<compile_context>
chip_gen: v6e
topology: v6e:2x2x1
jax: 0.10.0
libtpu: 0.0.40
codegen_flags: <defaults>
</compile_context>

<pallas_src>
import functools

import jax
import jax.numpy as jnp
from jax.experimental import pallas as pl
from jax.experimental.pallas import tpu as pltpu


# ----------------------------- tiling / limits -----------------------------

_ROW_TILE = 512        # 512-row tiles: ~85% of HBM roofline (vs ~63% at 256)


def _vmem_limit_bytes():
    # ~48 MiB on v7x (64 MiB physical), ~96 MiB on v5e/v6e (128 MiB physical).
    try:
        cap = pltpu.get_tpu_info().vmem_capacity_bytes
        return min(int(cap) * 3 // 4, 96 * 1024 * 1024)
    except Exception:
        return 48 * 1024 * 1024


_VMEM_LIMIT = _vmem_limit_bytes()


def _row_plan(m):
    """Return (row_tile, padded_rows).  Single full block if m fits one tile."""
    if m <= _ROW_TILE:
        return m, m
    mp = -(-m // _ROW_TILE) * _ROW_TILE
    return _ROW_TILE, mp


def _pad_rows(x, mp):
    m = x.shape[0]
    if m == mp:
        return x
    return jnp.pad(x, [(0, mp - m)] + [(0, 0)] * (x.ndim - 1))


def _slab(n_head, d_model):
    """d_k, real per-branch head width, 128-padded slab width, padded head count."""
    nh2 = n_head // 2
    dk = d_model // n_head
    hr = nh2 * dk
    s = -(-hr // 128) * 128
    # TODO(synk): the lane-padding scheme assumes d_k divides the 128-aligned slab
    # (true for d_model=128, n_head=4); generalize for d_k values like 42.
    assert s % dk == 0
    return dk, hr, s, s // dk


# ----------------------------- Pallas kernels -----------------------------

def _embed_kernel(x_ref, w_ref, b_ref, o_ref):
    # x: [tm, K] bf16, w: [K, D] bf16 (VMEM resident), b: [1, D] f32.
    y = jnp.dot(x_ref[...], w_ref[...], preferred_element_type=jnp.float32)
    o_ref[...] = (y + b_ref[...]).astype(o_ref.dtype)


def embed_linear(x, w, b):
    M, K = x.shape
    D = w.shape[1]
    tm, Mp = _row_plan(M)
    xp = _pad_rows(x, Mp)
    row = lambda i: (i, 0)
    rep = lambda i: (0, 0)
    out = pl.pallas_call(
        _embed_kernel,
        out_shape=jax.ShapeDtypeStruct((Mp, D), jnp.bfloat16),
        grid=(Mp // tm,),
        in_specs=[pl.BlockSpec((tm, K), row),
                  pl.BlockSpec((K, D), rep),
                  pl.BlockSpec((1, D), rep)],
        out_specs=pl.BlockSpec((tm, D), row),
        compiler_params=pltpu.CompilerParams(
            dimension_semantics=("parallel",), vmem_limit_bytes=_VMEM_LIMIT),
        cost_estimate=pl.CostEstimate(
            flops=2 * Mp * K * D, transcendentals=0,
            bytes_accessed=Mp * K * 2 + K * D * 2 + Mp * D * 2),
    )(xp, w, b)
    return out[:M] if Mp != M else out


def _ln_qkv_kernel(x_ref, g_ref, b_ref, w_ref, wb_ref, o_ref):
    # LayerNorm (f32 stats, eps=1e-5) fused with the single 768-wide QKV matmul
    # covering both branches (q-scale already folded into the weights).
    x = x_ref[...].astype(jnp.float32)
    mean = jnp.mean(x, axis=-1, keepdims=True)
    var = jnp.mean(jnp.square(x - mean), axis=-1, keepdims=True)
    xn = (x - mean) * jax.lax.rsqrt(var + 1e-5)
    xn = (xn * g_ref[...] + b_ref[...]).astype(jnp.bfloat16)
    y = jnp.dot(xn, w_ref[...], preferred_element_type=jnp.float32) + wb_ref[...]
    o_ref[...] = y.astype(o_ref.dtype)


def ln_qkv(x, g, b, w, wb_):
    M, D = x.shape
    Nq = w.shape[1]
    tm, Mp = _row_plan(M)
    xp = _pad_rows(x, Mp)
    row = lambda i: (i, 0)
    rep = lambda i: (0, 0)
    out = pl.pallas_call(
        _ln_qkv_kernel,
        out_shape=jax.ShapeDtypeStruct((Mp, Nq), jnp.bfloat16),
        grid=(Mp // tm,),
        in_specs=[pl.BlockSpec((tm, D), row),
                  pl.BlockSpec((1, D), rep),
                  pl.BlockSpec((1, D), rep),
                  pl.BlockSpec((D, Nq), rep),
                  pl.BlockSpec((1, Nq), rep)],
        out_specs=pl.BlockSpec((tm, Nq), row),
        compiler_params=pltpu.CompilerParams(
            dimension_semantics=("parallel",), vmem_limit_bytes=_VMEM_LIMIT),
        cost_estimate=pl.CostEstimate(
            flops=2 * Mp * D * Nq, transcendentals=Mp,
            bytes_accessed=Mp * D * 2 + D * Nq * 2 + Nq * 4 + Mp * Nq * 2),
    )(xp, g, b, w, wb_)
    return out[:M] if Mp != M else out


def _fact_attn_kernel(qkv_ref, t_ref, s_ref, *, hp, dk):
    # One batch element per grid step.  Both factorised branches, all heads
    # batched into one einsum each; q/k/v slices are 128-lane aligned; the
    # zero-padded ghost heads produce exact zeros.  Outputs written in token
    # order (no wrapper transposes needed).
    S = hp * dk
    x = qkv_ref[0]                                    # [n_t, n_hw, 6*S] bf16
    nt, ns = x.shape[0], x.shape[1]

    def branch(off, seq_axis):
        q = x[:, :, off:off + S].reshape(nt, ns, hp, dk)
        k = x[:, :, off + S:off + 2 * S].reshape(nt, ns, hp, dk)
        v = x[:, :, off + 2 * S:off + 3 * S].reshape(nt, ns, hp, dk)
        if seq_axis == 1:        # attend over n_hw, batch over (n_t, heads)
            perm, inv, g, n = (0, 2, 1, 3), (0, 2, 1, 3), nt, ns
        else:                    # attend over n_t, batch over (n_hw, heads)
            perm, inv, g, n = (1, 2, 0, 3), (2, 0, 1, 3), ns, nt
        qh = jnp.transpose(q, perm).reshape(g * hp, n, dk)
        kh = jnp.transpose(k, perm).reshape(g * hp, n, dk)
        vh = jnp.transpose(v, perm).reshape(g * hp, n, dk)
        # 1/sqrt(d_k) already folded into the q weights/biases at init time.
        sc = jnp.einsum('bqd,bkd->bqk', qh, kh,
                        preferred_element_type=jnp.float32)
        sc = sc - jnp.max(sc, axis=-1, keepdims=True)
        p = jnp.exp(sc)
        p = p * pl.reciprocal(jnp.sum(p, axis=-1, keepdims=True), approx=True)
        o = jnp.einsum('bqk,bkd->bqd', p.astype(jnp.bfloat16), vh,
                       preferred_element_type=jnp.float32)
        o = jnp.transpose(o.reshape(g, hp, n, dk), inv)       # token order
        return o.reshape(nt, ns, S).astype(jnp.bfloat16)

    t_ref[0] = branch(0, 1)          # "temporal" branch: w_qt/w_kt/w_vt
    s_ref[0] = branch(3 * S, 0)      # "spatial"  branch: w_qs/w_ks/w_vs


def factorised_attention(qkv, *, hp, dk):
    B, nt, ns, W6 = qkv.shape
    S = hp * dk
    kernel = functools.partial(_fact_attn_kernel, hp=hp, dk=dk)
    out_sd = jax.ShapeDtypeStruct((B, nt, ns, S), jnp.bfloat16)
    row4 = lambda i: (i, 0, 0, 0)
    flops = 4 * B * hp * dk * (nt * ns * ns + ns * nt * nt)
    return pl.pallas_call(
        kernel,
        out_shape=(out_sd, out_sd),
        grid=(B,),
        in_specs=[pl.BlockSpec((1, nt, ns, W6), row4)],
        out_specs=(pl.BlockSpec((1, nt, ns, S), row4),
                   pl.BlockSpec((1, nt, ns, S), row4)),
        compiler_params=pltpu.CompilerParams(
            dimension_semantics=("parallel",), vmem_limit_bytes=_VMEM_LIMIT),
        cost_estimate=pl.CostEstimate(
            flops=flops,
            transcendentals=B * hp * (nt * ns * ns + ns * nt * nt),
            bytes_accessed=B * nt * ns * (W6 + 2 * S) * 2),
    )(qkv)


def _proj_ln_ffn_kernel(t_ref, s_ref, tok_ref, pwt_ref, pws_ref, pb_ref,
                        g2_ref, b2_ref, w1_ref, c1_ref, w2_ref, c2_ref, o_ref):
    # split-weight projection -> +residual -> LN2 -> FFN(ReLU) -> +residual
    y = jnp.dot(t_ref[...], pwt_ref[...], preferred_element_type=jnp.float32)
    y = y + jnp.dot(s_ref[...], pws_ref[...], preferred_element_type=jnp.float32)
    y = y + pb_ref[...] + tok_ref[...].astype(jnp.float32)     # residual 1
    mean = jnp.mean(y, axis=-1, keepdims=True)
    var = jnp.mean(jnp.square(y - mean), axis=-1, keepdims=True)
    yn = (y - mean) * jax.lax.rsqrt(var + 1e-5)
    yn = (yn * g2_ref[...] + b2_ref[...]).astype(jnp.bfloat16)
    h = jnp.dot(yn, w1_ref[...], preferred_element_type=jnp.float32) + c1_ref[...]
    h = jnp.maximum(h, 0.0).astype(jnp.bfloat16)
    f = jnp.dot(h, w2_ref[...], preferred_element_type=jnp.float32) + c2_ref[...]
    o_ref[...] = (f + y).astype(o_ref.dtype)                   # residual 2


def proj_ln_ffn(t_out, s_out, tok, pwt, pws, pb, g2, b2, w1, c1, w2, c2):
    M, S = t_out.shape
    D = pwt.shape[1]
    Df = w1.shape[1]
    tm, Mp = _row_plan(M)
    t_p, s_p, tok_p = _pad_rows(t_out, Mp), _pad_rows(s_out, Mp), _pad_rows(tok, Mp)
    row = lambda i: (i, 0)
    rep = lambda i: (0, 0)
    out = pl.pallas_call(
        _proj_ln_ffn_kernel,
        out_shape=jax.ShapeDtypeStruct((Mp, D), jnp.bfloat16),
        grid=(Mp // tm,),
        in_specs=[
            pl.BlockSpec((tm, S), row),
            pl.BlockSpec((tm, S), row),
            pl.BlockSpec((tm, D), row),
            pl.BlockSpec((S, D), rep),
            pl.BlockSpec((S, D), rep),
            pl.BlockSpec((1, D), rep),
            pl.BlockSpec((1, D), rep),
            pl.BlockSpec((1, D), rep),
            pl.BlockSpec((D, Df), rep),
            pl.BlockSpec((1, Df), rep),
            pl.BlockSpec((Df, D), rep),
            pl.BlockSpec((1, D), rep),
        ],
        out_specs=pl.BlockSpec((tm, D), row),
        compiler_params=pltpu.CompilerParams(
            dimension_semantics=("parallel",), vmem_limit_bytes=_VMEM_LIMIT),
        cost_estimate=pl.CostEstimate(
            flops=4 * Mp * S * D + 4 * Mp * D * Df, transcendentals=Mp,
            bytes_accessed=(3 * Mp * S * 2 + Mp * D * 2
                            + (2 * S * D + 2 * D * Df) * 2)),
    )(t_p, s_p, tok_p, pwt, pws, pb, g2, b2, w1, c1, w2, c2)
    return out[:M] if Mp != M else out


def _head_kernel(x_ref, g_ref, b_ref, w_ref, hb_ref, o_ref):
    # mean over tokens -> LayerNorm -> classifier.
    x = x_ref[...].astype(jnp.float32)            # [B, N, d]
    t = jnp.mean(x, axis=1)                       # [B, d]
    mean = jnp.mean(t, axis=-1, keepdims=True)
    var = jnp.mean(jnp.square(t - mean), axis=-1, keepdims=True)
    tn = (t - mean) * jax.lax.rsqrt(var + 1e-5)
    tn = (tn * g_ref[...] + b_ref[...]).astype(jnp.bfloat16)
    y = jnp.dot(tn, w_ref[...], preferred_element_type=jnp.float32) + hb_ref[...]
    o_ref[...] = y


def pooled_head(tok3d, g, b, w, hb):
    # TODO(synk): fine at toy sizes; tile over B/N for production batch sizes.
    B, N, D = tok3d.shape
    C = w.shape[1]
    rep = lambda i: (0, 0)
    return pl.pallas_call(
        _head_kernel,
        out_shape=jax.ShapeDtypeStruct((B, C), jnp.float32),
        grid=(1,),
        in_specs=[pl.BlockSpec((B, N, D), lambda i: (0, 0, 0)),
                  pl.BlockSpec((1, D), rep),
                  pl.BlockSpec((1, D), rep),
                  pl.BlockSpec((D, C), rep),
                  pl.BlockSpec((1, C), rep)],
        out_specs=pl.BlockSpec((B, C), rep),
        compiler_params=pltpu.CompilerParams(
            dimension_semantics=("arbitrary",), vmem_limit_bytes=_VMEM_LIMIT),
        cost_estimate=pl.CostEstimate(
            flops=2 * B * D * C + B * N * D, transcendentals=B,
            bytes_accessed=B * N * D * 2 + D * C * 2 + B * C * 4),
    )(tok3d, g, b, w, hb)


# ----------------------------- model wrappers -----------------------------

def transformer_layer(tok2d, p, cfg):
    # tok2d: [b*N, d] bf16, token order (b, n_t, n_h, n_w).
    b_N, d = tok2d.shape
    n_t = cfg["n_t"]
    n_hw = cfg["n_h"] * cfg["n_w"]
    b = b_N // (n_t * n_hw)
    dk, _, S, hp = _slab(cfg["n_head"], d)

    qkv = ln_qkv(tok2d, p["ln1_g"], p["ln1_b"], p["wqkv"], p["bqkv"])   # [b*N, 6S]
    qkv = qkv.reshape(b, n_t, n_hw, 6 * S)                              # free reshape

    t_out, s_out = factorised_attention(qkv, hp=hp, dk=dk)              # token order
    t_out = t_out.reshape(b_N, S)
    s_out = s_out.reshape(b_N, S)

    return proj_ln_ffn(t_out, s_out, tok2d,
                       p["pwt"], p["pws"], p["proj_b"],
                       p["ln2_g"], p["ln2_b"],
                       p["ffc1_w"], p["ffc1_b"], p["ffc2_w"], p["ffc2_b"])


def vivit_forward(x, params, *, cfg):
    # x layout: [B, C=3, T, H, W] (PyTorch NCTHW input).
    b = x.shape[0]
    t, h, w = cfg["t"], cfg["h"], cfg["w"]
    n_t, n_h, n_w = cfg["n_t"], cfg["n_h"], cfg["n_w"]
    d = cfg["d_model"]
    N = n_t * n_h * n_w

    # 'b c (n_t t) (n_h h) (n_w w) -> b n_t n_h n_w (t h w c)'
    xb = x.reshape(b, 3, n_t, t, n_h, h, n_w, w)
    xb = jnp.transpose(xb, (0, 2, 4, 6, 3, 5, 7, 1))
    xb = xb.reshape(b * N, t * h * w * 3).astype(jnp.bfloat16)

    tok = embed_linear(xb, params["embed_w"], params["embed_b"])        # [b*N, d] bf16
    tok = (tok.reshape(b, N, d) + params["pos"]).reshape(b * N, d)

    for lp in params["layers"]:
        tok = transformer_layer(tok, lp, cfg)

    return pooled_head(tok.reshape(b, N, d),
                       params["head_ln_g"], params["head_ln_b"],
                       params["head_w"], params["head_b"])


# ----------------------------- params init -----------------------------

def init_params(key, cfg):
    d = cfg["d_model"]
    df = cfg["d_feature"]
    dk, hr, S, _ = _slab(cfg["n_head"], d)         # hr = (n_head//2)*d_k, S = 128-pad
    patch_dim = cfg["t"] * cfg["h"] * cfg["w"] * 3
    N = cfg["n_t"] * cfg["n_h"] * cfg["n_w"]
    C = cfg["num_classes"]
    q_scale = 1.0 / float(dk) ** 0.5               # folded into q weights/biases

    keys = iter(jax.random.split(key, 256))

    def wf(shape, scale=0.02):
        return jax.random.normal(next(keys), shape, jnp.float32) * scale

    def wb(shape, scale=0.02):
        return wf(shape, scale).astype(jnp.bfloat16)

    def qkv_fused():
        # columns: [q_t | k_t | v_t | q_s | k_s | v_s], each lane-padded hr -> S.
        def wslab(sc):
            return jnp.concatenate(
                [wf((d, hr)) * sc, jnp.zeros((d, S - hr), jnp.float32)], axis=1)

        def bslab(sc):
            return jnp.concatenate(
                [wf((1, hr)) * sc, jnp.zeros((1, S - hr), jnp.float32)], axis=1)

        w = jnp.concatenate([wslab(q_scale), wslab(1.0), wslab(1.0),
                             wslab(q_scale), wslab(1.0), wslab(1.0)], axis=1)
        bvec = jnp.concatenate([bslab(q_scale), bslab(1.0), bslab(1.0),
                                bslab(q_scale), bslab(1.0), bslab(1.0)], axis=1)
        return w.astype(jnp.bfloat16), bvec

    def proj_split():
        # nn.Linear(d, d) split by input rows (temporal half / spatial half),
        # each zero-row-padded to S so it matches the lane-padded attn outputs.
        pw = wf((2 * hr, d))
        pad = jnp.zeros((S - hr, d), jnp.float32)
        pwt = jnp.concatenate([pw[:hr], pad], axis=0)
        pws = jnp.concatenate([pw[hr:], pad], axis=0)
        return pwt.astype(jnp.bfloat16), pws.astype(jnp.bfloat16)

    params = {
        "embed_w": wb((patch_dim, d)),
        "embed_b": wf((1, d)),
        "pos": wf((1, N, d)).astype(jnp.bfloat16),
        "head_ln_g": jnp.ones((1, d), jnp.float32),
        "head_ln_b": jnp.zeros((1, d), jnp.float32),
        "head_w": wb((d, C)),
        "head_b": wf((1, C)),
        "layers": [],
    }
    for _ in range(cfg["n_layer"]):
        wq, bq = qkv_fused()
        pwt, pws = proj_split()
        params["layers"].append({
            "ln1_g": jnp.ones((1, d), jnp.float32),
            "ln1_b": jnp.zeros((1, d), jnp.float32),
            "ln2_g": jnp.ones((1, d), jnp.float32),
            "ln2_b": jnp.zeros((1, d), jnp.float32),
            "wqkv": wq, "bqkv": bq,
            "pwt": pwt, "pws": pws, "proj_b": wf((1, d)),
            "ffc1_w": wb((d, df)), "ffc1_b": wf((1, df)),
            "ffc2_w": wb((df, d)), "ffc2_b": wf((1, d)),
        })
    return params


# ----------------------------- main -----------------------------

if __name__ == "__main__":
    cfg = dict(
        num_classes=10,
        size=(32, 32),
        frame_per_clip=4,
        t=2, h=16, w=16,
        n_head=4,
        n_layer=2,
        d_model=128,
        d_feature=256,
    )
    cfg["n_t"] = cfg["frame_per_clip"] // cfg["t"]   # 2
    cfg["n_h"] = cfg["size"][0] // cfg["h"]          # 2
    cfg["n_w"] = cfg["size"][1] // cfg["w"]          # 2

    params = init_params(jax.random.PRNGKey(0), cfg)
    x = jax.random.normal(
        jax.random.PRNGKey(0),
        (2, 3, cfg["frame_per_clip"], cfg["size"][0], cfg["size"][1]),
        jnp.float32,
    )

    fwd = jax.jit(functools.partial(vivit_forward, cfg=cfg))
    logits = fwd(x, params)
    jax.block_until_ready(logits)
    assert logits.shape == (2, cfg["num_classes"])
    assert bool(jnp.all(jnp.isfinite(logits)))
    print("KERNEL_OK")
</pallas_src>

<mosaic_0001>
module attributes {stable_mosaic.version = 11 : i64} {
  func.func @_embed_kernel(%arg0: i32, %arg1: memref<16x1536xbf16, #tpu.memory_space<vmem>>, %arg2: memref<1536x128xbf16, #tpu.memory_space<vmem>>, %arg3: memref<1x128xf32, #tpu.memory_space<vmem>>, %arg4: memref<16x128xbf16, #tpu.memory_space<vmem>>) attributes {dimension_semantics = [#tpu.dimension_semantics<parallel>], iteration_bounds = array<i64: 1>, scalar_prefetch = 0 : i64, scratch_operands = 0 : i64, tpu.core_type = #tpu.core_type<tc>, window_params = [{transform_indices = @transform_0, window_bounds = array<i64: 16, 1536>}, {pipeline_mode = #tpu.pipeline_mode<synchronous>, transform_indices = @transform_1, window_bounds = array<i64: 1536, 128>}, {pipeline_mode = #tpu.pipeline_mode<synchronous>, transform_indices = @transform_2, window_bounds = array<i64: 1, 128>}, {transform_indices = @transform_3, window_bounds = array<i64: 16, 128>}]} {
    %c0 = arith.constant 0 : index
    %c0_0 = arith.constant 0 : index
    %0 = vector.load %arg1[%c0, %c0_0] : memref<16x1536xbf16, #tpu.memory_space<vmem>>, vector<16x1536xbf16>
    %c0_1 = arith.constant 0 : index
    %c0_2 = arith.constant 0 : index
    %1 = vector.load %arg2[%c0_1, %c0_2] : memref<1536x128xbf16, #tpu.memory_space<vmem>>, vector<1536x128xbf16>
    %cst = arith.constant dense<0.000000e+00> : vector<16x128xf32>
    %2 = tpu.matmul %0, %1, %cst {dimension_numbers = #tpu.dot_dimension_numbers<[1], [0], [0], [1], [0, 0, 1, 1], [], []>} : vector<16x1536xbf16>, vector<1536x128xbf16>, vector<16x128xf32> -> vector<16x128xf32>
    %c0_3 = arith.constant 0 : index
    %c0_4 = arith.constant 0 : index
    %3 = vector.load %arg3[%c0_3, %c0_4] : memref<1x128xf32, #tpu.memory_space<vmem>>, vector<1x128xf32>
    %4 = vector.broadcast %3 : vector<1x128xf32> to vector<16x128xf32>
    %5 = arith.addf %2, %4 : vector<16x128xf32>
    %6 = arith.truncf %5 : vector<16x128xf32> to vector<16x128xbf16>
    %c0_5 = arith.constant 0 : index
    %c0_6 = arith.constant 0 : index
    %7 = vector.load %arg4[%c0_5, %c0_6] : memref<16x128xbf16, #tpu.memory_space<vmem>>, vector<16x128xbf16>
    tpu.vector_store %arg4[%c0_5, %c0_6], %6 {strides = array<i32>} : memref<16x128xbf16, #tpu.memory_space<vmem>>, vector<16x128xbf16>,
    return
  }
  func.func @transform_0(%arg0: i32) -> (i32, i32) {
    %c0_i32 = arith.constant 0 : i32
    %c0_i32_0 = arith.constant 0 : i32
    return %arg0, %c0_i32 : i32, i32
  }
  func.func @transform_1(%arg0: i32) -> (i32, i32) {
    %c0_i32 = arith.constant 0 : i32
    %c0_i32_0 = arith.constant 0 : i32
    %c0_i32_1 = arith.constant 0 : i32
    return %c0_i32, %c0_i32_0 : i32, i32
  }
  func.func @transform_2(%arg0: i32) -> (i32, i32) {
    %c0_i32 = arith.constant 0 : i32
    %c0_i32_0 = arith.constant 0 : i32
    %c0_i32_1 = arith.constant 0 : i32
    return %c0_i32, %c0_i32_0 : i32, i32
  }
  func.func @transform_3(%arg0: i32) -> (i32, i32) {
    %c0_i32 = arith.constant 0 : i32
    %c0_i32_0 = arith.constant 0 : i32
    return %arg0, %c0_i32 : i32, i32
  }
}

module attributes {stable_mosaic.version = 11 : i64} {
  func.func @_ln_qkv_kernel(%arg0: i32, %arg1: memref<16x128xbf16, #tpu.memory_space<vmem>>, %arg2: memref<1x128xf32, #tpu.memory_space<vmem>>, %arg3: memref<1x128xf32, #tpu.memory_space<vmem>>, %arg4: memref<128x768xbf16, #tpu.memory_space<vmem>>, %arg5: memref<1x768xf32, #tpu.memory_space<vmem>>, %arg6: memref<16x768xbf16, #tpu.memory_space<vmem>>) attributes {dimension_semantics = [#tpu.dimension_semantics<parallel>], iteration_bounds = array<i64: 1>, scalar_prefetch = 0 : i64, scratch_operands = 0 : i64, tpu.core_type = #tpu.core_type<tc>, window_params = [{transform_indices = @transform_0, window_bounds = array<i64: 16, 128>}, {pipeline_mode = #tpu.pipeline_mode<synchronous>, transform_indices = @transform_1, window_bounds = array<i64: 1, 128>}, {pipeline_mode = #tpu.pipeline_mode<synchronous>, transform_indices = @transform_2, window_bounds = array<i64: 1, 128>}, {pipeline_mode = #tpu.pipeline_mode<synchronous>, transform_indices = @transform_3, window_bounds = array<i64: 128, 768>}, {pipeline_mode = #tpu.pipeline_mode<synchronous>, transform_indices = @transform_4, window_bounds = array<i64: 1, 768>}, {transform_indices = @transform_5, window_bounds = array<i64: 16, 768>}]} {
    %c0 = arith.constant 0 : index
    %c0_0 = arith.constant 0 : index
    %0 = vector.load %arg1[%c0, %c0_0] : memref<16x128xbf16, #tpu.memory_space<vmem>>, vector<16x128xbf16>
    %1 = arith.extf %0 : vector<16x128xbf16> to vector<16x128xf32>
    %cst = arith.constant dense<0.000000e+00> : vector<16xf32>
    %2 = vector.multi_reduction <add>, %1, %cst [1] : vector<16x128xf32> to vector<16xf32>
    %3 = vector.shape_cast %2 : vector<16xf32> to vector<16x1xf32>
    %cst_1 = arith.constant 1.280000e+02 : f32
    %4 = vector.broadcast %cst_1 : f32 to vector<16x1xf32>
    %5 = arith.divf %3, %4 : vector<16x1xf32>
    %6 = vector.broadcast %5 : vector<16x1xf32> to vector<16x128xf32>
    %7 = arith.subf %1, %6 : vector<16x128xf32>
    %8 = arith.mulf %7, %7 : vector<16x128xf32>
    %cst_2 = arith.constant dense<0.000000e+00> : vector<16xf32>
    %9 = vector.multi_reduction <add>, %8, %cst_2 [1] : vector<16x128xf32> to vector<16xf32>
    %10 = vector.shape_cast %9 : vector<16xf32> to vector<16x1xf32>
    %cst_3 = arith.constant 1.280000e+02 : f32
    %11 = vector.broadcast %cst_3 : f32 to vector<16x1xf32>
    %12 = arith.divf %10, %11 : vector<16x1xf32>
    %13 = vector.broadcast %5 : vector<16x1xf32> to vector<16x128xf32>
    %14 = arith.subf %1, %13 : vector<16x128xf32>
    %cst_4 = arith.constant 9.99999974E-6 : f32
    %15 = vector.broadcast %cst_4 : f32 to vector<16x1xf32>
    %16 = arith.addf %12, %15 : vector<16x1xf32>
    %17 = math.rsqrt %16 : vector<16x1xf32>
    %18 = vector.broadcast %17 : vector<16x1xf32> to vector<16x128xf32>
    %19 = arith.mulf %14, %18 : vector<16x128xf32>
    %c0_5 = arith.constant 0 : index
    %c0_6 = arith.constant 0 : index
    %20 = vector.load %arg2[%c0_5, %c0_6] : memref<1x128xf32, #tpu.memory_space<vmem>>, vector<1x128xf32>
    %21 = vector.broadcast %20 : vector<1x128xf32> to vector<16x128xf32>
    %22 = arith.mulf %19, %21 : vector<16x128xf32>
    %c0_7 = arith.constant 0 : index
    %c0_8 = arith.constant 0 : index
    %23 = vector.load %arg3[%c0_7, %c0_8] : memref<1x128xf32, #tpu.memory_space<vmem>>, vector<1x128xf32>
    %24 = vector.broadcast %23 : vector<1x128xf32> to vector<16x128xf32>
    %25 = arith.addf %22, %24 : vector<16x128xf32>
    %26 = arith.truncf %25 : vector<16x128xf32> to vector<16x128xbf16>
    %c0_9 = arith.constant 0 : index
    %c0_10 = arith.constant 0 : index
    %27 = vector.load %arg4[%c0_9, %c0_10] : memref<128x768xbf16, #tpu.memory_space<vmem>>, vector<128x768xbf16>
    %cst_11 = arith.constant dense<0.000000e+00> : vector<16x768xf32>
    %28 = tpu.matmul %26, %27, %cst_11 {dimension_numbers = #tpu.dot_dimension_numbers<[1], [0], [0], [1], [0, 0, 1, 1], [], []>} : vector<16x128xbf16>, vector<128x768xbf16>, vector<16x768xf32> -> vector<16x768xf32>
    %c0_12 = arith.constant 0 : index
    %c0_13 = arith.constant 0 : index
    %29 = vector.load %arg5[%c0_12, %c0_13] : memref<1x768xf32, #tpu.memory_space<vmem>>, vector<1x768xf32>
    %30 = vector.broadcast %29 : vector<1x768xf32> to vector<16x768xf32>
    %31 = arith.addf %28, %30 : vector<16x768xf32>
    %32 = arith.truncf %31 : vector<16x768xf32> to vector<16x768xbf16>
    %c0_14 = arith.constant 0 : index
    %c0_15 = arith.constant 0 : index
    %33 = vector.load %arg6[%c0_14, %c0_15] : memref<16x768xbf16, #tpu.memory_space<vmem>>, vector<16x768xbf16>
    tpu.vector_store %arg6[%c0_14, %c0_15], %32 {strides = array<i32>} : memref<16x768xbf16, #tpu.memory_space<vmem>>, vector<16x768xbf16>,
    return
  }
  func.func @transform_0(%arg0: i32) -> (i32, i32) {
    %c0_i32 = arith.constant 0 : i32
    %c0_i32_0 = arith.constant 0 : i32
    return %arg0, %c0_i32 : i32, i32
  }
  func.func @transform_1(%arg0: i32) -> (i32, i32) {
    %c0_i32 = arith.constant 0 : i32
    %c0_i32_0 = arith.constant 0 : i32
    %c0_i32_1 = arith.constant 0 : i32
    return %c0_i32, %c0_i32_0 : i32, i32
  }
  func.func @transform_2(%arg0: i32) -> (i32, i32) {
    %c0_i32 = arith.constant 0 : i32
    %c0_i32_0 = arith.constant 0 : i32
    %c0_i32_1 = arith.constant 0 : i32
    return %c0_i32, %c0_i32_0 : i32, i32
  }
  func.func @transform_3(%arg0: i32) -> (i32, i32) {
    %c0_i32 = arith.constant 0 : i32
    %c0_i32_0 = arith.constant 0 : i32
    %c0_i32_1 = arith.constant 0 : i32
    return %c0_i32, %c0_i32_0 : i32, i32
  }
  func.func @transform_4(%arg0: i32) -> (i32, i32) {
    %c0_i32 = arith.constant 0 : i32
    %c0_i32_0 = arith.constant 0 : i32
    %c0_i32_1 = arith.constant 0 : i32
    return %c0_i32, %c0_i32_0 : i32, i32
  }
  func.func @transform_5(%arg0: i32) -> (i32, i32) {
    %c0_i32 = arith.constant 0 : i32
    %c0_i32_0 = arith.constant 0 : i32
    return %arg0, %c0_i32 : i32, i32
  }
}

module attributes {stable_mosaic.version = 11 : i64} {
  func.func @_proj_ln_ffn_kernel(%arg0: i32, %arg1: memref<16x128xbf16, #tpu.memory_space<vmem>>, %arg2: memref<16x128xbf16, #tpu.memory_space<vmem>>, %arg3: memref<16x128xbf16, #tpu.memory_space<vmem>>, %arg4: memref<128x128xbf16, #tpu.memory_space<vmem>>, %arg5: memref<128x128xbf16, #tpu.memory_space<vmem>>, %arg6: memref<1x128xf32, #tpu.memory_space<vmem>>, %arg7: memref<1x128xf32, #tpu.memory_space<vmem>>, %arg8: memref<1x128xf32, #tpu.memory_space<vmem>>, %arg9: memref<128x256xbf16, #tpu.memory_space<vmem>>, %arg10: memref<1x256xf32, #tpu.memory_space<vmem>>, %arg11: memref<256x128xbf16, #tpu.memory_space<vmem>>, %arg12: memref<1x128xf32, #tpu.memory_space<vmem>>, %arg13: memref<16x128xbf16, #tpu.memory_space<vmem>>) attributes {dimension_semantics = [#tpu.dimension_semantics<parallel>], iteration_bounds = array<i64: 1>, scalar_prefetch = 0 : i64, scratch_operands = 0 : i64, tpu.core_type = #tpu.core_type<tc>, window_params = [{transform_indices = @transform_0, window_bounds = array<i64: 16, 128>}, {transform_indices = @transform_1, window_bounds = array<i64: 16, 128>}, {transform_indices = @transform_2, window_bounds = array<i64: 16, 128>}, {pipeline_mode = #tpu.pipeline_mode<synchronous>, transform_indices = @transform_3, window_bounds = array<i64: 128, 128>}, {pipeline_mode = #tpu.pipeline_mode<synchronous>, transform_indices = @transform_4, window_bounds = array<i64: 128, 128>}, {pipeline_mode = #tpu.pipeline_mode<synchronous>, transform_indices = @transform_5, window_bounds = array<i64: 1, 128>}, {pipeline_mode = #tpu.pipeline_mode<synchronous>, transform_indices = @transform_6, window_bounds = array<i64: 1, 128>}, {pipeline_mode = #tpu.pipeline_mode<synchronous>, transform_indices = @transform_7, window_bounds = array<i64: 1, 128>}, {pipeline_mode = #tpu.pipeline_mode<synchronous>, transform_indices = @transform_8, window_bounds = array<i64: 128, 256>}, {pipeline_mode = #tpu.pipeline_mode<synchronous>, transform_indices = @transform_9, window_bounds = array<i64: 1, 256>}, {pipeline_mode = #tpu.pipeline_mode<synchronous>, transform_indices = @transform_10, window_bounds = array<i64: 256, 128>}, {pipeline_mode = #tpu.pipeline_mode<synchronous>, transform_indices = @transform_11, window_bounds = array<i64: 1, 128>}, {transform_indices = @transform_12, window_bounds = array<i64: 16, 128>}]} {
    %c0 = arith.constant 0 : index
    %c0_0 = arith.constant 0 : index
    %0 = vector.load %arg1[%c0, %c0_0] : memref<16x128xbf16, #tpu.memory_space<vmem>>, vector<16x128xbf16>
    %c0_1 = arith.constant 0 : index
    %c0_2 = arith.constant 0 : index
    %1 = vector.load %arg4[%c0_1, %c0_2] : memref<128x128xbf16, #tpu.memory_space<vmem>>, vector<128x128xbf16>
    %cst = arith.constant dense<0.000000e+00> : vector<16x128xf32>
    %2 = tpu.matmul %0, %1, %cst {dimension_numbers = #tpu.dot_dimension_numbers<[1], [0], [0], [1], [0, 0, 1, 1], [], []>} : vector<16x128xbf16>, vector<128x128xbf16>, vector<16x128xf32> -> vector<16x128xf32>
    %c0_3 = arith.constant 0 : index
    %c0_4 = arith.constant 0 : index
    %3 = vector.load %arg2[%c0_3, %c0_4] : memref<16x128xbf16, #tpu.memory_space<vmem>>, vector<16x128xbf16>
    %c0_5 = arith.constant 0 : index
    %c0_6 = arith.constant 0 : index
    %4 = vector.load %arg5[%c0_5, %c0_6] : memref<128x128xbf16, #tpu.memory_space<vmem>>, vector<128x128xbf16>
    %cst_7 = arith.constant dense<0.000000e+00> : vector<16x128xf32>
    %5 = tpu.matmul %3, %4, %cst_7 {dimension_numbers = #tpu.dot_dimension_numbers<[1], [0], [0], [1], [0, 0, 1, 1], [], []>} : vector<16x128xbf16>, vector<128x128xbf16>, vector<16x128xf32> -> vector<16x128xf32>
    %6 = arith.addf %2, %5 : vector<16x128xf32>
    %c0_8 = arith.constant 0 : index
    %c0_9 = arith.constant 0 : index
    %7 = vector.load %arg6[%c0_8, %c0_9] : memref<1x128xf32, #tpu.memory_space<vmem>>, vector<1x128xf32>
    %8 = vector.broadcast %7 : vector<1x128xf32> to vector<16x128xf32>
    %9 = arith.addf %6, %8 : vector<16x128xf32>
    %c0_10 = arith.constant 0 : index
    %c0_11 = arith.constant 0 : index
    %10 = vector.load %arg3[%c0_10, %c0_11] : memref<16x128xbf16, #tpu.memory_space<vmem>>, vector<16x128xbf16>
    %11 = arith.extf %10 : vector<16x128xbf16> to vector<16x128xf32>
    %12 = arith.addf %9, %11 : vector<16x128xf32>
    %cst_12 = arith.constant dense<0.000000e+00> : vector<16xf32>
    %13 = vector.multi_reduction <add>, %12, %cst_12 [1] : vector<16x128xf32> to vector<16xf32>
    %14 = vector.shape_cast %13 : vector<16xf32> to vector<16x1xf32>
    %cst_13 = arith.constant 1.280000e+02 : f32
    %15 = vector.broadcast %cst_13 : f32 to vector<16x1xf32>
    %16 = arith.divf %14, %15 : vector<16x1xf32>
    %17 = vector.broadcast %16 : vector<16x1xf32> to vector<16x128xf32>
    %18 = arith.subf %12, %17 : vector<16x128xf32>
    %19 = arith.mulf %18, %18 : vector<16x128xf32>
    %cst_14 = arith.constant dense<0.000000e+00> : vector<16xf32>
    %20 = vector.multi_reduction <add>, %19, %cst_14 [1] : vector<16x128xf32> to vector<16xf32>
    %21 = vector.shape_cast %20 : vector<16xf32> to vector<16x1xf32>
    %cst_15 = arith.constant 1.280000e+02 : f32
    %22 = vector.broadcast %cst_15 : f32 to vector<16x1xf32>
    %23 = arith.divf %21, %22 : vector<16x1xf32>
    %24 = vector.broadcast %16 : vector<16x1xf32> to vector<16x128xf32>
    %25 = arith.subf %12, %24 : vector<16x128xf32>
    %cst_16 = arith.constant 9.99999974E-6 : f32
    %26 = vector.broadcast %cst_16 : f32 to vector<16x1xf32>
    %27 = arith.addf %23, %26 : vector<16x1xf32>
    %28 = math.rsqrt %27 : vector<16x1xf32>
    %29 = vector.broadcast %28 : vector<16x1xf32> to vector<16x128xf32>
    %30 = arith.mulf %25, %29 : vector<16x128xf32>
    %c0_17 = arith.constant 0 : index
    %c0_18 = arith.constant 0 : index
    %31 = vector.load %arg7[%c0_17, %c0_18] : memref<1x128xf32, #tpu.memory_space<vmem>>, vector<1x128xf32>
    %32 = vector.broadcast %31 : vector<1x128xf32> to vector<16x128xf32>
    %33 = arith.mulf %30, %32 : vector<16x128xf32>
    %c0_19 = arith.constant 0 : index
    %c0_20 = arith.constant 0 : index
    %34 = vector.load %arg8[%c0_19, %c0_20] : memref<1x128xf32, #tpu.memory_space<vmem>>, vector<1x128xf32>
    %35 = vector.broadcast %34 : vector<1x128xf32> to vector<16x128xf32>
    %36 = arith.addf %33, %35 : vector<16x128xf32>
    %37 = arith.truncf %36 : vector<16x128xf32> to vector<16x128xbf16>
    %c0_21 = arith.constant 0 : index
    %c0_22 = arith.constant 0 : index
    %38 = vector.load %arg9[%c0_21, %c0_22] : memref<128x256xbf16, #tpu.memory_space<vmem>>, vector<128x256xbf16>
    %cst_23 = arith.constant dense<0.000000e+00> : vector<16x256xf32>
    %39 = tpu.matmul %37, %38, %cst_23 {dimension_numbers = #tpu.dot_dimension_numbers<[1], [0], [0], [1], [0, 0, 1, 1], [], []>} : vector<16x128xbf16>, vector<128x256xbf16>, vector<16x256xf32> -> vector<16x256xf32>
    %c0_24 = arith.constant 0 : index
    %c0_25 = arith.constant 0 : index
    %40 = vector.load %arg10[%c0_24, %c0_25] : memref<1x256xf32, #tpu.memory_space<vmem>>, vector<1x256xf32>
    %41 = vector.broadcast %40 : vector<1x256xf32> to vector<16x256xf32>
    %42 = arith.addf %39, %41 : vector<16x256xf32>
    %cst_26 = arith.constant 0.000000e+00 : f32
    %43 = vector.broadcast %cst_26 : f32 to vector<16x256xf32>
    %44 = arith.maximumf %42, %43 : vector<16x256xf32>
    %45 = arith.truncf %44 : vector<16x256xf32> to vector<16x256xbf16>
    %c0_27 = arith.constant 0 : index
    %c0_28 = arith.constant 0 : index
    %46 = vector.load %arg11[%c0_27, %c0_28] : memref<256x128xbf16, #tpu.memory_space<vmem>>, vector<256x128xbf16>
    %cst_29 = arith.constant dense<0.000000e+00> : vector<16x128xf32>
    %47 = tpu.matmul %45, %46, %cst_29 {dimension_numbers = #tpu.dot_dimension_numbers<[1], [0], [0], [1], [0, 0, 1, 1], [], []>} : vector<16x256xbf16>, vector<256x128xbf16>, vector<16x128xf32> -> vector<16x128xf32>
    %c0_30 = arith.constant 0 : index
    %c0_31 = arith.constant 0 : index
    %48 = vector.load %arg12[%c0_30, %c0_31] : memref<1x128xf32, #tpu.memory_space<vmem>>, vector<1x128xf32>
    %49 = vector.broadcast %48 : vector<1x128xf32> to vector<16x128xf32>
    %50 = arith.addf %47, %49 : vector<16x128xf32>
    %51 = arith.addf %50, %12 : vector<16x128xf32>
    %52 = arith.truncf %51 : vector<16x128xf32> to vector<16x128xbf16>
    %c0_32 = arith.constant 0 : index
    %c0_33 = arith.constant 0 : index
    %53 = vector.load %arg13[%c0_32, %c0_33] : memref<16x128xbf16, #tpu.memory_space<vmem>>, vector<16x128xbf16>
    tpu.vector_store %arg13[%c0_32, %c0_33], %52 {strides = array<i32>} : memref<16x128xbf16, #tpu.memory_space<vmem>>, vector<16x128xbf16>,
    return
  }
  func.func @transform_0(%arg0: i32) -> (i32, i32) {
    %c0_i32 = arith.constant 0 : i32
    %c0_i32_0 = arith.constant 0 : i32
    return %arg0, %c0_i32 : i32, i32
  }
  func.func @transform_1(%arg0: i32) -> (i32, i32) {
    %c0_i32 = arith.constant 0 : i32
    %c0_i32_0 = arith.constant 0 : i32
    return %arg0, %c0_i32 : i32, i32
  }
  func.func @transform_2(%arg0: i32) -> (i32, i32) {
    %c0_i32 = arith.constant 0 : i32
    %c0_i32_0 = arith.constant 0 : i32
    return %arg0, %c0_i32 : i32, i32
  }
  func.func @transform_3(%arg0: i32) -> (i32, i32) {
    %c0_i32 = arith.constant 0 : i32
    %c0_i32_0 = arith.constant 0 : i32
    %c0_i32_1 = arith.constant 0 : i32
    return %c0_i32, %c0_i32_0 : i32, i32
  }
  func.func @transform_4(%arg0: i32) -> (i32, i32) {
    %c0_i32 = arith.constant 0 : i32
    %c0_i32_0 = arith.constant 0 : i32
    %c0_i32_1 = arith.constant 0 : i32
    return %c0_i32, %c0_i32_0 : i32, i32
  }
  func.func @transform_5(%arg0: i32) -> (i32, i32) {
    %c0_i32 = arith.constant 0 : i32
    %c0_i32_0 = arith.constant 0 : i32
    %c0_i32_1 = arith.constant 0 : i32
    return %c0_i32, %c0_i32_0 : i32, i32
  }
  func.func @transform_6(%arg0: i32) -> (i32, i32) {
    %c0_i32 = arith.constant 0 : i32
    %c0_i32_0 = arith.constant 0 : i32
    %c0_i32_1 = arith.constant 0 : i32
    return %c0_i32, %c0_i32_0 : i32, i32
  }
  func.func @transform_7(%arg0: i32) -> (i32, i32) {
    %c0_i32 = arith.constant 0 : i32
    %c0_i32_0 = arith.constant 0 : i32
    %c0_i32_1 = arith.constant 0 : i32
    return %c0_i32, %c0_i32_0 : i32, i32
  }
  func.func @transform_8(%arg0: i32) -> (i32, i32) {
    %c0_i32 = arith.constant 0 : i32
    %c0_i32_0 = arith.constant 0 : i32
    %c0_i32_1 = arith.constant 0 : i32
    return %c0_i32, %c0_i32_0 : i32, i32
  }
  func.func @transform_9(%arg0: i32) -> (i32, i32) {
    %c0_i32 = arith.constant 0 : i32
    %c0_i32_0 = arith.constant 0 : i32
    %c0_i32_1 = arith.constant 0 : i32
    return %c0_i32, %c0_i32_0 : i32, i32
  }
  func.func @transform_10(%arg0: i32) -> (i32, i32) {
    %c0_i32 = arith.constant 0 : i32
    %c0_i32_0 = arith.constant 0 : i32
    %c0_i32_1 = arith.constant 0 : i32
    return %c0_i32, %c0_i32_0 : i32, i32
  }
  func.func @transform_11(%arg0: i32) -> (i32, i32) {
    %c0_i32 = arith.constant 0 : i32
    %c0_i32_0 = arith.constant 0 : i32
    %c0_i32_1 = arith.constant 0 : i32
    return %c0_i32, %c0_i32_0 : i32, i32
  }
  func.func @transform_12(%arg0: i32) -> (i32, i32) {
    %c0_i32 = arith.constant 0 : i32
    %c0_i32_0 = arith.constant 0 : i32
    return %arg0, %c0_i32 : i32, i32
  }
}

module attributes {stable_mosaic.version = 11 : i64} {
  func.func @_head_kernel(%arg0: i32, %arg1: memref<2x8x128xbf16, #tpu.memory_space<vmem>>, %arg2: memref<1x128xf32, #tpu.memory_space<vmem>>, %arg3: memref<1x128xf32, #tpu.memory_space<vmem>>, %arg4: memref<128x10xbf16, #tpu.memory_space<vmem>>, %arg5: memref<1x10xf32, #tpu.memory_space<vmem>>, %arg6: memref<2x10xf32, #tpu.memory_space<vmem>>) attributes {dimension_semantics = [#tpu.dimension_semantics<arbitrary>], iteration_bounds = array<i64: 1>, scalar_prefetch = 0 : i64, scratch_operands = 0 : i64, tpu.core_type = #tpu.core_type<tc>, window_params = [{pipeline_mode = #tpu.pipeline_mode<synchronous>, transform_indices = @transform_0, window_bounds = array<i64: 2, 8, 128>}, {pipeline_mode = #tpu.pipeline_mode<synchronous>, transform_indices = @transform_1, window_bounds = array<i64: 1, 128>}, {pipeline_mode = #tpu.pipeline_mode<synchronous>, transform_indices = @transform_2, window_bounds = array<i64: 1, 128>}, {pipeline_mode = #tpu.pipeline_mode<synchronous>, transform_indices = @transform_3, window_bounds = array<i64: 128, 10>}, {pipeline_mode = #tpu.pipeline_mode<synchronous>, transform_indices = @transform_4, window_bounds = array<i64: 1, 10>}, {pipeline_mode = #tpu.pipeline_mode<synchronous>, transform_indices = @transform_5, window_bounds = array<i64: 2, 10>}]} {
    %c0 = arith.constant 0 : index
    %c0_0 = arith.constant 0 : index
    %c0_1 = arith.constant 0 : index
    %0 = vector.load %arg1[%c0, %c0_0, %c0_1] : memref<2x8x128xbf16, #tpu.memory_space<vmem>>, vector<2x8x128xbf16>
    %1 = arith.extf %0 : vector<2x8x128xbf16> to vector<2x8x128xf32>
    %cst = arith.constant dense<0.000000e+00> : vector<2x128xf32>
    %2 = vector.multi_reduction <add>, %1, %cst [1] : vector<2x8x128xf32> to vector<2x128xf32>
    %cst_2 = arith.constant 8.000000e+00 : f32
    %3 = vector.broadcast %cst_2 : f32 to vector<2x128xf32>
    %4 = arith.divf %2, %3 : vector<2x128xf32>
    %cst_3 = arith.constant dense<0.000000e+00> : vector<2xf32>
    %5 = vector.multi_reduction <add>, %4, %cst_3 [1] : vector<2x128xf32> to vector<2xf32>
    %6 = vector.shape_cast %5 : vector<2xf32> to vector<2x1xf32>
    %cst_4 = arith.constant 1.280000e+02 : f32
    %7 = vector.broadcast %cst_4 : f32 to vector<2x1xf32>
    %8 = arith.divf %6, %7 : vector<2x1xf32>
    %9 = vector.broadcast %8 : vector<2x1xf32> to vector<2x128xf32>
    %10 = arith.subf %4, %9 : vector<2x128xf32>
    %11 = arith.mulf %10, %10 : vector<2x128xf32>
    %cst_5 = arith.constant dense<0.000000e+00> : vector<2xf32>
    %12 = vector.multi_reduction <add>, %11, %cst_5 [1] : vector<2x128xf32> to vector<2xf32>
    %13 = vector.shape_cast %12 : vector<2xf32> to vector<2x1xf32>
    %cst_6 = arith.constant 1.280000e+02 : f32
    %14 = vector.broadcast %cst_6 : f32 to vector<2x1xf32>
    %15 = arith.divf %13, %14 : vector<2x1xf32>
    %16 = vector.broadcast %8 : vector<2x1xf32> to vector<2x128xf32>
    %17 = arith.subf %4, %16 : vector<2x128xf32>
    %cst_7 = arith.constant 9.99999974E-6 : f32
    %18 = vector.broadcast %cst_7 : f32 to vector<2x1xf32>
    %19 = arith.addf %15, %18 : vector<2x1xf32>
    %20 = math.rsqrt %19 : vector<2x1xf32>
    %21 = vector.broadcast %20 : vector<2x1xf32> to vector<2x128xf32>
    %22 = arith.mulf %17, %21 : vector<2x128xf32>
    %c0_8 = arith.constant 0 : index
    %c0_9 = arith.constant 0 : index
    %23 = vector.load %arg2[%c0_8, %c0_9] : memref<1x128xf32, #tpu.memory_space<vmem>>, vector<1x128xf32>
    %24 = vector.broadcast %23 : vector<1x128xf32> to vector<2x128xf32>
    %25 = arith.mulf %22, %24 : vector<2x128xf32>
    %c0_10 = arith.constant 0 : index
    %c0_11 = arith.constant 0 : index
    %26 = vector.load %arg3[%c0_10, %c0_11] : memref<1x128xf32, #tpu.memory_space<vmem>>, vector<1x128xf32>
    %27 = vector.broadcast %26 : vector<1x128xf32> to vector<2x128xf32>
    %28 = arith.addf %25, %27 : vector<2x128xf32>
    %29 = arith.truncf %28 : vector<2x128xf32> to vector<2x128xbf16>
    %c0_12 = arith.constant 0 : index
    %c0_13 = arith.constant 0 : index
    %30 = vector.load %arg4[%c0_12, %c0_13] : memref<128x10xbf16, #tpu.memory_space<vmem>>, vector<128x10xbf16>
    %cst_14 = arith.constant dense<0.000000e+00> : vector<2x10xf32>
    %31 = tpu.matmul %29, %30, %cst_14 {dimension_numbers = #tpu.dot_dimension_numbers<[1], [0], [0], [1], [0, 0, 1, 1], [], []>} : vector<2x128xbf16>, vector<128x10xbf16>, vector<2x10xf32> -> vector<2x10xf32>
    %c0_15 = arith.constant 0 : index
    %c0_16 = arith.constant 0 : index
    %32 = vector.load %arg5[%c0_15, %c0_16] : memref<1x10xf32, #tpu.memory_space<vmem>>, vector<1x10xf32>
    %33 = vector.broadcast %32 : vector<1x10xf32> to vector<2x10xf32>
    %34 = arith.addf %31, %33 : vector<2x10xf32>
    %c0_17 = arith.constant 0 : index
    %c0_18 = arith.constant 0 : index
    %35 = vector.load %arg6[%c0_17, %c0_18] : memref<2x10xf32, #tpu.memory_space<vmem>>, vector<2x10xf32>
    tpu.vector_store %arg6[%c0_17, %c0_18], %34 {strides = array<i32>} : memref<2x10xf32, #tpu.memory_space<vmem>>, vector<2x10xf32>,
    return
  }
  func.func @transform_0(%arg0: i32) -> (i32, i32, i32) {
    %c0_i32 = arith.constant 0 : i32
    %c0_i32_0 = arith.constant 0 : i32
    %c0_i32_1 = arith.constant 0 : i32
    %c0_i32_2 = arith.constant 0 : i32
    return %c0_i32, %c0_i32_0, %c0_i32_1 : i32, i32, i32
  }
  func.func @transform_1(%arg0: i32) -> (i32, i32) {
    %c0_i32 = arith.constant 0 : i32
    %c0_i32_0 = arith.constant 0 : i32
    %c0_i32_1 = arith.constant 0 : i32
    return %c0_i32, %c0_i32_0 : i32, i32
  }
  func.func @transform_2(%arg0: i32) -> (i32, i32) {
    %c0_i32 = arith.constant 0 : i32
    %c0_i32_0 = arith.constant 0 : i32
    %c0_i32_1 = arith.constant 0 : i32
    return %c0_i32, %c0_i32_0 : i32, i32
  }
  func.func @transform_3(%arg0: i32) -> (i32, i32) {
    %c0_i32 = arith.constant 0 : i32
    %c0_i32_0 = arith.constant 0 : i32
    %c0_i32_1 = arith.constant 0 : i32
    return %c0_i32, %c0_i32_0 : i32, i32
  }
  func.func @transform_4(%arg0: i32) -> (i32, i32) {
    %c0_i32 = arith.constant 0 : i32
    %c0_i32_0 = arith.constant 0 : i32
    %c0_i32_1 = arith.constant 0 : i32
    return %c0_i32, %c0_i32_0 : i32, i32
  }
  func.func @transform_5(%arg0: i32) -> (i32, i32) {
    %c0_i32 = arith.constant 0 : i32
    %c0_i32_0 = arith.constant 0 : i32
    %c0_i32_1 = arith.constant 0 : i32
    return %c0_i32, %c0_i32_0 : i32, i32
  }
}

module attributes {stable_mosaic.version = 11 : i64} {
  func.func @_fact_attn_kernel(%arg0: i32, %arg1: memref<1x2x4x768xbf16, #tpu.memory_space<vmem>>, %arg2: memref<1x2x4x128xbf16, #tpu.memory_space<vmem>>, %arg3: memref<1x2x4x128xbf16, #tpu.memory_space<vmem>>) attributes {dimension_semantics = [#tpu.dimension_semantics<parallel>], iteration_bounds = array<i64: 2>, scalar_prefetch = 0 : i64, scratch_operands = 0 : i64, tpu.core_type = #tpu.core_type<tc>, window_params = [{transform_indices = @transform_0, window_bounds = array<i64: 1, 2, 4, 768>}, {transform_indices = @transform_1, window_bounds = array<i64: 1, 2, 4, 128>}, {transform_indices = @transform_2, window_bounds = array<i64: 1, 2, 4, 128>}]} {
    %c0 = arith.constant 0 : index
    %c0_0 = arith.constant 0 : index
    %c0_1 = arith.constant 0 : index
    %c0_2 = arith.constant 0 : index
    %0 = vector.load %arg1[%c0, %c0_0, %c0_1, %c0_2] : memref<1x2x4x768xbf16, #tpu.memory_space<vmem>>, vector<1x2x4x768xbf16>
    %1 = vector.shape_cast %0 : vector<1x2x4x768xbf16> to vector<2x4x768xbf16>
    %2 = vector.extract_strided_slice %1 {offsets = [0, 0, 0], sizes = [2, 4, 128], strides = [1, 1, 1]} : vector<2x4x768xbf16> to vector<2x4x128xbf16>
    %3 = vector.shape_cast %2 : vector<2x4x128xbf16> to vector<2x4x4x32xbf16>
    %4 = vector.extract_strided_slice %1 {offsets = [0, 0, 128], sizes = [2, 4, 128], strides = [1, 1, 1]} : vector<2x4x768xbf16> to vector<2x4x128xbf16>
    %5 = vector.shape_cast %4 : vector<2x4x128xbf16> to vector<2x4x4x32xbf16>
    %6 = vector.extract_strided_slice %1 {offsets = [0, 0, 256], sizes = [2, 4, 128], strides = [1, 1, 1]} : vector<2x4x768xbf16> to vector<2x4x128xbf16>
    %7 = vector.shape_cast %6 : vector<2x4x128xbf16> to vector<2x4x4x32xbf16>
    %8 = tpu.transpose %3, [0, 2, 1, 3] : vector<2x4x4x32xbf16> -> vector<2x4x4x32xbf16>
    %9 = vector.shape_cast %8 : vector<2x4x4x32xbf16> to vector<8x4x32xbf16>
    %10 = tpu.transpose %5, [0, 2, 1, 3] : vector<2x4x4x32xbf16> -> vector<2x4x4x32xbf16>
    %11 = vector.shape_cast %10 : vector<2x4x4x32xbf16> to vector<8x4x32xbf16>
    %12 = tpu.transpose %7, [0, 2, 1, 3] : vector<2x4x4x32xbf16> -> vector<2x4x4x32xbf16>
    %13 = vector.shape_cast %12 : vector<2x4x4x32xbf16> to vector<8x4x32xbf16>
    "tpu.trace_start"() <{level = 10 : i32, message = "bqd,bkd->bqk"}> : () -> ()
    %cst = arith.constant dense<0.000000e+00> : vector<8x4x4xf32>
    %14 = tpu.matmul %9, %11, %cst {dimension_numbers = #tpu.dot_dimension_numbers<[2], [2], [1], [1], [0, 0, 0, 1, 1, 1], [0], [0]>} : vector<8x4x32xbf16>, vector<8x4x32xbf16>, vector<8x4x4xf32> -> vector<8x4x4xf32>
    "tpu.trace_stop"() : () -> ()
    %cst_3 = arith.constant dense<0xFF800000> : vector<8x4xf32>
    %15 = vector.multi_reduction <maximumf>, %14, %cst_3 [2] : vector<8x4x4xf32> to vector<8x4xf32>
    %16 = vector.shape_cast %15 : vector<8x4xf32> to vector<8x4x1xf32>
    %17 = vector.broadcast %16 : vector<8x4x1xf32> to vector<8x4x4xf32>
    %18 = arith.subf %14, %17 : vector<8x4x4xf32>
    %19 = math.exp %18 : vector<8x4x4xf32>
    %cst_4 = arith.constant dense<0.000000e+00> : vector<8x4xf32>
    %20 = vector.multi_reduction <add>, %19, %cst_4 [2] : vector<8x4x4xf32> to vector<8x4xf32>
    %21 = vector.shape_cast %20 : vector<8x4xf32> to vector<8x4x1xf32>
    %22 = tpu.reciprocal %21 {approx = true} : vector<8x4x1xf32> -> vector<8x4x1xf32>
    %23 = vector.broadcast %22 : vector<8x4x1xf32> to vector<8x4x4xf32>
    %24 = arith.mulf %19, %23 : vector<8x4x4xf32>
    %25 = arith.truncf %24 : vector<8x4x4xf32> to vector<8x4x4xbf16>
    "tpu.trace_start"() <{level = 10 : i32, message = "bqk,bkd->bqd"}> : () -> ()
    %cst_5 = arith.constant dense<0.000000e+00> : vector<8x4x32xf32>
    %26 = tpu.matmul %25, %13, %cst_5 {dimension_numbers = #tpu.dot_dimension_numbers<[2], [1], [1], [2], [0, 0, 0, 1, 1, 2], [0], [0]>} : vector<8x4x4xbf16>, vector<8x4x32xbf16>, vector<8x4x32xf32> -> vector<8x4x32xf32>
    "tpu.trace_stop"() : () -> ()
    %27 = vector.shape_cast %26 : vector<8x4x32xf32> to vector<2x4x4x32xf32>
    %28 = tpu.transpose %27, [0, 2, 1, 3] : vector<2x4x4x32xf32> -> vector<2x4x4x32xf32>
    %29 = vector.shape_cast %28 : vector<2x4x4x32xf32> to vector<2x4x128xf32>
    %30 = arith.truncf %29 : vector<2x4x128xf32> to vector<2x4x128xbf16>
    %c0_6 = arith.constant 0 : index
    %c0_7 = arith.constant 0 : index
    %c0_8 = arith.constant 0 : index
    %c0_9 = arith.constant 0 : index
    %31 = vector.load %arg2[%c0_6, %c0_7, %c0_8, %c0_9] : memref<1x2x4x128xbf16, #tpu.memory_space<vmem>>, vector<1x2x4x128xbf16>
    %32 = vector.shape_cast %31 : vector<1x2x4x128xbf16> to vector<2x4x128xbf16>
    %33 = vector.shape_cast %30 : vector<2x4x128xbf16> to vector<1x2x4x128xbf16>
    tpu.vector_store %arg2[%c0_6, %c0_7, %c0_8, %c0_9], %33 {strides = array<i32>} : memref<1x2x4x128xbf16, #tpu.memory_space<vmem>>, vector<1x2x4x128xbf16>,
    %34 = vector.extract_strided_slice %1 {offsets = [0, 0, 384], sizes = [2, 4, 128], strides = [1, 1, 1]} : vector<2x4x768xbf16> to vector<2x4x128xbf16>
    %35 = vector.shape_cast %34 : vector<2x4x128xbf16> to vector<2x4x4x32xbf16>
    %36 = vector.extract_strided_slice %1 {offsets = [0, 0, 512], sizes = [2, 4, 128], strides = [1, 1, 1]} : vector<2x4x768xbf16> to vector<2x4x128xbf16>
    %37 = vector.shape_cast %36 : vector<2x4x128xbf16> to vector<2x4x4x32xbf16>
    %38 = vector.extract_strided_slice %1 {offsets = [0, 0, 640], sizes = [2, 4, 128], strides = [1, 1, 1]} : vector<2x4x768xbf16> to vector<2x4x128xbf16>
    %39 = vector.shape_cast %38 : vector<2x4x128xbf16> to vector<2x4x4x32xbf16>
    %40 = tpu.transpose %35, [1, 2, 0, 3] : vector<2x4x4x32xbf16> -> vector<4x4x2x32xbf16>
    %41 = vector.shape_cast %40 : vector<4x4x2x32xbf16> to vector<16x2x32xbf16>
    %42 = tpu.transpose %37, [1, 2, 0, 3] : vector<2x4x4x32xbf16> -> vector<4x4x2x32xbf16>
    %43 = vector.shape_cast %42 : vector<4x4x2x32xbf16> to vector<16x2x32xbf16>
    %44 = tpu.transpose %39, [1, 2, 0, 3] : vector<2x4x4x32xbf16> -> vector<4x4x2x32xbf16>
    %45 = vector.shape_cast %44 : vector<4x4x2x32xbf16> to vector<16x2x32xbf16>
    "tpu.trace_start"() <{level = 10 : i32, message = "bqd,bkd->bqk"}> : () -> ()
    %cst_10 = arith.constant dense<0.000000e+00> : vector<16x2x2xf32>
    %46 = tpu.matmul %41, %43, %cst_10 {dimension_numbers = #tpu.dot_dimension_numbers<[2], [2], [1], [1], [0, 0, 0, 1, 1, 1], [0], [0]>} : vector<16x2x32xbf16>, vector<16x2x32xbf16>, vector<16x2x2xf32> -> vector<16x2x2xf32>
    "tpu.trace_stop"() : () -> ()
    %cst_11 = arith.constant dense<0xFF800000> : vector<16x2xf32>
    %47 = vector.multi_reduction <maximumf>, %46, %cst_11 [2] : vector<16x2x2xf32> to vector<16x2xf32>
    %48 = vector.shape_cast %47 : vector<16x2xf32> to vector<16x2x1xf32>
    %49 = vector.broadcast %48 : vector<16x2x1xf32> to vector<16x2x2xf32>
    %50 = arith.subf %46, %49 : vector<16x2x2xf32>
    %51 = math.exp %50 : vector<16x2x2xf32>
    %cst_12 = arith.constant dense<0.000000e+00> : vector<16x2xf32>
    %52 = vector.multi_reduction <add>, %51, %cst_12 [2] : vector<16x2x2xf32> to vector<16x2xf32>
    %53 = vector.shape_cast %52 : vector<16x2xf32> to vector<16x2x1xf32>
    %54 = tpu.reciprocal %53 {approx = true} : vector<16x2x1xf32> -> vector<16x2x1xf32>
    %55 = vector.broadcast %54 : vector<16x2x1xf32> to vector<16x2x2xf32>
    %56 = arith.mulf %51, %55 : vector<16x2x2xf32>
    %57 = arith.truncf %56 : vector<16x2x2xf32> to vector<16x2x2xbf16>
    "tpu.trace_start"() <{level = 10 : i32, message = "bqk,bkd->bqd"}> : () -> ()
    %cst_13 = arith.constant dense<0.000000e+00> : vector<16x2x32xf32>
    %58 = tpu.matmul %57, %45, %cst_13 {dimension_numbers = #tpu.dot_dimension_numbers<[2], [1], [1], [2], [0, 0, 0, 1, 1, 2], [0], [0]>} : vector<16x2x2xbf16>, vector<16x2x32xbf16>, vector<16x2x32xf32> -> vector<16x2x32xf32>
    "tpu.trace_stop"() : () -> ()
    %59 = vector.shape_cast %58 : vector<16x2x32xf32> to vector<4x4x2x32xf32>
    %60 = tpu.transpose %59, [2, 0, 1, 3] : vector<4x4x2x32xf32> -> vector<2x4x4x32xf32>
    %61 = vector.shape_cast %60 : vector<2x4x4x32xf32> to vector<2x4x128xf32>
    %62 = arith.truncf %61 : vector<2x4x128xf32> to vector<2x4x128xbf16>
    %c0_14 = arith.constant 0 : index
    %c0_15 = arith.constant 0 : index
    %c0_16 = arith.constant 0 : index
    %c0_17 = arith.constant 0 : index
    %63 = vector.load %arg3[%c0_14, %c0_15, %c0_16, %c0_17] : memref<1x2x4x128xbf16, #tpu.memory_space<vmem>>, vector<1x2x4x128xbf16>
    %64 = vector.shape_cast %63 : vector<1x2x4x128xbf16> to vector<2x4x128xbf16>
    %65 = vector.shape_cast %62 : vector<2x4x128xbf16> to vector<1x2x4x128xbf16>
    tpu.vector_store %arg3[%c0_14, %c0_15, %c0_16, %c0_17], %65 {strides = array<i32>} : memref<1x2x4x128xbf16, #tpu.memory_space<vmem>>, vector<1x2x4x128xbf16>,
    return
  }
  func.func @transform_0(%arg0: i32) -> (i32, i32, i32, i32) {
    %c0_i32 = arith.constant 0 : i32
    %c0_i32_0 = arith.constant 0 : i32
    %c0_i32_1 = arith.constant 0 : i32
    %c0_i32_2 = arith.constant 0 : i32
    return %arg0, %c0_i32, %c0_i32_0, %c0_i32_1 : i32, i32, i32, i32
  }
  func.func @transform_1(%arg0: i32) -> (i32, i32, i32, i32) {
    %c0_i32 = arith.constant 0 : i32
    %c0_i32_0 = arith.constant 0 : i32
    %c0_i32_1 = arith.constant 0 : i32
    %c0_i32_2 = arith.constant 0 : i32
    return %arg0, %c0_i32, %c0_i32_0, %c0_i32_1 : i32, i32, i32, i32
  }
  func.func @transform_2(%arg0: i32) -> (i32, i32, i32, i32) {
    %c0_i32 = arith.constant 0 : i32
    %c0_i32_0 = arith.constant 0 : i32
    %c0_i32_1 = arith.constant 0 : i32
    %c0_i32_2 = arith.constant 0 : i32
    return %arg0, %c0_i32, %c0_i32_0, %c0_i32_1 : i32, i32, i32, i32
  }
}

</mosaic_0001>

<llo_original>
// kernel: vivit_forward.9
$region0: #{vivit_forward.9}
  #allocation0 [shape = 'u32[]', space=smem, size = 0x4, offset = 0x4, fixed_abs, tag = 'smem constant byte address 0x4 - core index']
  #allocation1 [shape = 'u32[144,128]{1,0:T(1,128)}', space=vmem, size = 0x12000, scoped, tag = 'internal scratch']
  %s0 = inlined_call_operand.vmem [shape: bf16[16,128], index: 0, kind: input, shape index: {}]
  %s1 = inlined_call_operand.vmem [shape: f32[1,128], index: 1, kind: input, shape index: {}]
  %s2 = inlined_call_operand.vmem [shape: f32[1,128], index: 2, kind: input, shape index: {}]
  %s3 = inlined_call_operand.vmem [shape: bf16[128,768], index: 3, kind: input, shape index: {}]
  %s4 = inlined_call_operand.vmem [shape: f32[1,768], index: 4, kind: input, shape index: {}]
  %s5 = inlined_call_operand.vmem [shape: bf16[16,768], index: 5, kind: output, shape index: {}]
  %s6 = sld [smem:[#allocation0]]
  $region30: #{vivit_forward.9} parent=0
    _
  %s8 = ssub.s32 1, %s6
  %s9 = scalar_select 0, %s8, %s6
  // Predicated region
  $region2: #{vivit_forward.9} parent=0 // pred_check
    _
  $region3: #{vivit_forward.9} parent=0 // pred_check_branch
    %11 = sbr.rel (0) target = $region5
  $region4: #{vivit_forward.9} parent=0 // pred_region
    _
  $region5: #{vivit_forward.9} parent=0 // pred_fallthru
    _
  // Predicated region
  $region6: #{vivit_forward.9} parent=0 // pred_check
    _
  $region7: #{vivit_forward.9} parent=0 // pred_check_branch
    %13 = sbr.rel (0) target = $region9
  $region8: #{vivit_forward.9} parent=0 // pred_region
    _
  $region9: #{vivit_forward.9} parent=0 // pred_fallthru
    _
  // Predicated region
  $region10: #{vivit_forward.9} parent=0 // pred_check
    _
  $region11: #{vivit_forward.9} parent=0 // pred_check_branch
    %15 = sbr.rel (0) target = $region13
  $region12: #{vivit_forward.9} parent=0 // pred_region
    _
  $region13: #{vivit_forward.9} parent=0 // pred_fallthru
    _
  // Predicated region
  $region14: #{vivit_forward.9} parent=0 // pred_check
    _
  $region15: #{vivit_forward.9} parent=0 // pred_check_branch
    %17 = sbr.rel (0) target = $region17
  $region16: #{vivit_forward.9} parent=0 // pred_region
    _
  $region17: #{vivit_forward.9} parent=0 // pred_fallthru
    _
  // Predicated region
  $region18: #{vivit_forward.9} parent=0 // pred_check
    _
  $region19: #{vivit_forward.9} parent=0 // pred_check_branch
    %19 = sbr.rel (0) target = $region21
  $region20: #{vivit_forward.9} parent=0 // pred_region
    _
  $region21: #{vivit_forward.9} parent=0 // pred_fallthru
    _
  %v21 = vld [vmem:[%s0] sm:$0xf]
  %v22 = vld [vmem:[%s0 + $0x4] sm:$0xf]
  %v23 = vunpack.c.l.bf16 %v21
  %v24 = vunpack.c.l.bf16 %v22
  %25 = vadd.xlane.f32.xlu0 %v23
  %v26 = vpop.xlane.xlu0 %25
  %27 = vadd.xlane.f32.xlu0 %v24
  %v28 = vpop.xlane.xlu0 %27
  %v29 = vrcp.pop 128.0
  %v30 = vmul.f32 %v26, %v29
  %v31 = vmul.f32 %v28, %v29
  %v32 = vsub.f32 %v23, %v30
  %v33 = vsub.f32 %v24, %v31
  %v34 = vmul.f32 %v32, %v32
  %v35 = vmul.f32 %v33, %v33
  %36 = vadd.xlane.f32.xlu0 %v34
  %v37 = vpop.xlane.xlu0 %36
  %38 = vadd.xlane.f32.xlu0 %v35
  %v39 = vpop.xlane.xlu0 %38
  %v40 = vmul.f32 %v37, %v29
  %v41 = vmul.f32 %v39, %v29
  %v42 = vadd.f32 %v40, 1e-05
  %v43 = vadd.f32 %v41, 1e-05
  %v44 = vrsqrt.pop %v42
  %v45 = vrsqrt.pop %v43
  %v46 = vmul.f32 %v32, %v44
  %v47 = vmul.f32 %v33, %v45
  %v48 = vld [vmem:[%s1] sm:$0x1]
  %v50 = vlaneseq
  %v51 = vshrl.u32 %v50, 7
  %v52 = vsub.s32 0, %v51
  %v53 = vrot.slane %v48, %v52
  %v55 = vmul.f32 %v46, %v53
  %v56 = vmul.f32 %v47, %v53
  %v57 = vld [vmem:[%s2] sm:$0x1]
  %v59 = vlaneseq
  %v60 = vshrl.u32 %v59, 7
  %v61 = vsub.s32 0, %v60
  %v62 = vrot.slane %v57, %v61
  %v64 = vadd.f32 %v55, %v62
  %v65 = vadd.f32 %v56, %v62
  %v66 = vpack.c.bf16 %v65, %v64
  %v67 = vld [vmem:[%s3] sm:$0xff]
  %v68 = vld [vmem:[%s3 + $0x8] sm:$0xff]
  %v69 = vld [vmem:[%s3 + $0x10] sm:$0xff]
  %v70 = vld [vmem:[%s3 + $0x18] sm:$0xff]
  %v71 = vld [vmem:[%s3 + $0x20] sm:$0xff]
  %v72 = vld [vmem:[%s3 + $0x28] sm:$0xff]
  %v73 = vld [vmem:[%s3 + $0x30] sm:$0xff]
  %v74 = vld [vmem:[%s3 + $0x38] sm:$0xff]
  %v75 = vld [vmem:[%s3 + $0x40] sm:$0xff]
  %v76 = vld [vmem:[%s3 + $0x48] sm:$0xff]
  %v77 = vld [vmem:[%s3 + $0x50] sm:$0xff]
  %v78 = vld [vmem:[%s3 + $0x58] sm:$0xff]
  %v79 = vld [vmem:[%s3 + $0x60] sm:$0xff]
  %v80 = vld [vmem:[%s3 + $0x68] sm:$0xff]
  %v81 = vld [vmem:[%s3 + $0x70] sm:$0xff]
  %v82 = vld [vmem:[%s3 + $0x78] sm:$0xff]
  %v83 = vld [vmem:[%s3 + $0x80] sm:$0xff]
  %v84 = vld [vmem:[%s3 + $0x88] sm:$0xff]
  %v85 = vld [vmem:[%s3 + $0x90] sm:$0xff]
  %v86 = vld [vmem:[%s3 + $0x98] sm:$0xff]
  %v87 = vld [vmem:[%s3 + $0xa0] sm:$0xff]
  %v88 = vld [vmem:[%s3 + $0xa8] sm:$0xff]
  %v89 = vld [vmem:[%s3 + $0xb0] sm:$0xff]
  %v90 = vld [vmem:[%s3 + $0xb8] sm:$0xff]
  %v91 = vld [vmem:[%s3 + $0xc0] sm:$0xff]
  %v92 = vld [vmem:[%s3 + $0xc8] sm:$0xff]
  %v93 = vld [vmem:[%s3 + $0xd0] sm:$0xff]
  %v94 = vld [vmem:[%s3 + $0xd8] sm:$0xff]
  %v95 = vld [vmem:[%s3 + $0xe0] sm:$0xff]
  %v96 = vld [vmem:[%s3 + $0xe8] sm:$0xff]
  %v97 = vld [vmem:[%s3 + $0xf0] sm:$0xff]
  %v98 = vld [vmem:[%s3 + $0xf8] sm:$0xff]
  %v99 = vld [vmem:[%s3 + $0x100] sm:$0xff]
  %v100 = vld [vmem:[%s3 + $0x108] sm:$0xff]
  %v101 = vld [vmem:[%s3 + $0x110] sm:$0xff]
  %v102 = vld [vmem:[%s3 + $0x118] sm:$0xff]
  %v103 = vld [vmem:[%s3 + $0x120] sm:$0xff]
  %v104 = vld [vmem:[%s3 + $0x128] sm:$0xff]
  %v105 = vld [vmem:[%s3 + $0x130] sm:$0xff]
  %v106 = vld [vmem:[%s3 + $0x138] sm:$0xff]
  %v107 = vld [vmem:[%s3 + $0x140] sm:$0xff]
  %v108 = vld [vmem:[%s3 + $0x148] sm:$0xff]
  %v109 = vld [vmem:[%s3 + $0x150] sm:$0xff]
  %v110 = vld [vmem:[%s3 + $0x158] sm:$0xff]
  %v111 = vld [vmem:[%s3 + $0x160] sm:$0xff]
  %v112 = vld [vmem:[%s3 + $0x168] sm:$0xff]
  %v113 = vld [vmem:[%s3 + $0x170] sm:$0xff]
  %v114 = vld [vmem:[%s3 + $0x178] sm:$0xff]
  %v115 = vld [vmem:[%s4] sm:$0x3f]
  %v117 = vlaneseq
  %v118 = vshrl.u32 %v117, 7
  %v119 = vsub.s32 0, %v118
  %v120 = vrot.slane %v115, %v119
  %v121 = vlaneseq
  %v122 = vshrl.u32 %v121, 7
  %v123 = vsub.s32 1, %v122
  %v124 = vrot.slane %v115, %v123
  %v125 = vlaneseq
  %v126 = vshrl.u32 %v125, 7
  %v127 = vsub.s32 2, %v126
  %v128 = vrot.slane %v115, %v127
  %v129 = vlaneseq
  %v130 = vshrl.u32 %v129, 7
  %v131 = vsub.s32 3, %v130
  %v132 = vrot.slane %v115, %v131
  %v133 = vlaneseq
  %v134 = vshrl.u32 %v133, 7
  %v135 = vsub.s32 4, %v134
  %v136 = vrot.slane %v115, %v135
  %v137 = vlaneseq
  %v138 = vshrl.u32 %v137, 7
  %v139 = vsub.s32 5, %v138
  %v140 = vrot.slane %v115, %v139
  %v195 = vunpack.c.l.b16 %v67
  %v196 = vunpack.c.h.b16 %v67
  %v197 = vunpack.c.l.b16 %v68
  %v198 = vunpack.c.h.b16 %v68
  %v199 = vunpack.c.l.b16 %v69
  %v200 = vunpack.c.h.b16 %v69
  %v201 = vunpack.c.l.b16 %v70
  %v202 = vunpack.c.h.b16 %v70
  %v203 = vunpack.c.l.b16 %v71
  %v204 = vunpack.c.h.b16 %v71
  %v205 = vunpack.c.l.b16 %v72
  %v206 = vunpack.c.h.b16 %v72
  %v207 = vunpack.c.l.b16 %v73
  %v208 = vunpack.c.h.b16 %v73
  %v209 = vunpack.c.l.b16 %v74
  %v210 = vunpack.c.h.b16 %v74
  %v211 = vunpack.c.l.b16 %v75
  %v212 = vunpack.c.h.b16 %v75
  %v213 = vunpack.c.l.b16 %v76
  %v214 = vunpack.c.h.b16 %v76
  %v215 = vunpack.c.l.b16 %v77
  %v216 = vunpack.c.h.b16 %v77
  %v217 = vunpack.c.l.b16 %v78
  %v218 = vunpack.c.h.b16 %v78
  %v219 = vunpack.c.l.b16 %v79
  %v220 = vunpack.c.h.b16 %v79
  %v221 = vunpack.c.l.b16 %v80
  %v222 = vunpack.c.h.b16 %v80
  %v223 = vunpack.c.l.b16 %v81
  %v224 = vunpack.c.h.b16 %v81
  %v225 = vunpack.c.l.b16 %v82
  %v226 = vunpack.c.h.b16 %v82
  %v227 = vunpack.c.l.b16 %v83
  %v228 = vunpack.c.h.b16 %v83
  %v229 = vunpack.c.l.b16 %v84
  %v230 = vunpack.c.h.b16 %v84
  %v231 = vunpack.c.l.b16 %v85
  %v232 = vunpack.c.h.b16 %v85
  %v233 = vunpack.c.l.b16 %v86
  %v234 = vunpack.c.h.b16 %v86
  %v235 = vunpack.c.l.b16 %v87
  %v236 = vunpack.c.h.b16 %v87
  %v237 = vunpack.c.l.b16 %v88
  %v238 = vunpack.c.h.b16 %v88
  %v239 = vunpack.c.l.b16 %v89
  %v240 = vunpack.c.h.b16 %v89
  %v241 = vunpack.c.l.b16 %v90
  %v242 = vunpack.c.h.b16 %v90
  %v243 = vunpack.c.l.b16 %v91
  %v244 = vunpack.c.h.b16 %v91
  %v245 = vunpack.c.l.b16 %v92
  %v246 = vunpack.c.h.b16 %v92
  %v247 = vunpack.c.l.b16 %v93
  %v248 = vunpack.c.h.b16 %v93
  %v249 = vunpack.c.l.b16 %v94
  %v250 = vunpack.c.h.b16 %v94
  %v251 = vunpack.c.l.b16 %v95
  %v252 = vunpack.c.h.b16 %v95
  %v253 = vunpack.c.l.b16 %v96
  %v254 = vunpack.c.h.b16 %v96
  %v255 = vunpack.c.l.b16 %v97
  %v256 = vunpack.c.h.b16 %v97
  %v257 = vunpack.c.l.b16 %v98
  %v258 = vunpack.c.h.b16 %v98
  %v259 = vunpack.c.l.b16 %v99
  %v260 = vunpack.c.h.b16 %v99
  %v261 = vunpack.c.l.b16 %v100
  %v262 = vunpack.c.h.b16 %v100
  %v263 = vunpack.c.l.b16 %v101
  %v264 = vunpack.c.h.b16 %v101
  %v265 = vunpack.c.l.b16 %v102
  %v266 = vunpack.c.h.b16 %v102
  %v267 = vunpack.c.l.b16 %v103
  %v268 = vunpack.c.h.b16 %v103
  %v269 = vunpack.c.l.b16 %v104
  %v270 = vunpack.c.h.b16 %v104
  %v271 = vunpack.c.l.b16 %v105
  %v272 = vunpack.c.h.b16 %v105
  %v273 = vunpack.c.l.b16 %v106
  %v274 = vunpack.c.h.b16 %v106
  %v275 = vunpack.c.l.b16 %v107
  %v276 = vunpack.c.h.b16 %v107
  %v277 = vunpack.c.l.b16 %v108
  %v278 = vunpack.c.h.b16 %v108
  %v279 = vunpack.c.l.b16 %v109
  %v280 = vunpack.c.h.b16 %v109
  %v281 = vunpack.c.l.b16 %v110
  %v282 = vunpack.c.h.b16 %v110
  %v283 = vunpack.c.l.b16 %v111
  %v284 = vunpack.c.h.b16 %v111
  %v285 = vunpack.c.l.b16 %v112
  %v286 = vunpack.c.h.b16 %v112
  %v287 = vunpack.c.l.b16 %v113
  %v288 = vunpack.c.h.b16 %v113
  %v289 = vunpack.c.l.b16 %v114
  %v290 = vunpack.c.h.b16 %v114
  %v291 = vpack.c.b16 %v201, %v195
  %v292 = vpack.c.b16 %v202, %v196
  %v293 = vpack.c.b16 %v203, %v197
  %v294 = vpack.c.b16 %v204, %v198
  %v295 = vpack.c.b16 %v205, %v199
  %v296 = vpack.c.b16 %v206, %v200
  %v297 = vpack.c.b16 %v213, %v207
  %v298 = vpack.c.b16 %v214, %v208
  %v299 = vpack.c.b16 %v215, %v209
  %v300 = vpack.c.b16 %v216, %v210
  %v301 = vpack.c.b16 %v217, %v211
  %v302 = vpack.c.b16 %v218, %v212
  %v303 = vpack.c.b16 %v225, %v219
  %v304 = vpack.c.b16 %v226, %v220
  %v305 = vpack.c.b16 %v227, %v221
  %v306 = vpack.c.b16 %v228, %v222
  %v307 = vpack.c.b16 %v229, %v223
  %v308 = vpack.c.b16 %v230, %v224
  %v309 = vpack.c.b16 %v237, %v231
  %v310 = vpack.c.b16 %v238, %v232
  %v311 = vpack.c.b16 %v239, %v233
  %v312 = vpack.c.b16 %v240, %v234
  %v313 = vpack.c.b16 %v241, %v235
  %v314 = vpack.c.b16 %v242, %v236
  %v315 = vpack.c.b16 %v249, %v243
  %v316 = vpack.c.b16 %v250, %v244
  %v317 = vpack.c.b16 %v251, %v245
  %v318 = vpack.c.b16 %v252, %v246
  %v319 = vpack.c.b16 %v253, %v247
  %v320 = vpack.c.b16 %v254, %v248
  %v321 = vpack.c.b16 %v261, %v255
  %v322 = vpack.c.b16 %v262, %v256
  %v323 = vpack.c.b16 %v263, %v257
  %v324 = vpack.c.b16 %v264, %v258
  %v325 = vpack.c.b16 %v265, %v259
  %v326 = vpack.c.b16 %v266, %v260
  %v327 = vpack.c.b16 %v273, %v267
  %v328 = vpack.c.b16 %v274, %v268
  %v329 = vpack.c.b16 %v275, %v269
  %v330 = vpack.c.b16 %v276, %v270
  %v331 = vpack.c.b16 %v277, %v271
  %v332 = vpack.c.b16 %v278, %v272
  %v333 = vpack.c.b16 %v285, %v279
  %v334 = vpack.c.b16 %v286, %v280
  %v335 = vpack.c.b16 %v287, %v281
  %v336 = vpack.c.b16 %v288, %v282
  %v337 = vpack.c.b16 %v289, %v283
  %v338 = vpack.c.b16 %v290, %v284
  %387 = vmatprep.subr.bf16.mxu0 %v334
  %388 = vmatpush1.bf16.msra.mxu0 %v333
  %389 = vmatprep.subr.bf16.mxu0 %v328
  %390 = vmatpush1.bf16.msra.mxu0 %v327
  %391 = vmatprep.subr.bf16.mxu0 %v322
  %392 = vmatpush1.bf16.msra.mxu0 %v321
  %393 = vmatprep.subr.bf16.mxu0 %v316
  %394 = vmatpush1.bf16.msra.mxu0 %v315
  %395 = vmatprep.subr.bf16.mxu0 %v310
  %396 = vmatpush1.bf16.msra.mxu0 %v309
  %397 = vmatprep.subr.bf16.mxu0 %v304
  %398 = vmatpush1.bf16.msra.mxu0 %v303
  %399 = vmatprep.subr.bf16.mxu0 %v298
  %400 = vmatpush1.bf16.msra.mxu0 %v297
  %401 = vmatprep.subr.bf16.mxu0 %v292
  %402 = vmatpush1.bf16.msra.mxu0 %v291
  %403 = vmatprep.subr.bf16.mxu0 0
  %404 = vmatpush2.bf16.msra.mxu0 0
  %405 = vmatprep.subr.bf16.mxu0 0
  %406 = vmatpush2.bf16.msra.mxu0 0
  %407 = vmatprep.subr.bf16.mxu0 0
  %408 = vmatpush2.bf16.msra.mxu0 0
  %409 = vmatprep.subr.bf16.mxu0 0
  %410 = vmatpush2.bf16.msra.mxu0 0
  %411 = vmatprep.subr.bf16.mxu0 0
  %412 = vmatpush2.bf16.msra.mxu0 0
  %413 = vmatprep.subr.bf16.mxu0 0
  %414 = vmatpush2.bf16.msra.mxu0 0
  %415 = vmatprep.subr.bf16.mxu0 0
  %416 = vmatpush2.bf16.msra.mxu0 0
  %417 = vmatprep.subr.bf16.mxu0 0
  %418 = vmatpush2.bf16.msra.mxu0 0
  %419 = vmatprep.mubr.bf16.mxu0 0
  %420 = vmatmul.mubr.bf16.gmra.mxu0 %v66
  %v421 = vpop.f32.mrf.mxu0
  %v422 = vadd.f32 %v120, %v421
  %v423 = vpop.f32.mrf.mxu0
  %v424 = vadd.f32 %v124, %v423
  %v425 = vpop.f32.mrf.mxu0
  %v426 = vadd.f32 %v120, %v425
  %v427 = vpop.f32.mrf.mxu0
  %v428 = vadd.f32 %v124, %v427
  %429 = vdwg.mxu0
  %430 = vmatprep.subr.bf16.mxu0 %v336
  %431 = vmatpush1.bf16.msra.mxu0 %v335
  %432 = vmatprep.subr.bf16.mxu0 %v330
  %433 = vmatpush1.bf16.msra.mxu0 %v329
  %434 = vmatprep.subr.bf16.mxu0 %v324
  %435 = vmatpush1.bf16.msra.mxu0 %v323
  %436 = vmatprep.subr.bf16.mxu0 %v318
  %437 = vmatpush1.bf16.msra.mxu0 %v317
  %438 = vmatprep.subr.bf16.mxu0 %v312
  %439 = vmatpush1.bf16.msra.mxu0 %v311
  %440 = vmatprep.subr.bf16.mxu0 %v306
  %441 = vmatpush1.bf16.msra.mxu0 %v305
  %442 = vmatprep.subr.bf16.mxu0 %v300
  %443 = vmatpush1.bf16.msra.mxu0 %v299
  %444 = vmatprep.subr.bf16.mxu0 %v294
  %445 = vmatpush1.bf16.msra.mxu0 %v293
  %446 = vmatprep.subr.bf16.mxu0 0
  %447 = vmatpush2.bf16.msra.mxu0 0
  %448 = vmatprep.subr.bf16.mxu0 0
  %449 = vmatpush2.bf16.msra.mxu0 0
  %450 = vmatprep.subr.bf16.mxu0 0
  %451 = vmatpush2.bf16.msra.mxu0 0
  %452 = vmatprep.subr.bf16.mxu0 0
  %453 = vmatpush2.bf16.msra.mxu0 0
  %454 = vmatprep.subr.bf16.mxu0 0
  %455 = vmatpush2.bf16.msra.mxu0 0
  %456 = vmatprep.subr.bf16.mxu0 0
  %457 = vmatpush2.bf16.msra.mxu0 0
  %458 = vmatprep.subr.bf16.mxu0 0
  %459 = vmatpush2.bf16.msra.mxu0 0
  %460 = vmatprep.subr.bf16.mxu0 0
  %461 = vmatpush2.bf16.msra.mxu0 0
  %462 = vmatprep.mubr.bf16.mxu0 0
  %463 = vmatmul.mubr.bf16.gmra.mxu0 %v66
  %v464 = vpop.f32.mrf.mxu0
  %v465 = vadd.f32 %v128, %v464
  %v466 = vpop.f32.mrf.mxu0
  %v467 = vadd.f32 %v132, %v466
  %v468 = vpop.f32.mrf.mxu0
  %v469 = vadd.f32 %v128, %v468
  %v470 = vpop.f32.mrf.mxu0
  %v471 = vadd.f32 %v132, %v470
  %472 = vdwg.mxu0
  %473 = vmatprep.subr.bf16.mxu0 %v338
  %474 = vmatpush1.bf16.msra.mxu0 %v337
  %475 = vmatprep.subr.bf16.mxu0 %v332
  %476 = vmatpush1.bf16.msra.mxu0 %v331
  %477 = vmatprep.subr.bf16.mxu0 %v326
  %478 = vmatpush1.bf16.msra.mxu0 %v325
  %479 = vmatprep.subr.bf16.mxu0 %v320
  %480 = vmatpush1.bf16.msra.mxu0 %v319
  %481 = vmatprep.subr.bf16.mxu0 %v314
  %482 = vmatpush1.bf16.msra.mxu0 %v313
  %483 = vmatprep.subr.bf16.mxu0 %v308
  %484 = vmatpush1.bf16.msra.mxu0 %v307
  %485 = vmatprep.subr.bf16.mxu0 %v302
  %486 = vmatpush1.bf16.msra.mxu0 %v301
  %487 = vmatprep.subr.bf16.mxu0 %v296
  %488 = vmatpush1.bf16.msra.mxu0 %v295
  %489 = vmatprep.subr.bf16.mxu0 0
  %490 = vmatpush2.bf16.msra.mxu0 0
  %491 = vmatprep.subr.bf16.mxu0 0
  %492 = vmatpush2.bf16.msra.mxu0 0
  %493 = vmatprep.subr.bf16.mxu0 0
  %494 = vmatpush2.bf16.msra.mxu0 0
  %495 = vmatprep.subr.bf16.mxu0 0
  %496 = vmatpush2.bf16.msra.mxu0 0
  %497 = vmatprep.subr.bf16.mxu0 0
  %498 = vmatpush2.bf16.msra.mxu0 0
  %499 = vmatprep.subr.bf16.mxu0 0
  %500 = vmatpush2.bf16.msra.mxu0 0
  %501 = vmatprep.subr.bf16.mxu0 0
  %502 = vmatpush2.bf16.msra.mxu0 0
  %503 = vmatprep.subr.bf16.mxu0 0
  %504 = vmatpush2.bf16.msra.mxu0 0
  %505 = vmatprep.mubr.bf16.mxu0 0
  %506 = vmatmul.mubr.bf16.gmra.mxu0 %v66
  %v507 = vpop.f32.mrf.mxu0
  %v508 = vadd.f32 %v136, %v507
  %v509 = vpop.f32.mrf.mxu0
  %v510 = vadd.f32 %v140, %v509
  %v511 = vpop.f32.mrf.mxu0
  %v512 = vadd.f32 %v136, %v511
  %v513 = vpop.f32.mrf.mxu0
  %v514 = vadd.f32 %v140, %v513
  %515 = vdwg.mxu0
  %v516 = vpack.c.bf16 %v426, %v422
  %v517 = vpack.c.bf16 %v428, %v424
  %v518 = vpack.c.bf16 %v469, %v465
  %v519 = vpack.c.bf16 %v471, %v467
  %v520 = vpack.c.bf16 %v512, %v508
  %v521 = vpack.c.bf16 %v514, %v510
  %v528 = vunpack.c.l.b16 %v516
  %v529 = vunpack.c.l.b16 %v517
  %v530 = vunpack.c.l.b16 %v518
  %v531 = vunpack.c.l.b16 %v519
  %v532 = vunpack.c.l.b16 %v520
  %v533 = vunpack.c.l.b16 %v521
  %v534 = vunpack.c.h.b16 %v516
  %v535 = vunpack.c.h.b16 %v517
  %v536 = vunpack.c.h.b16 %v518
  %v537 = vunpack.c.h.b16 %v519
  %v538 = vunpack.c.h.b16 %v520
  %v539 = vunpack.c.h.b16 %v521
  %v540 = vpack.c.b16 %v529, %v528
  %v541 = vpack.c.b16 %v531, %v530
  %v542 = vpack.c.b16 %v533, %v532
  %v543 = vpack.c.b16 %v535, %v534
  %v544 = vpack.c.b16 %v537, %v536
  %v545 = vpack.c.b16 %v539, %v538
  %552 = vst [vmem:[%s5] sm:$0xff] %v540
  %553 = vst [vmem:[%s5 + $0x8] sm:$0xff] %v541
  %554 = vst [vmem:[%s5 + $0x10] sm:$0xff] %v542
  %555 = vst [vmem:[%s5 + $0x18] sm:$0xff] %v543
  %556 = vst [vmem:[%s5 + $0x20] sm:$0xff] %v544
  %557 = vst [vmem:[%s5 + $0x28] sm:$0xff] %v545
  // Predicated region
  $region22: #{vivit_forward.9} parent=0 // pred_check
    _
  $region23: #{vivit_forward.9} parent=0 // pred_check_branch
    %559 = sbr.rel (0) target = $region25
  $region24: #{vivit_forward.9} parent=0 // pred_region
    _
  $region25: #{vivit_forward.9} parent=0 // pred_fallthru
    _
  // Predicated region
  $region26: #{vivit_forward.9} parent=0 // pred_check
    _
  $region27: #{vivit_forward.9} parent=0 // pred_check_branch
    %561 = sbr.rel (0) target = $region29
  $region28: #{vivit_forward.9} parent=0 // pred_region
    _
  $region29: #{vivit_forward.9} parent=0 // pred_fallthru
    _

// kernel: vivit_forward.8
$region0: #{vivit_forward.8}
  #allocation0 [shape = 'u32[]', space=smem, size = 0x4, offset = 0x4, fixed_abs, tag = 'smem constant byte address 0x4 - core index']
  #allocation1 [shape = 'u32[144,128]{1,0:T(1,128)}', space=vmem, size = 0x12000, scoped, tag = 'internal scratch']
  %s0 = inlined_call_operand.vmem [shape: bf16[16,1536], index: 0, kind: input, shape index: {}]
  %s1 = inlined_call_operand.vmem [shape: bf16[1536,128], index: 1, kind: input, shape index: {}]
  %s2 = inlined_call_operand.vmem [shape: f32[1,128], index: 2, kind: input, shape index: {}]
  %s3 = inlined_call_operand.vmem [shape: bf16[16,128], index: 3, kind: output, shape index: {}]
  %s4 = sld [smem:[#allocation0]]
  $region22: #{vivit_forward.8} parent=0
    _
  %s6 = ssub.s32 1, %s4
  %s7 = scalar_select 0, %s6, %s4
  // Predicated region
  $region2: #{vivit_forward.8} parent=0 // pred_check
    _
  $region3: #{vivit_forward.8} parent=0 // pred_check_branch
    %9 = sbr.rel (0) target = $region5
  $region4: #{vivit_forward.8} parent=0 // pred_region
    _
  $region5: #{vivit_forward.8} parent=0 // pred_fallthru
    _
  // Predicated region
  $region6: #{vivit_forward.8} parent=0 // pred_check
    _
  $region7: #{vivit_forward.8} parent=0 // pred_check_branch
    %11 = sbr.rel (0) target = $region9
  $region8: #{vivit_forward.8} parent=0 // pred_region
    _
  $region9: #{vivit_forward.8} parent=0 // pred_fallthru
    _
  // Predicated region
  $region10: #{vivit_forward.8} parent=0 // pred_check
    _
  $region11: #{vivit_forward.8} parent=0 // pred_check_branch
    %13 = sbr.rel (0) target = $region13
  $region12: #{vivit_forward.8} parent=0 // pred_region
    _
  $region13: #{vivit_forward.8} parent=0 // pred_fallthru
    _
  %v15 = vld [vmem:[%s0] sm:$0xff]
  %v16 = vld [vmem:[%s0 + $0x8] sm:$0xff]
  %v17 = vld [vmem:[%s0 + $0x10] sm:$0xff]
  %v18 = vld [vmem:[%s0 + $0x18] sm:$0xff]
  %v19 = vld [vmem:[%s0 + $0x20] sm:$0xff]
  %v20 = vld [vmem:[%s0 + $0x28] sm:$0xff]
  %v21 = vld [vmem:[%s0 + $0x30] sm:$0xff]
  %v22 = vld [vmem:[%s0 + $0x38] sm:$0xff]
  %v23 = vld [vmem:[%s0 + $0x40] sm:$0xff]
  %v24 = vld [vmem:[%s0 + $0x48] sm:$0xff]
  %v25 = vld [vmem:[%s0 + $0x50] sm:$0xff]
  %v26 = vld [vmem:[%s0 + $0x58] sm:$0xff]
  %v27 = vld [vmem:[%s1] sm:$0xf]
  %v28 = vld [vmem:[%s1 + $0x4] sm:$0xf]
  %v29 = vld [vmem:[%s1 + $0x8] sm:$0xf]
  %v30 = vld [vmem:[%s1 + $0xc] sm:$0xf]
  %v31 = vld [vmem:[%s1 + $0x10] sm:$0xf]
  %v32 = vld [vmem:[%s1 + $0x14] sm:$0xf]
  %v33 = vld [vmem:[%s1 + $0x18] sm:$0xf]
  %v34 = vld [vmem:[%s1 + $0x1c] sm:$0xf]
  %v35 = vld [vmem:[%s1 + $0x20] sm:$0xf]
  %v36 = vld [vmem:[%s1 + $0x24] sm:$0xf]
  %v37 = vld [vmem:[%s1 + $0x28] sm:$0xf]
  %v38 = vld [vmem:[%s1 + $0x2c] sm:$0xf]
  %v39 = vld [vmem:[%s1 + $0x30] sm:$0xf]
  %v40 = vld [vmem:[%s1 + $0x34] sm:$0xf]
  %v41 = vld [vmem:[%s1 + $0x38] sm:$0xf]
  %v42 = vld [vmem:[%s1 + $0x3c] sm:$0xf]
  %v43 = vld [vmem:[%s1 + $0x40] sm:$0xf]
  %v44 = vld [vmem:[%s1 + $0x44] sm:$0xf]
  %v45 = vld [vmem:[%s1 + $0x48] sm:$0xf]
  %v46 = vld [vmem:[%s1 + $0x4c] sm:$0xf]
  %v47 = vld [vmem:[%s1 + $0x50] sm:$0xf]
  %v48 = vld [vmem:[%s1 + $0x54] sm:$0xf]
  %v49 = vld [vmem:[%s1 + $0x58] sm:$0xf]
  %v50 = vld [vmem:[%s1 + $0x5c] sm:$0xf]
  %v51 = vld [vmem:[%s1 + $0x60] sm:$0xf]
  %v52 = vld [vmem:[%s1 + $0x64] sm:$0xf]
  %v53 = vld [vmem:[%s1 + $0x68] sm:$0xf]
  %v54 = vld [vmem:[%s1 + $0x6c] sm:$0xf]
  %v55 = vld [vmem:[%s1 + $0x70] sm:$0xf]
  %v56 = vld [vmem:[%s1 + $0x74] sm:$0xf]
  %v57 = vld [vmem:[%s1 + $0x78] sm:$0xf]
  %v58 = vld [vmem:[%s1 + $0x7c] sm:$0xf]
  %v59 = vld [vmem:[%s1 + $0x80] sm:$0xf]
  %v60 = vld [vmem:[%s1 + $0x84] sm:$0xf]
  %v61 = vld [vmem:[%s1 + $0x88] sm:$0xf]
  %v62 = vld [vmem:[%s1 + $0x8c] sm:$0xf]
  %v63 = vld [vmem:[%s1 + $0x90] sm:$0xf]
  %v64 = vld [vmem:[%s1 + $0x94] sm:$0xf]
  %v65 = vld [vmem:[%s1 + $0x98] sm:$0xf]
  %v66 = vld [vmem:[%s1 + $0x9c] sm:$0xf]
  %v67 = vld [vmem:[%s1 + $0xa0] sm:$0xf]
  %v68 = vld [vmem:[%s1 + $0xa4] sm:$0xf]
  %v69 = vld [vmem:[%s1 + $0xa8] sm:$0xf]
  %v70 = vld [vmem:[%s1 + $0xac] sm:$0xf]
  %v71 = vld [vmem:[%s1 + $0xb0] sm:$0xf]
  %v72 = vld [vmem:[%s1 + $0xb4] sm:$0xf]
  %v73 = vld [vmem:[%s1 + $0xb8] sm:$0xf]
  %v74 = vld [vmem:[%s1 + $0xbc] sm:$0xf]
  %v75 = vld [vmem:[%s1 + $0xc0] sm:$0xf]
  %v76 = vld [vmem:[%s1 + $0xc4] sm:$0xf]
  %v77 = vld [vmem:[%s1 + $0xc8] sm:$0xf]
  %v78 = vld [vmem:[%s1 + $0xcc] sm:$0xf]
  %v79 = vld [vmem:[%s1 + $0xd0] sm:$0xf]
  %v80 = vld [vmem:[%s1 + $0xd4] sm:$0xf]
  %v81 = vld [vmem:[%s1 + $0xd8] sm:$0xf]
  %v82 = vld [vmem:[%s1 + $0xdc] sm:$0xf]
  %v83 = vld [vmem:[%s1 + $0xe0] sm:$0xf]
  %v84 = vld [vmem:[%s1 + $0xe4] sm:$0xf]
  %v85 = vld [vmem:[%s1 + $0xe8] sm:$0xf]
  %v86 = vld [vmem:[%s1 + $0xec] sm:$0xf]
  %v87 = vld [vmem:[%s1 + $0xf0] sm:$0xf]
  %v88 = vld [vmem:[%s1 + $0xf4] sm:$0xf]
  %v89 = vld [vmem:[%s1 + $0xf8] sm:$0xf]
  %v90 = vld [vmem:[%s1 + $0xfc] sm:$0xf]
  %v91 = vld [vmem:[%s1 + $0x100] sm:$0xf]
  %v92 = vld [vmem:[%s1 + $0x104] sm:$0xf]
  %v93 = vld [vmem:[%s1 + $0x108] sm:$0xf]
  %v94 = vld [vmem:[%s1 + $0x10c] sm:$0xf]
  %v95 = vld [vmem:[%s1 + $0x110] sm:$0xf]
  %v96 = vld [vmem:[%s1 + $0x114] sm:$0xf]
  %v97 = vld [vmem:[%s1 + $0x118] sm:$0xf]
  %v98 = vld [vmem:[%s1 + $0x11c] sm:$0xf]
  %v99 = vld [vmem:[%s1 + $0x120] sm:$0xf]
  %v100 = vld [vmem:[%s1 + $0x124] sm:$0xf]
  %v101 = vld [vmem:[%s1 + $0x128] sm:$0xf]
  %v102 = vld [vmem:[%s1 + $0x12c] sm:$0xf]
  %v103 = vld [vmem:[%s1 + $0x130] sm:$0xf]
  %v104 = vld [vmem:[%s1 + $0x134] sm:$0xf]
  %v105 = vld [vmem:[%s1 + $0x138] sm:$0xf]
  %v106 = vld [vmem:[%s1 + $0x13c] sm:$0xf]
  %v107 = vld [vmem:[%s1 + $0x140] sm:$0xf]
  %v108 = vld [vmem:[%s1 + $0x144] sm:$0xf]
  %v109 = vld [vmem:[%s1 + $0x148] sm:$0xf]
  %v110 = vld [vmem:[%s1 + $0x14c] sm:$0xf]
  %v111 = vld [vmem:[%s1 + $0x150] sm:$0xf]
  %v112 = vld [vmem:[%s1 + $0x154] sm:$0xf]
  %v113 = vld [vmem:[%s1 + $0x158] sm:$0xf]
  %v114 = vld [vmem:[%s1 + $0x15c] sm:$0xf]
  %v115 = vld [vmem:[%s1 + $0x160] sm:$0xf]
  %v116 = vld [vmem:[%s1 + $0x164] sm:$0xf]
  %v117 = vld [vmem:[%s1 + $0x168] sm:$0xf]
  %v118 = vld [vmem:[%s1 + $0x16c] sm:$0xf]
  %v119 = vld [vmem:[%s1 + $0x170] sm:$0xf]
  %v120 = vld [vmem:[%s1 + $0x174] sm:$0xf]
  %v121 = vld [vmem:[%s1 + $0x178] sm:$0xf]
  %v122 = vld [vmem:[%s1 + $0x17c] sm:$0xf]
  %v123 = vld [vmem:[%s1 + $0x180] sm:$0xf]
  %v124 = vld [vmem:[%s1 + $0x184] sm:$0xf]
  %v125 = vld [vmem:[%s1 + $0x188] sm:$0xf]
  %v126 = vld [vmem:[%s1 + $0x18c] sm:$0xf]
  %v127 = vld [vmem:[%s1 + $0x190] sm:$0xf]
  %v128 = vld [vmem:[%s1 + $0x194] sm:$0xf]
  %v129 = vld [vmem:[%s1 + $0x198] sm:$0xf]
  %v130 = vld [vmem:[%s1 + $0x19c] sm:$0xf]
  %v131 = vld [vmem:[%s1 + $0x1a0] sm:$0xf]
  %v132 = vld [vmem:[%s1 + $0x1a4] sm:$0xf]
  %v133 = vld [vmem:[%s1 + $0x1a8] sm:$0xf]
  %v134 = vld [vmem:[%s1 + $0x1ac] sm:$0xf]
  %v135 = vld [vmem:[%s1 + $0x1b0] sm:$0xf]
  %v136 = vld [vmem:[%s1 + $0x1b4] sm:$0xf]
  %v137 = vld [vmem:[%s1 + $0x1b8] sm:$0xf]
  %v138 = vld [vmem:[%s1 + $0x1bc] sm:$0xf]
  %v139 = vld [vmem:[%s1 + $0x1c0] sm:$0xf]
  %v140 = vld [vmem:[%s1 + $0x1c4] sm:$0xf]
  %v141 = vld [vmem:[%s1 + $0x1c8] sm:$0xf]
  %v142 = vld [vmem:[%s1 + $0x1cc] sm:$0xf]
  %v143 = vld [vmem:[%s1 + $0x1d0] sm:$0xf]
  %v144 = vld [vmem:[%s1 + $0x1d4] sm:$0xf]
  %v145 = vld [vmem:[%s1 + $0x1d8] sm:$0xf]
  %v146 = vld [vmem:[%s1 + $0x1dc] sm:$0xf]
  %v147 = vld [vmem:[%s1 + $0x1e0] sm:$0xf]
  %v148 = vld [vmem:[%s1 + $0x1e4] sm:$0xf]
  %v149 = vld [vmem:[%s1 + $0x1e8] sm:$0xf]
  %v150 = vld [vmem:[%s1 + $0x1ec] sm:$0xf]
  %v151 = vld [vmem:[%s1 + $0x1f0] sm:$0xf]
  %v152 = vld [vmem:[%s1 + $0x1f4] sm:$0xf]
  %v153 = vld [vmem:[%s1 + $0x1f8] sm:$0xf]
  %v154 = vld [vmem:[%s1 + $0x1fc] sm:$0xf]
  %v155 = vld [vmem:[%s1 + $0x200] sm:$0xf]
  %v156 = vld [vmem:[%s1 + $0x204] sm:$0xf]
  %v157 = vld [vmem:[%s1 + $0x208] sm:$0xf]
  %v158 = vld [vmem:[%s1 + $0x20c] sm:$0xf]
  %v159 = vld [vmem:[%s1 + $0x210] sm:$0xf]
  %v160 = vld [vmem:[%s1 + $0x214] sm:$0xf]
  %v161 = vld [vmem:[%s1 + $0x218] sm:$0xf]
  %v162 = vld [vmem:[%s1 + $0x21c] sm:$0xf]
  %v163 = vld [vmem:[%s1 + $0x220] sm:$0xf]
  %v164 = vld [vmem:[%s1 + $0x224] sm:$0xf]
  %v165 = vld [vmem:[%s1 + $0x228] sm:$0xf]
  %v166 = vld [vmem:[%s1 + $0x22c] sm:$0xf]
  %v167 = vld [vmem:[%s1 + $0x230] sm:$0xf]
  %v168 = vld [vmem:[%s1 + $0x234] sm:$0xf]
  %v169 = vld [vmem:[%s1 + $0x238] sm:$0xf]
  %v170 = vld [vmem:[%s1 + $0x23c] sm:$0xf]
  %v171 = vld [vmem:[%s1 + $0x240] sm:$0xf]
  %v172 = vld [vmem:[%s1 + $0x244] sm:$0xf]
  %v173 = vld [vmem:[%s1 + $0x248] sm:$0xf]
  %v174 = vld [vmem:[%s1 + $0x24c] sm:$0xf]
  %v175 = vld [vmem:[%s1 + $0x250] sm:$0xf]
  %v176 = vld [vmem:[%s1 + $0x254] sm:$0xf]
  %v177 = vld [vmem:[%s1 + $0x258] sm:$0xf]
  %v178 = vld [vmem:[%s1 + $0x25c] sm:$0xf]
  %v179 = vld [vmem:[%s1 + $0x260] sm:$0xf]
  %v180 = vld [vmem:[%s1 + $0x264] sm:$0xf]
  %v181 = vld [vmem:[%s1 + $0x268] sm:$0xf]
  %v182 = vld [vmem:[%s1 + $0x26c] sm:$0xf]
  %v183 = vld [vmem:[%s1 + $0x270] sm:$0xf]
  %v184 = vld [vmem:[%s1 + $0x274] sm:$0xf]
  %v185 = vld [vmem:[%s1 + $0x278] sm:$0xf]
  %v186 = vld [vmem:[%s1 + $0x27c] sm:$0xf]
  %v187 = vld [vmem:[%s1 + $0x280] sm:$0xf]
  %v188 = vld [vmem:[%s1 + $0x284] sm:$0xf]
  %v189 = vld [vmem:[%s1 + $0x288] sm:$0xf]
  %v190 = vld [vmem:[%s1 + $0x28c] sm:$0xf]
  %v191 = vld [vmem:[%s1 + $0x290] sm:$0xf]
  %v192 = vld [vmem:[%s1 + $0x294] sm:$0xf]
  %v193 = vld [vmem:[%s1 + $0x298] sm:$0xf]
  %v194 = vld [vmem:[%s1 + $0x29c] sm:$0xf]
  %v195 = vld [vmem:[%s1 + $0x2a0] sm:$0xf]
  %v196 = vld [vmem:[%s1 + $0x2a4] sm:$0xf]
  %v197 = vld [vmem:[%s1 + $0x2a8] sm:$0xf]
  %v198 = vld [vmem:[%s1 + $0x2ac] sm:$0xf]
  %v199 = vld [vmem:[%s1 + $0x2b0] sm:$0xf]
  %v200 = vld [vmem:[%s1 + $0x2b4] sm:$0xf]
  %v201 = vld [vmem:[%s1 + $0x2b8] sm:$0xf]
  %v202 = vld [vmem:[%s1 + $0x2bc] sm:$0xf]
  %v203 = vld [vmem:[%s1 + $0x2c0] sm:$0xf]
  %v204 = vld [vmem:[%s1 + $0x2c4] sm:$0xf]
  %v205 = vld [vmem:[%s1 + $0x2c8] sm:$0xf]
  %v206 = vld [vmem:[%s1 + $0x2cc] sm:$0xf]
  %v207 = vld [vmem:[%s1 + $0x2d0] sm:$0xf]
  %v208 = vld [vmem:[%s1 + $0x2d4] sm:$0xf]
  %v209 = vld [vmem:[%s1 + $0x2d8] sm:$0xf]
  %v210 = vld [vmem:[%s1 + $0x2dc] sm:$0xf]
  %v211 = vld [vmem:[%s1 + $0x2e0] sm:$0xf]
  %v212 = vld [vmem:[%s1 + $0x2e4] sm:$0xf]
  %v213 = vld [vmem:[%s1 + $0x2e8] sm:$0xf]
  %v214 = vld [vmem:[%s1 + $0x2ec] sm:$0xf]
  %v215 = vld [vmem:[%s1 + $0x2f0] sm:$0xf]
  %v216 = vld [vmem:[%s1 + $0x2f4] sm:$0xf]
  %v217 = vld [vmem:[%s1 + $0x2f8] sm:$0xf]
  %v218 = vld [vmem:[%s1 + $0x2fc] sm:$0xf]
  %v219 = vld [vmem:[%s2] sm:$0x1]
  %v221 = vlaneseq
  %v222 = vshrl.u32 %v221, 7
  %v223 = vsub.s32 0, %v222
  %v224 = vrot.slane %v219, %v223
  %v238 = vunpack.c.l.b16 %v15
  %v239 = vunpack.c.h.b16 %v15
  %v240 = vunpack.c.l.b16 %v16
  %v241 = vunpack.c.h.b16 %v16
  %v242 = vunpack.c.l.b16 %v17
  %v243 = vunpack.c.h.b16 %v17
  %v244 = vunpack.c.l.b16 %v18
  %v245 = vunpack.c.h.b16 %v18
  %v246 = vunpack.c.l.b16 %v19
  %v247 = vunpack.c.h.b16 %v19
  %v248 = vunpack.c.l.b16 %v20
  %v249 = vunpack.c.h.b16 %v20
  %v250 = vunpack.c.l.b16 %v21
  %v251 = vunpack.c.h.b16 %v21
  %v252 = vunpack.c.l.b16 %v22
  %v253 = vunpack.c.h.b16 %v22
  %v254 = vunpack.c.l.b16 %v23
  %v255 = vunpack.c.h.b16 %v23
  %v256 = vunpack.c.l.b16 %v24
  %v257 = vunpack.c.h.b16 %v24
  %v258 = vunpack.c.l.b16 %v25
  %v259 = vunpack.c.h.b16 %v25
  %v260 = vunpack.c.l.b16 %v26
  %v261 = vunpack.c.h.b16 %v26
  %v262 = vpack.c.b16 %v250, %v238
  %v263 = vpack.c.b16 %v251, %v239
  %v264 = vpack.c.b16 %v252, %v240
  %v265 = vpack.c.b16 %v253, %v241
  %v266 = vpack.c.b16 %v254, %v242
  %v267 = vpack.c.b16 %v255, %v243
  %v268 = vpack.c.b16 %v256, %v244
  %v269 = vpack.c.b16 %v257, %v245
  %v270 = vpack.c.b16 %v258, %v246
  %v271 = vpack.c.b16 %v259, %v247
  %v272 = vpack.c.b16 %v260, %v248
  %v273 = vpack.c.b16 %v261, %v249
  %v478 = vunpack.c.l.b16 %v27
  %v479 = vunpack.c.l.b16 %v28
  %v480 = vunpack.c.l.b16 %v29
  %v481 = vunpack.c.l.b16 %v30
  %v482 = vunpack.c.l.b16 %v31
  %v483 = vunpack.c.l.b16 %v32
  %v484 = vunpack.c.l.b16 %v33
  %v485 = vunpack.c.l.b16 %v34
  %v486 = vunpack.c.l.b16 %v35
  %v487 = vunpack.c.l.b16 %v36
  %v488 = vunpack.c.l.b16 %v37
  %v489 = vunpack.c.l.b16 %v38
  %v490 = vunpack.c.l.b16 %v39
  %v491 = vunpack.c.l.b16 %v40
  %v492 = vunpack.c.l.b16 %v41
  %v493 = vunpack.c.l.b16 %v42
  %v494 = vunpack.c.l.b16 %v43
  %v495 = vunpack.c.l.b16 %v44
  %v496 = vunpack.c.l.b16 %v45
  %v497 = vunpack.c.l.b16 %v46
  %v498 = vunpack.c.l.b16 %v47
  %v499 = vunpack.c.l.b16 %v48
  %v500 = vunpack.c.l.b16 %v49
  %v501 = vunpack.c.l.b16 %v50
  %v502 = vunpack.c.l.b16 %v51
  %v503 = vunpack.c.l.b16 %v52
  %v504 = vunpack.c.l.b16 %v53
  %v505 = vunpack.c.l.b16 %v54
  %v506 = vunpack.c.l.b16 %v55
  %v507 = vunpack.c.l.b16 %v56
  %v508 = vunpack.c.l.b16 %v57
  %v509 = vunpack.c.l.b16 %v58
  %v510 = vunpack.c.l.b16 %v59
  %v511 = vunpack.c.l.b16 %v60
  %v512 = vunpack.c.l.b16 %v61
  %v513 = vunpack.c.l.b16 %v62
  %v514 = vunpack.c.l.b16 %v63
  %v515 = vunpack.c.l.b16 %v64
  %v516 = vunpack.c.l.b16 %v65
  %v517 = vunpack.c.l.b16 %v66
  %v518 = vunpack.c.l.b16 %v67
  %v519 = vunpack.c.l.b16 %v68
  %v520 = vunpack.c.l.b16 %v69
  %v521 = vunpack.c.l.b16 %v70
  %v522 = vunpack.c.l.b16 %v71
  %v523 = vunpack.c.l.b16 %v72
  %v524 = vunpack.c.l.b16 %v73
  %v525 = vunpack.c.l.b16 %v74
  %v526 = vunpack.c.l.b16 %v75
  %v527 = vunpack.c.l.b16 %v76
  %v528 = vunpack.c.l.b16 %v77
  %v529 = vunpack.c.l.b16 %v78
  %v530 = vunpack.c.l.b16 %v79
  %v531 = vunpack.c.l.b16 %v80
  %v532 = vunpack.c.l.b16 %v81
  %v533 = vunpack.c.l.b16 %v82
  %v534 = vunpack.c.l.b16 %v83
  %v535 = vunpack.c.l.b16 %v84
  %v536 = vunpack.c.l.b16 %v85
  %v537 = vunpack.c.l.b16 %v86
  %v538 = vunpack.c.l.b16 %v87
  %v539 = vunpack.c.l.b16 %v88
  %v540 = vunpack.c.l.b16 %v89
  %v541 = vunpack.c.l.b16 %v90
  %v542 = vunpack.c.l.b16 %v91
  %v543 = vunpack.c.l.b16 %v92
  %v544 = vunpack.c.l.b16 %v93
  %v545 = vunpack.c.l.b16 %v94
  %v546 = vunpack.c.l.b16 %v95
  %v547 = vunpack.c.l.b16 %v96
  %v548 = vunpack.c.l.b16 %v97
  %v549 = vunpack.c.l.b16 %v98
  %v550 = vunpack.c.l.b16 %v99
  %v551 = vunpack.c.l.b16 %v100
  %v552 = vunpack.c.l.b16 %v101
  %v553 = vunpack.c.l.b16 %v102
  %v554 = vunpack.c.l.b16 %v103
  %v555 = vunpack.c.l.b16 %v104
  %v556 = vunpack.c.l.b16 %v105
  %v557 = vunpack.c.l.b16 %v106
  %v558 = vunpack.c.l.b16 %v107
  %v559 = vunpack.c.l.b16 %v108
  %v560 = vunpack.c.l.b16 %v109
  %v561 = vunpack.c.l.b16 %v110
  %v562 = vunpack.c.l.b16 %v111
  %v563 = vunpack.c.l.b16 %v112
  %v564 = vunpack.c.l.b16 %v113
  %v565 = vunpack.c.l.b16 %v114
  %v566 = vunpack.c.l.b16 %v115
  %v567 = vunpack.c.l.b16 %v116
  %v568 = vunpack.c.l.b16 %v117
  %v569 = vunpack.c.l.b16 %v118
  %v570 = vunpack.c.l.b16 %v119
  %v571 = vunpack.c.l.b16 %v120
  %v572 = vunpack.c.l.b16 %v121
  %v573 = vunpack.c.l.b16 %v122
  %v574 = vunpack.c.l.b16 %v123
  %v575 = vunpack.c.l.b16 %v124
  %v576 = vunpack.c.l.b16 %v125
  %v577 = vunpack.c.l.b16 %v126
  %v578 = vunpack.c.l.b16 %v127
  %v579 = vunpack.c.l.b16 %v128
  %v580 = vunpack.c.l.b16 %v129
  %v581 = vunpack.c.l.b16 %v130
  %v582 = vunpack.c.l.b16 %v131
  %v583 = vunpack.c.l.b16 %v132
  %v584 = vunpack.c.l.b16 %v133
  %v585 = vunpack.c.l.b16 %v134
  %v586 = vunpack.c.l.b16 %v135
  %v587 = vunpack.c.l.b16 %v136
  %v588 = vunpack.c.l.b16 %v137
  %v589 = vunpack.c.l.b16 %v138
  %v590 = vunpack.c.l.b16 %v139
  %v591 = vunpack.c.l.b16 %v140
  %v592 = vunpack.c.l.b16 %v141
  %v593 = vunpack.c.l.b16 %v142
  %v594 = vunpack.c.l.b16 %v143
  %v595 = vunpack.c.l.b16 %v144
  %v596 = vunpack.c.l.b16 %v145
  %v597 = vunpack.c.l.b16 %v146
  %v598 = vunpack.c.l.b16 %v147
  %v599 = vunpack.c.l.b16 %v148
  %v600 = vunpack.c.l.b16 %v149
  %v601 = vunpack.c.l.b16 %v150
  %v602 = vunpack.c.l.b16 %v151
  %v603 = vunpack.c.l.b16 %v152
  %v604 = vunpack.c.l.b16 %v153
  %v605 = vunpack.c.l.b16 %v154
  %v606 = vunpack.c.l.b16 %v155
  %v607 = vunpack.c.l.b16 %v156
  %v608 = vunpack.c.l.b16 %v157
  %v609 = vunpack.c.l.b16 %v158
  %v610 = vunpack.c.l.b16 %v159
  %v611 = vunpack.c.l.b16 %v160
  %v612 = vunpack.c.l.b16 %v161
  %v613 = vunpack.c.l.b16 %v162
  %v614 = vunpack.c.l.b16 %v163
  %v615 = vunpack.c.l.b16 %v164
  %v616 = vunpack.c.l.b16 %v165
  %v617 = vunpack.c.l.b16 %v166
  %v618 = vunpack.c.l.b16 %v167
  %v619 = vunpack.c.l.b16 %v168
  %v620 = vunpack.c.l.b16 %v169
  %v621 = vunpack.c.l.b16 %v170
  %v622 = vunpack.c.l.b16 %v171
  %v623 = vunpack.c.l.b16 %v172
  %v624 = vunpack.c.l.b16 %v173
  %v625 = vunpack.c.l.b16 %v174
  %v626 = vunpack.c.l.b16 %v175
  %v627 = vunpack.c.l.b16 %v176
  %v628 = vunpack.c.l.b16 %v177
  %v629 = vunpack.c.l.b16 %v178
  %v630 = vunpack.c.l.b16 %v179
  %v631 = vunpack.c.l.b16 %v180
  %v632 = vunpack.c.l.b16 %v181
  %v633 = vunpack.c.l.b16 %v182
  %v634 = vunpack.c.l.b16 %v183
  %v635 = vunpack.c.l.b16 %v184
  %v636 = vunpack.c.l.b16 %v185
  %v637 = vunpack.c.l.b16 %v186
  %v638 = vunpack.c.l.b16 %v187
  %v639 = vunpack.c.l.b16 %v188
  %v640 = vunpack.c.l.b16 %v189
  %v641 = vunpack.c.l.b16 %v190
  %v642 = vunpack.c.l.b16 %v191
  %v643 = vunpack.c.l.b16 %v192
  %v644 = vunpack.c.l.b16 %v193
  %v645 = vunpack.c.l.b16 %v194
  %v646 = vunpack.c.l.b16 %v195
  %v647 = vunpack.c.l.b16 %v196
  %v648 = vunpack.c.l.b16 %v197
  %v649 = vunpack.c.l.b16 %v198
  %v650 = vunpack.c.l.b16 %v199
  %v651 = vunpack.c.l.b16 %v200
  %v652 = vunpack.c.l.b16 %v201
  %v653 = vunpack.c.l.b16 %v202
  %v654 = vunpack.c.l.b16 %v203
  %v655 = vunpack.c.l.b16 %v204
  %v656 = vunpack.c.l.b16 %v205
  %v657 = vunpack.c.l.b16 %v206
  %v658 = vunpack.c.l.b16 %v207
  %v659 = vunpack.c.l.b16 %v208
  %v660 = vunpack.c.l.b16 %v209
  %v661 = vunpack.c.l.b16 %v210
  %v662 = vunpack.c.l.b16 %v211
  %v663 = vunpack.c.l.b16 %v212
  %v664 = vunpack.c.l.b16 %v213
  %v665 = vunpack.c.l.b16 %v214
  %v666 = vunpack.c.l.b16 %v215
  %v667 = vunpack.c.l.b16 %v216
  %v668 = vunpack.c.l.b16 %v217
  %v669 = vunpack.c.l.b16 %v218
  %v670 = vpack.c.b16 %v479, %v478
  %v671 = vpack.c.b16 %v481, %v480
  %v672 = vpack.c.b16 %v483, %v482
  %v673 = vpack.c.b16 %v485, %v484
  %v674 = vpack.c.b16 %v487, %v486
  %v675 = vpack.c.b16 %v489, %v488
  %v676 = vpack.c.b16 %v491, %v490
  %v677 = vpack.c.b16 %v493, %v492
  %v678 = vpack.c.b16 %v495, %v494
  %v679 = vpack.c.b16 %v497, %v496
  %v680 = vpack.c.b16 %v499, %v498
  %v681 = vpack.c.b16 %v501, %v500
  %v682 = vpack.c.b16 %v503, %v502
  %v683 = vpack.c.b16 %v505, %v504
  %v684 = vpack.c.b16 %v507, %v506
  %v685 = vpack.c.b16 %v509, %v508
  %v686 = vpack.c.b16 %v511, %v510
  %v687 = vpack.c.b16 %v513, %v512
  %v688 = vpack.c.b16 %v515, %v514
  %v689 = vpack.c.b16 %v517, %v516
  %v690 = vpack.c.b16 %v519, %v518
  %v691 = vpack.c.b16 %v521, %v520
  %v692 = vpack.c.b16 %v523, %v522
  %v693 = vpack.c.b16 %v525, %v524
  %v694 = vpack.c.b16 %v527, %v526
  %v695 = vpack.c.b16 %v529, %v528
  %v696 = vpack.c.b16 %v531, %v530
  %v697 = vpack.c.b16 %v533, %v532
  %v698 = vpack.c.b16 %v535, %v534
  %v699 = vpack.c.b16 %v537, %v536
  %v700 = vpack.c.b16 %v539, %v538
  %v701 = vpack.c.b16 %v541, %v540
  %v702 = vpack.c.b16 %v543, %v542
  %v703 = vpack.c.b16 %v545, %v544
  %v704 = vpack.c.b16 %v547, %v546
  %v705 = vpack.c.b16 %v549, %v548
  %v706 = vpack.c.b16 %v551, %v550
  %v707 = vpack.c.b16 %v553, %v552
  %v708 = vpack.c.b16 %v555, %v554
  %v709 = vpack.c.b16 %v557, %v556
  %v710 = vpack.c.b16 %v559, %v558
  %v711 = vpack.c.b16 %v561, %v560
  %v712 = vpack.c.b16 %v563, %v562
  %v713 = vpack.c.b16 %v565, %v564
  %v714 = vpack.c.b16 %v567, %v566
  %v715 = vpack.c.b16 %v569, %v568
  %v716 = vpack.c.b16 %v571, %v570
  %v717 = vpack.c.b16 %v573, %v572
  %v718 = vpack.c.b16 %v575, %v574
  %v719 = vpack.c.b16 %v577, %v576
  %v720 = vpack.c.b16 %v579, %v578
  %v721 = vpack.c.b16 %v581, %v580
  %v722 = vpack.c.b16 %v583, %v582
  %v723 = vpack.c.b16 %v585, %v584
  %v724 = vpack.c.b16 %v587, %v586
  %v725 = vpack.c.b16 %v589, %v588
  %v726 = vpack.c.b16 %v591, %v590
  %v727 = vpack.c.b16 %v593, %v592
  %v728 = vpack.c.b16 %v595, %v594
  %v729 = vpack.c.b16 %v597, %v596
  %v730 = vpack.c.b16 %v599, %v598
  %v731 = vpack.c.b16 %v601, %v600
  %v732 = vpack.c.b16 %v603, %v602
  %v733 = vpack.c.b16 %v605, %v604
  %v734 = vpack.c.b16 %v607, %v606
  %v735 = vpack.c.b16 %v609, %v608
  %v736 = vpack.c.b16 %v611, %v610
  %v737 = vpack.c.b16 %v613, %v612
  %v738 = vpack.c.b16 %v615, %v614
  %v739 = vpack.c.b16 %v617, %v616
  %v740 = vpack.c.b16 %v619, %v618
  %v741 = vpack.c.b16 %v621, %v620
  %v742 = vpack.c.b16 %v623, %v622
  %v743 = vpack.c.b16 %v625, %v624
  %v744 = vpack.c.b16 %v627, %v626
  %v745 = vpack.c.b16 %v629, %v628
  %v746 = vpack.c.b16 %v631, %v630
  %v747 = vpack.c.b16 %v633, %v632
  %v748 = vpack.c.b16 %v635, %v634
  %v749 = vpack.c.b16 %v637, %v636
  %v750 = vpack.c.b16 %v639, %v638
  %v751 = vpack.c.b16 %v641, %v640
  %v752 = vpack.c.b16 %v643, %v642
  %v753 = vpack.c.b16 %v645, %v644
  %v754 = vpack.c.b16 %v647, %v646
  %v755 = vpack.c.b16 %v649, %v648
  %v756 = vpack.c.b16 %v651, %v650
  %v757 = vpack.c.b16 %v653, %v652
  %v758 = vpack.c.b16 %v655, %v654
  %v759 = vpack.c.b16 %v657, %v656
  %v760 = vpack.c.b16 %v659, %v658
  %v761 = vpack.c.b16 %v661, %v660
  %v762 = vpack.c.b16 %v663, %v662
  %v763 = vpack.c.b16 %v665, %v664
  %v764 = vpack.c.b16 %v667, %v666
  %v765 = vpack.c.b16 %v669, %v668
  %862 = vmatprep.subr.bf16.mxu0 0
  %863 = vmatpush1.bf16.msra.mxu0 %v677
  %864 = vmatprep.subr.bf16.mxu0 0
  %865 = vmatpush1.bf16.msra.mxu0 %v676
  %866 = vmatprep.subr.bf16.mxu0 0
  %867 = vmatpush1.bf16.msra.mxu0 %v675
  %868 = vmatprep.subr.bf16.mxu0 0
  %869 = vmatpush1.bf16.msra.mxu0 %v674
  %870 = vmatprep.subr.bf16.mxu0 0
  %871 = vmatpush1.bf16.msra.mxu0 %v673
  %872 = vmatprep.subr.bf16.mxu0 0
  %873 = vmatpush1.bf16.msra.mxu0 %v672
  %874 = vmatprep.subr.bf16.mxu0 0
  %875 = vmatpush1.bf16.msra.mxu0 %v671
  %876 = vmatprep.subr.bf16.mxu0 0
  %877 = vmatpush1.bf16.msra.mxu0 %v670
  %878 = vmatprep.subr.bf16.mxu0 0
  %879 = vmatpush2.bf16.msra.mxu0 %v685
  %880 = vmatprep.subr.bf16.mxu0 0
  %881 = vmatpush2.bf16.msra.mxu0 %v684
  %882 = vmatprep.subr.bf16.mxu0 0
  %883 = vmatpush2.bf16.msra.mxu0 %v683
  %884 = vmatprep.subr.bf16.mxu0 0
  %885 = vmatpush2.bf16.msra.mxu0 %v682
  %886 = vmatprep.subr.bf16.mxu0 0
  %887 = vmatpush2.bf16.msra.mxu0 %v681
  %888 = vmatprep.subr.bf16.mxu0 0
  %889 = vmatpush2.bf16.msra.mxu0 %v680
  %890 = vmatprep.subr.bf16.mxu0 0
  %891 = vmatpush2.bf16.msra.mxu0 %v679
  %892 = vmatprep.subr.bf16.mxu0 0
  %893 = vmatpush2.bf16.msra.mxu0 %v678
  %894 = vmatprep.mubr.bf16.mxu0 %v263
  %895 = vmatmul.mubr.bf16.gmra.mxu0 %v262
  %v896 = vpop.f32.mrf.mxu0
  %v897 = vadd.f32 %v224, %v896
  %v898 = vpop.f32.mrf.mxu0
  %v899 = vpop.f32.mrf.mxu0
  %v900 = vadd.f32 %v224, %v899
  %v901 = vpop.f32.mrf.mxu0
  %902 = vdwg.mxu0
  %903 = vmatprep.subr.bf16.mxu0 0
  %904 = vmatpush1.bf16.msra.mxu0 %v693
  %905 = vmatprep.subr.bf16.mxu0 0
  %906 = vmatpush1.bf16.msra.mxu0 %v692
  %907 = vmatprep.subr.bf16.mxu0 0
  %908 = vmatpush1.bf16.msra.mxu0 %v691
  %909 = vmatprep.subr.bf16.mxu0 0
  %910 = vmatpush1.bf16.msra.mxu0 %v690
  %911 = vmatprep.subr.bf16.mxu0 0
  %912 = vmatpush1.bf16.msra.mxu0 %v689
  %913 = vmatprep.subr.bf16.mxu0 0
  %914 = vmatpush1.bf16.msra.mxu0 %v688
  %915 = vmatprep.subr.bf16.mxu0 0
  %916 = vmatpush1.bf16.msra.mxu0 %v687
  %917 = vmatprep.subr.bf16.mxu0 0
  %918 = vmatpush1.bf16.msra.mxu0 %v686
  %919 = vmatprep.subr.bf16.mxu0 0
  %920 = vmatpush2.bf16.msra.mxu0 %v701
  %921 = vmatprep.subr.bf16.mxu0 0
  %922 = vmatpush2.bf16.msra.mxu0 %v700
  %923 = vmatprep.subr.bf16.mxu0 0
  %924 = vmatpush2.bf16.msra.mxu0 %v699
  %925 = vmatprep.subr.bf16.mxu0 0
  %926 = vmatpush2.bf16.msra.mxu0 %v698
  %927 = vmatprep.subr.bf16.mxu0 0
  %928 = vmatpush2.bf16.msra.mxu0 %v697
  %929 = vmatprep.subr.bf16.mxu0 0
  %930 = vmatpush2.bf16.msra.mxu0 %v696
  %931 = vmatprep.subr.bf16.mxu0 0
  %932 = vmatpush2.bf16.msra.mxu0 %v695
  %933 = vmatprep.subr.bf16.mxu0 0
  %934 = vmatpush2.bf16.msra.mxu0 %v694
  %935 = vmatprep.mubr.bf16.mxu0 %v265
  %936 = vmatmul.mubr.bf16.gmra.mxu0 %v264
  %v937 = vpop.f32.mrf.mxu0
  %v938 = vadd.f32 %v897, %v937
  %v939 = vpop.f32.mrf.mxu0
  %v940 = vpop.f32.mrf.mxu0
  %v941 = vadd.f32 %v900, %v940
  %v942 = vpop.f32.mrf.mxu0
  %943 = vdwg.mxu0
  %944 = vmatprep.subr.bf16.mxu0 0
  %945 = vmatpush1.bf16.msra.mxu0 %v709
  %946 = vmatprep.subr.bf16.mxu0 0
  %947 = vmatpush1.bf16.msra.mxu0 %v708
  %948 = vmatprep.subr.bf16.mxu0 0
  %949 = vmatpush1.bf16.msra.mxu0 %v707
  %950 = vmatprep.subr.bf16.mxu0 0
  %951 = vmatpush1.bf16.msra.mxu0 %v706
  %952 = vmatprep.subr.bf16.mxu0 0
  %953 = vmatpush1.bf16.msra.mxu0 %v705
  %954 = vmatprep.subr.bf16.mxu0 0
  %955 = vmatpush1.bf16.msra.mxu0 %v704
  %956 = vmatprep.subr.bf16.mxu0 0
  %957 = vmatpush1.bf16.msra.mxu0 %v703
  %958 = vmatprep.subr.bf16.mxu0 0
  %959 = vmatpush1.bf16.msra.mxu0 %v702
  %960 = vmatprep.subr.bf16.mxu0 0
  %961 = vmatpush2.bf16.msra.mxu0 %v717
  %962 = vmatprep.subr.bf16.mxu0 0
  %963 = vmatpush2.bf16.msra.mxu0 %v716
  %964 = vmatprep.subr.bf16.mxu0 0
  %965 = vmatpush2.bf16.msra.mxu0 %v715
  %966 = vmatprep.subr.bf16.mxu0 0
  %967 = vmatpush2.bf16.msra.mxu0 %v714
  %968 = vmatprep.subr.bf16.mxu0 0
  %969 = vmatpush2.bf16.msra.mxu0 %v713
  %970 = vmatprep.subr.bf16.mxu0 0
  %971 = vmatpush2.bf16.msra.mxu0 %v712
  %972 = vmatprep.subr.bf16.mxu0 0
  %973 = vmatpush2.bf16.msra.mxu0 %v711
  %974 = vmatprep.subr.bf16.mxu0 0
  %975 = vmatpush2.bf16.msra.mxu0 %v710
  %976 = vmatprep.mubr.bf16.mxu0 %v267
  %977 = vmatmul.mubr.bf16.gmra.mxu0 %v266
  %v978 = vpop.f32.mrf.mxu0
  %v979 = vadd.f32 %v938, %v978
  %v980 = vpop.f32.mrf.mxu0
  %v981 = vpop.f32.mrf.mxu0
  %v982 = vadd.f32 %v941, %v981
  %v983 = vpop.f32.mrf.mxu0
  %984 = vdwg.mxu0
  %985 = vmatprep.subr.bf16.mxu0 0
  %986 = vmatpush1.bf16.msra.mxu0 %v725
  %987 = vmatprep.subr.bf16.mxu0 0
  %988 = vmatpush1.bf16.msra.mxu0 %v724
  %989 = vmatprep.subr.bf16.mxu0 0
  %990 = vmatpush1.bf16.msra.mxu0 %v723
  %991 = vmatprep.subr.bf16.mxu0 0
  %992 = vmatpush1.bf16.msra.mxu0 %v722
  %993 = vmatprep.subr.bf16.mxu0 0
  %994 = vmatpush1.bf16.msra.mxu0 %v721
  %995 = vmatprep.subr.bf16.mxu0 0
  %996 = vmatpush1.bf16.msra.mxu0 %v720
  %997 = vmatprep.subr.bf16.mxu0 0
  %998 = vmatpush1.bf16.msra.mxu0 %v719
  %999 = vmatprep.subr.bf16.mxu0 0
  %1000 = vmatpush1.bf16.msra.mxu0 %v718
  %1001 = vmatprep.subr.bf16.mxu0 0
  %1002 = vmatpush2.bf16.msra.mxu0 %v733
  %1003 = vmatprep.subr.bf16.mxu0 0
  %1004 = vmatpush2.bf16.msra.mxu0 %v732
  %1005 = vmatprep.subr.bf16.mxu0 0
  %1006 = vmatpush2.bf16.msra.mxu0 %v731
  %1007 = vmatprep.subr.bf16.mxu0 0
  %1008 = vmatpush2.bf16.msra.mxu0 %v730
  %1009 = vmatprep.subr.bf16.mxu0 0
  %1010 = vmatpush2.bf16.msra.mxu0 %v729
  %1011 = vmatprep.subr.bf16.mxu0 0
  %1012 = vmatpush2.bf16.msra.mxu0 %v728
  %1013 = vmatprep.subr.bf16.mxu0 0
  %1014 = vmatpush2.bf16.msra.mxu0 %v727
  %1015 = vmatprep.subr.bf16.mxu0 0
  %1016 = vmatpush2.bf16.msra.mxu0 %v726
  %1017 = vmatprep.mubr.bf16.mxu0 %v269
  %1018 = vmatmul.mubr.bf16.gmra.mxu0 %v268
  %v1019 = vpop.f32.mrf.mxu0
  %v1020 = vadd.f32 %v979, %v1019
  %v1021 = vpop.f32.mrf.mxu0
  %v1022 = vpop.f32.mrf.mxu0
  %v1023 = vadd.f32 %v982, %v1022
  %v1024 = vpop.f32.mrf.mxu0
  %1025 = vdwg.mxu0
  %1026 = vmatprep.subr.bf16.mxu0 0
  %1027 = vmatpush1.bf16.msra.mxu0 %v741
  %1028 = vmatprep.subr.bf16.mxu0 0
  %1029 = vmatpush1.bf16.msra.mxu0 %v740
  %1030 = vmatprep.subr.bf16.mxu0 0
  %1031 = vmatpush1.bf16.msra.mxu0 %v739
  %1032 = vmatprep.subr.bf16.mxu0 0
  %1033 = vmatpush1.bf16.msra.mxu0 %v738
  %1034 = vmatprep.subr.bf16.mxu0 0
  %1035 = vmatpush1.bf16.msra.mxu0 %v737
  %1036 = vmatprep.subr.bf16.mxu0 0
  %1037 = vmatpush1.bf16.msra.mxu0 %v736
  %1038 = vmatprep.subr.bf16.mxu0 0
  %1039 = vmatpush1.bf16.msra.mxu0 %v735
  %1040 = vmatprep.subr.bf16.mxu0 0
  %1041 = vmatpush1.bf16.msra.mxu0 %v734
  %1042 = vmatprep.subr.bf16.mxu0 0
  %1043 = vmatpush2.bf16.msra.mxu0 %v749
  %1044 = vmatprep.subr.bf16.mxu0 0
  %1045 = vmatpush2.bf16.msra.mxu0 %v748
  %1046 = vmatprep.subr.bf16.mxu0 0
  %1047 = vmatpush2.bf16.msra.mxu0 %v747
  %1048 = vmatprep.subr.bf16.mxu0 0
  %1049 = vmatpush2.bf16.msra.mxu0 %v746
  %1050 = vmatprep.subr.bf16.mxu0 0
  %1051 = vmatpush2.bf16.msra.mxu0 %v745
  %1052 = vmatprep.subr.bf16.mxu0 0
  %1053 = vmatpush2.bf16.msra.mxu0 %v744
  %1054 = vmatprep.subr.bf16.mxu0 0
  %1055 = vmatpush2.bf16.msra.mxu0 %v743
  %1056 = vmatprep.subr.bf16.mxu0 0
  %1057 = vmatpush2.bf16.msra.mxu0 %v742
  %1058 = vmatprep.mubr.bf16.mxu0 %v271
  %1059 = vmatmul.mubr.bf16.gmra.mxu0 %v270
  %v1060 = vpop.f32.mrf.mxu0
  %v1061 = vadd.f32 %v1020, %v1060
  %v1062 = vpop.f32.mrf.mxu0
  %v1063 = vpop.f32.mrf.mxu0
  %v1064 = vadd.f32 %v1023, %v1063
  %v1065 = vpop.f32.mrf.mxu0
  %1066 = vdwg.mxu0
  %1067 = vmatprep.subr.bf16.mxu0 0
  %1068 = vmatpush1.bf16.msra.mxu0 %v757
  %1069 = vmatprep.subr.bf16.mxu0 0
  %1070 = vmatpush1.bf16.msra.mxu0 %v756
  %1071 = vmatprep.subr.bf16.mxu0 0
  %1072 = vmatpush1.bf16.msra.mxu0 %v755
  %1073 = vmatprep.subr.bf16.mxu0 0
  %1074 = vmatpush1.bf16.msra.mxu0 %v754
  %1075 = vmatprep.subr.bf16.mxu0 0
  %1076 = vmatpush1.bf16.msra.mxu0 %v753
  %1077 = vmatprep.subr.bf16.mxu0 0
  %1078 = vmatpush1.bf16.msra.mxu0 %v752
  %1079 = vmatprep.subr.bf16.mxu0 0
  %1080 = vmatpush1.bf16.msra.mxu0 %v751
  %1081 = vmatprep.subr.bf16.mxu0 0
  %1082 = vmatpush1.bf16.msra.mxu0 %v750
  %1083 = vmatprep.subr.bf16.mxu0 0
  %1084 = vmatpush2.bf16.msra.mxu0 %v765
  %1085 = vmatprep.subr.bf16.mxu0 0
  %1086 = vmatpush2.bf16.msra.mxu0 %v764
  %1087 = vmatprep.subr.bf16.mxu0 0
  %1088 = vmatpush2.bf16.msra.mxu0 %v763
  %1089 = vmatprep.subr.bf16.mxu0 0
  %1090 = vmatpush2.bf16.msra.mxu0 %v762
  %1091 = vmatprep.subr.bf16.mxu0 0
  %1092 = vmatpush2.bf16.msra.mxu0 %v761
  %1093 = vmatprep.subr.bf16.mxu0 0
  %1094 = vmatpush2.bf16.msra.mxu0 %v760
  %1095 = vmatprep.subr.bf16.mxu0 0
  %1096 = vmatpush2.bf16.msra.mxu0 %v759
  %1097 = vmatprep.subr.bf16.mxu0 0
  %1098 = vmatpush2.bf16.msra.mxu0 %v758
  %1099 = vmatprep.mubr.bf16.mxu0 %v273
  %1100 = vmatmul.mubr.bf16.gmra.mxu0 %v272
  %v1101 = vpop.f32.mrf.mxu0
  %v1102 = vadd.f32 %v1061, %v1101
  %v1103 = vpop.f32.mrf.mxu0
  %v1104 = vpop.f32.mrf.mxu0
  %v1105 = vadd.f32 %v1064, %v1104
  %v1106 = vpop.f32.mrf.mxu0
  %1107 = vdwg.mxu0
  %v1108 = vpack.c.bf16 %v1105, %v1102
  %v1110 = vunpack.c.l.b16 %v1108
  %v1111 = vunpack.c.h.b16 %v1108
  %v1112 = vpack.c.b16 %v1110, %v1110
  %v1113 = vpack.c.b16 %v1111, %v1111
  %1116 = vst [vmem:[%s3] sm:$0xf] %v1112
  %1117 = vst [vmem:[%s3 + $0x4] sm:$0xf] %v1113
  // Predicated region
  $region14: #{vivit_forward.8} parent=0 // pred_check
    _
  $region15: #{vivit_forward.8} parent=0 // pred_check_branch
    %1119 = sbr.rel (0) target = $region17
  $region16: #{vivit_forward.8} parent=0 // pred_region
    _
  $region17: #{vivit_forward.8} parent=0 // pred_fallthru
    _
  // Predicated region
  $region18: #{vivit_forward.8} parent=0 // pred_check
    _
  $region19: #{vivit_forward.8} parent=0 // pred_check_branch
    %1121 = sbr.rel (0) target = $region21
  $region20: #{vivit_forward.8} parent=0 // pred_region
    _
  $region21: #{vivit_forward.8} parent=0 // pred_fallthru
    _

// kernel: vivit_forward.15
$region0: #{vivit_forward.15}
  #allocation0 [shape = 'u32[]', space=smem, size = 0x4, offset = 0x4, fixed_abs, tag = 'smem constant byte address 0x4 - core index']
  #allocation1 [shape = 'u32[144,128]{1,0:T(1,128)}', space=vmem, size = 0x12000, scoped, tag = 'internal scratch']
  %s0 = inlined_call_operand.vmem [shape: bf16[2,8,128], index: 0, kind: input, shape index: {}]
  %s1 = inlined_call_operand.vmem [shape: f32[1,128], index: 1, kind: input, shape index: {}]
  %s2 = inlined_call_operand.vmem [shape: f32[1,128], index: 2, kind: input, shape index: {}]
  %s3 = inlined_call_operand.vmem [shape: bf16[128,10], index: 3, kind: input, shape index: {}]
  %s4 = inlined_call_operand.vmem [shape: f32[1,10], index: 4, kind: input, shape index: {}]
  %s5 = inlined_call_operand.hbm [shape: f32[2,10], index: 5, kind: output, shape index: {}]
  %s6 = sld [smem:[#allocation0]]
  $region30: #{vivit_forward.15} parent=0
    _
  %s8 = ssub.s32 1, %s6
  %s9 = scalar_select 0, %s8, %s6
  $region1: #{vivit_forward.15} parent=0
    #allocation2 [shape = 'u8[1024]{0}', space=vmem, size = 0x400, scoped, tag = 'output window, operand 0, single buffered']
    #allocation3 [shape = 's32[1]{0}', space=sflag, size = 0x4, scoped, tag = 'scoped memory for vivit_forward.15']
    %10 = vsyncpa [#allocation3], 0
    // Predicated region
    $region2: #{vivit_forward.15} parent=1 // pred_check
      _
    $region3: #{vivit_forward.15} parent=1 // pred_check_branch
      %12 = sbr.rel (0) target = $region5
    $region4: #{vivit_forward.15} parent=1 // pred_region
      _
    $region5: #{vivit_forward.15} parent=1 // pred_fallthru
      _
    // Predicated region
    $region6: #{vivit_forward.15} parent=1 // pred_check
      _
    $region7: #{vivit_forward.15} parent=1 // pred_check_branch
      %14 = sbr.rel (0) target = $region9
    $region8: #{vivit_forward.15} parent=1 // pred_region
      _
    $region9: #{vivit_forward.15} parent=1 // pred_fallthru
      _
    // Predicated region
    $region10: #{vivit_forward.15} parent=1 // pred_check
      _
    $region11: #{vivit_forward.15} parent=1 // pred_check_branch
      %16 = sbr.rel (0) target = $region13
    $region12: #{vivit_forward.15} parent=1 // pred_region
      _
    $region13: #{vivit_forward.15} parent=1 // pred_fallthru
      _
    // Predicated region
    $region14: #{vivit_forward.15} parent=1 // pred_check
      _
    $region15: #{vivit_forward.15} parent=1 // pred_check_branch
      %18 = sbr.rel (0) target = $region17
    $region16: #{vivit_forward.15} parent=1 // pred_region
      _
    $region17: #{vivit_forward.15} parent=1 // pred_fallthru
      _
    // Predicated region
    $region18: #{vivit_forward.15} parent=1 // pred_check
      _
    $region19: #{vivit_forward.15} parent=1 // pred_check_branch
      %20 = sbr.rel (0) target = $region21
    $region20: #{vivit_forward.15} parent=1 // pred_region
      _
    $region21: #{vivit_forward.15} parent=1 // pred_fallthru
      _
    %v22 = vld [vmem:[%s0] sm:$0xf]
    %v23 = vld [vmem:[%s0 + $0x4] sm:$0xf]
    %v24 = vunpack.c.l.bf16 %v22
    %v25 = vunpack.c.l.bf16 %v23
    %v26 = vrot.slane %v24, 4
    %v27 = vadd.f32 %v24, %v26
    %v28 = vrot.slane %v27, 2
    %v29 = vadd.f32 %v27, %v28
    %v30 = vrot.slane %v29, 1
    %v31 = vadd.f32 %v29, %v30
    %v32 = vrot.slane %v25, 4
    %v33 = vadd.f32 %v25, %v32
    %v34 = vrot.slane %v33, 2
    %v35 = vadd.f32 %v33, %v34
    %v36 = vrot.slane %v35, 1
    %v37 = vadd.f32 %v35, %v36
    %v38 = vrcp.pop 8.0
    %v39 = vmul.f32 %v31, %v38
    %v40 = vmul.f32 %v37, %v38
    %vm43 = vcmask 1041409
    %v44 = vsel %vm43, %v40, %v39
    %vm46 = vcmask 1041408
    %v47 = vsel %vm46, %v44, 0.0
    %48 = vadd.xlane.f32.xlu0 %v47
    %v49 = vpop.xlane.xlu0 %48
    %v50 = vrcp.pop 128.0
    %v51 = vmul.f32 %v49, %v50
    %v53 = vrot.slane %v51, 1
    %v56 = vsub.f32 %v39, %v51
    %v57 = vsub.f32 %v40, %v53
    %v58 = vmul.f32 %v56, %v56
    %v59 = vmul.f32 %v57, %v57
    %v62 = vrot.slane %v59, 7
    %v63 = vsel %vm43, %v62, %v58
    %v65 = vsel %vm46, %v63, 0.0
    %66 = vadd.xlane.f32.xlu0 %v65
    %v67 = vpop.xlane.xlu0 %66
    %v68 = vmul.f32 %v67, %v50
    %v69 = vadd.f32 %v68, 1e-05
    %v70 = vrsqrt.pop %v69
    %v72 = vrot.slane %v70, 1
    %v75 = vmul.f32 %v56, %v70
    %v76 = vmul.f32 %v57, %v72
    %v77 = vld [vmem:[%s1] sm:$0x1]
    %v79 = vlaneseq
    %v80 = vshrl.u32 %v79, 7
    %v81 = vsub.s32 0, %v80
    %v82 = vrot.slane %v77, %v81
    %v84 = vmul.f32 %v75, %v82
    %v85 = vmul.f32 %v76, %v82
    %v86 = vld [vmem:[%s2] sm:$0x1]
    %v88 = vlaneseq
    %v89 = vshrl.u32 %v88, 7
    %v90 = vsub.s32 0, %v89
    %v91 = vrot.slane %v86, %v90
    %v93 = vadd.f32 %v84, %v91
    %v94 = vadd.f32 %v85, %v91
    %v95 = vpack.c.bf16 %v93, %v93
    %v96 = vpack.c.bf16 %v94, %v94
    %v97 = vld [vmem:[%s3] sm:$0xf]
    %v98 = vld [vmem:[%s3 + $0x4] sm:$0xf]
    %v99 = vld [vmem:[%s3 + $0x8] sm:$0xf]
    %v100 = vld [vmem:[%s3 + $0xc] sm:$0xf]
    %v101 = vld [vmem:[%s3 + $0x10] sm:$0xf]
    %v102 = vld [vmem:[%s3 + $0x14] sm:$0xf]
    %v103 = vld [vmem:[%s3 + $0x18] sm:$0xf]
    %v104 = vld [vmem:[%s3 + $0x1c] sm:$0xf]
    %v105 = vld [vmem:[%s3 + $0x20] sm:$0xf]
    %v106 = vld [vmem:[%s3 + $0x24] sm:$0xf]
    %v107 = vld [vmem:[%s3 + $0x28] sm:$0xf]
    %v108 = vld [vmem:[%s3 + $0x2c] sm:$0xf]
    %v109 = vld [vmem:[%s3 + $0x30] sm:$0xf]
    %v110 = vld [vmem:[%s3 + $0x34] sm:$0xf]
    %v111 = vld [vmem:[%s3 + $0x38] sm:$0xf]
    %v112 = vld [vmem:[%s3 + $0x3c] sm:$0xf]
    %v113 = vld [vmem:[%s4] sm:$0x1]
    %v115 = vlaneseq
    %v116 = vshrl.u32 %v115, 7
    %v117 = vsub.s32 0, %v116
    %v118 = vrot.slane %v113, %v117
    %v122 = vunpack.c.l.b16 %v95
    %v123 = vunpack.c.l.b16 %v96
    %v124 = vrot.slane %v123, 7
    %v125 = vsel %vm43, %v124, %v122
    %v126 = vpack.c.b16 %v125, %v125
    %v144 = vunpack.c.l.b16 %v97
    %v145 = vunpack.c.l.b16 %v98
    %v146 = vunpack.c.l.b16 %v99
    %v147 = vunpack.c.l.b16 %v100
    %v148 = vunpack.c.l.b16 %v101
    %v149 = vunpack.c.l.b16 %v102
    %v150 = vunpack.c.l.b16 %v103
    %v151 = vunpack.c.l.b16 %v104
    %v152 = vunpack.c.l.b16 %v105
    %v153 = vunpack.c.l.b16 %v106
    %v154 = vunpack.c.l.b16 %v107
    %v155 = vunpack.c.l.b16 %v108
    %v156 = vunpack.c.l.b16 %v109
    %v157 = vunpack.c.l.b16 %v110
    %v158 = vunpack.c.l.b16 %v111
    %v159 = vunpack.c.l.b16 %v112
    %v160 = vpack.c.b16 %v145, %v144
    %v161 = vpack.c.b16 %v147, %v146
    %v162 = vpack.c.b16 %v149, %v148
    %v163 = vpack.c.b16 %v151, %v150
    %v164 = vpack.c.b16 %v153, %v152
    %v165 = vpack.c.b16 %v155, %v154
    %v166 = vpack.c.b16 %v157, %v156
    %v167 = vpack.c.b16 %v159, %v158
    %176 = vmatprep.subr.bf16.mxu0 0
    %177 = vmatpush1.bf16.msra.mxu0 %v167
    %178 = vmatprep.subr.bf16.mxu0 0
    %179 = vmatpush1.bf16.msra.mxu0 %v166
    %180 = vmatprep.subr.bf16.mxu0 0
    %181 = vmatpush1.bf16.msra.mxu0 %v165
    %182 = vmatprep.subr.bf16.mxu0 0
    %183 = vmatpush1.bf16.msra.mxu0 %v164
    %184 = vmatprep.subr.bf16.mxu0 0
    %185 = vmatpush1.bf16.msra.mxu0 %v163
    %186 = vmatprep.subr.bf16.mxu0 0
    %187 = vmatpush1.bf16.msra.mxu0 %v162
    %188 = vmatprep.subr.bf16.mxu0 0
    %189 = vmatpush1.bf16.msra.mxu0 %v161
    %190 = vmatprep.subr.bf16.mxu0 0
    %191 = vmatpush1.bf16.msra.mxu0 %v160
    %192 = vmatprep.subr.bf16.mxu0 0
    %193 = vmatpush2.bf16.msra.mxu0 0
    %194 = vmatprep.subr.bf16.mxu0 0
    %195 = vmatpush2.bf16.msra.mxu0 0
    %196 = vmatprep.subr.bf16.mxu0 0
    %197 = vmatpush2.bf16.msra.mxu0 0
    %198 = vmatprep.subr.bf16.mxu0 0
    %199 = vmatpush2.bf16.msra.mxu0 0
    %200 = vmatprep.subr.bf16.mxu0 0
    %201 = vmatpush2.bf16.msra.mxu0 0
    %202 = vmatprep.subr.bf16.mxu0 0
    %203 = vmatpush2.bf16.msra.mxu0 0
    %204 = vmatprep.subr.bf16.mxu0 0
    %205 = vmatpush2.bf16.msra.mxu0 0
    %206 = vmatprep.subr.bf16.mxu0 0
    %207 = vmatpush2.bf16.msra.mxu0 0
    %208 = vmatprep.mubr.bf16.mxu0 0
    %209 = vmatmul.mubr.bf16.gmra.mxu0 %v126
    %v210 = vpop.f32.mrf.mxu0
    %v211 = vadd.f32 %v118, %v210
    %v212 = vpop.f32.mrf.mxu0
    %v213 = vpop.f32.mrf.mxu0
    %v214 = vpop.f32.mrf.mxu0
    %215 = vdwg.mxu0
    %vm216 = vcmask 74752
    %217 = vst.msk [vmem:[#allocation2] sm:$0x3] %vm216, %v211
    // Predicated region
    $region22: #{vivit_forward.15} parent=1 // pred_check
      _
    $region23: #{vivit_forward.15} parent=1 // pred_check_branch
      %219 = sbr.rel (0) target = $region25
    $region24: #{vivit_forward.15} parent=1 // pred_region
      %s221 = ssub.s32 32, 32
      %222 = vsyncadd [#allocation3], %s221
      %s224 = sshll.u32 [#allocation2], 4
      %s225 = int_to_ptr.vmem [resolvable:$true] %s224
      %227 = dma.vmem_to_hbm [thread:$0]  %s225, 32, %s5, [#allocation3]
    $region25: #{vivit_forward.15} parent=1 // pred_fallthru
      _
    // Predicated region
    $region26: #{vivit_forward.15} parent=1 // pred_check
      _
    $region27: #{vivit_forward.15} parent=1 // pred_check_branch
      %229 = sbr.rel (0) target = $region29
    $region28: #{vivit_forward.15} parent=1 // pred_region
      %230 = dma.done [#allocation3], 32
    $region29: #{vivit_forward.15} parent=1 // pred_fallthru
      _
    %231 = vsyncpa [#allocation3], 1

// kernel: vivit_forward.11
$region0: #{vivit_forward.11}
  #allocation0 [shape = 'u32[]', space=smem, size = 0x4, offset = 0x4, fixed_abs, tag = 'smem constant byte address 0x4 - core index']
  #allocation1 [shape = 'u32[144,128]{1,0:T(1,128)}', space=vmem, size = 0x12000, scoped, tag = 'internal scratch']
  %s0 = inlined_call_operand.vmem [shape: bf16[16,128], index: 0, kind: input, shape index: {}]
  %s1 = inlined_call_operand.vmem [shape: bf16[16,128], index: 1, kind: input, shape index: {}]
  %s2 = inlined_call_operand.vmem [shape: bf16[16,128], index: 2, kind: input, shape index: {}]
  %s3 = inlined_call_operand.vmem [shape: bf16[128,128], index: 3, kind: input, shape index: {}]
  %s4 = inlined_call_operand.vmem [shape: bf16[128,128], index: 4, kind: input, shape index: {}]
  %s5 = inlined_call_operand.vmem [shape: f32[1,128], index: 5, kind: input, shape index: {}]
  %s6 = inlined_call_operand.vmem [shape: f32[1,128], index: 6, kind: input, shape index: {}]
  %s7 = inlined_call_operand.vmem [shape: f32[1,128], index: 7, kind: input, shape index: {}]
  %s8 = inlined_call_operand.vmem [shape: bf16[128,256], index: 8, kind: input, shape index: {}]
  %s9 = inlined_call_operand.vmem [shape: f32[1,256], index: 9, kind: input, shape index: {}]
  %s10 = inlined_call_operand.vmem [shape: bf16[256,128], index: 10, kind: input, shape index: {}]
  %s11 = inlined_call_operand.vmem [shape: f32[1,128], index: 11, kind: input, shape index: {}]
  %s12 = inlined_call_operand.vmem [shape: bf16[16,128], index: 12, kind: output, shape index: {}]
  %s13 = sld [smem:[#allocation0]]
  $region58: #{vivit_forward.11} parent=0
    _
  %s15 = ssub.s32 1, %s13
  %s16 = scalar_select 0, %s15, %s13
  // Predicated region
  $region2: #{vivit_forward.11} parent=0 // pred_check
    _
  $region3: #{vivit_forward.11} parent=0 // pred_check_branch
    %18 = sbr.rel (0) target = $region5
  $region4: #{vivit_forward.11} parent=0 // pred_region
    _
  $region5: #{vivit_forward.11} parent=0 // pred_fallthru
    _
  // Predicated region
  $region6: #{vivit_forward.11} parent=0 // pred_check
    _
  $region7: #{vivit_forward.11} parent=0 // pred_check_branch
    %20 = sbr.rel (0) target = $region9
  $region8: #{vivit_forward.11} parent=0 // pred_region
    _
  $region9: #{vivit_forward.11} parent=0 // pred_fallthru
    _
  // Predicated region
  $region10: #{vivit_forward.11} parent=0 // pred_check
    _
  $region11: #{vivit_forward.11} parent=0 // pred_check_branch
    %22 = sbr.rel (0) target = $region13
  $region12: #{vivit_forward.11} parent=0 // pred_region
    _
  $region13: #{vivit_forward.11} parent=0 // pred_fallthru
    _
  // Predicated region
  $region14: #{vivit_forward.11} parent=0 // pred_check
    _
  $region15: #{vivit_forward.11} parent=0 // pred_check_branch
    %24 = sbr.rel (0) target = $region17
  $region16: #{vivit_forward.11} parent=0 // pred_region
    _
  $region17: #{vivit_forward.11} parent=0 // pred_fallthru
    _
  // Predicated region
  $region18: #{vivit_forward.11} parent=0 // pred_check
    _
  $region19: #{vivit_forward.11} parent=0 // pred_check_branch
    %26 = sbr.rel (0) target = $region21
  $region20: #{vivit_forward.11} parent=0 // pred_region
    _
  $region21: #{vivit_forward.11} parent=0 // pred_fallthru
    _
  // Predicated region
  $region22: #{vivit_forward.11} parent=0 // pred_check
    _
  $region23: #{vivit_forward.11} parent=0 // pred_check_branch
    %28 = sbr.rel (0) target = $region25
  $region24: #{vivit_forward.11} parent=0 // pred_region
    _
  $region25: #{vivit_forward.11} parent=0 // pred_fallthru
    _
  // Predicated region
  $region26: #{vivit_forward.11} parent=0 // pred_check
    _
  $region27: #{vivit_forward.11} parent=0 // pred_check_branch
    %30 = sbr.rel (0) target = $region29
  $region28: #{vivit_forward.11} parent=0 // pred_region
    _
  $region29: #{vivit_forward.11} parent=0 // pred_fallthru
    _
  // Predicated region
  $region30: #{vivit_forward.11} parent=0 // pred_check
    _
  $region31: #{vivit_forward.11} parent=0 // pred_check_branch
    %32 = sbr.rel (0) target = $region33
  $region32: #{vivit_forward.11} parent=0 // pred_region
    _
  $region33: #{vivit_forward.11} parent=0 // pred_fallthru
    _
  // Predicated region
  $region34: #{vivit_forward.11} parent=0 // pred_check
    _
  $region35: #{vivit_forward.11} parent=0 // pred_check_branch
    %34 = sbr.rel (0) target = $region37
  $region36: #{vivit_forward.11} parent=0 // pred_region
    _
  $region37: #{vivit_forward.11} parent=0 // pred_fallthru
    _
  // Predicated region
  $region38: #{vivit_forward.11} parent=0 // pred_check
    _
  $region39: #{vivit_forward.11} parent=0 // pred_check_branch
    %36 = sbr.rel (0) target = $region41
  $region40: #{vivit_forward.11} parent=0 // pred_region
    _
  $region41: #{vivit_forward.11} parent=0 // pred_fallthru
    _
  // Predicated region
  $region42: #{vivit_forward.11} parent=0 // pred_check
    _
  $region43: #{vivit_forward.11} parent=0 // pred_check_branch
    %38 = sbr.rel (0) target = $region45
  $region44: #{vivit_forward.11} parent=0 // pred_region
    _
  $region45: #{vivit_forward.11} parent=0 // pred_fallthru
    _
  // Predicated region
  $region46: #{vivit_forward.11} parent=0 // pred_check
    _
  $region47: #{vivit_forward.11} parent=0 // pred_check_branch
    %40 = sbr.rel (0) target = $region49
  $region48: #{vivit_forward.11} parent=0 // pred_region
    _
  $region49: #{vivit_forward.11} parent=0 // pred_fallthru
    _
  %v42 = vld [vmem:[%s0] sm:$0xf]
  %v43 = vld [vmem:[%s0 + $0x4] sm:$0xf]
  %v44 = vld [vmem:[%s3] sm:$0xf]
  %v45 = vld [vmem:[%s3 + $0x4] sm:$0xf]
  %v46 = vld [vmem:[%s3 + $0x8] sm:$0xf]
  %v47 = vld [vmem:[%s3 + $0xc] sm:$0xf]
  %v48 = vld [vmem:[%s3 + $0x10] sm:$0xf]
  %v49 = vld [vmem:[%s3 + $0x14] sm:$0xf]
  %v50 = vld [vmem:[%s3 + $0x18] sm:$0xf]
  %v51 = vld [vmem:[%s3 + $0x1c] sm:$0xf]
  %v52 = vld [vmem:[%s3 + $0x20] sm:$0xf]
  %v53 = vld [vmem:[%s3 + $0x24] sm:$0xf]
  %v54 = vld [vmem:[%s3 + $0x28] sm:$0xf]
  %v55 = vld [vmem:[%s3 + $0x2c] sm:$0xf]
  %v56 = vld [vmem:[%s3 + $0x30] sm:$0xf]
  %v57 = vld [vmem:[%s3 + $0x34] sm:$0xf]
  %v58 = vld [vmem:[%s3 + $0x38] sm:$0xf]
  %v59 = vld [vmem:[%s3 + $0x3c] sm:$0xf]
  %v60 = vld [vmem:[%s1] sm:$0xf]
  %v61 = vld [vmem:[%s1 + $0x4] sm:$0xf]
  %v62 = vld [vmem:[%s4] sm:$0xf]
  %v63 = vld [vmem:[%s4 + $0x4] sm:$0xf]
  %v64 = vld [vmem:[%s4 + $0x8] sm:$0xf]
  %v65 = vld [vmem:[%s4 + $0xc] sm:$0xf]
  %v66 = vld [vmem:[%s4 + $0x10] sm:$0xf]
  %v67 = vld [vmem:[%s4 + $0x14] sm:$0xf]
  %v68 = vld [vmem:[%s4 + $0x18] sm:$0xf]
  %v69 = vld [vmem:[%s4 + $0x1c] sm:$0xf]
  %v70 = vld [vmem:[%s4 + $0x20] sm:$0xf]
  %v71 = vld [vmem:[%s4 + $0x24] sm:$0xf]
  %v72 = vld [vmem:[%s4 + $0x28] sm:$0xf]
  %v73 = vld [vmem:[%s4 + $0x2c] sm:$0xf]
  %v74 = vld [vmem:[%s4 + $0x30] sm:$0xf]
  %v75 = vld [vmem:[%s4 + $0x34] sm:$0xf]
  %v76 = vld [vmem:[%s4 + $0x38] sm:$0xf]
  %v77 = vld [vmem:[%s4 + $0x3c] sm:$0xf]
  %v80 = vunpack.c.l.b16 %v60
  %v81 = vunpack.c.l.b16 %v61
  %v82 = vpack.c.b16 %v81, %v80
  %v100 = vunpack.c.l.b16 %v62
  %v101 = vunpack.c.l.b16 %v63
  %v102 = vunpack.c.l.b16 %v64
  %v103 = vunpack.c.l.b16 %v65
  %v104 = vunpack.c.l.b16 %v66
  %v105 = vunpack.c.l.b16 %v67
  %v106 = vunpack.c.l.b16 %v68
  %v107 = vunpack.c.l.b16 %v69
  %v108 = vunpack.c.l.b16 %v70
  %v109 = vunpack.c.l.b16 %v71
  %v110 = vunpack.c.l.b16 %v72
  %v111 = vunpack.c.l.b16 %v73
  %v112 = vunpack.c.l.b16 %v74
  %v113 = vunpack.c.l.b16 %v75
  %v114 = vunpack.c.l.b16 %v76
  %v115 = vunpack.c.l.b16 %v77
  %v116 = vpack.c.b16 %v101, %v100
  %v117 = vpack.c.b16 %v103, %v102
  %v118 = vpack.c.b16 %v105, %v104
  %v119 = vpack.c.b16 %v107, %v106
  %v120 = vpack.c.b16 %v109, %v108
  %v121 = vpack.c.b16 %v111, %v110
  %v122 = vpack.c.b16 %v113, %v112
  %v123 = vpack.c.b16 %v115, %v114
  %132 = vmatprep.subr.bf16.mxu0 0
  %133 = vmatpush1.bf16.msra.mxu0 %v123
  %134 = vmatprep.subr.bf16.mxu0 0
  %135 = vmatpush1.bf16.msra.mxu0 %v122
  %136 = vmatprep.subr.bf16.mxu0 0
  %137 = vmatpush1.bf16.msra.mxu0 %v121
  %138 = vmatprep.subr.bf16.mxu0 0
  %139 = vmatpush1.bf16.msra.mxu0 %v120
  %140 = vmatprep.subr.bf16.mxu0 0
  %141 = vmatpush1.bf16.msra.mxu0 %v119
  %142 = vmatprep.subr.bf16.mxu0 0
  %143 = vmatpush1.bf16.msra.mxu0 %v118
  %144 = vmatprep.subr.bf16.mxu0 0
  %145 = vmatpush1.bf16.msra.mxu0 %v117
  %146 = vmatprep.subr.bf16.mxu0 0
  %147 = vmatpush1.bf16.msra.mxu0 %v116
  %148 = vmatprep.subr.bf16.mxu0 0
  %149 = vmatpush2.bf16.msra.mxu0 0
  %150 = vmatprep.subr.bf16.mxu0 0
  %151 = vmatpush2.bf16.msra.mxu0 0
  %152 = vmatprep.subr.bf16.mxu0 0
  %153 = vmatpush2.bf16.msra.mxu0 0
  %154 = vmatprep.subr.bf16.mxu0 0
  %155 = vmatpush2.bf16.msra.mxu0 0
  %156 = vmatprep.subr.bf16.mxu0 0
  %157 = vmatpush2.bf16.msra.mxu0 0
  %158 = vmatprep.subr.bf16.mxu0 0
  %159 = vmatpush2.bf16.msra.mxu0 0
  %160 = vmatprep.subr.bf16.mxu0 0
  %161 = vmatpush2.bf16.msra.mxu0 0
  %162 = vmatprep.subr.bf16.mxu0 0
  %163 = vmatpush2.bf16.msra.mxu0 0
  %164 = vmatprep.mubr.bf16.mxu0 0
  %165 = vmatmul.mubr.bf16.gmra.mxu0 %v82
  %v166 = vpop.f32.mrf.mxu0
  %v167 = vadd.f32 0.0, %v166
  %v168 = vpop.f32.mrf.mxu0
  %v169 = vpop.f32.mrf.mxu0
  %v170 = vadd.f32 0.0, %v169
  %v171 = vpop.f32.mrf.mxu0
  %172 = vdwg.mxu0
  %v175 = vunpack.c.l.b16 %v42
  %v176 = vunpack.c.l.b16 %v43
  %v177 = vpack.c.b16 %v176, %v175
  %v195 = vunpack.c.l.b16 %v44
  %v196 = vunpack.c.l.b16 %v45
  %v197 = vunpack.c.l.b16 %v46
  %v198 = vunpack.c.l.b16 %v47
  %v199 = vunpack.c.l.b16 %v48
  %v200 = vunpack.c.l.b16 %v49
  %v201 = vunpack.c.l.b16 %v50
  %v202 = vunpack.c.l.b16 %v51
  %v203 = vunpack.c.l.b16 %v52
  %v204 = vunpack.c.l.b16 %v53
  %v205 = vunpack.c.l.b16 %v54
  %v206 = vunpack.c.l.b16 %v55
  %v207 = vunpack.c.l.b16 %v56
  %v208 = vunpack.c.l.b16 %v57
  %v209 = vunpack.c.l.b16 %v58
  %v210 = vunpack.c.l.b16 %v59
  %v211 = vpack.c.b16 %v196, %v195
  %v212 = vpack.c.b16 %v198, %v197
  %v213 = vpack.c.b16 %v200, %v199
  %v214 = vpack.c.b16 %v202, %v201
  %v215 = vpack.c.b16 %v204, %v203
  %v216 = vpack.c.b16 %v206, %v205
  %v217 = vpack.c.b16 %v208, %v207
  %v218 = vpack.c.b16 %v210, %v209
  %227 = vmatprep.subr.bf16.mxu0 0
  %228 = vmatpush1.bf16.msra.mxu0 %v218
  %229 = vmatprep.subr.bf16.mxu0 0
  %230 = vmatpush1.bf16.msra.mxu0 %v217
  %231 = vmatprep.subr.bf16.mxu0 0
  %232 = vmatpush1.bf16.msra.mxu0 %v216
  %233 = vmatprep.subr.bf16.mxu0 0
  %234 = vmatpush1.bf16.msra.mxu0 %v215
  %235 = vmatprep.subr.bf16.mxu0 0
  %236 = vmatpush1.bf16.msra.mxu0 %v214
  %237 = vmatprep.subr.bf16.mxu0 0
  %238 = vmatpush1.bf16.msra.mxu0 %v213
  %239 = vmatprep.subr.bf16.mxu0 0
  %240 = vmatpush1.bf16.msra.mxu0 %v212
  %241 = vmatprep.subr.bf16.mxu0 0
  %242 = vmatpush1.bf16.msra.mxu0 %v211
  %243 = vmatprep.subr.bf16.mxu0 0
  %244 = vmatpush2.bf16.msra.mxu0 0
  %245 = vmatprep.subr.bf16.mxu0 0
  %246 = vmatpush2.bf16.msra.mxu0 0
  %247 = vmatprep.subr.bf16.mxu0 0
  %248 = vmatpush2.bf16.msra.mxu0 0
  %249 = vmatprep.subr.bf16.mxu0 0
  %250 = vmatpush2.bf16.msra.mxu0 0
  %251 = vmatprep.subr.bf16.mxu0 0
  %252 = vmatpush2.bf16.msra.mxu0 0
  %253 = vmatprep.subr.bf16.mxu0 0
  %254 = vmatpush2.bf16.msra.mxu0 0
  %255 = vmatprep.subr.bf16.mxu0 0
  %256 = vmatpush2.bf16.msra.mxu0 0
  %257 = vmatprep.subr.bf16.mxu0 0
  %258 = vmatpush2.bf16.msra.mxu0 0
  %259 = vmatprep.mubr.bf16.mxu0 0
  %260 = vmatmul.mubr.bf16.gmra.mxu0 %v177
  %v261 = vpop.f32.mrf.mxu0
  %v262 = vadd.f32 %v167, %v261
  %v263 = vpop.f32.mrf.mxu0
  %v264 = vpop.f32.mrf.mxu0
  %v265 = vadd.f32 %v170, %v264
  %v266 = vpop.f32.mrf.mxu0
  %267 = vdwg.mxu0
  %v268 = vld [vmem:[%s5] sm:$0x1]
  %v270 = vlaneseq
  %v271 = vshrl.u32 %v270, 7
  %v272 = vsub.s32 0, %v271
  %v273 = vrot.slane %v268, %v272
  %v275 = vadd.f32 %v262, %v273
  %v276 = vadd.f32 %v265, %v273
  %v277 = vld [vmem:[%s2] sm:$0xf]
  %v278 = vld [vmem:[%s2 + $0x4] sm:$0xf]
  %v279 = vunpack.c.l.bf16 %v277
  %v280 = vunpack.c.l.bf16 %v278
  %v281 = vadd.f32 %v275, %v279
  %v282 = vadd.f32 %v276, %v280
  %283 = vadd.xlane.f32.xlu0 %v281
  %v284 = vpop.xlane.xlu0 %283
  %285 = vadd.xlane.f32.xlu0 %v282
  %v286 = vpop.xlane.xlu0 %285
  %v287 = vrcp.pop 128.0
  %v288 = vmul.f32 %v284, %v287
  %v289 = vmul.f32 %v286, %v287
  %v290 = vsub.f32 %v281, %v288
  %v291 = vsub.f32 %v282, %v289
  %v292 = vmul.f32 %v290, %v290
  %v293 = vmul.f32 %v291, %v291
  %294 = vadd.xlane.f32.xlu0 %v292
  %v295 = vpop.xlane.xlu0 %294
  %296 = vadd.xlane.f32.xlu0 %v293
  %v297 = vpop.xlane.xlu0 %296
  %v298 = vmul.f32 %v295, %v287
  %v299 = vmul.f32 %v297, %v287
  %v300 = vadd.f32 %v298, 1e-05
  %v301 = vadd.f32 %v299, 1e-05
  %v302 = vrsqrt.pop %v300
  %v303 = vrsqrt.pop %v301
  %v304 = vmul.f32 %v290, %v302
  %v305 = vmul.f32 %v291, %v303
  %v306 = vld [vmem:[%s6] sm:$0x1]
  %v308 = vlaneseq
  %v309 = vshrl.u32 %v308, 7
  %v310 = vsub.s32 0, %v309
  %v311 = vrot.slane %v306, %v310
  %v313 = vmul.f32 %v304, %v311
  %v314 = vmul.f32 %v305, %v311
  %v315 = vld [vmem:[%s7] sm:$0x1]
  %v317 = vlaneseq
  %v318 = vshrl.u32 %v317, 7
  %v319 = vsub.s32 0, %v318
  %v320 = vrot.slane %v315, %v319
  %v322 = vadd.f32 %v313, %v320
  %v323 = vadd.f32 %v314, %v320
  %v324 = vpack.c.bf16 %v323, %v322
  %v325 = vld [vmem:[%s8] sm:$0xff]
  %v326 = vld [vmem:[%s8 + $0x8] sm:$0xff]
  %v327 = vld [vmem:[%s8 + $0x10] sm:$0xff]
  %v328 = vld [vmem:[%s8 + $0x18] sm:$0xff]
  %v329 = vld [vmem:[%s8 + $0x20] sm:$0xff]
  %v330 = vld [vmem:[%s8 + $0x28] sm:$0xff]
  %v331 = vld [vmem:[%s8 + $0x30] sm:$0xff]
  %v332 = vld [vmem:[%s8 + $0x38] sm:$0xff]
  %v333 = vld [vmem:[%s8 + $0x40] sm:$0xff]
  %v334 = vld [vmem:[%s8 + $0x48] sm:$0xff]
  %v335 = vld [vmem:[%s8 + $0x50] sm:$0xff]
  %v336 = vld [vmem:[%s8 + $0x58] sm:$0xff]
  %v337 = vld [vmem:[%s8 + $0x60] sm:$0xff]
  %v338 = vld [vmem:[%s8 + $0x68] sm:$0xff]
  %v339 = vld [vmem:[%s8 + $0x70] sm:$0xff]
  %v340 = vld [vmem:[%s8 + $0x78] sm:$0xff]
  %v341 = vld [vmem:[%s9] sm:$0x3]
  %v343 = vlaneseq
  %v344 = vshrl.u32 %v343, 7
  %v345 = vsub.s32 0, %v344
  %v346 = vrot.slane %v341, %v345
  %v347 = vlaneseq
  %v348 = vshrl.u32 %v347, 7
  %v349 = vsub.s32 1, %v348
  %v350 = vrot.slane %v341, %v349
  %v369 = vunpack.c.l.b16 %v325
  %v370 = vunpack.c.h.b16 %v325
  %v371 = vunpack.c.l.b16 %v326
  %v372 = vunpack.c.h.b16 %v326
  %v373 = vunpack.c.l.b16 %v327
  %v374 = vunpack.c.h.b16 %v327
  %v375 = vunpack.c.l.b16 %v328
  %v376 = vunpack.c.h.b16 %v328
  %v377 = vunpack.c.l.b16 %v329
  %v378 = vunpack.c.h.b16 %v329
  %v379 = vunpack.c.l.b16 %v330
  %v380 = vunpack.c.h.b16 %v330
  %v381 = vunpack.c.l.b16 %v331
  %v382 = vunpack.c.h.b16 %v331
  %v383 = vunpack.c.l.b16 %v332
  %v384 = vunpack.c.h.b16 %v332
  %v385 = vunpack.c.l.b16 %v333
  %v386 = vunpack.c.h.b16 %v333
  %v387 = vunpack.c.l.b16 %v334
  %v388 = vunpack.c.h.b16 %v334
  %v389 = vunpack.c.l.b16 %v335
  %v390 = vunpack.c.h.b16 %v335
  %v391 = vunpack.c.l.b16 %v336
  %v392 = vunpack.c.h.b16 %v336
  %v393 = vunpack.c.l.b16 %v337
  %v394 = vunpack.c.h.b16 %v337
  %v395 = vunpack.c.l.b16 %v338
  %v396 = vunpack.c.h.b16 %v338
  %v397 = vunpack.c.l.b16 %v339
  %v398 = vunpack.c.h.b16 %v339
  %v399 = vunpack.c.l.b16 %v340
  %v400 = vunpack.c.h.b16 %v340
  %v401 = vpack.c.b16 %v371, %v369
  %v402 = vpack.c.b16 %v372, %v370
  %v403 = vpack.c.b16 %v375, %v373
  %v404 = vpack.c.b16 %v376, %v374
  %v405 = vpack.c.b16 %v379, %v377
  %v406 = vpack.c.b16 %v380, %v378
  %v407 = vpack.c.b16 %v383, %v381
  %v408 = vpack.c.b16 %v384, %v382
  %v409 = vpack.c.b16 %v387, %v385
  %v410 = vpack.c.b16 %v388, %v386
  %v411 = vpack.c.b16 %v391, %v389
  %v412 = vpack.c.b16 %v392, %v390
  %v413 = vpack.c.b16 %v395, %v393
  %v414 = vpack.c.b16 %v396, %v394
  %v415 = vpack.c.b16 %v399, %v397
  %v416 = vpack.c.b16 %v400, %v398
  %433 = vmatprep.subr.bf16.mxu0 %v416
  %434 = vmatpush1.bf16.msra.mxu0 %v415
  %435 = vmatprep.subr.bf16.mxu0 %v414
  %436 = vmatpush1.bf16.msra.mxu0 %v413
  %437 = vmatprep.subr.bf16.mxu0 %v412
  %438 = vmatpush1.bf16.msra.mxu0 %v411
  %439 = vmatprep.subr.bf16.mxu0 %v410
  %440 = vmatpush1.bf16.msra.mxu0 %v409
  %441 = vmatprep.subr.bf16.mxu0 %v408
  %442 = vmatpush1.bf16.msra.mxu0 %v407
  %443 = vmatprep.subr.bf16.mxu0 %v406
  %444 = vmatpush1.bf16.msra.mxu0 %v405
  %445 = vmatprep.subr.bf16.mxu0 %v404
  %446 = vmatpush1.bf16.msra.mxu0 %v403
  %447 = vmatprep.subr.bf16.mxu0 %v402
  %448 = vmatpush1.bf16.msra.mxu0 %v401
  %449 = vmatprep.subr.bf16.mxu0 0
  %450 = vmatpush2.bf16.msra.mxu0 0
  %451 = vmatprep.subr.bf16.mxu0 0
  %452 = vmatpush2.bf16.msra.mxu0 0
  %453 = vmatprep.subr.bf16.mxu0 0
  %454 = vmatpush2.bf16.msra.mxu0 0
  %455 = vmatprep.subr.bf16.mxu0 0
  %456 = vmatpush2.bf16.msra.mxu0 0
  %457 = vmatprep.subr.bf16.mxu0 0
  %458 = vmatpush2.bf16.msra.mxu0 0
  %459 = vmatprep.subr.bf16.mxu0 0
  %460 = vmatpush2.bf16.msra.mxu0 0
  %461 = vmatprep.subr.bf16.mxu0 0
  %462 = vmatpush2.bf16.msra.mxu0 0
  %463 = vmatprep.subr.bf16.mxu0 0
  %464 = vmatpush2.bf16.msra.mxu0 0
  %465 = vmatprep.mubr.bf16.mxu0 0
  %466 = vmatmul.mubr.bf16.gmra.mxu0 %v324
  %v467 = vpop.f32.mrf.mxu0
  %v468 = vadd.f32 %v346, %v467
  %v469 = vpop.f32.mrf.mxu0
  %v470 = vadd.f32 %v350, %v469
  %v471 = vpop.f32.mrf.mxu0
  %v472 = vadd.f32 %v346, %v471
  %v473 = vpop.f32.mrf.mxu0
  %v474 = vadd.f32 %v350, %v473
  %475 = vdwg.mxu0
  %v476 = vmax.f32 %v468, 0.0
  %v477 = vmax.f32 %v470, 0.0
  %v478 = vmax.f32 %v472, 0.0
  %v479 = vmax.f32 %v474, 0.0
  %v480 = vpack.c.bf16 %v478, %v476
  %v481 = vpack.c.bf16 %v479, %v477
  %v482 = vld [vmem:[%s10] sm:$0xf]
  %v483 = vld [vmem:[%s10 + $0x4] sm:$0xf]
  %v484 = vld [vmem:[%s10 + $0x8] sm:$0xf]
  %v485 = vld [vmem:[%s10 + $0xc] sm:$0xf]
  %v486 = vld [vmem:[%s10 + $0x10] sm:$0xf]
  %v487 = vld [vmem:[%s10 + $0x14] sm:$0xf]
  %v488 = vld [vmem:[%s10 + $0x18] sm:$0xf]
  %v489 = vld [vmem:[%s10 + $0x1c] sm:$0xf]
  %v490 = vld [vmem:[%s10 + $0x20] sm:$0xf]
  %v491 = vld [vmem:[%s10 + $0x24] sm:$0xf]
  %v492 = vld [vmem:[%s10 + $0x28] sm:$0xf]
  %v493 = vld [vmem:[%s10 + $0x2c] sm:$0xf]
  %v494 = vld [vmem:[%s10 + $0x30] sm:$0xf]
  %v495 = vld [vmem:[%s10 + $0x34] sm:$0xf]
  %v496 = vld [vmem:[%s10 + $0x38] sm:$0xf]
  %v497 = vld [vmem:[%s10 + $0x3c] sm:$0xf]
  %v498 = vld [vmem:[%s10 + $0x40] sm:$0xf]
  %v499 = vld [vmem:[%s10 + $0x44] sm:$0xf]
  %v500 = vld [vmem:[%s10 + $0x48] sm:$0xf]
  %v501 = vld [vmem:[%s10 + $0x4c] sm:$0xf]
  %v502 = vld [vmem:[%s10 + $0x50] sm:$0xf]
  %v503 = vld [vmem:[%s10 + $0x54] sm:$0xf]
  %v504 = vld [vmem:[%s10 + $0x58] sm:$0xf]
  %v505 = vld [vmem:[%s10 + $0x5c] sm:$0xf]
  %v506 = vld [vmem:[%s10 + $0x60] sm:$0xf]
  %v507 = vld [vmem:[%s10 + $0x64] sm:$0xf]
  %v508 = vld [vmem:[%s10 + $0x68] sm:$0xf]
  %v509 = vld [vmem:[%s10 + $0x6c] sm:$0xf]
  %v510 = vld [vmem:[%s10 + $0x70] sm:$0xf]
  %v511 = vld [vmem:[%s10 + $0x74] sm:$0xf]
  %v512 = vld [vmem:[%s10 + $0x78] sm:$0xf]
  %v513 = vld [vmem:[%s10 + $0x7c] sm:$0xf]
  %v514 = vld [vmem:[%s11] sm:$0x1]
  %v516 = vlaneseq
  %v517 = vshrl.u32 %v516, 7
  %v518 = vsub.s32 0, %v517
  %v519 = vrot.slane %v514, %v518
  %v553 = vunpack.c.l.b16 %v482
  %v554 = vunpack.c.l.b16 %v483
  %v555 = vunpack.c.l.b16 %v484
  %v556 = vunpack.c.l.b16 %v485
  %v557 = vunpack.c.l.b16 %v486
  %v558 = vunpack.c.l.b16 %v487
  %v559 = vunpack.c.l.b16 %v488
  %v560 = vunpack.c.l.b16 %v489
  %v561 = vunpack.c.l.b16 %v490
  %v562 = vunpack.c.l.b16 %v491
  %v563 = vunpack.c.l.b16 %v492
  %v564 = vunpack.c.l.b16 %v493
  %v565 = vunpack.c.l.b16 %v494
  %v566 = vunpack.c.l.b16 %v495
  %v567 = vunpack.c.l.b16 %v496
  %v568 = vunpack.c.l.b16 %v497
  %v569 = vunpack.c.l.b16 %v498
  %v570 = vunpack.c.l.b16 %v499
  %v571 = vunpack.c.l.b16 %v500
  %v572 = vunpack.c.l.b16 %v501
  %v573 = vunpack.c.l.b16 %v502
  %v574 = vunpack.c.l.b16 %v503
  %v575 = vunpack.c.l.b16 %v504
  %v576 = vunpack.c.l.b16 %v505
  %v577 = vunpack.c.l.b16 %v506
  %v578 = vunpack.c.l.b16 %v507
  %v579 = vunpack.c.l.b16 %v508
  %v580 = vunpack.c.l.b16 %v509
  %v581 = vunpack.c.l.b16 %v510
  %v582 = vunpack.c.l.b16 %v511
  %v583 = vunpack.c.l.b16 %v512
  %v584 = vunpack.c.l.b16 %v513
  %v585 = vpack.c.b16 %v554, %v553
  %v586 = vpack.c.b16 %v556, %v555
  %v587 = vpack.c.b16 %v558, %v557
  %v588 = vpack.c.b16 %v560, %v559
  %v589 = vpack.c.b16 %v562, %v561
  %v590 = vpack.c.b16 %v564, %v563
  %v591 = vpack.c.b16 %v566, %v565
  %v592 = vpack.c.b16 %v568, %v567
  %v593 = vpack.c.b16 %v570, %v569
  %v594 = vpack.c.b16 %v572, %v571
  %v595 = vpack.c.b16 %v574, %v573
  %v596 = vpack.c.b16 %v576, %v575
  %v597 = vpack.c.b16 %v578, %v577
  %v598 = vpack.c.b16 %v580, %v579
  %v599 = vpack.c.b16 %v582, %v581
  %v600 = vpack.c.b16 %v584, %v583
  %617 = vmatprep.subr.bf16.mxu0 0
  %618 = vmatpush1.bf16.msra.mxu0 %v592
  %619 = vmatprep.subr.bf16.mxu0 0
  %620 = vmatpush1.bf16.msra.mxu0 %v591
  %621 = vmatprep.subr.bf16.mxu0 0
  %622 = vmatpush1.bf16.msra.mxu0 %v590
  %623 = vmatprep.subr.bf16.mxu0 0
  %624 = vmatpush1.bf16.msra.mxu0 %v589
  %625 = vmatprep.subr.bf16.mxu0 0
  %626 = vmatpush1.bf16.msra.mxu0 %v588
  %627 = vmatprep.subr.bf16.mxu0 0
  %628 = vmatpush1.bf16.msra.mxu0 %v587
  %629 = vmatprep.subr.bf16.mxu0 0
  %630 = vmatpush1.bf16.msra.mxu0 %v586
  %631 = vmatprep.subr.bf16.mxu0 0
  %632 = vmatpush1.bf16.msra.mxu0 %v585
  %633 = vmatprep.subr.bf16.mxu0 0
  %634 = vmatpush2.bf16.msra.mxu0 %v600
  %635 = vmatprep.subr.bf16.mxu0 0
  %636 = vmatpush2.bf16.msra.mxu0 %v599
  %637 = vmatprep.subr.bf16.mxu0 0
  %638 = vmatpush2.bf16.msra.mxu0 %v598
  %639 = vmatprep.subr.bf16.mxu0 0
  %640 = vmatpush2.bf16.msra.mxu0 %v597
  %641 = vmatprep.subr.bf16.mxu0 0
  %642 = vmatpush2.bf16.msra.mxu0 %v596
  %643 = vmatprep.subr.bf16.mxu0 0
  %644 = vmatpush2.bf16.msra.mxu0 %v595
  %645 = vmatprep.subr.bf16.mxu0 0
  %646 = vmatpush2.bf16.msra.mxu0 %v594
  %647 = vmatprep.subr.bf16.mxu0 0
  %648 = vmatpush2.bf16.msra.mxu0 %v593
  %649 = vmatprep.mubr.bf16.mxu0 %v481
  %650 = vmatmul.mubr.bf16.gmra.mxu0 %v480
  %v651 = vpop.f32.mrf.mxu0
  %v652 = vadd.f32 %v519, %v651
  %v653 = vpop.f32.mrf.mxu0
  %v654 = vpop.f32.mrf.mxu0
  %v655 = vadd.f32 %v519, %v654
  %v656 = vpop.f32.mrf.mxu0
  %657 = vdwg.mxu0
  %v658 = vadd.f32 %v652, %v281
  %v659 = vadd.f32 %v655, %v282
  %v660 = vpack.c.bf16 %v659, %v658
  %v662 = vunpack.c.l.b16 %v660
  %v663 = vunpack.c.h.b16 %v660
  %v664 = vpack.c.b16 %v662, %v662
  %v665 = vpack.c.b16 %v663, %v663
  %668 = vst [vmem:[%s12] sm:$0xf] %v664
  %669 = vst [vmem:[%s12 + $0x4] sm:$0xf] %v665
  // Predicated region
  $region50: #{vivit_forward.11} parent=0 // pred_check
    _
  $region51: #{vivit_forward.11} parent=0 // pred_check_branch
    %671 = sbr.rel (0) target = $region53
  $region52: #{vivit_forward.11} parent=0 // pred_region
    _
  $region53: #{vivit_forward.11} parent=0 // pred_fallthru
    _
  // Predicated region
  $region54: #{vivit_forward.11} parent=0 // pred_check
    _
  $region55: #{vivit_forward.11} parent=0 // pred_check_branch
    %673 = sbr.rel (0) target = $region57
  $region56: #{vivit_forward.11} parent=0 // pred_region
    _
  $region57: #{vivit_forward.11} parent=0 // pred_fallthru
    _

// kernel: vivit_forward.10
$region0: #{vivit_forward.10}
  #allocation0 [shape = 'u32[]', space=smem, size = 0x4, offset = 0x4, fixed_abs, tag = 'smem constant byte address 0x4 - core index']
  #allocation1 [shape = 'u32[144,128]{1,0:T(1,128)}', space=vmem, size = 0x12000, scoped, tag = 'internal scratch']
  %s0 = inlined_call_operand.vmem [shape: bf16[2,2,4,768], index: 0, kind: input, shape index: {}]
  %s1 = inlined_call_operand.vmem [shape: bf16[2,2,4,128], index: 1, kind: output, shape index: {0}]
  %s2 = inlined_call_operand.vmem [shape: bf16[2,2,4,128], index: 2, kind: output, shape index: {1}]
  %3 = xla_tuple %s1, %s2
  %s4 = sld [smem:[#allocation0]]
  $region45: #{vivit_forward.10} parent=0
    _
  %s6 = ssub.s32 1, %s4
  %s7 = scalar_select 0, %s6, %s4
  loop: start=0, step=1, limit=4
  $region2: #{vivit_forward.10} parent=0 // loop_pre_header
    _
  $region3: #{vivit_forward.10} parent=0 // loop_header
    %s9 = sphi 0, %s13
    %p10 = scmp.ge.s32.totalorder %s9, 4
    %s19 = sphi 0, %s21
    %s22 = sphi 0, %s19
    %s23 = sphi 0, %s22
    %s39 = sphi 0, %s23
    %s45 = sphi 0, %s47
    %s48 = sphi 0, %s45
    %s49 = sphi 0, %s48
    %s65 = sphi 0, %s49
    %s71 = sphi 0, %s73
    %s74 = sphi 0, %s71
    %s75 = sphi 0, %s74
    %s91 = sphi 0, %s75
  $region4: #{vivit_forward.10} parent=0 // loop_header_branch
    %12 = sbr.rel (%p10) target = $region8
  $region5: #{vivit_forward.10} parent=0 // loop_body
    %s14 = ssub.s32 %s9, 1
    %s15 = ssub.s32 %s9, 2
    %s16 = sadd.s32 %s9, 1
    %s17 = ssub.s32 %s9, %s16
    %p18 = scmp.eq.s32.totalorder %s17, 0
    %s20 = sadd.s32 %s19, 1
    %s21 = scalar_select %p18, %s19, %s20
    %p24 = pneg %p18
    %p25 = scmp.eq.s32.totalorder %s9, 1
    %p26 = por %p24, %p25
    %p27 = scmp.ne.s32.totalorder %s19, %s22
    %p28 = scmp.eq.s32.totalorder %s9, 0
    %p29 = por %p27, %p28
    %p30 = scmp.ne.s32.totalorder %s19, %s22
    %p31 = scmp.eq.s32.totalorder %s14, 1
    %p32 = por %p30, %p31
    %p33 = scmp.ne.s32.totalorder %s22, %s23
    %p34 = scmp.eq.s32.totalorder %s14, 0
    %p35 = por %p33, %p34
    %p36 = scmp.ne.s32.totalorder %s22, %s23
    %p37 = scmp.eq.s32.totalorder %s15, 1
    %p38 = por %p36, %p37
    %p40 = scmp.ne.s32.totalorder %s23, %s39
    %p41 = scmp.eq.s32.totalorder %s15, 0
    %p42 = por %p40, %p41
    %s43 = ssub.s32 %s9, %s16
    %p44 = scmp.eq.s32.totalorder %s43, 0
    %s46 = sadd.s32 %s45, 1
    %s47 = scalar_select %p44, %s45, %s46
    %p50 = pneg %p44
    %p51 = scmp.eq.s32.totalorder %s9, 1
    %p52 = por %p50, %p51
    %p53 = scmp.ne.s32.totalorder %s45, %s48
    %p54 = scmp.eq.s32.totalorder %s9, 0
    %p55 = por %p53, %p54
    %p56 = scmp.ne.s32.totalorder %s45, %s48
    %p57 = scmp.eq.s32.totalorder %s14, 1
    %p58 = por %p56, %p57
    %p59 = scmp.ne.s32.totalorder %s48, %s49
    %p60 = scmp.eq.s32.totalorder %s14, 0
    %p61 = por %p59, %p60
    %p62 = scmp.ne.s32.totalorder %s48, %s49
    %p63 = scmp.eq.s32.totalorder %s15, 1
    %p64 = por %p62, %p63
    %p66 = scmp.ne.s32.totalorder %s49, %s65
    %p67 = scmp.eq.s32.totalorder %s15, 0
    %p68 = por %p66, %p67
    %s69 = ssub.s32 %s9, %s16
    %p70 = scmp.eq.s32.totalorder %s69, 0
    %s72 = sadd.s32 %s71, 1
    %s73 = scalar_select %p70, %s71, %s72
    %p76 = pneg %p70
    %p77 = scmp.eq.s32.totalorder %s9, 1
    %p78 = por %p76, %p77
    %p79 = scmp.ne.s32.totalorder %s71, %s74
    %p80 = scmp.eq.s32.totalorder %s9, 0
    %p81 = por %p79, %p80
    %p82 = scmp.ne.s32.totalorder %s71, %s74
    %p83 = scmp.eq.s32.totalorder %s14, 1
    %p84 = por %p82, %p83
    %p85 = scmp.ne.s32.totalorder %s74, %s75
    %p86 = scmp.eq.s32.totalorder %s14, 0
    %p87 = por %p85, %p86
    %p88 = scmp.ne.s32.totalorder %s74, %s75
    %p89 = scmp.eq.s32.totalorder %s15, 1
    %p90 = por %p88, %p89
    %p92 = scmp.ne.s32.totalorder %s75, %s91
    %p93 = scmp.eq.s32.totalorder %s15, 0
    %p94 = por %p92, %p93
    %p95 = scmp.le.s32.totalorder 1, %s9
    %p96 = scmp.lt.s32.totalorder %s9, 3
    %p97 = pnand %p95, %p96
    %p98 = pneg %p97
    // Predicated region
    $region9: #{vivit_forward.10} parent=5 // pred_check
      _
    $region10: #{vivit_forward.10} parent=5 // pred_check_branch
      %100 = sbr.rel (%p97) target = $region12
    $region11: #{vivit_forward.10} parent=5 // pred_region
      %s101 = ssub.s32 %s9, 1
    $region12: #{vivit_forward.10} parent=5 // pred_fallthru
      _
    %p102 = scmp.lt.s32.totalorder %s9, 2
    // Predicated region
    $region13: #{vivit_forward.10} parent=5 // pred_check
      %p103 = pneg %p102
    $region14: #{vivit_forward.10} parent=5 // pred_check_branch
      %105 = sbr.rel (%p103) target = $region16
    $region15: #{vivit_forward.10} parent=5 // pred_region
      // Predicated region
      $region17: #{vivit_forward.10} parent=15 // pred_check
        %p106 = pneg %p29
      $region18: #{vivit_forward.10} parent=15 // pred_check_branch
        %108 = sbr.rel (%p106) target = $region20
      $region19: #{vivit_forward.10} parent=15 // pred_region
        %p109 = scmp.lt.s32.totalorder %s9, 1
        %s110 = scalar_select %p109, %s9, 1
        %s111 = smul.addr %s110, 12
        %s112 = smul.addr %s111, 2
        %s113 = scalar_lea.vmem %s0, %s112
      $region20: #{vivit_forward.10} parent=15 // pred_fallthru
        _
    $region16: #{vivit_forward.10} parent=5 // pred_fallthru
      _
    %p114 = scmp.le.s32.totalorder 1, %s9
    %p115 = scmp.lt.s32.totalorder %s9, 3
    %p116 = pnand %p114, %p115
    %p117 = pneg %p116
    // Predicated region
    $region21: #{vivit_forward.10} parent=5 // pred_check
      _
    $region22: #{vivit_forward.10} parent=5 // pred_check_branch
      %119 = sbr.rel (%p116) target = $region24
    $region23: #{vivit_forward.10} parent=5 // pred_region
      %s120 = ssub.s32 %s9, 1
      %p121 = scmp.lt.s32.totalorder %s14, 1
      %s122 = scalar_select %p121, %s14, 1
      %s123 = smul.addr %s122, 12
      %s124 = smul.addr %s123, 2
      %s125 = scalar_lea.vmem %s0, %s124
      %p126 = pneg %p35
      %p127 = pneg %p32
      %p128 = pneg %p61
      %p129 = pneg %p58
      %p130 = scmp.lt.s32.totalorder %s14, 1
      %s131 = scalar_select %p130, %s14, 1
      %s132 = smul.addr %s131, 2
      %s133 = smul.addr %s132, 2
      %s134 = scalar_lea.vmem %s1, %s133
      %p135 = pneg %p87
      %p136 = pneg %p84
      %p137 = scmp.lt.s32.totalorder %s14, 1
      %s138 = scalar_select %p137, %s14, 1
      %s139 = smul.addr %s138, 2
      %s140 = smul.addr %s139, 2
      %s141 = scalar_lea.vmem %s2, %s140
      %p142 = scmp.lt.s32.totalorder %s14, 1
      %s143 = scalar_select %p142, %s14, 1
      %s144 = smul.addr %s143, 12
      %s145 = smul.addr %s144, 2
      %s146 = scalar_lea.vmem %s0, %s145
      %p147 = scmp.lt.s32.totalorder %s14, 1
      %s148 = scalar_select %p147, %s14, 1
      %s149 = smul.addr %s148, 2
      %s150 = smul.addr %s149, 2
      %s151 = scalar_lea.vmem %s1, %s150
      %p152 = scmp.lt.s32.totalorder %s14, 1
      %s153 = scalar_select %p152, %s14, 1
      %s154 = smul.addr %s153, 2
      %s155 = smul.addr %s154, 2
      %s156 = scalar_lea.vmem %s2, %s155
      %v158 = vld [vmem:[%s146] sm:$0xff]
      %v159 = vld [vmem:[%s146 + $0x8] sm:$0xf]
      %v160 = vld [vmem:[%s146 + $0xc] sm:$0xff]
      %v161 = vld [vmem:[%s146 + $0x14] sm:$0xf]
      %164 = vrot.lane.b32.xlu0 %v158, 96
      %v165 = vpop.permute.xlu0 %164
      %166 = vrot.lane.b32.xlu0 %v160, 96
      %v167 = vpop.permute.xlu0 %166
      %170 = vrot.lane.b32.xlu0 %v158, 64
      %v171 = vpop.permute.xlu0 %170
      %172 = vrot.lane.b32.xlu0 %v160, 64
      %v173 = vpop.permute.xlu0 %172
      %176 = vrot.lane.b32.xlu0 %v158, 32
      %v177 = vpop.permute.xlu0 %176
      %178 = vrot.lane.b32.xlu0 %v160, 32
      %v179 = vpop.permute.xlu0 %178
      %v182 = vcombine.low %v158, %v171
      %v184 = vunpack.c.l.s4 1934713408
      %v185 = vunpack.c.0.s8 %v184
      %v186 = vlaneseq
      %v187 = vshrl.u32 %v186, 7
      %v188 = vsub.s32 %v185, %v187
      %v189 = vrot.slane %v182, %v188
      %v190 = vcombine.high %v189, 0
      %v191 = vcombine.low %v165, %v177
      %v193 = vunpack.c.l.s4 1934713408
      %v194 = vunpack.c.0.s8 %v193
      %v195 = vlaneseq
      %v196 = vshrl.u32 %v195, 7
      %v197 = vsub.s32 %v194, %v196
      %v198 = vrot.slane %v191, %v197
      %v199 = vcombine.high %v198, 0
      %v200 = vcombine.low %v160, %v173
      %v202 = vunpack.c.l.s4 1934713408
      %v203 = vunpack.c.0.s8 %v202
      %v204 = vlaneseq
      %v205 = vshrl.u32 %v204, 7
      %v206 = vsub.s32 %v203, %v205
      %v207 = vrot.slane %v200, %v206
      %v208 = vcombine.high %v207, 0
      %v209 = vcombine.low %v167, %v179
      %v211 = vunpack.c.l.s4 1934713408
      %v212 = vunpack.c.0.s8 %v211
      %v213 = vlaneseq
      %v214 = vshrl.u32 %v213, 7
      %v215 = vsub.s32 %v212, %v214
      %v216 = vrot.slane %v209, %v215
      %v217 = vcombine.high %v216, 0
      %v220 = vpack.i.b16 %v198, %v189
      %v222 = vshrl.u32 %v189, 16
      %v223 = vshrl.u32 %v198, 16
      %v224 = vpack.i.b16 %v223, %v222
      %v228 = vpack.i.b16 %v199, %v190
      %v230 = vshrl.u32 %v190, 16
      %v231 = vshrl.u32 %v199, 16
      %v232 = vpack.i.b16 %v231, %v230
      %v236 = vpack.i.b16 %v216, %v207
      %v238 = vshrl.u32 %v207, 16
      %v239 = vshrl.u32 %v216, 16
      %v240 = vpack.i.b16 %v239, %v238
      %v244 = vpack.i.b16 %v217, %v208
      %v246 = vshrl.u32 %v208, 16
      %v247 = vshrl.u32 %v217, 16
      %v248 = vpack.i.b16 %v247, %v246
      %v250 = vrot.slane %v158, 2
      %v251 = vrot.slane %v160, 2
      %v254 = vrot.slane %v165, 2
      %v255 = vrot.slane %v167, 2
      %v258 = vrot.slane %v171, 2
      %v259 = vrot.slane %v173, 2
      %v262 = vrot.slane %v177, 2
      %v263 = vrot.slane %v179, 2
      %v266 = vcombine.low %v250, %v258
      %v268 = vunpack.c.l.s4 1934713408
      %v269 = vunpack.c.0.s8 %v268
      %v270 = vlaneseq
      %v271 = vshrl.u32 %v270, 7
      %v272 = vsub.s32 %v269, %v271
      %v273 = vrot.slane %v266, %v272
      %v274 = vcombine.high %v273, 0
      %v275 = vcombine.low %v254, %v262
      %v277 = vunpack.c.l.s4 1934713408
      %v278 = vunpack.c.0.s8 %v277
      %v279 = vlaneseq
      %v280 = vshrl.u32 %v279, 7
      %v281 = vsub.s32 %v278, %v280
      %v282 = vrot.slane %v275, %v281
      %v283 = vcombine.high %v282, 0
      %v284 = vcombine.low %v251, %v259
      %v286 = vunpack.c.l.s4 1934713408
      %v287 = vunpack.c.0.s8 %v286
      %v288 = vlaneseq
      %v289 = vshrl.u32 %v288, 7
      %v290 = vsub.s32 %v287, %v289
      %v291 = vrot.slane %v284, %v290
      %v292 = vcombine.high %v291, 0
      %v293 = vcombine.low %v255, %v263
      %v295 = vunpack.c.l.s4 1934713408
      %v296 = vunpack.c.0.s8 %v295
      %v297 = vlaneseq
      %v298 = vshrl.u32 %v297, 7
      %v299 = vsub.s32 %v296, %v298
      %v300 = vrot.slane %v293, %v299
      %v301 = vcombine.high %v300, 0
      %v304 = vpack.i.b16 %v282, %v273
      %v306 = vshrl.u32 %v273, 16
      %v307 = vshrl.u32 %v282, 16
      %v308 = vpack.i.b16 %v307, %v306
      %v312 = vpack.i.b16 %v283, %v274
      %v314 = vshrl.u32 %v274, 16
      %v315 = vshrl.u32 %v283, 16
      %v316 = vpack.i.b16 %v315, %v314
      %v320 = vpack.i.b16 %v300, %v291
      %v322 = vshrl.u32 %v291, 16
      %v323 = vshrl.u32 %v300, 16
      %v324 = vpack.i.b16 %v323, %v322
      %v328 = vpack.i.b16 %v301, %v292
      %v330 = vshrl.u32 %v292, 16
      %v331 = vshrl.u32 %v301, 16
      %v332 = vpack.i.b16 %v331, %v330
      %v334 = vrot.slane %v158, 4
      %v335 = vrot.slane %v160, 4
      %v338 = vrot.slane %v165, 4
      %v339 = vrot.slane %v167, 4
      %v342 = vrot.slane %v171, 4
      %v343 = vrot.slane %v173, 4
      %v346 = vrot.slane %v177, 4
      %v347 = vrot.slane %v179, 4
      %v350 = vcombine.low %v334, %v342
      %v352 = vunpack.c.l.s4 1934713408
      %v353 = vunpack.c.0.s8 %v352
      %v354 = vlaneseq
      %v355 = vshrl.u32 %v354, 7
      %v356 = vsub.s32 %v353, %v355
      %v357 = vrot.slane %v350, %v356
      %v358 = vcombine.high %v357, 0
      %v359 = vcombine.low %v338, %v346
      %v361 = vunpack.c.l.s4 1934713408
      %v362 = vunpack.c.0.s8 %v361
      %v363 = vlaneseq
      %v364 = vshrl.u32 %v363, 7
      %v365 = vsub.s32 %v362, %v364
      %v366 = vrot.slane %v359, %v365
      %v367 = vcombine.high %v366, 0
      %v368 = vcombine.low %v335, %v343
      %v370 = vunpack.c.l.s4 1934713408
      %v371 = vunpack.c.0.s8 %v370
      %v372 = vlaneseq
      %v373 = vshrl.u32 %v372, 7
      %v374 = vsub.s32 %v371, %v373
      %v375 = vrot.slane %v368, %v374
      %v376 = vcombine.high %v375, 0
      %v377 = vcombine.low %v339, %v347
      %v379 = vunpack.c.l.s4 1934713408
      %v380 = vunpack.c.0.s8 %v379
      %v381 = vlaneseq
      %v382 = vshrl.u32 %v381, 7
      %v383 = vsub.s32 %v380, %v382
      %v384 = vrot.slane %v377, %v383
      %v385 = vcombine.high %v384, 0
      %v388 = vpack.i.b16 %v366, %v357
      %v390 = vshrl.u32 %v357, 16
      %v391 = vshrl.u32 %v366, 16
      %v392 = vpack.i.b16 %v391, %v390
      %v396 = vpack.i.b16 %v367, %v358
      %v398 = vshrl.u32 %v358, 16
      %v399 = vshrl.u32 %v367, 16
      %v400 = vpack.i.b16 %v399, %v398
      %v404 = vpack.i.b16 %v384, %v375
      %v406 = vshrl.u32 %v375, 16
      %v407 = vshrl.u32 %v384, 16
      %v408 = vpack.i.b16 %v407, %v406
      %v412 = vpack.i.b16 %v385, %v376
      %v414 = vshrl.u32 %v376, 16
      %v415 = vshrl.u32 %v385, 16
      %v416 = vpack.i.b16 %v415, %v414
      %v418 = vcombine.low %v220, %v228
      %v420 = vunpack.c.l.s4 1934713408
      %v421 = vunpack.c.0.s8 %v420
      %v422 = vlaneseq
      %v423 = vshrl.u32 %v422, 7
      %v424 = vsub.s32 %v421, %v423
      %v425 = vrot.slane %v418, %v424
      %v426 = vcombine.high %v425, 0
      %v427 = vcombine.low %v224, %v232
      %v429 = vunpack.c.l.s4 1934713408
      %v430 = vunpack.c.0.s8 %v429
      %v431 = vlaneseq
      %v432 = vshrl.u32 %v431, 7
      %v433 = vsub.s32 %v430, %v432
      %v434 = vrot.slane %v427, %v433
      %v435 = vcombine.high %v434, 0
      %v436 = vcombine.low %v236, %v244
      %v438 = vunpack.c.l.s4 1934713408
      %v439 = vunpack.c.0.s8 %v438
      %v440 = vlaneseq
      %v441 = vshrl.u32 %v440, 7
      %v442 = vsub.s32 %v439, %v441
      %v443 = vrot.slane %v436, %v442
      %v444 = vcombine.high %v443, 0
      %v445 = vcombine.low %v240, %v248
      %v447 = vunpack.c.l.s4 1934713408
      %v448 = vunpack.c.0.s8 %v447
      %v449 = vlaneseq
      %v450 = vshrl.u32 %v449, 7
      %v451 = vsub.s32 %v448, %v450
      %v452 = vrot.slane %v445, %v451
      %v453 = vcombine.high %v452, 0
      %v456 = vpack.i.b16 %v434, %v425
      %v457 = vshrl.u32 %v425, 16
      %v458 = vshrl.u32 %v434, 16
      %v459 = vpack.i.b16 %v458, %v457
      %v462 = vpack.i.b16 %v435, %v426
      %v463 = vshrl.u32 %v426, 16
      %v464 = vshrl.u32 %v435, 16
      %v465 = vpack.i.b16 %v464, %v463
      %v468 = vpack.i.b16 %v452, %v443
      %v469 = vshrl.u32 %v443, 16
      %v470 = vshrl.u32 %v452, 16
      %v471 = vpack.i.b16 %v470, %v469
      %v474 = vpack.i.b16 %v453, %v444
      %v475 = vshrl.u32 %v444, 16
      %v476 = vshrl.u32 %v453, 16
      %v477 = vpack.i.b16 %v476, %v475
      %v478 = vcombine.low %v304, %v312
      %v480 = vunpack.c.l.s4 1934713408
      %v481 = vunpack.c.0.s8 %v480
      %v482 = vlaneseq
      %v483 = vshrl.u32 %v482, 7
      %v484 = vsub.s32 %v481, %v483
      %v485 = vrot.slane %v478, %v484
      %v486 = vcombine.high %v485, 0
      %v487 = vcombine.low %v308, %v316
      %v489 = vunpack.c.l.s4 1934713408
      %v490 = vunpack.c.0.s8 %v489
      %v491 = vlaneseq
      %v492 = vshrl.u32 %v491, 7
      %v493 = vsub.s32 %v490, %v492
      %v494 = vrot.slane %v487, %v493
      %v495 = vcombine.high %v494, 0
      %v496 = vcombine.low %v320, %v328
      %v498 = vunpack.c.l.s4 1934713408
      %v499 = vunpack.c.0.s8 %v498
      %v500 = vlaneseq
      %v501 = vshrl.u32 %v500, 7
      %v502 = vsub.s32 %v499, %v501
      %v503 = vrot.slane %v496, %v502
      %v504 = vcombine.high %v503, 0
      %v505 = vcombine.low %v324, %v332
      %v507 = vunpack.c.l.s4 1934713408
      %v508 = vunpack.c.0.s8 %v507
      %v509 = vlaneseq
      %v510 = vshrl.u32 %v509, 7
      %v511 = vsub.s32 %v508, %v510
      %v512 = vrot.slane %v505, %v511
      %v513 = vcombine.high %v512, 0
      %v516 = vpack.i.b16 %v494, %v485
      %v517 = vshrl.u32 %v485, 16
      %v518 = vshrl.u32 %v494, 16
      %v519 = vpack.i.b16 %v518, %v517
      %v522 = vpack.i.b16 %v495, %v486
      %v523 = vshrl.u32 %v486, 16
      %v524 = vshrl.u32 %v495, 16
      %v525 = vpack.i.b16 %v524, %v523
      %v528 = vpack.i.b16 %v512, %v503
      %v529 = vshrl.u32 %v503, 16
      %v530 = vshrl.u32 %v512, 16
      %v531 = vpack.i.b16 %v530, %v529
      %v534 = vpack.i.b16 %v513, %v504
      %v535 = vshrl.u32 %v504, 16
      %v536 = vshrl.u32 %v513, 16
      %v537 = vpack.i.b16 %v536, %v535
      %v538 = vcombine.low %v388, %v396
      %v540 = vunpack.c.l.s4 1934713408
      %v541 = vunpack.c.0.s8 %v540
      %v542 = vlaneseq
      %v543 = vshrl.u32 %v542, 7
      %v544 = vsub.s32 %v541, %v543
      %v545 = vrot.slane %v538, %v544
      %v546 = vcombine.high %v545, 0
      %v547 = vcombine.low %v392, %v400
      %v549 = vunpack.c.l.s4 1934713408
      %v550 = vunpack.c.0.s8 %v549
      %v551 = vlaneseq
      %v552 = vshrl.u32 %v551, 7
      %v553 = vsub.s32 %v550, %v552
      %v554 = vrot.slane %v547, %v553
      %v555 = vcombine.high %v554, 0
      %v556 = vcombine.low %v404, %v412
      %v558 = vunpack.c.l.s4 1934713408
      %v559 = vunpack.c.0.s8 %v558
      %v560 = vlaneseq
      %v561 = vshrl.u32 %v560, 7
      %v562 = vsub.s32 %v559, %v561
      %v563 = vrot.slane %v556, %v562
      %v564 = vcombine.high %v563, 0
      %v565 = vcombine.low %v408, %v416
      %v567 = vunpack.c.l.s4 1934713408
      %v568 = vunpack.c.0.s8 %v567
      %v569 = vlaneseq
      %v570 = vshrl.u32 %v569, 7
      %v571 = vsub.s32 %v568, %v570
      %v572 = vrot.slane %v565, %v571
      %v573 = vcombine.high %v572, 0
      %v576 = vpack.i.b16 %v554, %v545
      %v577 = vshrl.u32 %v545, 16
      %v578 = vshrl.u32 %v554, 16
      %v579 = vpack.i.b16 %v578, %v577
      %v582 = vpack.i.b16 %v555, %v546
      %v583 = vshrl.u32 %v546, 16
      %v584 = vshrl.u32 %v555, 16
      %v585 = vpack.i.b16 %v584, %v583
      %v588 = vpack.i.b16 %v572, %v563
      %v589 = vshrl.u32 %v563, 16
      %v590 = vshrl.u32 %v572, 16
      %v591 = vpack.i.b16 %v590, %v589
      %v594 = vpack.i.b16 %v573, %v564
      %v595 = vshrl.u32 %v564, 16
      %v596 = vshrl.u32 %v573, 16
      %v597 = vpack.i.b16 %v596, %v595
      %vm598 = vcmask 261120
      %v600 = vsel %vm598, %v456, 0
      %v603 = vsel %vm598, %v516, 0
      %605 = vmatprep.subr.bf16.mxu0 0
      %606 = vmatpush1.bf16.xpose.msra.mxu0 0
      %607 = vmatprep.subr.bf16.mxu0 0
      %608 = vmatpush1.bf16.xpose.msra.mxu0 0
      %609 = vmatprep.subr.bf16.mxu0 0
      %610 = vmatpush1.bf16.xpose.msra.mxu0 0
      %611 = vmatprep.subr.bf16.mxu0 0
      %612 = vmatpush1.bf16.xpose.msra.mxu0 0
      %613 = vmatprep.subr.bf16.mxu0 0
      %614 = vmatpush1.bf16.xpose.msra.mxu0 0
      %615 = vmatprep.subr.bf16.mxu0 0
      %616 = vmatpush1.bf16.xpose.msra.mxu0 0
      %617 = vmatprep.subr.bf16.mxu0 0
      %618 = vmatpush1.bf16.xpose.msra.mxu0 0
      %619 = vmatprep.subr.bf16.mxu0 0
      %620 = vmatpush1.bf16.xpose.msra.mxu0 %v603
      %621 = vmatprep.subr.bf16.mxu0 0
      %622 = vmatpush2.bf16.xpose.msra.mxu0 0
      %623 = vmatprep.subr.bf16.mxu0 0
      %624 = vmatpush2.bf16.xpose.msra.mxu0 0
      %625 = vmatprep.subr.bf16.mxu0 0
      %626 = vmatpush2.bf16.xpose.msra.mxu0 0
      %627 = vmatprep.subr.bf16.mxu0 0
      %628 = vmatpush2.bf16.xpose.msra.mxu0 0
      %629 = vmatprep.subr.bf16.mxu0 0
      %630 = vmatpush2.bf16.xpose.msra.mxu0 0
      %631 = vmatprep.subr.bf16.mxu0 0
      %632 = vmatpush2.bf16.xpose.msra.mxu0 0
      %633 = vmatprep.subr.bf16.mxu0 0
      %634 = vmatpush2.bf16.xpose.msra.mxu0 0
      %635 = vmatprep.subr.bf16.mxu0 0
      %636 = vmatpush2.bf16.xpose.msra.mxu0 0
      %637 = vmatprep.mubr.bf16.mxu0 0
      %638 = vmatmul.mubr.bf16.gmra.mxu0 %v600
      %v639 = vpop.f32.mrf.mxu0
      %v640 = vadd.f32 0.0, %v639
      %v641 = vpop.f32.mrf.mxu0
      %v642 = vpop.f32.mrf.mxu0
      %v643 = vpop.f32.mrf.mxu0
      %644 = vdwg.mxu0
      %v646 = vsel %vm598, %v459, 0
      %v649 = vsel %vm598, %v519, 0
      %651 = vmatprep.subr.bf16.mxu0 0
      %652 = vmatpush1.bf16.xpose.msra.mxu0 0
      %653 = vmatprep.subr.bf16.mxu0 0
      %654 = vmatpush1.bf16.xpose.msra.mxu0 0
      %655 = vmatprep.subr.bf16.mxu0 0
      %656 = vmatpush1.bf16.xpose.msra.mxu0 0
      %657 = vmatprep.subr.bf16.mxu0 0
      %658 = vmatpush1.bf16.xpose.msra.mxu0 0
      %659 = vmatprep.subr.bf16.mxu0 0
      %660 = vmatpush1.bf16.xpose.msra.mxu0 0
      %661 = vmatprep.subr.bf16.mxu0 0
      %662 = vmatpush1.bf16.xpose.msra.mxu0 0
      %663 = vmatprep.subr.bf16.mxu0 0
      %664 = vmatpush1.bf16.xpose.msra.mxu0 0
      %665 = vmatprep.subr.bf16.mxu0 0
      %666 = vmatpush1.bf16.xpose.msra.mxu0 %v649
      %667 = vmatprep.subr.bf16.mxu0 0
      %668 = vmatpush2.bf16.xpose.msra.mxu0 0
      %669 = vmatprep.subr.bf16.mxu0 0
      %670 = vmatpush2.bf16.xpose.msra.mxu0 0
      %671 = vmatprep.subr.bf16.mxu0 0
      %672 = vmatpush2.bf16.xpose.msra.mxu0 0
      %673 = vmatprep.subr.bf16.mxu0 0
      %674 = vmatpush2.bf16.xpose.msra.mxu0 0
      %675 = vmatprep.subr.bf16.mxu0 0
      %676 = vmatpush2.bf16.xpose.msra.mxu0 0
      %677 = vmatprep.subr.bf16.mxu0 0
      %678 = vmatpush2.bf16.xpose.msra.mxu0 0
      %679 = vmatprep.subr.bf16.mxu0 0
      %680 = vmatpush2.bf16.xpose.msra.mxu0 0
      %681 = vmatprep.subr.bf16.mxu0 0
      %682 = vmatpush2.bf16.xpose.msra.mxu0 0
      %683 = vmatprep.mubr.bf16.mxu0 0
      %684 = vmatmul.mubr.bf16.gmra.mxu0 %v646
      %v685 = vpop.f32.mrf.mxu0
      %v686 = vadd.f32 0.0, %v685
      %v687 = vpop.f32.mrf.mxu0
      %v688 = vpop.f32.mrf.mxu0
      %v689 = vpop.f32.mrf.mxu0
      %690 = vdwg.mxu0
      %v692 = vsel %vm598, %v462, 0
      %v695 = vsel %vm598, %v522, 0
      %697 = vmatprep.subr.bf16.mxu0 0
      %698 = vmatpush1.bf16.xpose.msra.mxu0 0
      %699 = vmatprep.subr.bf16.mxu0 0
      %700 = vmatpush1.bf16.xpose.msra.mxu0 0
      %701 = vmatprep.subr.bf16.mxu0 0
      %702 = vmatpush1.bf16.xpose.msra.mxu0 0
      %703 = vmatprep.subr.bf16.mxu0 0
      %704 = vmatpush1.bf16.xpose.msra.mxu0 0
      %705 = vmatprep.subr.bf16.mxu0 0
      %706 = vmatpush1.bf16.xpose.msra.mxu0 0
      %707 = vmatprep.subr.bf16.mxu0 0
      %708 = vmatpush1.bf16.xpose.msra.mxu0 0
      %709 = vmatprep.subr.bf16.mxu0 0
      %710 = vmatpush1.bf16.xpose.msra.mxu0 0
      %711 = vmatprep.subr.bf16.mxu0 0
      %712 = vmatpush1.bf16.xpose.msra.mxu0 %v695
      %713 = vmatprep.subr.bf16.mxu0 0
      %714 = vmatpush2.bf16.xpose.msra.mxu0 0
      %715 = vmatprep.subr.bf16.mxu0 0
      %716 = vmatpush2.bf16.xpose.msra.mxu0 0
      %717 = vmatprep.subr.bf16.mxu0 0
      %718 = vmatpush2.bf16.xpose.msra.mxu0 0
      %719 = vmatprep.subr.bf16.mxu0 0
      %720 = vmatpush2.bf16.xpose.msra.mxu0 0
      %721 = vmatprep.subr.bf16.mxu0 0
      %722 = vmatpush2.bf16.xpose.msra.mxu0 0
      %723 = vmatprep.subr.bf16.mxu0 0
      %724 = vmatpush2.bf16.xpose.msra.mxu0 0
      %725 = vmatprep.subr.bf16.mxu0 0
      %726 = vmatpush2.bf16.xpose.msra.mxu0 0
      %727 = vmatprep.subr.bf16.mxu0 0
      %728 = vmatpush2.bf16.xpose.msra.mxu0 0
      %729 = vmatprep.mubr.bf16.mxu0 0
      %730 = vmatmul.mubr.bf16.gmra.mxu0 %v692
      %v731 = vpop.f32.mrf.mxu0
      %v732 = vadd.f32 0.0, %v731
      %v733 = vpop.f32.mrf.mxu0
      %v734 = vpop.f32.mrf.mxu0
      %v735 = vpop.f32.mrf.mxu0
      %736 = vdwg.mxu0
      %v738 = vsel %vm598, %v465, 0
      %v741 = vsel %vm598, %v525, 0
      %743 = vmatprep.subr.bf16.mxu0 0
      %744 = vmatpush1.bf16.xpose.msra.mxu0 0
      %745 = vmatprep.subr.bf16.mxu0 0
      %746 = vmatpush1.bf16.xpose.msra.mxu0 0
      %747 = vmatprep.subr.bf16.mxu0 0
      %748 = vmatpush1.bf16.xpose.msra.mxu0 0
      %749 = vmatprep.subr.bf16.mxu0 0
      %750 = vmatpush1.bf16.xpose.msra.mxu0 0
      %751 = vmatprep.subr.bf16.mxu0 0
      %752 = vmatpush1.bf16.xpose.msra.mxu0 0
      %753 = vmatprep.subr.bf16.mxu0 0
      %754 = vmatpush1.bf16.xpose.msra.mxu0 0
      %755 = vmatprep.subr.bf16.mxu0 0
      %756 = vmatpush1.bf16.xpose.msra.mxu0 0
      %757 = vmatprep.subr.bf16.mxu0 0
      %758 = vmatpush1.bf16.xpose.msra.mxu0 %v741
      %759 = vmatprep.subr.bf16.mxu0 0
      %760 = vmatpush2.bf16.xpose.msra.mxu0 0
      %761 = vmatprep.subr.bf16.mxu0 0
      %762 = vmatpush2.bf16.xpose.msra.mxu0 0
      %763 = vmatprep.subr.bf16.mxu0 0
      %764 = vmatpush2.bf16.xpose.msra.mxu0 0
      %765 = vmatprep.subr.bf16.mxu0 0
      %766 = vmatpush2.bf16.xpose.msra.mxu0 0
      %767 = vmatprep.subr.bf16.mxu0 0
      %768 = vmatpush2.bf16.xpose.msra.mxu0 0
      %769 = vmatprep.subr.bf16.mxu0 0
      %770 = vmatpush2.bf16.xpose.msra.mxu0 0
      %771 = vmatprep.subr.bf16.mxu0 0
      %772 = vmatpush2.bf16.xpose.msra.mxu0 0
      %773 = vmatprep.subr.bf16.mxu0 0
      %774 = vmatpush2.bf16.xpose.msra.mxu0 0
      %775 = vmatprep.mubr.bf16.mxu0 0
      %776 = vmatmul.mubr.bf16.gmra.mxu0 %v738
      %v777 = vpop.f32.mrf.mxu0
      %v778 = vadd.f32 0.0, %v777
      %v779 = vpop.f32.mrf.mxu0
      %v780 = vpop.f32.mrf.mxu0
      %v781 = vpop.f32.mrf.mxu0
      %782 = vdwg.mxu0
      %v784 = vsel %vm598, %v468, 0
      %v787 = vsel %vm598, %v528, 0
      %789 = vmatprep.subr.bf16.mxu0 0
      %790 = vmatpush1.bf16.xpose.msra.mxu0 0
      %791 = vmatprep.subr.bf16.mxu0 0
      %792 = vmatpush1.bf16.xpose.msra.mxu0 0
      %793 = vmatprep.subr.bf16.mxu0 0
      %794 = vmatpush1.bf16.xpose.msra.mxu0 0
      %795 = vmatprep.subr.bf16.mxu0 0
      %796 = vmatpush1.bf16.xpose.msra.mxu0 0
      %797 = vmatprep.subr.bf16.mxu0 0
      %798 = vmatpush1.bf16.xpose.msra.mxu0 0
      %799 = vmatprep.subr.bf16.mxu0 0
      %800 = vmatpush1.bf16.xpose.msra.mxu0 0
      %801 = vmatprep.subr.bf16.mxu0 0
      %802 = vmatpush1.bf16.xpose.msra.mxu0 0
      %803 = vmatprep.subr.bf16.mxu0 0
      %804 = vmatpush1.bf16.xpose.msra.mxu0 %v787
      %805 = vmatprep.subr.bf16.mxu0 0
      %806 = vmatpush2.bf16.xpose.msra.mxu0 0
      %807 = vmatprep.subr.bf16.mxu0 0
      %808 = vmatpush2.bf16.xpose.msra.mxu0 0
      %809 = vmatprep.subr.bf16.mxu0 0
      %810 = vmatpush2.bf16.xpose.msra.mxu0 0
      %811 = vmatprep.subr.bf16.mxu0 0
      %812 = vmatpush2.bf16.xpose.msra.mxu0 0
      %813 = vmatprep.subr.bf16.mxu0 0
      %814 = vmatpush2.bf16.xpose.msra.mxu0 0
      %815 = vmatprep.subr.bf16.mxu0 0
      %816 = vmatpush2.bf16.xpose.msra.mxu0 0
      %817 = vmatprep.subr.bf16.mxu0 0
      %818 = vmatpush2.bf16.xpose.msra.mxu0 0
      %819 = vmatprep.subr.bf16.mxu0 0
      %820 = vmatpush2.bf16.xpose.msra.mxu0 0
      %821 = vmatprep.mubr.bf16.mxu0 0
      %822 = vmatmul.mubr.bf16.gmra.mxu0 %v784
      %v823 = vpop.f32.mrf.mxu0
      %v824 = vadd.f32 0.0, %v823
      %v825 = vpop.f32.mrf.mxu0
      %v826 = vpop.f32.mrf.mxu0
      %v827 = vpop.f32.mrf.mxu0
      %828 = vdwg.mxu0
      %v830 = vsel %vm598, %v471, 0
      %v833 = vsel %vm598, %v531, 0
      %835 = vmatprep.subr.bf16.mxu0 0
      %836 = vmatpush1.bf16.xpose.msra.mxu0 0
      %837 = vmatprep.subr.bf16.mxu0 0
      %838 = vmatpush1.bf16.xpose.msra.mxu0 0
      %839 = vmatprep.subr.bf16.mxu0 0
      %840 = vmatpush1.bf16.xpose.msra.mxu0 0
      %841 = vmatprep.subr.bf16.mxu0 0
      %842 = vmatpush1.bf16.xpose.msra.mxu0 0
      %843 = vmatprep.subr.bf16.mxu0 0
      %844 = vmatpush1.bf16.xpose.msra.mxu0 0
      %845 = vmatprep.subr.bf16.mxu0 0
      %846 = vmatpush1.bf16.xpose.msra.mxu0 0
      %847 = vmatprep.subr.bf16.mxu0 0
      %848 = vmatpush1.bf16.xpose.msra.mxu0 0
      %849 = vmatprep.subr.bf16.mxu0 0
      %850 = vmatpush1.bf16.xpose.msra.mxu0 %v833
      %851 = vmatprep.subr.bf16.mxu0 0
      %852 = vmatpush2.bf16.xpose.msra.mxu0 0
      %853 = vmatprep.subr.bf16.mxu0 0
      %854 = vmatpush2.bf16.xpose.msra.mxu0 0
      %855 = vmatprep.subr.bf16.mxu0 0
      %856 = vmatpush2.bf16.xpose.msra.mxu0 0
      %857 = vmatprep.subr.bf16.mxu0 0
      %858 = vmatpush2.bf16.xpose.msra.mxu0 0
      %859 = vmatprep.subr.bf16.mxu0 0
      %860 = vmatpush2.bf16.xpose.msra.mxu0 0
      %861 = vmatprep.subr.bf16.mxu0 0
      %862 = vmatpush2.bf16.xpose.msra.mxu0 0
      %863 = vmatprep.subr.bf16.mxu0 0
      %864 = vmatpush2.bf16.xpose.msra.mxu0 0
      %865 = vmatprep.subr.bf16.mxu0 0
      %866 = vmatpush2.bf16.xpose.msra.mxu0 0
      %867 = vmatprep.mubr.bf16.mxu0 0
      %868 = vmatmul.mubr.bf16.gmra.mxu0 %v830
      %v869 = vpop.f32.mrf.mxu0
      %v870 = vadd.f32 0.0, %v869
      %v871 = vpop.f32.mrf.mxu0
      %v872 = vpop.f32.mrf.mxu0
      %v873 = vpop.f32.mrf.mxu0
      %874 = vdwg.mxu0
      %v876 = vsel %vm598, %v474, 0
      %v879 = vsel %vm598, %v534, 0
      %881 = vmatprep.subr.bf16.mxu0 0
      %882 = vmatpush1.bf16.xpose.msra.mxu0 0
      %883 = vmatprep.subr.bf16.mxu0 0
      %884 = vmatpush1.bf16.xpose.msra.mxu0 0
      %885 = vmatprep.subr.bf16.mxu0 0
      %886 = vmatpush1.bf16.xpose.msra.mxu0 0
      %887 = vmatprep.subr.bf16.mxu0 0
      %888 = vmatpush1.bf16.xpose.msra.mxu0 0
      %889 = vmatprep.subr.bf16.mxu0 0
      %890 = vmatpush1.bf16.xpose.msra.mxu0 0
      %891 = vmatprep.subr.bf16.mxu0 0
      %892 = vmatpush1.bf16.xpose.msra.mxu0 0
      %893 = vmatprep.subr.bf16.mxu0 0
      %894 = vmatpush1.bf16.xpose.msra.mxu0 0
      %895 = vmatprep.subr.bf16.mxu0 0
      %896 = vmatpush1.bf16.xpose.msra.mxu0 %v879
      %897 = vmatprep.subr.bf16.mxu0 0
      %898 = vmatpush2.bf16.xpose.msra.mxu0 0
      %899 = vmatprep.subr.bf16.mxu0 0
      %900 = vmatpush2.bf16.xpose.msra.mxu0 0
      %901 = vmatprep.subr.bf16.mxu0 0
      %902 = vmatpush2.bf16.xpose.msra.mxu0 0
      %903 = vmatprep.subr.bf16.mxu0 0
      %904 = vmatpush2.bf16.xpose.msra.mxu0 0
      %905 = vmatprep.subr.bf16.mxu0 0
      %906 = vmatpush2.bf16.xpose.msra.mxu0 0
      %907 = vmatprep.subr.bf16.mxu0 0
      %908 = vmatpush2.bf16.xpose.msra.mxu0 0
      %909 = vmatprep.subr.bf16.mxu0 0
      %910 = vmatpush2.bf16.xpose.msra.mxu0 0
      %911 = vmatprep.subr.bf16.mxu0 0
      %912 = vmatpush2.bf16.xpose.msra.mxu0 0
      %913 = vmatprep.mubr.bf16.mxu0 0
      %914 = vmatmul.mubr.bf16.gmra.mxu0 %v876
      %v915 = vpop.f32.mrf.mxu0
      %v916 = vadd.f32 0.0, %v915
      %v917 = vpop.f32.mrf.mxu0
      %v918 = vpop.f32.mrf.mxu0
      %v919 = vpop.f32.mrf.mxu0
      %920 = vdwg.mxu0
      %v922 = vsel %vm598, %v477, 0
      %v925 = vsel %vm598, %v537, 0
      %927 = vmatprep.subr.bf16.mxu0 0
      %928 = vmatpush1.bf16.xpose.msra.mxu0 0
      %929 = vmatprep.subr.bf16.mxu0 0
      %930 = vmatpush1.bf16.xpose.msra.mxu0 0
      %931 = vmatprep.subr.bf16.mxu0 0
      %932 = vmatpush1.bf16.xpose.msra.mxu0 0
      %933 = vmatprep.subr.bf16.mxu0 0
      %934 = vmatpush1.bf16.xpose.msra.mxu0 0
      %935 = vmatprep.subr.bf16.mxu0 0
      %936 = vmatpush1.bf16.xpose.msra.mxu0 0
      %937 = vmatprep.subr.bf16.mxu0 0
      %938 = vmatpush1.bf16.xpose.msra.mxu0 0
      %939 = vmatprep.subr.bf16.mxu0 0
      %940 = vmatpush1.bf16.xpose.msra.mxu0 0
      %941 = vmatprep.subr.bf16.mxu0 0
      %942 = vmatpush1.bf16.xpose.msra.mxu0 %v925
      %943 = vmatprep.subr.bf16.mxu0 0
      %944 = vmatpush2.bf16.xpose.msra.mxu0 0
      %945 = vmatprep.subr.bf16.mxu0 0
      %946 = vmatpush2.bf16.xpose.msra.mxu0 0
      %947 = vmatprep.subr.bf16.mxu0 0
      %948 = vmatpush2.bf16.xpose.msra.mxu0 0
      %949 = vmatprep.subr.bf16.mxu0 0
      %950 = vmatpush2.bf16.xpose.msra.mxu0 0
      %951 = vmatprep.subr.bf16.mxu0 0
      %952 = vmatpush2.bf16.xpose.msra.mxu0 0
      %953 = vmatprep.subr.bf16.mxu0 0
      %954 = vmatpush2.bf16.xpose.msra.mxu0 0
      %955 = vmatprep.subr.bf16.mxu0 0
      %956 = vmatpush2.bf16.xpose.msra.mxu0 0
      %957 = vmatprep.subr.bf16.mxu0 0
      %958 = vmatpush2.bf16.xpose.msra.mxu0 0
      %959 = vmatprep.mubr.bf16.mxu0 0
      %960 = vmatmul.mubr.bf16.gmra.mxu0 %v922
      %v961 = vpop.f32.mrf.mxu0
      %v962 = vadd.f32 0.0, %v961
      %v963 = vpop.f32.mrf.mxu0
      %v964 = vpop.f32.mrf.mxu0
      %v965 = vpop.f32.mrf.mxu0
      %966 = vdwg.mxu0
      %vm967 = vcmask 27648
      %v968 = vsel %vm967, %v640, -inf
      %969 = vmax.xlane.f32.xlu0 %v968
      %v970 = vpop.xlane.xlu0 %969
      %v971 = vsel %vm967, %v686, -inf
      %972 = vmax.xlane.f32.xlu0 %v971
      %v973 = vpop.xlane.xlu0 %972
      %v974 = vsel %vm967, %v732, -inf
      %975 = vmax.xlane.f32.xlu0 %v974
      %v976 = vpop.xlane.xlu0 %975
      %v977 = vsel %vm967, %v778, -inf
      %978 = vmax.xlane.f32.xlu0 %v977
      %v979 = vpop.xlane.xlu0 %978
      %v980 = vsel %vm967, %v824, -inf
      %981 = vmax.xlane.f32.xlu0 %v980
      %v982 = vpop.xlane.xlu0 %981
      %v983 = vsel %vm967, %v870, -inf
      %984 = vmax.xlane.f32.xlu0 %v983
      %v985 = vpop.xlane.xlu0 %984
      %v986 = vsel %vm967, %v916, -inf
      %987 = vmax.xlane.f32.xlu0 %v986
      %v988 = vpop.xlane.xlu0 %987
      %v989 = vsel %vm967, %v962, -inf
      %990 = vmax.xlane.f32.xlu0 %v989
      %v991 = vpop.xlane.xlu0 %990
      %v992 = vsub.f32 %v640, %v970
      %v993 = vsub.f32 %v686, %v973
      %v994 = vsub.f32 %v732, %v976
      %v995 = vsub.f32 %v778, %v979
      %v996 = vsub.f32 %v824, %v982
      %v997 = vsub.f32 %v870, %v985
      %v998 = vsub.f32 %v916, %v988
      %v999 = vsub.f32 %v962, %v991
      %v1000 = vmul.f32 %v992, 1.442695
      %v1001 = vpow.pop %v1000
      %v1002 = vmul.f32 %v993, 1.442695
      %v1003 = vpow.pop %v1002
      %v1004 = vmul.f32 %v994, 1.442695
      %v1005 = vpow.pop %v1004
      %v1006 = vmul.f32 %v995, 1.442695
      %v1007 = vpow.pop %v1006
      %v1008 = vmul.f32 %v996, 1.442695
      %v1009 = vpow.pop %v1008
      %v1010 = vmul.f32 %v997, 1.442695
      %v1011 = vpow.pop %v1010
      %v1012 = vmul.f32 %v998, 1.442695
      %v1013 = vpow.pop %v1012
      %v1014 = vmul.f32 %v999, 1.442695
      %v1015 = vpow.pop %v1014
      %v1016 = vsel %vm967, %v1001, 0.0
      %1017 = vadd.xlane.f32.xlu0 %v1016
      %v1018 = vpop.xlane.xlu0 %1017
      %v1019 = vsel %vm967, %v1003, 0.0
      %1020 = vadd.xlane.f32.xlu0 %v1019
      %v1021 = vpop.xlane.xlu0 %1020
      %v1022 = vsel %vm967, %v1005, 0.0
      %1023 = vadd.xlane.f32.xlu0 %v1022
      %v1024 = vpop.xlane.xlu0 %1023
      %v1025 = vsel %vm967, %v1007, 0.0
      %1026 = vadd.xlane.f32.xlu0 %v1025
      %v1027 = vpop.xlane.xlu0 %1026
      %v1028 = vsel %vm967, %v1009, 0.0
      %1029 = vadd.xlane.f32.xlu0 %v1028
      %v1030 = vpop.xlane.xlu0 %1029
      %v1031 = vsel %vm967, %v1011, 0.0
      %1032 = vadd.xlane.f32.xlu0 %v1031
      %v1033 = vpop.xlane.xlu0 %1032
      %v1034 = vsel %vm967, %v1013, 0.0
      %1035 = vadd.xlane.f32.xlu0 %v1034
      %v1036 = vpop.xlane.xlu0 %1035
      %v1037 = vsel %vm967, %v1015, 0.0
      %1038 = vadd.xlane.f32.xlu0 %v1037
      %v1039 = vpop.xlane.xlu0 %1038
      %v1040 = vrcp.pop %v1018
      %v1041 = vrcp.pop %v1021
      %v1042 = vrcp.pop %v1024
      %v1043 = vrcp.pop %v1027
      %v1044 = vrcp.pop %v1030
      %v1045 = vrcp.pop %v1033
      %v1046 = vrcp.pop %v1036
      %v1047 = vrcp.pop %v1039
      %v1048 = vmul.f32 %v1001, %v1040
      %v1049 = vmul.f32 %v1003, %v1041
      %v1050 = vmul.f32 %v1005, %v1042
      %v1051 = vmul.f32 %v1007, %v1043
      %v1052 = vmul.f32 %v1009, %v1044
      %v1053 = vmul.f32 %v1011, %v1045
      %v1054 = vmul.f32 %v1013, %v1046
      %v1055 = vmul.f32 %v1015, %v1047
      %v1056 = vpack.c.bf16 %v1048, %v1048
      %v1057 = vpack.c.bf16 %v1049, %v1049
      %v1058 = vpack.c.bf16 %v1050, %v1050
      %v1059 = vpack.c.bf16 %v1051, %v1051
      %v1060 = vpack.c.bf16 %v1052, %v1052
      %v1061 = vpack.c.bf16 %v1053, %v1053
      %v1062 = vpack.c.bf16 %v1054, %v1054
      %v1063 = vpack.c.bf16 %v1055, %v1055
      %vm1064 = vcmask 31744
      %v1066 = vsel %vm1064, %v1056, 0
      %vm1068 = vcmask 1041408
      %v1070 = vsel %vm1068, %v576, 0
      %1072 = vmatprep.subr.bf16.mxu0 0
      %1073 = vmatpush1.bf16.msra.mxu0 0
      %1074 = vmatprep.subr.bf16.mxu0 0
      %1075 = vmatpush1.bf16.msra.mxu0 0
      %1076 = vmatprep.subr.bf16.mxu0 0
      %1077 = vmatpush1.bf16.msra.mxu0 0
      %1078 = vmatprep.subr.bf16.mxu0 0
      %1079 = vmatpush1.bf16.msra.mxu0 0
      %1080 = vmatprep.subr.bf16.mxu0 0
      %1081 = vmatpush1.bf16.msra.mxu0 0
      %1082 = vmatprep.subr.bf16.mxu0 0
      %1083 = vmatpush1.bf16.msra.mxu0 0
      %1084 = vmatprep.subr.bf16.mxu0 0
      %1085 = vmatpush1.bf16.msra.mxu0 0
      %1086 = vmatprep.subr.bf16.mxu0 0
      %1087 = vmatpush1.bf16.msra.mxu0 %v1070
      %1088 = vmatprep.subr.bf16.mxu0 0
      %1089 = vmatpush2.bf16.msra.mxu0 0
      %1090 = vmatprep.subr.bf16.mxu0 0
      %1091 = vmatpush2.bf16.msra.mxu0 0
      %1092 = vmatprep.subr.bf16.mxu0 0
      %1093 = vmatpush2.bf16.msra.mxu0 0
      %1094 = vmatprep.subr.bf16.mxu0 0
      %1095 = vmatpush2.bf16.msra.mxu0 0
      %1096 = vmatprep.subr.bf16.mxu0 0
      %1097 = vmatpush2.bf16.msra.mxu0 0
      %1098 = vmatprep.subr.bf16.mxu0 0
      %1099 = vmatpush2.bf16.msra.mxu0 0
      %1100 = vmatprep.subr.bf16.mxu0 0
      %1101 = vmatpush2.bf16.msra.mxu0 0
      %1102 = vmatprep.subr.bf16.mxu0 0
      %1103 = vmatpush2.bf16.msra.mxu0 0
      %1104 = vmatprep.mubr.bf16.mxu0 0
      %1105 = vmatmul.mubr.bf16.gmra.mxu0 %v1066
      %v1106 = vpop.f32.mrf.mxu0
      %v1107 = vadd.f32 0.0, %v1106
      %v1108 = vpop.f32.mrf.mxu0
      %v1109 = vpop.f32.mrf.mxu0
      %v1110 = vpop.f32.mrf.mxu0
      %1111 = vdwg.mxu0
      %v1113 = vsel %vm1064, %v1057, 0
      %v1116 = vsel %vm1068, %v579, 0
      %1118 = vmatprep.subr.bf16.mxu0 0
      %1119 = vmatpush1.bf16.msra.mxu0 0
      %1120 = vmatprep.subr.bf16.mxu0 0
      %1121 = vmatpush1.bf16.msra.mxu0 0
      %1122 = vmatprep.subr.bf16.mxu0 0
      %1123 = vmatpush1.bf16.msra.mxu0 0
      %1124 = vmatprep.subr.bf16.mxu0 0
      %1125 = vmatpush1.bf16.msra.mxu0 0
      %1126 = vmatprep.subr.bf16.mxu0 0
      %1127 = vmatpush1.bf16.msra.mxu0 0
      %1128 = vmatprep.subr.bf16.mxu0 0
      %1129 = vmatpush1.bf16.msra.mxu0 0
      %1130 = vmatprep.subr.bf16.mxu0 0
      %1131 = vmatpush1.bf16.msra.mxu0 0
      %1132 = vmatprep.subr.bf16.mxu0 0
      %1133 = vmatpush1.bf16.msra.mxu0 %v1116
      %1134 = vmatprep.subr.bf16.mxu0 0
      %1135 = vmatpush2.bf16.msra.mxu0 0
      %1136 = vmatprep.subr.bf16.mxu0 0
      %1137 = vmatpush2.bf16.msra.mxu0 0
      %1138 = vmatprep.subr.bf16.mxu0 0
      %1139 = vmatpush2.bf16.msra.mxu0 0
      %1140 = vmatprep.subr.bf16.mxu0 0
      %1141 = vmatpush2.bf16.msra.mxu0 0
      %1142 = vmatprep.subr.bf16.mxu0 0
      %1143 = vmatpush2.bf16.msra.mxu0 0
      %1144 = vmatprep.subr.bf16.mxu0 0
      %1145 = vmatpush2.bf16.msra.mxu0 0
      %1146 = vmatprep.subr.bf16.mxu0 0
      %1147 = vmatpush2.bf16.msra.mxu0 0
      %1148 = vmatprep.subr.bf16.mxu0 0
      %1149 = vmatpush2.bf16.msra.mxu0 0
      %1150 = vmatprep.mubr.bf16.mxu0 0
      %1151 = vmatmul.mubr.bf16.gmra.mxu0 %v1113
      %v1152 = vpop.f32.mrf.mxu0
      %v1153 = vadd.f32 0.0, %v1152
      %v1154 = vpop.f32.mrf.mxu0
      %v1155 = vpop.f32.mrf.mxu0
      %v1156 = vpop.f32.mrf.mxu0
      %1157 = vdwg.mxu0
      %v1159 = vsel %vm1064, %v1058, 0
      %v1162 = vsel %vm1068, %v582, 0
      %1164 = vmatprep.subr.bf16.mxu0 0
      %1165 = vmatpush1.bf16.msra.mxu0 0
      %1166 = vmatprep.subr.bf16.mxu0 0
      %1167 = vmatpush1.bf16.msra.mxu0 0
      %1168 = vmatprep.subr.bf16.mxu0 0
      %1169 = vmatpush1.bf16.msra.mxu0 0
      %1170 = vmatprep.subr.bf16.mxu0 0
      %1171 = vmatpush1.bf16.msra.mxu0 0
      %1172 = vmatprep.subr.bf16.mxu0 0
      %1173 = vmatpush1.bf16.msra.mxu0 0
      %1174 = vmatprep.subr.bf16.mxu0 0
      %1175 = vmatpush1.bf16.msra.mxu0 0
      %1176 = vmatprep.subr.bf16.mxu0 0
      %1177 = vmatpush1.bf16.msra.mxu0 0
      %1178 = vmatprep.subr.bf16.mxu0 0
      %1179 = vmatpush1.bf16.msra.mxu0 %v1162
      %1180 = vmatprep.subr.bf16.mxu0 0
      %1181 = vmatpush2.bf16.msra.mxu0 0
      %1182 = vmatprep.subr.bf16.mxu0 0
      %1183 = vmatpush2.bf16.msra.mxu0 0
      %1184 = vmatprep.subr.bf16.mxu0 0
      %1185 = vmatpush2.bf16.msra.mxu0 0
      %1186 = vmatprep.subr.bf16.mxu0 0
      %1187 = vmatpush2.bf16.msra.mxu0 0
      %1188 = vmatprep.subr.bf16.mxu0 0
      %1189 = vmatpush2.bf16.msra.mxu0 0
      %1190 = vmatprep.subr.bf16.mxu0 0
      %1191 = vmatpush2.bf16.msra.mxu0 0
      %1192 = vmatprep.subr.bf16.mxu0 0
      %1193 = vmatpush2.bf16.msra.mxu0 0
      %1194 = vmatprep.subr.bf16.mxu0 0
      %1195 = vmatpush2.bf16.msra.mxu0 0
      %1196 = vmatprep.mubr.bf16.mxu0 0
      %1197 = vmatmul.mubr.bf16.gmra.mxu0 %v1159
      %v1198 = vpop.f32.mrf.mxu0
      %v1199 = vadd.f32 0.0, %v1198
      %v1200 = vpop.f32.mrf.mxu0
      %v1201 = vpop.f32.mrf.mxu0
      %v1202 = vpop.f32.mrf.mxu0
      %1203 = vdwg.mxu0
      %v1205 = vsel %vm1064, %v1059, 0
      %v1208 = vsel %vm1068, %v585, 0
      %1210 = vmatprep.subr.bf16.mxu0 0
      %1211 = vmatpush1.bf16.msra.mxu0 0
      %1212 = vmatprep.subr.bf16.mxu0 0
      %1213 = vmatpush1.bf16.msra.mxu0 0
      %1214 = vmatprep.subr.bf16.mxu0 0
      %1215 = vmatpush1.bf16.msra.mxu0 0
      %1216 = vmatprep.subr.bf16.mxu0 0
      %1217 = vmatpush1.bf16.msra.mxu0 0
      %1218 = vmatprep.subr.bf16.mxu0 0
      %1219 = vmatpush1.bf16.msra.mxu0 0
      %1220 = vmatprep.subr.bf16.mxu0 0
      %1221 = vmatpush1.bf16.msra.mxu0 0
      %1222 = vmatprep.subr.bf16.mxu0 0
      %1223 = vmatpush1.bf16.msra.mxu0 0
      %1224 = vmatprep.subr.bf16.mxu0 0
      %1225 = vmatpush1.bf16.msra.mxu0 %v1208
      %1226 = vmatprep.subr.bf16.mxu0 0
      %1227 = vmatpush2.bf16.msra.mxu0 0
      %1228 = vmatprep.subr.bf16.mxu0 0
      %1229 = vmatpush2.bf16.msra.mxu0 0
      %1230 = vmatprep.subr.bf16.mxu0 0
      %1231 = vmatpush2.bf16.msra.mxu0 0
      %1232 = vmatprep.subr.bf16.mxu0 0
      %1233 = vmatpush2.bf16.msra.mxu0 0
      %1234 = vmatprep.subr.bf16.mxu0 0
      %1235 = vmatpush2.bf16.msra.mxu0 0
      %1236 = vmatprep.subr.bf16.mxu0 0
      %1237 = vmatpush2.bf16.msra.mxu0 0
      %1238 = vmatprep.subr.bf16.mxu0 0
      %1239 = vmatpush2.bf16.msra.mxu0 0
      %1240 = vmatprep.subr.bf16.mxu0 0
      %1241 = vmatpush2.bf16.msra.mxu0 0
      %1242 = vmatprep.mubr.bf16.mxu0 0
      %1243 = vmatmul.mubr.bf16.gmra.mxu0 %v1205
      %v1244 = vpop.f32.mrf.mxu0
      %v1245 = vadd.f32 0.0, %v1244
      %v1246 = vpop.f32.mrf.mxu0
      %v1247 = vpop.f32.mrf.mxu0
      %v1248 = vpop.f32.mrf.mxu0
      %1249 = vdwg.mxu0
      %v1251 = vsel %vm1064, %v1060, 0
      %v1254 = vsel %vm1068, %v588, 0
      %1256 = vmatprep.subr.bf16.mxu0 0
      %1257 = vmatpush1.bf16.msra.mxu0 0
      %1258 = vmatprep.subr.bf16.mxu0 0
      %1259 = vmatpush1.bf16.msra.mxu0 0
      %1260 = vmatprep.subr.bf16.mxu0 0
      %1261 = vmatpush1.bf16.msra.mxu0 0
      %1262 = vmatprep.subr.bf16.mxu0 0
      %1263 = vmatpush1.bf16.msra.mxu0 0
      %1264 = vmatprep.subr.bf16.mxu0 0
      %1265 = vmatpush1.bf16.msra.mxu0 0
      %1266 = vmatprep.subr.bf16.mxu0 0
      %1267 = vmatpush1.bf16.msra.mxu0 0
      %1268 = vmatprep.subr.bf16.mxu0 0
      %1269 = vmatpush1.bf16.msra.mxu0 0
      %1270 = vmatprep.subr.bf16.mxu0 0
      %1271 = vmatpush1.bf16.msra.mxu0 %v1254
      %1272 = vmatprep.subr.bf16.mxu0 0
      %1273 = vmatpush2.bf16.msra.mxu0 0
      %1274 = vmatprep.subr.bf16.mxu0 0
      %1275 = vmatpush2.bf16.msra.mxu0 0
      %1276 = vmatprep.subr.bf16.mxu0 0
      %1277 = vmatpush2.bf16.msra.mxu0 0
      %1278 = vmatprep.subr.bf16.mxu0 0
      %1279 = vmatpush2.bf16.msra.mxu0 0
      %1280 = vmatprep.subr.bf16.mxu0 0
      %1281 = vmatpush2.bf16.msra.mxu0 0
      %1282 = vmatprep.subr.bf16.mxu0 0
      %1283 = vmatpush2.bf16.msra.mxu0 0
      %1284 = vmatprep.subr.bf16.mxu0 0
      %1285 = vmatpush2.bf16.msra.mxu0 0
      %1286 = vmatprep.subr.bf16.mxu0 0
      %1287 = vmatpush2.bf16.msra.mxu0 0
      %1288 = vmatprep.mubr.bf16.mxu0 0
      %1289 = vmatmul.mubr.bf16.gmra.mxu0 %v1251
      %v1290 = vpop.f32.mrf.mxu0
      %v1291 = vadd.f32 0.0, %v1290
      %v1292 = vpop.f32.mrf.mxu0
      %v1293 = vpop.f32.mrf.mxu0
      %v1294 = vpop.f32.mrf.mxu0
      %1295 = vdwg.mxu0
      %v1297 = vsel %vm1064, %v1061, 0
      %v1300 = vsel %vm1068, %v591, 0
      %1302 = vmatprep.subr.bf16.mxu0 0
      %1303 = vmatpush1.bf16.msra.mxu0 0
      %1304 = vmatprep.subr.bf16.mxu0 0
      %1305 = vmatpush1.bf16.msra.mxu0 0
      %1306 = vmatprep.subr.bf16.mxu0 0
      %1307 = vmatpush1.bf16.msra.mxu0 0
      %1308 = vmatprep.subr.bf16.mxu0 0
      %1309 = vmatpush1.bf16.msra.mxu0 0
      %1310 = vmatprep.subr.bf16.mxu0 0
      %1311 = vmatpush1.bf16.msra.mxu0 0
      %1312 = vmatprep.subr.bf16.mxu0 0
      %1313 = vmatpush1.bf16.msra.mxu0 0
      %1314 = vmatprep.subr.bf16.mxu0 0
      %1315 = vmatpush1.bf16.msra.mxu0 0
      %1316 = vmatprep.subr.bf16.mxu0 0
      %1317 = vmatpush1.bf16.msra.mxu0 %v1300
      %1318 = vmatprep.subr.bf16.mxu0 0
      %1319 = vmatpush2.bf16.msra.mxu0 0
      %1320 = vmatprep.subr.bf16.mxu0 0
      %1321 = vmatpush2.bf16.msra.mxu0 0
      %1322 = vmatprep.subr.bf16.mxu0 0
      %1323 = vmatpush2.bf16.msra.mxu0 0
      %1324 = vmatprep.subr.bf16.mxu0 0
      %1325 = vmatpush2.bf16.msra.mxu0 0
      %1326 = vmatprep.subr.bf16.mxu0 0
      %1327 = vmatpush2.bf16.msra.mxu0 0
      %1328 = vmatprep.subr.bf16.mxu0 0
      %1329 = vmatpush2.bf16.msra.mxu0 0
      %1330 = vmatprep.subr.bf16.mxu0 0
      %1331 = vmatpush2.bf16.msra.mxu0 0
      %1332 = vmatprep.subr.bf16.mxu0 0
      %1333 = vmatpush2.bf16.msra.mxu0 0
      %1334 = vmatprep.mubr.bf16.mxu0 0
      %1335 = vmatmul.mubr.bf16.gmra.mxu0 %v1297
      %v1336 = vpop.f32.mrf.mxu0
      %v1337 = vadd.f32 0.0, %v1336
      %v1338 = vpop.f32.mrf.mxu0
      %v1339 = vpop.f32.mrf.mxu0
      %v1340 = vpop.f32.mrf.mxu0
      %1341 = vdwg.mxu0
      %v1343 = vsel %vm1064, %v1062, 0
      %v1346 = vsel %vm1068, %v594, 0
      %1348 = vmatprep.subr.bf16.mxu0 0
      %1349 = vmatpush1.bf16.msra.mxu0 0
      %1350 = vmatprep.subr.bf16.mxu0 0
      %1351 = vmatpush1.bf16.msra.mxu0 0
      %1352 = vmatprep.subr.bf16.mxu0 0
      %1353 = vmatpush1.bf16.msra.mxu0 0
      %1354 = vmatprep.subr.bf16.mxu0 0
      %1355 = vmatpush1.bf16.msra.mxu0 0
      %1356 = vmatprep.subr.bf16.mxu0 0
      %1357 = vmatpush1.bf16.msra.mxu0 0
      %1358 = vmatprep.subr.bf16.mxu0 0
      %1359 = vmatpush1.bf16.msra.mxu0 0
      %1360 = vmatprep.subr.bf16.mxu0 0
      %1361 = vmatpush1.bf16.msra.mxu0 0
      %1362 = vmatprep.subr.bf16.mxu0 0
      %1363 = vmatpush1.bf16.msra.mxu0 %v1346
      %1364 = vmatprep.subr.bf16.mxu0 0
      %1365 = vmatpush2.bf16.msra.mxu0 0
      %1366 = vmatprep.subr.bf16.mxu0 0
      %1367 = vmatpush2.bf16.msra.mxu0 0
      %1368 = vmatprep.subr.bf16.mxu0 0
      %1369 = vmatpush2.bf16.msra.mxu0 0
      %1370 = vmatprep.subr.bf16.mxu0 0
      %1371 = vmatpush2.bf16.msra.mxu0 0
      %1372 = vmatprep.subr.bf16.mxu0 0
      %1373 = vmatpush2.bf16.msra.mxu0 0
      %1374 = vmatprep.subr.bf16.mxu0 0
      %1375 = vmatpush2.bf16.msra.mxu0 0
      %1376 = vmatprep.subr.bf16.mxu0 0
      %1377 = vmatpush2.bf16.msra.mxu0 0
      %1378 = vmatprep.subr.bf16.mxu0 0
      %1379 = vmatpush2.bf16.msra.mxu0 0
      %1380 = vmatprep.mubr.bf16.mxu0 0
      %1381 = vmatmul.mubr.bf16.gmra.mxu0 %v1343
      %v1382 = vpop.f32.mrf.mxu0
      %v1383 = vadd.f32 0.0, %v1382
      %v1384 = vpop.f32.mrf.mxu0
      %v1385 = vpop.f32.mrf.mxu0
      %v1386 = vpop.f32.mrf.mxu0
      %1387 = vdwg.mxu0
      %v1389 = vsel %vm1064, %v1063, 0
      %v1392 = vsel %vm1068, %v597, 0
      %1394 = vmatprep.subr.bf16.mxu0 0
      %1395 = vmatpush1.bf16.msra.mxu0 0
      %1396 = vmatprep.subr.bf16.mxu0 0
      %1397 = vmatpush1.bf16.msra.mxu0 0
      %1398 = vmatprep.subr.bf16.mxu0 0
      %1399 = vmatpush1.bf16.msra.mxu0 0
      %1400 = vmatprep.subr.bf16.mxu0 0
      %1401 = vmatpush1.bf16.msra.mxu0 0
      %1402 = vmatprep.subr.bf16.mxu0 0
      %1403 = vmatpush1.bf16.msra.mxu0 0
      %1404 = vmatprep.subr.bf16.mxu0 0
      %1405 = vmatpush1.bf16.msra.mxu0 0
      %1406 = vmatprep.subr.bf16.mxu0 0
      %1407 = vmatpush1.bf16.msra.mxu0 0
      %1408 = vmatprep.subr.bf16.mxu0 0
      %1409 = vmatpush1.bf16.msra.mxu0 %v1392
      %1410 = vmatprep.subr.bf16.mxu0 0
      %1411 = vmatpush2.bf16.msra.mxu0 0
      %1412 = vmatprep.subr.bf16.mxu0 0
      %1413 = vmatpush2.bf16.msra.mxu0 0
      %1414 = vmatprep.subr.bf16.mxu0 0
      %1415 = vmatpush2.bf16.msra.mxu0 0
      %1416 = vmatprep.subr.bf16.mxu0 0
      %1417 = vmatpush2.bf16.msra.mxu0 0
      %1418 = vmatprep.subr.bf16.mxu0 0
      %1419 = vmatpush2.bf16.msra.mxu0 0
      %1420 = vmatprep.subr.bf16.mxu0 0
      %1421 = vmatpush2.bf16.msra.mxu0 0
      %1422 = vmatprep.subr.bf16.mxu0 0
      %1423 = vmatpush2.bf16.msra.mxu0 0
      %1424 = vmatprep.subr.bf16.mxu0 0
      %1425 = vmatpush2.bf16.msra.mxu0 0
      %1426 = vmatprep.mubr.bf16.mxu0 0
      %1427 = vmatmul.mubr.bf16.gmra.mxu0 %v1389
      %v1428 = vpop.f32.mrf.mxu0
      %v1429 = vadd.f32 0.0, %v1428
      %v1430 = vpop.f32.mrf.mxu0
      %v1431 = vpop.f32.mrf.mxu0
      %v1432 = vpop.f32.mrf.mxu0
      %1433 = vdwg.mxu0
      %v1434 = vcombine.low %v1107, %v1199
      %v1436 = vunpack.c.l.s4 1983009808
      %v1437 = vunpack.c.0.s8 %v1436
      %v1438 = vlaneseq
      %v1439 = vshrl.u32 %v1438, 7
      %v1440 = vsub.s32 %v1437, %v1439
      %v1441 = vrot.slane %v1434, %v1440
      %v1442 = vcombine.low %v1153, %v1245
      %v1444 = vunpack.c.l.s4 1983009808
      %v1445 = vunpack.c.0.s8 %v1444
      %v1446 = vlaneseq
      %v1447 = vshrl.u32 %v1446, 7
      %v1448 = vsub.s32 %v1445, %v1447
      %v1449 = vrot.slane %v1442, %v1448
      %v1450 = vcombine.low %v1441, %v1449
      %v1451 = vcombine.high %v1441, %v1449
      %v1453 = vunpack.c.l.s4 1934713408
      %v1454 = vunpack.c.0.s8 %v1453
      %v1455 = vlaneseq
      %v1456 = vshrl.u32 %v1455, 7
      %v1457 = vsub.s32 %v1454, %v1456
      %v1458 = vrot.slane %v1450, %v1457
      %v1460 = vunpack.c.l.s4 1934713408
      %v1461 = vunpack.c.0.s8 %v1460
      %v1462 = vlaneseq
      %v1463 = vshrl.u32 %v1462, 7
      %v1464 = vsub.s32 %v1461, %v1463
      %v1465 = vrot.slane %v1451, %v1464
      %v1466 = vcombine.high %v1458, 0.0
      %v1467 = vcombine.high %v1465, 0.0
      %v1468 = vcombine.low %v1291, %v1383
      %v1470 = vunpack.c.l.s4 1983009808
      %v1471 = vunpack.c.0.s8 %v1470
      %v1472 = vlaneseq
      %v1473 = vshrl.u32 %v1472, 7
      %v1474 = vsub.s32 %v1471, %v1473
      %v1475 = vrot.slane %v1468, %v1474
      %v1476 = vcombine.low %v1337, %v1429
      %v1478 = vunpack.c.l.s4 1983009808
      %v1479 = vunpack.c.0.s8 %v1478
      %v1480 = vlaneseq
      %v1481 = vshrl.u32 %v1480, 7
      %v1482 = vsub.s32 %v1479, %v1481
      %v1483 = vrot.slane %v1476, %v1482
      %v1484 = vcombine.low %v1475, %v1483
      %v1485 = vcombine.high %v1475, %v1483
      %v1487 = vunpack.c.l.s4 1934713408
      %v1488 = vunpack.c.0.s8 %v1487
      %v1489 = vlaneseq
      %v1490 = vshrl.u32 %v1489, 7
      %v1491 = vsub.s32 %v1488, %v1490
      %v1492 = vrot.slane %v1484, %v1491
      %v1494 = vunpack.c.l.s4 1934713408
      %v1495 = vunpack.c.0.s8 %v1494
      %v1496 = vlaneseq
      %v1497 = vshrl.u32 %v1496, 7
      %v1498 = vsub.s32 %v1495, %v1497
      %v1499 = vrot.slane %v1485, %v1498
      %v1500 = vcombine.high %v1492, 0.0
      %v1501 = vcombine.high %v1499, 0.0
      %v1502 = vcombine.low %v1458, %v1465
      %v1504 = vunpack.c.l.s4 1983009808
      %v1505 = vunpack.c.0.s8 %v1504
      %v1506 = vlaneseq
      %v1507 = vshrl.u32 %v1506, 7
      %v1508 = vsub.s32 %v1505, %v1507
      %v1509 = vrot.slane %v1502, %v1508
      %v1510 = vcombine.low %v1466, %v1467
      %v1512 = vunpack.c.l.s4 1983009808
      %v1513 = vunpack.c.0.s8 %v1512
      %v1514 = vlaneseq
      %v1515 = vshrl.u32 %v1514, 7
      %v1516 = vsub.s32 %v1513, %v1515
      %v1517 = vrot.slane %v1510, %v1516
      %v1518 = vcombine.low %v1509, %v1517
      %v1519 = vcombine.high %v1509, %v1517
      %v1521 = vunpack.c.l.s4 1934713408
      %v1522 = vunpack.c.0.s8 %v1521
      %v1523 = vlaneseq
      %v1524 = vshrl.u32 %v1523, 7
      %v1525 = vsub.s32 %v1522, %v1524
      %v1526 = vrot.slane %v1518, %v1525
      %v1528 = vunpack.c.l.s4 1934713408
      %v1529 = vunpack.c.0.s8 %v1528
      %v1530 = vlaneseq
      %v1531 = vshrl.u32 %v1530, 7
      %v1532 = vsub.s32 %v1529, %v1531
      %v1533 = vrot.slane %v1519, %v1532
      %v1534 = vcombine.high %v1526, 0.0
      %v1535 = vcombine.high %v1533, 0.0
      %v1536 = vcombine.low %v1492, %v1499
      %v1538 = vunpack.c.l.s4 1983009808
      %v1539 = vunpack.c.0.s8 %v1538
      %v1540 = vlaneseq
      %v1541 = vshrl.u32 %v1540, 7
      %v1542 = vsub.s32 %v1539, %v1541
      %v1543 = vrot.slane %v1536, %v1542
      %v1544 = vcombine.low %v1500, %v1501
      %v1546 = vunpack.c.l.s4 1983009808
      %v1547 = vunpack.c.0.s8 %v1546
      %v1548 = vlaneseq
      %v1549 = vshrl.u32 %v1548, 7
      %v1550 = vsub.s32 %v1547, %v1549
      %v1551 = vrot.slane %v1544, %v1550
      %v1552 = vcombine.low %v1543, %v1551
      %v1553 = vcombine.high %v1543, %v1551
      %v1555 = vunpack.c.l.s4 1934713408
      %v1556 = vunpack.c.0.s8 %v1555
      %v1557 = vlaneseq
      %v1558 = vshrl.u32 %v1557, 7
      %v1559 = vsub.s32 %v1556, %v1558
      %v1560 = vrot.slane %v1552, %v1559
      %v1562 = vunpack.c.l.s4 1934713408
      %v1563 = vunpack.c.0.s8 %v1562
      %v1564 = vlaneseq
      %v1565 = vshrl.u32 %v1564, 7
      %v1566 = vsub.s32 %v1563, %v1565
      %v1567 = vrot.slane %v1553, %v1566
      %v1568 = vcombine.high %v1560, 0.0
      %v1569 = vcombine.high %v1567, 0.0
      %1572 = vrot.lane.b32.xlu0 %v1534, 32
      %v1573 = vpop.permute.xlu0 %1572
      %1574 = vrot.lane.b32.xlu0 %v1568, 32
      %v1575 = vpop.permute.xlu0 %1574
      %1580 = vrot.lane.b32.xlu0 %v1533, 64
      %v1581 = vpop.permute.xlu0 %1580
      %1582 = vrot.lane.b32.xlu0 %v1567, 64
      %v1583 = vpop.permute.xlu0 %1582
      %1588 = vrot.lane.b32.xlu0 %v1535, 96
      %v1589 = vpop.permute.xlu0 %1588
      %1590 = vrot.lane.b32.xlu0 %v1569, 96
      %v1591 = vpop.permute.xlu0 %1590
      %v1594 = vsel %vm598, %v1526, %v1573
      %v1595 = vsel %vm598, %v1560, %v1575
      %vm1596 = vcmask 523264
      %v1597 = vsel %vm1596, %v1594, %v1581
      %v1598 = vsel %vm1596, %v1595, %v1583
      %vm1599 = vcmask 785408
      %v1600 = vsel %vm1599, %v1597, %v1589
      %v1601 = vsel %vm1599, %v1598, %v1591
      %v1602 = vpack.c.bf16 %v1600, %v1600
      %v1603 = vpack.c.bf16 %v1601, %v1601
      %1604 = vst [vmem:[%s151] sm:$0x3] %v1602
      %1605 = vst [vmem:[%s151 + $0x2] sm:$0x3] %v1603
      %v1606 = vrot.slane %v158, 6
      %v1607 = vrot.slane %v160, 6
      %v1610 = vrot.slane %v165, 6
      %v1611 = vrot.slane %v167, 6
      %v1614 = vrot.slane %v171, 6
      %v1615 = vrot.slane %v173, 6
      %v1618 = vrot.slane %v177, 6
      %v1619 = vrot.slane %v179, 6
      %v1622 = vcombine.low %v1606, %v1614
      %v1624 = vunpack.c.l.s4 1934713408
      %v1625 = vunpack.c.0.s8 %v1624
      %v1626 = vlaneseq
      %v1627 = vshrl.u32 %v1626, 7
      %v1628 = vsub.s32 %v1625, %v1627
      %v1629 = vrot.slane %v1622, %v1628
      %v1630 = vcombine.high %v1629, 0
      %v1631 = vcombine.low %v1610, %v1618
      %v1633 = vunpack.c.l.s4 1934713408
      %v1634 = vunpack.c.0.s8 %v1633
      %v1635 = vlaneseq
      %v1636 = vshrl.u32 %v1635, 7
      %v1637 = vsub.s32 %v1634, %v1636
      %v1638 = vrot.slane %v1631, %v1637
      %v1639 = vcombine.high %v1638, 0
      %v1640 = vcombine.low %v1607, %v1615
      %v1642 = vunpack.c.l.s4 1934713408
      %v1643 = vunpack.c.0.s8 %v1642
      %v1644 = vlaneseq
      %v1645 = vshrl.u32 %v1644, 7
      %v1646 = vsub.s32 %v1643, %v1645
      %v1647 = vrot.slane %v1640, %v1646
      %v1648 = vcombine.high %v1647, 0
      %v1649 = vcombine.low %v1611, %v1619
      %v1651 = vunpack.c.l.s4 1934713408
      %v1652 = vunpack.c.0.s8 %v1651
      %v1653 = vlaneseq
      %v1654 = vshrl.u32 %v1653, 7
      %v1655 = vsub.s32 %v1652, %v1654
      %v1656 = vrot.slane %v1649, %v1655
      %v1657 = vcombine.high %v1656, 0
      %v1660 = vpack.i.b16 %v1638, %v1629
      %v1661 = vshrl.u32 %v1629, 16
      %v1662 = vshrl.u32 %v1638, 16
      %v1663 = vpack.i.b16 %v1662, %v1661
      %v1666 = vpack.i.b16 %v1639, %v1630
      %v1667 = vshrl.u32 %v1630, 16
      %v1668 = vshrl.u32 %v1639, 16
      %v1669 = vpack.i.b16 %v1668, %v1667
      %v1672 = vpack.i.b16 %v1656, %v1647
      %v1673 = vshrl.u32 %v1647, 16
      %v1674 = vshrl.u32 %v1656, 16
      %v1675 = vpack.i.b16 %v1674, %v1673
      %v1678 = vpack.i.b16 %v1657, %v1648
      %v1679 = vshrl.u32 %v1648, 16
      %v1680 = vshrl.u32 %v1657, 16
      %v1681 = vpack.i.b16 %v1680, %v1679
      %1684 = vrot.lane.b32.xlu0 %v159, 96
      %v1685 = vpop.permute.xlu0 %1684
      %1686 = vrot.lane.b32.xlu0 %v161, 96
      %v1687 = vpop.permute.xlu0 %1686
      %1690 = vrot.lane.b32.xlu0 %v159, 64
      %v1691 = vpop.permute.xlu0 %1690
      %1692 = vrot.lane.b32.xlu0 %v161, 64
      %v1693 = vpop.permute.xlu0 %1692
      %1696 = vrot.lane.b32.xlu0 %v159, 32
      %v1697 = vpop.permute.xlu0 %1696
      %1698 = vrot.lane.b32.xlu0 %v161, 32
      %v1699 = vpop.permute.xlu0 %1698
      %v1702 = vcombine.low %v159, %v1691
      %v1704 = vunpack.c.l.s4 1934713408
      %v1705 = vunpack.c.0.s8 %v1704
      %v1706 = vlaneseq
      %v1707 = vshrl.u32 %v1706, 7
      %v1708 = vsub.s32 %v1705, %v1707
      %v1709 = vrot.slane %v1702, %v1708
      %v1710 = vcombine.high %v1709, 0
      %v1711 = vcombine.low %v1685, %v1697
      %v1713 = vunpack.c.l.s4 1934713408
      %v1714 = vunpack.c.0.s8 %v1713
      %v1715 = vlaneseq
      %v1716 = vshrl.u32 %v1715, 7
      %v1717 = vsub.s32 %v1714, %v1716
      %v1718 = vrot.slane %v1711, %v1717
      %v1719 = vcombine.high %v1718, 0
      %v1720 = vcombine.low %v161, %v1693
      %v1722 = vunpack.c.l.s4 1934713408
      %v1723 = vunpack.c.0.s8 %v1722
      %v1724 = vlaneseq
      %v1725 = vshrl.u32 %v1724, 7
      %v1726 = vsub.s32 %v1723, %v1725
      %v1727 = vrot.slane %v1720, %v1726
      %v1728 = vcombine.high %v1727, 0
      %v1729 = vcombine.low %v1687, %v1699
      %v1731 = vunpack.c.l.s4 1934713408
      %v1732 = vunpack.c.0.s8 %v1731
      %v1733 = vlaneseq
      %v1734 = vshrl.u32 %v1733, 7
      %v1735 = vsub.s32 %v1732, %v1734
      %v1736 = vrot.slane %v1729, %v1735
      %v1737 = vcombine.high %v1736, 0
      %v1740 = vpack.i.b16 %v1718, %v1709
      %v1741 = vshrl.u32 %v1709, 16
      %v1742 = vshrl.u32 %v1718, 16
      %v1743 = vpack.i.b16 %v1742, %v1741
      %v1746 = vpack.i.b16 %v1719, %v1710
      %v1747 = vshrl.u32 %v1710, 16
      %v1748 = vshrl.u32 %v1719, 16
      %v1749 = vpack.i.b16 %v1748, %v1747
      %v1752 = vpack.i.b16 %v1736, %v1727
      %v1753 = vshrl.u32 %v1727, 16
      %v1754 = vshrl.u32 %v1736, 16
      %v1755 = vpack.i.b16 %v1754, %v1753
      %v1758 = vpack.i.b16 %v1737, %v1728
      %v1759 = vshrl.u32 %v1728, 16
      %v1760 = vshrl.u32 %v1737, 16
      %v1761 = vpack.i.b16 %v1760, %v1759
      %v1762 = vrot.slane %v159, 2
      %v1763 = vrot.slane %v161, 2
      %v1766 = vrot.slane %v1685, 2
      %v1767 = vrot.slane %v1687, 2
      %v1770 = vrot.slane %v1691, 2
      %v1771 = vrot.slane %v1693, 2
      %v1774 = vrot.slane %v1697, 2
      %v1775 = vrot.slane %v1699, 2
      %v1778 = vcombine.low %v1762, %v1770
      %v1780 = vunpack.c.l.s4 1934713408
      %v1781 = vunpack.c.0.s8 %v1780
      %v1782 = vlaneseq
      %v1783 = vshrl.u32 %v1782, 7
      %v1784 = vsub.s32 %v1781, %v1783
      %v1785 = vrot.slane %v1778, %v1784
      %v1786 = vcombine.high %v1785, 0
      %v1787 = vcombine.low %v1766, %v1774
      %v1789 = vunpack.c.l.s4 1934713408
      %v1790 = vunpack.c.0.s8 %v1789
      %v1791 = vlaneseq
      %v1792 = vshrl.u32 %v1791, 7
      %v1793 = vsub.s32 %v1790, %v1792
      %v1794 = vrot.slane %v1787, %v1793
      %v1795 = vcombine.high %v1794, 0
      %v1796 = vcombine.low %v1763, %v1771
      %v1798 = vunpack.c.l.s4 1934713408
      %v1799 = vunpack.c.0.s8 %v1798
      %v1800 = vlaneseq
      %v1801 = vshrl.u32 %v1800, 7
      %v1802 = vsub.s32 %v1799, %v1801
      %v1803 = vrot.slane %v1796, %v1802
      %v1804 = vcombine.high %v1803, 0
      %v1805 = vcombine.low %v1767, %v1775
      %v1807 = vunpack.c.l.s4 1934713408
      %v1808 = vunpack.c.0.s8 %v1807
      %v1809 = vlaneseq
      %v1810 = vshrl.u32 %v1809, 7
      %v1811 = vsub.s32 %v1808, %v1810
      %v1812 = vrot.slane %v1805, %v1811
      %v1813 = vcombine.high %v1812, 0
      %v1816 = vpack.i.b16 %v1794, %v1785
      %v1817 = vshrl.u32 %v1785, 16
      %v1818 = vshrl.u32 %v1794, 16
      %v1819 = vpack.i.b16 %v1818, %v1817
      %v1822 = vpack.i.b16 %v1795, %v1786
      %v1823 = vshrl.u32 %v1786, 16
      %v1824 = vshrl.u32 %v1795, 16
      %v1825 = vpack.i.b16 %v1824, %v1823
      %v1828 = vpack.i.b16 %v1812, %v1803
      %v1829 = vshrl.u32 %v1803, 16
      %v1830 = vshrl.u32 %v1812, 16
      %v1831 = vpack.i.b16 %v1830, %v1829
      %v1834 = vpack.i.b16 %v1813, %v1804
      %v1835 = vshrl.u32 %v1804, 16
      %v1836 = vshrl.u32 %v1813, 16
      %v1837 = vpack.i.b16 %v1836, %v1835
      %v1840 = vpack.i.b16 %v1672, %v1660
      %v1841 = vshrl.u32 %v1660, 16
      %v1842 = vshrl.u32 %v1672, 16
      %v1843 = vpack.i.b16 %v1842, %v1841
      %v1846 = vpack.i.b16 %v1675, %v1663
      %v1847 = vshrl.u32 %v1663, 16
      %v1848 = vshrl.u32 %v1675, 16
      %v1849 = vpack.i.b16 %v1848, %v1847
      %v1852 = vpack.i.b16 %v1678, %v1666
      %v1853 = vshrl.u32 %v1666, 16
      %v1854 = vshrl.u32 %v1678, 16
      %v1855 = vpack.i.b16 %v1854, %v1853
      %v1858 = vpack.i.b16 %v1681, %v1669
      %v1859 = vshrl.u32 %v1669, 16
      %v1860 = vshrl.u32 %v1681, 16
      %v1861 = vpack.i.b16 %v1860, %v1859
      %v1864 = vunpack.c.l.s4 1934713408
      %v1865 = vunpack.c.0.s8 %v1864
      %v1866 = vlaneseq
      %v1867 = vshrl.u32 %v1866, 7
      %v1868 = vsub.s32 %v1865, %v1867
      %v1869 = vrot.slane %v1840, %v1868
      %v1870 = vcombine.high %v1869, 0
      %v1873 = vunpack.c.l.s4 1934713408
      %v1874 = vunpack.c.0.s8 %v1873
      %v1875 = vlaneseq
      %v1876 = vshrl.u32 %v1875, 7
      %v1877 = vsub.s32 %v1874, %v1876
      %v1878 = vrot.slane %v1843, %v1877
      %v1879 = vcombine.high %v1878, 0
      %v1882 = vunpack.c.l.s4 1934713408
      %v1883 = vunpack.c.0.s8 %v1882
      %v1884 = vlaneseq
      %v1885 = vshrl.u32 %v1884, 7
      %v1886 = vsub.s32 %v1883, %v1885
      %v1887 = vrot.slane %v1846, %v1886
      %v1888 = vcombine.high %v1887, 0
      %v1891 = vunpack.c.l.s4 1934713408
      %v1892 = vunpack.c.0.s8 %v1891
      %v1893 = vlaneseq
      %v1894 = vshrl.u32 %v1893, 7
      %v1895 = vsub.s32 %v1892, %v1894
      %v1896 = vrot.slane %v1849, %v1895
      %v1897 = vcombine.high %v1896, 0
      %v1900 = vunpack.c.l.s4 1934713408
      %v1901 = vunpack.c.0.s8 %v1900
      %v1902 = vlaneseq
      %v1903 = vshrl.u32 %v1902, 7
      %v1904 = vsub.s32 %v1901, %v1903
      %v1905 = vrot.slane %v1852, %v1904
      %v1906 = vcombine.high %v1905, 0
      %v1909 = vunpack.c.l.s4 1934713408
      %v1910 = vunpack.c.0.s8 %v1909
      %v1911 = vlaneseq
      %v1912 = vshrl.u32 %v1911, 7
      %v1913 = vsub.s32 %v1910, %v1912
      %v1914 = vrot.slane %v1855, %v1913
      %v1915 = vcombine.high %v1914, 0
      %v1918 = vunpack.c.l.s4 1934713408
      %v1919 = vunpack.c.0.s8 %v1918
      %v1920 = vlaneseq
      %v1921 = vshrl.u32 %v1920, 7
      %v1922 = vsub.s32 %v1919, %v1921
      %v1923 = vrot.slane %v1858, %v1922
      %v1924 = vcombine.high %v1923, 0
      %v1927 = vunpack.c.l.s4 1934713408
      %v1928 = vunpack.c.0.s8 %v1927
      %v1929 = vlaneseq
      %v1930 = vshrl.u32 %v1929, 7
      %v1931 = vsub.s32 %v1928, %v1930
      %v1932 = vrot.slane %v1861, %v1931
      %v1933 = vcombine.high %v1932, 0
      %v1936 = vpack.i.b16 %v1752, %v1740
      %v1937 = vshrl.u32 %v1740, 16
      %v1938 = vshrl.u32 %v1752, 16
      %v1939 = vpack.i.b16 %v1938, %v1937
      %v1942 = vpack.i.b16 %v1755, %v1743
      %v1943 = vshrl.u32 %v1743, 16
      %v1944 = vshrl.u32 %v1755, 16
      %v1945 = vpack.i.b16 %v1944, %v1943
      %v1948 = vpack.i.b16 %v1758, %v1746
      %v1949 = vshrl.u32 %v1746, 16
      %v1950 = vshrl.u32 %v1758, 16
      %v1951 = vpack.i.b16 %v1950, %v1949
      %v1954 = vpack.i.b16 %v1761, %v1749
      %v1955 = vshrl.u32 %v1749, 16
      %v1956 = vshrl.u32 %v1761, 16
      %v1957 = vpack.i.b16 %v1956, %v1955
      %v1960 = vunpack.c.l.s4 1934713408
      %v1961 = vunpack.c.0.s8 %v1960
      %v1962 = vlaneseq
      %v1963 = vshrl.u32 %v1962, 7
      %v1964 = vsub.s32 %v1961, %v1963
      %v1965 = vrot.slane %v1936, %v1964
      %v1966 = vcombine.high %v1965, 0
      %v1969 = vunpack.c.l.s4 1934713408
      %v1970 = vunpack.c.0.s8 %v1969
      %v1971 = vlaneseq
      %v1972 = vshrl.u32 %v1971, 7
      %v1973 = vsub.s32 %v1970, %v1972
      %v1974 = vrot.slane %v1939, %v1973
      %v1975 = vcombine.high %v1974, 0
      %v1978 = vunpack.c.l.s4 1934713408
      %v1979 = vunpack.c.0.s8 %v1978
      %v1980 = vlaneseq
      %v1981 = vshrl.u32 %v1980, 7
      %v1982 = vsub.s32 %v1979, %v1981
      %v1983 = vrot.slane %v1942, %v1982
      %v1984 = vcombine.high %v1983, 0
      %v1987 = vunpack.c.l.s4 1934713408
      %v1988 = vunpack.c.0.s8 %v1987
      %v1989 = vlaneseq
      %v1990 = vshrl.u32 %v1989, 7
      %v1991 = vsub.s32 %v1988, %v1990
      %v1992 = vrot.slane %v1945, %v1991
      %v1993 = vcombine.high %v1992, 0
      %v1996 = vunpack.c.l.s4 1934713408
      %v1997 = vunpack.c.0.s8 %v1996
      %v1998 = vlaneseq
      %v1999 = vshrl.u32 %v1998, 7
      %v2000 = vsub.s32 %v1997, %v1999
      %v2001 = vrot.slane %v1948, %v2000
      %v2002 = vcombine.high %v2001, 0
      %v2005 = vunpack.c.l.s4 1934713408
      %v2006 = vunpack.c.0.s8 %v2005
      %v2007 = vlaneseq
      %v2008 = vshrl.u32 %v2007, 7
      %v2009 = vsub.s32 %v2006, %v2008
      %v2010 = vrot.slane %v1951, %v2009
      %v2011 = vcombine.high %v2010, 0
      %v2014 = vunpack.c.l.s4 1934713408
      %v2015 = vunpack.c.0.s8 %v2014
      %v2016 = vlaneseq
      %v2017 = vshrl.u32 %v2016, 7
      %v2018 = vsub.s32 %v2015, %v2017
      %v2019 = vrot.slane %v1954, %v2018
      %v2020 = vcombine.high %v2019, 0
      %v2023 = vunpack.c.l.s4 1934713408
      %v2024 = vunpack.c.0.s8 %v2023
      %v2025 = vlaneseq
      %v2026 = vshrl.u32 %v2025, 7
      %v2027 = vsub.s32 %v2024, %v2026
      %v2028 = vrot.slane %v1957, %v2027
      %v2029 = vcombine.high %v2028, 0
      %v2032 = vpack.i.b16 %v1828, %v1816
      %v2033 = vshrl.u32 %v1816, 16
      %v2034 = vshrl.u32 %v1828, 16
      %v2035 = vpack.i.b16 %v2034, %v2033
      %v2038 = vpack.i.b16 %v1831, %v1819
      %v2039 = vshrl.u32 %v1819, 16
      %v2040 = vshrl.u32 %v1831, 16
      %v2041 = vpack.i.b16 %v2040, %v2039
      %v2044 = vpack.i.b16 %v1834, %v1822
      %v2045 = vshrl.u32 %v1822, 16
      %v2046 = vshrl.u32 %v1834, 16
      %v2047 = vpack.i.b16 %v2046, %v2045
      %v2050 = vpack.i.b16 %v1837, %v1825
      %v2051 = vshrl.u32 %v1825, 16
      %v2052 = vshrl.u32 %v1837, 16
      %v2053 = vpack.i.b16 %v2052, %v2051
      %v2056 = vunpack.c.l.s4 1934713408
      %v2057 = vunpack.c.0.s8 %v2056
      %v2058 = vlaneseq
      %v2059 = vshrl.u32 %v2058, 7
      %v2060 = vsub.s32 %v2057, %v2059
      %v2061 = vrot.slane %v2032, %v2060
      %v2062 = vcombine.high %v2061, 0
      %v2065 = vunpack.c.l.s4 1934713408
      %v2066 = vunpack.c.0.s8 %v2065
      %v2067 = vlaneseq
      %v2068 = vshrl.u32 %v2067, 7
      %v2069 = vsub.s32 %v2066, %v2068
      %v2070 = vrot.slane %v2035, %v2069
      %v2071 = vcombine.high %v2070, 0
      %v2074 = vunpack.c.l.s4 1934713408
      %v2075 = vunpack.c.0.s8 %v2074
      %v2076 = vlaneseq
      %v2077 = vshrl.u32 %v2076, 7
      %v2078 = vsub.s32 %v2075, %v2077
      %v2079 = vrot.slane %v2038, %v2078
      %v2080 = vcombine.high %v2079, 0
      %v2083 = vunpack.c.l.s4 1934713408
      %v2084 = vunpack.c.0.s8 %v2083
      %v2085 = vlaneseq
      %v2086 = vshrl.u32 %v2085, 7
      %v2087 = vsub.s32 %v2084, %v2086
      %v2088 = vrot.slane %v2041, %v2087
      %v2089 = vcombine.high %v2088, 0
      %v2092 = vunpack.c.l.s4 1934713408
      %v2093 = vunpack.c.0.s8 %v2092
      %v2094 = vlaneseq
      %v2095 = vshrl.u32 %v2094, 7
      %v2096 = vsub.s32 %v2093, %v2095
      %v2097 = vrot.slane %v2044, %v2096
      %v2098 = vcombine.high %v2097, 0
      %v2101 = vunpack.c.l.s4 1934713408
      %v2102 = vunpack.c.0.s8 %v2101
      %v2103 = vlaneseq
      %v2104 = vshrl.u32 %v2103, 7
      %v2105 = vsub.s32 %v2102, %v2104
      %v2106 = vrot.slane %v2047, %v2105
      %v2107 = vcombine.high %v2106, 0
      %v2110 = vunpack.c.l.s4 1934713408
      %v2111 = vunpack.c.0.s8 %v2110
      %v2112 = vlaneseq
      %v2113 = vshrl.u32 %v2112, 7
      %v2114 = vsub.s32 %v2111, %v2113
      %v2115 = vrot.slane %v2050, %v2114
      %v2116 = vcombine.high %v2115, 0
      %v2119 = vunpack.c.l.s4 1934713408
      %v2120 = vunpack.c.0.s8 %v2119
      %v2121 = vlaneseq
      %v2122 = vshrl.u32 %v2121, 7
      %v2123 = vsub.s32 %v2120, %v2122
      %v2124 = vrot.slane %v2053, %v2123
      %v2125 = vcombine.high %v2124, 0
      %v2127 = vsel %vm598, %v1869, 0
      %v2130 = vsel %vm598, %v1965, 0
      %2132 = vmatprep.subr.bf16.mxu0 0
      %2133 = vmatpush1.bf16.xpose.msra.mxu0 0
      %2134 = vmatprep.subr.bf16.mxu0 0
      %2135 = vmatpush1.bf16.xpose.msra.mxu0 0
      %2136 = vmatprep.subr.bf16.mxu0 0
      %2137 = vmatpush1.bf16.xpose.msra.mxu0 0
      %2138 = vmatprep.subr.bf16.mxu0 0
      %2139 = vmatpush1.bf16.xpose.msra.mxu0 0
      %2140 = vmatprep.subr.bf16.mxu0 0
      %2141 = vmatpush1.bf16.xpose.msra.mxu0 0
      %2142 = vmatprep.subr.bf16.mxu0 0
      %2143 = vmatpush1.bf16.xpose.msra.mxu0 0
      %2144 = vmatprep.subr.bf16.mxu0 0
      %2145 = vmatpush1.bf16.xpose.msra.mxu0 0
      %2146 = vmatprep.subr.bf16.mxu0 0
      %2147 = vmatpush1.bf16.xpose.msra.mxu0 %v2130
      %2148 = vmatprep.subr.bf16.mxu0 0
      %2149 = vmatpush2.bf16.xpose.msra.mxu0 0
      %2150 = vmatprep.subr.bf16.mxu0 0
      %2151 = vmatpush2.bf16.xpose.msra.mxu0 0
      %2152 = vmatprep.subr.bf16.mxu0 0
      %2153 = vmatpush2.bf16.xpose.msra.mxu0 0
      %2154 = vmatprep.subr.bf16.mxu0 0
      %2155 = vmatpush2.bf16.xpose.msra.mxu0 0
      %2156 = vmatprep.subr.bf16.mxu0 0
      %2157 = vmatpush2.bf16.xpose.msra.mxu0 0
      %2158 = vmatprep.subr.bf16.mxu0 0
      %2159 = vmatpush2.bf16.xpose.msra.mxu0 0
      %2160 = vmatprep.subr.bf16.mxu0 0
      %2161 = vmatpush2.bf16.xpose.msra.mxu0 0
      %2162 = vmatprep.subr.bf16.mxu0 0
      %2163 = vmatpush2.bf16.xpose.msra.mxu0 0
      %2164 = vmatprep.mubr.bf16.mxu0 0
      %2165 = vmatmul.mubr.bf16.gmra.mxu0 %v2127
      %v2166 = vpop.f32.mrf.mxu0
      %v2167 = vadd.f32 0.0, %v2166
      %v2168 = vpop.f32.mrf.mxu0
      %v2169 = vpop.f32.mrf.mxu0
      %v2170 = vpop.f32.mrf.mxu0
      %2171 = vdwg.mxu0
      %v2173 = vsel %vm598, %v1878, 0
      %v2176 = vsel %vm598, %v1974, 0
      %2178 = vmatprep.subr.bf16.mxu0 0
      %2179 = vmatpush1.bf16.xpose.msra.mxu0 0
      %2180 = vmatprep.subr.bf16.mxu0 0
      %2181 = vmatpush1.bf16.xpose.msra.mxu0 0
      %2182 = vmatprep.subr.bf16.mxu0 0
      %2183 = vmatpush1.bf16.xpose.msra.mxu0 0
      %2184 = vmatprep.subr.bf16.mxu0 0
      %2185 = vmatpush1.bf16.xpose.msra.mxu0 0
      %2186 = vmatprep.subr.bf16.mxu0 0
      %2187 = vmatpush1.bf16.xpose.msra.mxu0 0
      %2188 = vmatprep.subr.bf16.mxu0 0
      %2189 = vmatpush1.bf16.xpose.msra.mxu0 0
      %2190 = vmatprep.subr.bf16.mxu0 0
      %2191 = vmatpush1.bf16.xpose.msra.mxu0 0
      %2192 = vmatprep.subr.bf16.mxu0 0
      %2193 = vmatpush1.bf16.xpose.msra.mxu0 %v2176
      %2194 = vmatprep.subr.bf16.mxu0 0
      %2195 = vmatpush2.bf16.xpose.msra.mxu0 0
      %2196 = vmatprep.subr.bf16.mxu0 0
      %2197 = vmatpush2.bf16.xpose.msra.mxu0 0
      %2198 = vmatprep.subr.bf16.mxu0 0
      %2199 = vmatpush2.bf16.xpose.msra.mxu0 0
      %2200 = vmatprep.subr.bf16.mxu0 0
      %2201 = vmatpush2.bf16.xpose.msra.mxu0 0
      %2202 = vmatprep.subr.bf16.mxu0 0
      %2203 = vmatpush2.bf16.xpose.msra.mxu0 0
      %2204 = vmatprep.subr.bf16.mxu0 0
      %2205 = vmatpush2.bf16.xpose.msra.mxu0 0
      %2206 = vmatprep.subr.bf16.mxu0 0
      %2207 = vmatpush2.bf16.xpose.msra.mxu0 0
      %2208 = vmatprep.subr.bf16.mxu0 0
      %2209 = vmatpush2.bf16.xpose.msra.mxu0 0
      %2210 = vmatprep.mubr.bf16.mxu0 0
      %2211 = vmatmul.mubr.bf16.gmra.mxu0 %v2173
      %v2212 = vpop.f32.mrf.mxu0
      %v2213 = vadd.f32 0.0, %v2212
      %v2214 = vpop.f32.mrf.mxu0
      %v2215 = vpop.f32.mrf.mxu0
      %v2216 = vpop.f32.mrf.mxu0
      %2217 = vdwg.mxu0
      %v2219 = vsel %vm598, %v1870, 0
      %v2222 = vsel %vm598, %v1966, 0
      %2224 = vmatprep.subr.bf16.mxu0 0
      %2225 = vmatpush1.bf16.xpose.msra.mxu0 0
      %2226 = vmatprep.subr.bf16.mxu0 0
      %2227 = vmatpush1.bf16.xpose.msra.mxu0 0
      %2228 = vmatprep.subr.bf16.mxu0 0
      %2229 = vmatpush1.bf16.xpose.msra.mxu0 0
      %2230 = vmatprep.subr.bf16.mxu0 0
      %2231 = vmatpush1.bf16.xpose.msra.mxu0 0
      %2232 = vmatprep.subr.bf16.mxu0 0
      %2233 = vmatpush1.bf16.xpose.msra.mxu0 0
      %2234 = vmatprep.subr.bf16.mxu0 0
      %2235 = vmatpush1.bf16.xpose.msra.mxu0 0
      %2236 = vmatprep.subr.bf16.mxu0 0
      %2237 = vmatpush1.bf16.xpose.msra.mxu0 0
      %2238 = vmatprep.subr.bf16.mxu0 0
      %2239 = vmatpush1.bf16.xpose.msra.mxu0 %v2222
      %2240 = vmatprep.subr.bf16.mxu0 0
      %2241 = vmatpush2.bf16.xpose.msra.mxu0 0
      %2242 = vmatprep.subr.bf16.mxu0 0
      %2243 = vmatpush2.bf16.xpose.msra.mxu0 0
      %2244 = vmatprep.subr.bf16.mxu0 0
      %2245 = vmatpush2.bf16.xpose.msra.mxu0 0
      %2246 = vmatprep.subr.bf16.mxu0 0
      %2247 = vmatpush2.bf16.xpose.msra.mxu0 0
      %2248 = vmatprep.subr.bf16.mxu0 0
      %2249 = vmatpush2.bf16.xpose.msra.mxu0 0
      %2250 = vmatprep.subr.bf16.mxu0 0
      %2251 = vmatpush2.bf16.xpose.msra.mxu0 0
      %2252 = vmatprep.subr.bf16.mxu0 0
      %2253 = vmatpush2.bf16.xpose.msra.mxu0 0
      %2254 = vmatprep.subr.bf16.mxu0 0
      %2255 = vmatpush2.bf16.xpose.msra.mxu0 0
      %2256 = vmatprep.mubr.bf16.mxu0 0
      %2257 = vmatmul.mubr.bf16.gmra.mxu0 %v2219
      %v2258 = vpop.f32.mrf.mxu0
      %v2259 = vadd.f32 0.0, %v2258
      %v2260 = vpop.f32.mrf.mxu0
      %v2261 = vpop.f32.mrf.mxu0
      %v2262 = vpop.f32.mrf.mxu0
      %2263 = vdwg.mxu0
      %v2265 = vsel %vm598, %v1879, 0
      %v2268 = vsel %vm598, %v1975, 0
      %2270 = vmatprep.subr.bf16.mxu0 0
      %2271 = vmatpush1.bf16.xpose.msra.mxu0 0
      %2272 = vmatprep.subr.bf16.mxu0 0
      %2273 = vmatpush1.bf16.xpose.msra.mxu0 0
      %2274 = vmatprep.subr.bf16.mxu0 0
      %2275 = vmatpush1.bf16.xpose.msra.mxu0 0
      %2276 = vmatprep.subr.bf16.mxu0 0
      %2277 = vmatpush1.bf16.xpose.msra.mxu0 0
      %2278 = vmatprep.subr.bf16.mxu0 0
      %2279 = vmatpush1.bf16.xpose.msra.mxu0 0
      %2280 = vmatprep.subr.bf16.mxu0 0
      %2281 = vmatpush1.bf16.xpose.msra.mxu0 0
      %2282 = vmatprep.subr.bf16.mxu0 0
      %2283 = vmatpush1.bf16.xpose.msra.mxu0 0
      %2284 = vmatprep.subr.bf16.mxu0 0
      %2285 = vmatpush1.bf16.xpose.msra.mxu0 %v2268
      %2286 = vmatprep.subr.bf16.mxu0 0
      %2287 = vmatpush2.bf16.xpose.msra.mxu0 0
      %2288 = vmatprep.subr.bf16.mxu0 0
      %2289 = vmatpush2.bf16.xpose.msra.mxu0 0
      %2290 = vmatprep.subr.bf16.mxu0 0
      %2291 = vmatpush2.bf16.xpose.msra.mxu0 0
      %2292 = vmatprep.subr.bf16.mxu0 0
      %2293 = vmatpush2.bf16.xpose.msra.mxu0 0
      %2294 = vmatprep.subr.bf16.mxu0 0
      %2295 = vmatpush2.bf16.xpose.msra.mxu0 0
      %2296 = vmatprep.subr.bf16.mxu0 0
      %2297 = vmatpush2.bf16.xpose.msra.mxu0 0
      %2298 = vmatprep.subr.bf16.mxu0 0
      %2299 = vmatpush2.bf16.xpose.msra.mxu0 0
      %2300 = vmatprep.subr.bf16.mxu0 0
      %2301 = vmatpush2.bf16.xpose.msra.mxu0 0
      %2302 = vmatprep.mubr.bf16.mxu0 0
      %2303 = vmatmul.mubr.bf16.gmra.mxu0 %v2265
      %v2304 = vpop.f32.mrf.mxu0
      %v2305 = vadd.f32 0.0, %v2304
      %v2306 = vpop.f32.mrf.mxu0
      %v2307 = vpop.f32.mrf.mxu0
      %v2308 = vpop.f32.mrf.mxu0
      %2309 = vdwg.mxu0
      %v2311 = vsel %vm598, %v1887, 0
      %v2314 = vsel %vm598, %v1983, 0
      %2316 = vmatprep.subr.bf16.mxu0 0
      %2317 = vmatpush1.bf16.xpose.msra.mxu0 0
      %2318 = vmatprep.subr.bf16.mxu0 0
      %2319 = vmatpush1.bf16.xpose.msra.mxu0 0
      %2320 = vmatprep.subr.bf16.mxu0 0
      %2321 = vmatpush1.bf16.xpose.msra.mxu0 0
      %2322 = vmatprep.subr.bf16.mxu0 0
      %2323 = vmatpush1.bf16.xpose.msra.mxu0 0
      %2324 = vmatprep.subr.bf16.mxu0 0
      %2325 = vmatpush1.bf16.xpose.msra.mxu0 0
      %2326 = vmatprep.subr.bf16.mxu0 0
      %2327 = vmatpush1.bf16.xpose.msra.mxu0 0
      %2328 = vmatprep.subr.bf16.mxu0 0
      %2329 = vmatpush1.bf16.xpose.msra.mxu0 0
      %2330 = vmatprep.subr.bf16.mxu0 0
      %2331 = vmatpush1.bf16.xpose.msra.mxu0 %v2314
      %2332 = vmatprep.subr.bf16.mxu0 0
      %2333 = vmatpush2.bf16.xpose.msra.mxu0 0
      %2334 = vmatprep.subr.bf16.mxu0 0
      %2335 = vmatpush2.bf16.xpose.msra.mxu0 0
      %2336 = vmatprep.subr.bf16.mxu0 0
      %2337 = vmatpush2.bf16.xpose.msra.mxu0 0
      %2338 = vmatprep.subr.bf16.mxu0 0
      %2339 = vmatpush2.bf16.xpose.msra.mxu0 0
      %2340 = vmatprep.subr.bf16.mxu0 0
      %2341 = vmatpush2.bf16.xpose.msra.mxu0 0
      %2342 = vmatprep.subr.bf16.mxu0 0
      %2343 = vmatpush2.bf16.xpose.msra.mxu0 0
      %2344 = vmatprep.subr.bf16.mxu0 0
      %2345 = vmatpush2.bf16.xpose.msra.mxu0 0
      %2346 = vmatprep.subr.bf16.mxu0 0
      %2347 = vmatpush2.bf16.xpose.msra.mxu0 0
      %2348 = vmatprep.mubr.bf16.mxu0 0
      %2349 = vmatmul.mubr.bf16.gmra.mxu0 %v2311
      %v2350 = vpop.f32.mrf.mxu0
      %v2351 = vadd.f32 0.0, %v2350
      %v2352 = vpop.f32.mrf.mxu0
      %v2353 = vpop.f32.mrf.mxu0
      %v2354 = vpop.f32.mrf.mxu0
      %2355 = vdwg.mxu0
      %v2357 = vsel %vm598, %v1896, 0
      %v2360 = vsel %vm598, %v1992, 0
      %2362 = vmatprep.subr.bf16.mxu0 0
      %2363 = vmatpush1.bf16.xpose.msra.mxu0 0
      %2364 = vmatprep.subr.bf16.mxu0 0
      %2365 = vmatpush1.bf16.xpose.msra.mxu0 0
      %2366 = vmatprep.subr.bf16.mxu0 0
      %2367 = vmatpush1.bf16.xpose.msra.mxu0 0
      %2368 = vmatprep.subr.bf16.mxu0 0
      %2369 = vmatpush1.bf16.xpose.msra.mxu0 0
      %2370 = vmatprep.subr.bf16.mxu0 0
      %2371 = vmatpush1.bf16.xpose.msra.mxu0 0
      %2372 = vmatprep.subr.bf16.mxu0 0
      %2373 = vmatpush1.bf16.xpose.msra.mxu0 0
      %2374 = vmatprep.subr.bf16.mxu0 0
      %2375 = vmatpush1.bf16.xpose.msra.mxu0 0
      %2376 = vmatprep.subr.bf16.mxu0 0
      %2377 = vmatpush1.bf16.xpose.msra.mxu0 %v2360
      %2378 = vmatprep.subr.bf16.mxu0 0
      %2379 = vmatpush2.bf16.xpose.msra.mxu0 0
      %2380 = vmatprep.subr.bf16.mxu0 0
      %2381 = vmatpush2.bf16.xpose.msra.mxu0 0
      %2382 = vmatprep.subr.bf16.mxu0 0
      %2383 = vmatpush2.bf16.xpose.msra.mxu0 0
      %2384 = vmatprep.subr.bf16.mxu0 0
      %2385 = vmatpush2.bf16.xpose.msra.mxu0 0
      %2386 = vmatprep.subr.bf16.mxu0 0
      %2387 = vmatpush2.bf16.xpose.msra.mxu0 0
      %2388 = vmatprep.subr.bf16.mxu0 0
      %2389 = vmatpush2.bf16.xpose.msra.mxu0 0
      %2390 = vmatprep.subr.bf16.mxu0 0
      %2391 = vmatpush2.bf16.xpose.msra.mxu0 0
      %2392 = vmatprep.subr.bf16.mxu0 0
      %2393 = vmatpush2.bf16.xpose.msra.mxu0 0
      %2394 = vmatprep.mubr.bf16.mxu0 0
      %2395 = vmatmul.mubr.bf16.gmra.mxu0 %v2357
      %v2396 = vpop.f32.mrf.mxu0
      %v2397 = vadd.f32 0.0, %v2396
      %v2398 = vpop.f32.mrf.mxu0
      %v2399 = vpop.f32.mrf.mxu0
      %v2400 = vpop.f32.mrf.mxu0
      %2401 = vdwg.mxu0
      %v2403 = vsel %vm598, %v1888, 0
      %v2406 = vsel %vm598, %v1984, 0
      %2408 = vmatprep.subr.bf16.mxu0 0
      %2409 = vmatpush1.bf16.xpose.msra.mxu0 0
      %2410 = vmatprep.subr.bf16.mxu0 0
      %2411 = vmatpush1.bf16.xpose.msra.mxu0 0
      %2412 = vmatprep.subr.bf16.mxu0 0
      %2413 = vmatpush1.bf16.xpose.msra.mxu0 0
      %2414 = vmatprep.subr.bf16.mxu0 0
      %2415 = vmatpush1.bf16.xpose.msra.mxu0 0
      %2416 = vmatprep.subr.bf16.mxu0 0
      %2417 = vmatpush1.bf16.xpose.msra.mxu0 0
      %2418 = vmatprep.subr.bf16.mxu0 0
      %2419 = vmatpush1.bf16.xpose.msra.mxu0 0
      %2420 = vmatprep.subr.bf16.mxu0 0
      %2421 = vmatpush1.bf16.xpose.msra.mxu0 0
      %2422 = vmatprep.subr.bf16.mxu0 0
      %2423 = vmatpush1.bf16.xpose.msra.mxu0 %v2406
      %2424 = vmatprep.subr.bf16.mxu0 0
      %2425 = vmatpush2.bf16.xpose.msra.mxu0 0
      %2426 = vmatprep.subr.bf16.mxu0 0
      %2427 = vmatpush2.bf16.xpose.msra.mxu0 0
      %2428 = vmatprep.subr.bf16.mxu0 0
      %2429 = vmatpush2.bf16.xpose.msra.mxu0 0
      %2430 = vmatprep.subr.bf16.mxu0 0
      %2431 = vmatpush2.bf16.xpose.msra.mxu0 0
      %2432 = vmatprep.subr.bf16.mxu0 0
      %2433 = vmatpush2.bf16.xpose.msra.mxu0 0
      %2434 = vmatprep.subr.bf16.mxu0 0
      %2435 = vmatpush2.bf16.xpose.msra.mxu0 0
      %2436 = vmatprep.subr.bf16.mxu0 0
      %2437 = vmatpush2.bf16.xpose.msra.mxu0 0
      %2438 = vmatprep.subr.bf16.mxu0 0
      %2439 = vmatpush2.bf16.xpose.msra.mxu0 0
      %2440 = vmatprep.mubr.bf16.mxu0 0
      %2441 = vmatmul.mubr.bf16.gmra.mxu0 %v2403
      %v2442 = vpop.f32.mrf.mxu0
      %v2443 = vadd.f32 0.0, %v2442
      %v2444 = vpop.f32.mrf.mxu0
      %v2445 = vpop.f32.mrf.mxu0
      %v2446 = vpop.f32.mrf.mxu0
      %2447 = vdwg.mxu0
      %v2449 = vsel %vm598, %v1897, 0
      %v2452 = vsel %vm598, %v1993, 0
      %2454 = vmatprep.subr.bf16.mxu0 0
      %2455 = vmatpush1.bf16.xpose.msra.mxu0 0
      %2456 = vmatprep.subr.bf16.mxu0 0
      %2457 = vmatpush1.bf16.xpose.msra.mxu0 0
      %2458 = vmatprep.subr.bf16.mxu0 0
      %2459 = vmatpush1.bf16.xpose.msra.mxu0 0
      %2460 = vmatprep.subr.bf16.mxu0 0
      %2461 = vmatpush1.bf16.xpose.msra.mxu0 0
      %2462 = vmatprep.subr.bf16.mxu0 0
      %2463 = vmatpush1.bf16.xpose.msra.mxu0 0
      %2464 = vmatprep.subr.bf16.mxu0 0
      %2465 = vmatpush1.bf16.xpose.msra.mxu0 0
      %2466 = vmatprep.subr.bf16.mxu0 0
      %2467 = vmatpush1.bf16.xpose.msra.mxu0 0
      %2468 = vmatprep.subr.bf16.mxu0 0
      %2469 = vmatpush1.bf16.xpose.msra.mxu0 %v2452
      %2470 = vmatprep.subr.bf16.mxu0 0
      %2471 = vmatpush2.bf16.xpose.msra.mxu0 0
      %2472 = vmatprep.subr.bf16.mxu0 0
      %2473 = vmatpush2.bf16.xpose.msra.mxu0 0
      %2474 = vmatprep.subr.bf16.mxu0 0
      %2475 = vmatpush2.bf16.xpose.msra.mxu0 0
      %2476 = vmatprep.subr.bf16.mxu0 0
      %2477 = vmatpush2.bf16.xpose.msra.mxu0 0
      %2478 = vmatprep.subr.bf16.mxu0 0
      %2479 = vmatpush2.bf16.xpose.msra.mxu0 0
      %2480 = vmatprep.subr.bf16.mxu0 0
      %2481 = vmatpush2.bf16.xpose.msra.mxu0 0
      %2482 = vmatprep.subr.bf16.mxu0 0
      %2483 = vmatpush2.bf16.xpose.msra.mxu0 0
      %2484 = vmatprep.subr.bf16.mxu0 0
      %2485 = vmatpush2.bf16.xpose.msra.mxu0 0
      %2486 = vmatprep.mubr.bf16.mxu0 0
      %2487 = vmatmul.mubr.bf16.gmra.mxu0 %v2449
      %v2488 = vpop.f32.mrf.mxu0
      %v2489 = vadd.f32 0.0, %v2488
      %v2490 = vpop.f32.mrf.mxu0
      %v2491 = vpop.f32.mrf.mxu0
      %v2492 = vpop.f32.mrf.mxu0
      %2493 = vdwg.mxu0
      %v2495 = vsel %vm598, %v1905, 0
      %v2498 = vsel %vm598, %v2001, 0
      %2500 = vmatprep.subr.bf16.mxu0 0
      %2501 = vmatpush1.bf16.xpose.msra.mxu0 0
      %2502 = vmatprep.subr.bf16.mxu0 0
      %2503 = vmatpush1.bf16.xpose.msra.mxu0 0
      %2504 = vmatprep.subr.bf16.mxu0 0
      %2505 = vmatpush1.bf16.xpose.msra.mxu0 0
      %2506 = vmatprep.subr.bf16.mxu0 0
      %2507 = vmatpush1.bf16.xpose.msra.mxu0 0
      %2508 = vmatprep.subr.bf16.mxu0 0
      %2509 = vmatpush1.bf16.xpose.msra.mxu0 0
      %2510 = vmatprep.subr.bf16.mxu0 0
      %2511 = vmatpush1.bf16.xpose.msra.mxu0 0
      %2512 = vmatprep.subr.bf16.mxu0 0
      %2513 = vmatpush1.bf16.xpose.msra.mxu0 0
      %2514 = vmatprep.subr.bf16.mxu0 0
      %2515 = vmatpush1.bf16.xpose.msra.mxu0 %v2498
      %2516 = vmatprep.subr.bf16.mxu0 0
      %2517 = vmatpush2.bf16.xpose.msra.mxu0 0
      %2518 = vmatprep.subr.bf16.mxu0 0
      %2519 = vmatpush2.bf16.xpose.msra.mxu0 0
      %2520 = vmatprep.subr.bf16.mxu0 0
      %2521 = vmatpush2.bf16.xpose.msra.mxu0 0
      %2522 = vmatprep.subr.bf16.mxu0 0
      %2523 = vmatpush2.bf16.xpose.msra.mxu0 0
      %2524 = vmatprep.subr.bf16.mxu0 0
      %2525 = vmatpush2.bf16.xpose.msra.mxu0 0
      %2526 = vmatprep.subr.bf16.mxu0 0
      %2527 = vmatpush2.bf16.xpose.msra.mxu0 0
      %2528 = vmatprep.subr.bf16.mxu0 0
      %2529 = vmatpush2.bf16.xpose.msra.mxu0 0
      %2530 = vmatprep.subr.bf16.mxu0 0
      %2531 = vmatpush2.bf16.xpose.msra.mxu0 0
      %2532 = vmatprep.mubr.bf16.mxu0 0
      %2533 = vmatmul.mubr.bf16.gmra.mxu0 %v2495
      %v2534 = vpop.f32.mrf.mxu0
      %v2535 = vadd.f32 0.0, %v2534
      %v2536 = vpop.f32.mrf.mxu0
      %v2537 = vpop.f32.mrf.mxu0
      %v2538 = vpop.f32.mrf.mxu0
      %2539 = vdwg.mxu0
      %v2541 = vsel %vm598, %v1914, 0
      %v2544 = vsel %vm598, %v2010, 0
      %2546 = vmatprep.subr.bf16.mxu0 0
      %2547 = vmatpush1.bf16.xpose.msra.mxu0 0
      %2548 = vmatprep.subr.bf16.mxu0 0
      %2549 = vmatpush1.bf16.xpose.msra.mxu0 0
      %2550 = vmatprep.subr.bf16.mxu0 0
      %2551 = vmatpush1.bf16.xpose.msra.mxu0 0
      %2552 = vmatprep.subr.bf16.mxu0 0
      %2553 = vmatpush1.bf16.xpose.msra.mxu0 0
      %2554 = vmatprep.subr.bf16.mxu0 0
      %2555 = vmatpush1.bf16.xpose.msra.mxu0 0
      %2556 = vmatprep.subr.bf16.mxu0 0
      %2557 = vmatpush1.bf16.xpose.msra.mxu0 0
      %2558 = vmatprep.subr.bf16.mxu0 0
      %2559 = vmatpush1.bf16.xpose.msra.mxu0 0
      %2560 = vmatprep.subr.bf16.mxu0 0
      %2561 = vmatpush1.bf16.xpose.msra.mxu0 %v2544
      %2562 = vmatprep.subr.bf16.mxu0 0
      %2563 = vmatpush2.bf16.xpose.msra.mxu0 0
      %2564 = vmatprep.subr.bf16.mxu0 0
      %2565 = vmatpush2.bf16.xpose.msra.mxu0 0
      %2566 = vmatprep.subr.bf16.mxu0 0
      %2567 = vmatpush2.bf16.xpose.msra.mxu0 0
      %2568 = vmatprep.subr.bf16.mxu0 0
      %2569 = vmatpush2.bf16.xpose.msra.mxu0 0
      %2570 = vmatprep.subr.bf16.mxu0 0
      %2571 = vmatpush2.bf16.xpose.msra.mxu0 0
      %2572 = vmatprep.subr.bf16.mxu0 0
      %2573 = vmatpush2.bf16.xpose.msra.mxu0 0
      %2574 = vmatprep.subr.bf16.mxu0 0
      %2575 = vmatpush2.bf16.xpose.msra.mxu0 0
      %2576 = vmatprep.subr.bf16.mxu0 0
      %2577 = vmatpush2.bf16.xpose.msra.mxu0 0
      %2578 = vmatprep.mubr.bf16.mxu0 0
      %2579 = vmatmul.mubr.bf16.gmra.mxu0 %v2541
      %v2580 = vpop.f32.mrf.mxu0
      %v2581 = vadd.f32 0.0, %v2580
      %v2582 = vpop.f32.mrf.mxu0
      %v2583 = vpop.f32.mrf.mxu0
      %v2584 = vpop.f32.mrf.mxu0
      %2585 = vdwg.mxu0
      %v2587 = vsel %vm598, %v1906, 0
      %v2590 = vsel %vm598, %v2002, 0
      %2592 = vmatprep.subr.bf16.mxu0 0
      %2593 = vmatpush1.bf16.xpose.msra.mxu0 0
      %2594 = vmatprep.subr.bf16.mxu0 0
      %2595 = vmatpush1.bf16.xpose.msra.mxu0 0
      %2596 = vmatprep.subr.bf16.mxu0 0
      %2597 = vmatpush1.bf16.xpose.msra.mxu0 0
      %2598 = vmatprep.subr.bf16.mxu0 0
      %2599 = vmatpush1.bf16.xpose.msra.mxu0 0
      %2600 = vmatprep.subr.bf16.mxu0 0
      %2601 = vmatpush1.bf16.xpose.msra.mxu0 0
      %2602 = vmatprep.subr.bf16.mxu0 0
      %2603 = vmatpush1.bf16.xpose.msra.mxu0 0
      %2604 = vmatprep.subr.bf16.mxu0 0
      %2605 = vmatpush1.bf16.xpose.msra.mxu0 0
      %2606 = vmatprep.subr.bf16.mxu0 0
      %2607 = vmatpush1.bf16.xpose.msra.mxu0 %v2590
      %2608 = vmatprep.subr.bf16.mxu0 0
      %2609 = vmatpush2.bf16.xpose.msra.mxu0 0
      %2610 = vmatprep.subr.bf16.mxu0 0
      %2611 = vmatpush2.bf16.xpose.msra.mxu0 0
      %2612 = vmatprep.subr.bf16.mxu0 0
      %2613 = vmatpush2.bf16.xpose.msra.mxu0 0
      %2614 = vmatprep.subr.bf16.mxu0 0
      %2615 = vmatpush2.bf16.xpose.msra.mxu0 0
      %2616 = vmatprep.subr.bf16.mxu0 0
      %2617 = vmatpush2.bf16.xpose.msra.mxu0 0
      %2618 = vmatprep.subr.bf16.mxu0 0
      %2619 = vmatpush2.bf16.xpose.msra.mxu0 0
      %2620 = vmatprep.subr.bf16.mxu0 0
      %2621 = vmatpush2.bf16.xpose.msra.mxu0 0
      %2622 = vmatprep.subr.bf16.mxu0 0
      %2623 = vmatpush2.bf16.xpose.msra.mxu0 0
      %2624 = vmatprep.mubr.bf16.mxu0 0
      %2625 = vmatmul.mubr.bf16.gmra.mxu0 %v2587
      %v2626 = vpop.f32.mrf.mxu0
      %v2627 = vadd.f32 0.0, %v2626
      %v2628 = vpop.f32.mrf.mxu0
      %v2629 = vpop.f32.mrf.mxu0
      %v2630 = vpop.f32.mrf.mxu0
      %2631 = vdwg.mxu0
      %v2633 = vsel %vm598, %v1915, 0
      %v2636 = vsel %vm598, %v2011, 0
      %2638 = vmatprep.subr.bf16.mxu0 0
      %2639 = vmatpush1.bf16.xpose.msra.mxu0 0
      %2640 = vmatprep.subr.bf16.mxu0 0
      %2641 = vmatpush1.bf16.xpose.msra.mxu0 0
      %2642 = vmatprep.subr.bf16.mxu0 0
      %2643 = vmatpush1.bf16.xpose.msra.mxu0 0
      %2644 = vmatprep.subr.bf16.mxu0 0
      %2645 = vmatpush1.bf16.xpose.msra.mxu0 0
      %2646 = vmatprep.subr.bf16.mxu0 0
      %2647 = vmatpush1.bf16.xpose.msra.mxu0 0
      %2648 = vmatprep.subr.bf16.mxu0 0
      %2649 = vmatpush1.bf16.xpose.msra.mxu0 0
      %2650 = vmatprep.subr.bf16.mxu0 0
      %2651 = vmatpush1.bf16.xpose.msra.mxu0 0
      %2652 = vmatprep.subr.bf16.mxu0 0
      %2653 = vmatpush1.bf16.xpose.msra.mxu0 %v2636
      %2654 = vmatprep.subr.bf16.mxu0 0
      %2655 = vmatpush2.bf16.xpose.msra.mxu0 0
      %2656 = vmatprep.subr.bf16.mxu0 0
      %2657 = vmatpush2.bf16.xpose.msra.mxu0 0
      %2658 = vmatprep.subr.bf16.mxu0 0
      %2659 = vmatpush2.bf16.xpose.msra.mxu0 0
      %2660 = vmatprep.subr.bf16.mxu0 0
      %2661 = vmatpush2.bf16.xpose.msra.mxu0 0
      %2662 = vmatprep.subr.bf16.mxu0 0
      %2663 = vmatpush2.bf16.xpose.msra.mxu0 0
      %2664 = vmatprep.subr.bf16.mxu0 0
      %2665 = vmatpush2.bf16.xpose.msra.mxu0 0
      %2666 = vmatprep.subr.bf16.mxu0 0
      %2667 = vmatpush2.bf16.xpose.msra.mxu0 0
      %2668 = vmatprep.subr.bf16.mxu0 0
      %2669 = vmatpush2.bf16.xpose.msra.mxu0 0
      %2670 = vmatprep.mubr.bf16.mxu0 0
      %2671 = vmatmul.mubr.bf16.gmra.mxu0 %v2633
      %v2672 = vpop.f32.mrf.mxu0
      %v2673 = vadd.f32 0.0, %v2672
      %v2674 = vpop.f32.mrf.mxu0
      %v2675 = vpop.f32.mrf.mxu0
      %v2676 = vpop.f32.mrf.mxu0
      %2677 = vdwg.mxu0
      %v2679 = vsel %vm598, %v1923, 0
      %v2682 = vsel %vm598, %v2019, 0
      %2684 = vmatprep.subr.bf16.mxu0 0
      %2685 = vmatpush1.bf16.xpose.msra.mxu0 0
      %2686 = vmatprep.subr.bf16.mxu0 0
      %2687 = vmatpush1.bf16.xpose.msra.mxu0 0
      %2688 = vmatprep.subr.bf16.mxu0 0
      %2689 = vmatpush1.bf16.xpose.msra.mxu0 0
      %2690 = vmatprep.subr.bf16.mxu0 0
      %2691 = vmatpush1.bf16.xpose.msra.mxu0 0
      %2692 = vmatprep.subr.bf16.mxu0 0
      %2693 = vmatpush1.bf16.xpose.msra.mxu0 0
      %2694 = vmatprep.subr.bf16.mxu0 0
      %2695 = vmatpush1.bf16.xpose.msra.mxu0 0
      %2696 = vmatprep.subr.bf16.mxu0 0
      %2697 = vmatpush1.bf16.xpose.msra.mxu0 0
      %2698 = vmatprep.subr.bf16.mxu0 0
      %2699 = vmatpush1.bf16.xpose.msra.mxu0 %v2682
      %2700 = vmatprep.subr.bf16.mxu0 0
      %2701 = vmatpush2.bf16.xpose.msra.mxu0 0
      %2702 = vmatprep.subr.bf16.mxu0 0
      %2703 = vmatpush2.bf16.xpose.msra.mxu0 0
      %2704 = vmatprep.subr.bf16.mxu0 0
      %2705 = vmatpush2.bf16.xpose.msra.mxu0 0
      %2706 = vmatprep.subr.bf16.mxu0 0
      %2707 = vmatpush2.bf16.xpose.msra.mxu0 0
      %2708 = vmatprep.subr.bf16.mxu0 0
      %2709 = vmatpush2.bf16.xpose.msra.mxu0 0
      %2710 = vmatprep.subr.bf16.mxu0 0
      %2711 = vmatpush2.bf16.xpose.msra.mxu0 0
      %2712 = vmatprep.subr.bf16.mxu0 0
      %2713 = vmatpush2.bf16.xpose.msra.mxu0 0
      %2714 = vmatprep.subr.bf16.mxu0 0
      %2715 = vmatpush2.bf16.xpose.msra.mxu0 0
      %2716 = vmatprep.mubr.bf16.mxu0 0
      %2717 = vmatmul.mubr.bf16.gmra.mxu0 %v2679
      %v2718 = vpop.f32.mrf.mxu0
      %v2719 = vadd.f32 0.0, %v2718
      %v2720 = vpop.f32.mrf.mxu0
      %v2721 = vpop.f32.mrf.mxu0
      %v2722 = vpop.f32.mrf.mxu0
      %2723 = vdwg.mxu0
      %v2725 = vsel %vm598, %v1932, 0
      %v2728 = vsel %vm598, %v2028, 0
      %2730 = vmatprep.subr.bf16.mxu0 0
      %2731 = vmatpush1.bf16.xpose.msra.mxu0 0
      %2732 = vmatprep.subr.bf16.mxu0 0
      %2733 = vmatpush1.bf16.xpose.msra.mxu0 0
      %2734 = vmatprep.subr.bf16.mxu0 0
      %2735 = vmatpush1.bf16.xpose.msra.mxu0 0
      %2736 = vmatprep.subr.bf16.mxu0 0
      %2737 = vmatpush1.bf16.xpose.msra.mxu0 0
      %2738 = vmatprep.subr.bf16.mxu0 0
      %2739 = vmatpush1.bf16.xpose.msra.mxu0 0
      %2740 = vmatprep.subr.bf16.mxu0 0
      %2741 = vmatpush1.bf16.xpose.msra.mxu0 0
      %2742 = vmatprep.subr.bf16.mxu0 0
      %2743 = vmatpush1.bf16.xpose.msra.mxu0 0
      %2744 = vmatprep.subr.bf16.mxu0 0
      %2745 = vmatpush1.bf16.xpose.msra.mxu0 %v2728
      %2746 = vmatprep.subr.bf16.mxu0 0
      %2747 = vmatpush2.bf16.xpose.msra.mxu0 0
      %2748 = vmatprep.subr.bf16.mxu0 0
      %2749 = vmatpush2.bf16.xpose.msra.mxu0 0
      %2750 = vmatprep.subr.bf16.mxu0 0
      %2751 = vmatpush2.bf16.xpose.msra.mxu0 0
      %2752 = vmatprep.subr.bf16.mxu0 0
      %2753 = vmatpush2.bf16.xpose.msra.mxu0 0
      %2754 = vmatprep.subr.bf16.mxu0 0
      %2755 = vmatpush2.bf16.xpose.msra.mxu0 0
      %2756 = vmatprep.subr.bf16.mxu0 0
      %2757 = vmatpush2.bf16.xpose.msra.mxu0 0
      %2758 = vmatprep.subr.bf16.mxu0 0
      %2759 = vmatpush2.bf16.xpose.msra.mxu0 0
      %2760 = vmatprep.subr.bf16.mxu0 0
      %2761 = vmatpush2.bf16.xpose.msra.mxu0 0
      %2762 = vmatprep.mubr.bf16.mxu0 0
      %2763 = vmatmul.mubr.bf16.gmra.mxu0 %v2725
      %v2764 = vpop.f32.mrf.mxu0
      %v2765 = vadd.f32 0.0, %v2764
      %v2766 = vpop.f32.mrf.mxu0
      %v2767 = vpop.f32.mrf.mxu0
      %v2768 = vpop.f32.mrf.mxu0
      %2769 = vdwg.mxu0
      %v2771 = vsel %vm598, %v1924, 0
      %v2774 = vsel %vm598, %v2020, 0
      %2776 = vmatprep.subr.bf16.mxu0 0
      %2777 = vmatpush1.bf16.xpose.msra.mxu0 0
      %2778 = vmatprep.subr.bf16.mxu0 0
      %2779 = vmatpush1.bf16.xpose.msra.mxu0 0
      %2780 = vmatprep.subr.bf16.mxu0 0
      %2781 = vmatpush1.bf16.xpose.msra.mxu0 0
      %2782 = vmatprep.subr.bf16.mxu0 0
      %2783 = vmatpush1.bf16.xpose.msra.mxu0 0
      %2784 = vmatprep.subr.bf16.mxu0 0
      %2785 = vmatpush1.bf16.xpose.msra.mxu0 0
      %2786 = vmatprep.subr.bf16.mxu0 0
      %2787 = vmatpush1.bf16.xpose.msra.mxu0 0
      %2788 = vmatprep.subr.bf16.mxu0 0
      %2789 = vmatpush1.bf16.xpose.msra.mxu0 0
      %2790 = vmatprep.subr.bf16.mxu0 0
      %2791 = vmatpush1.bf16.xpose.msra.mxu0 %v2774
      %2792 = vmatprep.subr.bf16.mxu0 0
      %2793 = vmatpush2.bf16.xpose.msra.mxu0 0
      %2794 = vmatprep.subr.bf16.mxu0 0
      %2795 = vmatpush2.bf16.xpose.msra.mxu0 0
      %2796 = vmatprep.subr.bf16.mxu0 0
      %2797 = vmatpush2.bf16.xpose.msra.mxu0 0
      %2798 = vmatprep.subr.bf16.mxu0 0
      %2799 = vmatpush2.bf16.xpose.msra.mxu0 0
      %2800 = vmatprep.subr.bf16.mxu0 0
      %2801 = vmatpush2.bf16.xpose.msra.mxu0 0
      %2802 = vmatprep.subr.bf16.mxu0 0
      %2803 = vmatpush2.bf16.xpose.msra.mxu0 0
      %2804 = vmatprep.subr.bf16.mxu0 0
      %2805 = vmatpush2.bf16.xpose.msra.mxu0 0
      %2806 = vmatprep.subr.bf16.mxu0 0
      %2807 = vmatpush2.bf16.xpose.msra.mxu0 0
      %2808 = vmatprep.mubr.bf16.mxu0 0
      %2809 = vmatmul.mubr.bf16.gmra.mxu0 %v2771
      %v2810 = vpop.f32.mrf.mxu0
      %v2811 = vadd.f32 0.0, %v2810
      %v2812 = vpop.f32.mrf.mxu0
      %v2813 = vpop.f32.mrf.mxu0
      %v2814 = vpop.f32.mrf.mxu0
      %2815 = vdwg.mxu0
      %v2817 = vsel %vm598, %v1933, 0
      %v2820 = vsel %vm598, %v2029, 0
      %2822 = vmatprep.subr.bf16.mxu0 0
      %2823 = vmatpush1.bf16.xpose.msra.mxu0 0
      %2824 = vmatprep.subr.bf16.mxu0 0
      %2825 = vmatpush1.bf16.xpose.msra.mxu0 0
      %2826 = vmatprep.subr.bf16.mxu0 0
      %2827 = vmatpush1.bf16.xpose.msra.mxu0 0
      %2828 = vmatprep.subr.bf16.mxu0 0
      %2829 = vmatpush1.bf16.xpose.msra.mxu0 0
      %2830 = vmatprep.subr.bf16.mxu0 0
      %2831 = vmatpush1.bf16.xpose.msra.mxu0 0
      %2832 = vmatprep.subr.bf16.mxu0 0
      %2833 = vmatpush1.bf16.xpose.msra.mxu0 0
      %2834 = vmatprep.subr.bf16.mxu0 0
      %2835 = vmatpush1.bf16.xpose.msra.mxu0 0
      %2836 = vmatprep.subr.bf16.mxu0 0
      %2837 = vmatpush1.bf16.xpose.msra.mxu0 %v2820
      %2838 = vmatprep.subr.bf16.mxu0 0
      %2839 = vmatpush2.bf16.xpose.msra.mxu0 0
      %2840 = vmatprep.subr.bf16.mxu0 0
      %2841 = vmatpush2.bf16.xpose.msra.mxu0 0
      %2842 = vmatprep.subr.bf16.mxu0 0
      %2843 = vmatpush2.bf16.xpose.msra.mxu0 0
      %2844 = vmatprep.subr.bf16.mxu0 0
      %2845 = vmatpush2.bf16.xpose.msra.mxu0 0
      %2846 = vmatprep.subr.bf16.mxu0 0
      %2847 = vmatpush2.bf16.xpose.msra.mxu0 0
      %2848 = vmatprep.subr.bf16.mxu0 0
      %2849 = vmatpush2.bf16.xpose.msra.mxu0 0
      %2850 = vmatprep.subr.bf16.mxu0 0
      %2851 = vmatpush2.bf16.xpose.msra.mxu0 0
      %2852 = vmatprep.subr.bf16.mxu0 0
      %2853 = vmatpush2.bf16.xpose.msra.mxu0 0
      %2854 = vmatprep.mubr.bf16.mxu0 0
      %2855 = vmatmul.mubr.bf16.gmra.mxu0 %v2817
      %v2856 = vpop.f32.mrf.mxu0
      %v2857 = vadd.f32 0.0, %v2856
      %v2858 = vpop.f32.mrf.mxu0
      %v2859 = vpop.f32.mrf.mxu0
      %v2860 = vpop.f32.mrf.mxu0
      %2861 = vdwg.mxu0
      %vm2862 = vcmask 9216
      %v2863 = vsel %vm2862, %v2167, -inf
      %2864 = vmax.xlane.f32.xlu0 %v2863
      %v2865 = vpop.xlane.xlu0 %2864
      %v2866 = vsel %vm2862, %v2213, -inf
      %2867 = vmax.xlane.f32.xlu0 %v2866
      %v2868 = vpop.xlane.xlu0 %2867
      %v2869 = vsel %vm2862, %v2259, -inf
      %2870 = vmax.xlane.f32.xlu0 %v2869
      %v2871 = vpop.xlane.xlu0 %2870
      %v2872 = vsel %vm2862, %v2305, -inf
      %2873 = vmax.xlane.f32.xlu0 %v2872
      %v2874 = vpop.xlane.xlu0 %2873
      %v2875 = vsel %vm2862, %v2351, -inf
      %2876 = vmax.xlane.f32.xlu0 %v2875
      %v2877 = vpop.xlane.xlu0 %2876
      %v2878 = vsel %vm2862, %v2397, -inf
      %2879 = vmax.xlane.f32.xlu0 %v2878
      %v2880 = vpop.xlane.xlu0 %2879
      %v2881 = vsel %vm2862, %v2443, -inf
      %2882 = vmax.xlane.f32.xlu0 %v2881
      %v2883 = vpop.xlane.xlu0 %2882
      %v2884 = vsel %vm2862, %v2489, -inf
      %2885 = vmax.xlane.f32.xlu0 %v2884
      %v2886 = vpop.xlane.xlu0 %2885
      %v2887 = vsel %vm2862, %v2535, -inf
      %2888 = vmax.xlane.f32.xlu0 %v2887
      %v2889 = vpop.xlane.xlu0 %2888
      %v2890 = vsel %vm2862, %v2581, -inf
      %2891 = vmax.xlane.f32.xlu0 %v2890
      %v2892 = vpop.xlane.xlu0 %2891
      %v2893 = vsel %vm2862, %v2627, -inf
      %2894 = vmax.xlane.f32.xlu0 %v2893
      %v2895 = vpop.xlane.xlu0 %2894
      %v2896 = vsel %vm2862, %v2673, -inf
      %2897 = vmax.xlane.f32.xlu0 %v2896
      %v2898 = vpop.xlane.xlu0 %2897
      %v2899 = vsel %vm2862, %v2719, -inf
      %2900 = vmax.xlane.f32.xlu0 %v2899
      %v2901 = vpop.xlane.xlu0 %2900
      %v2902 = vsel %vm2862, %v2765, -inf
      %2903 = vmax.xlane.f32.xlu0 %v2902
      %v2904 = vpop.xlane.xlu0 %2903
      %v2905 = vsel %vm2862, %v2811, -inf
      %2906 = vmax.xlane.f32.xlu0 %v2905
      %v2907 = vpop.xlane.xlu0 %2906
      %v2908 = vsel %vm2862, %v2857, -inf
      %2909 = vmax.xlane.f32.xlu0 %v2908
      %v2910 = vpop.xlane.xlu0 %2909
      %v2911 = vsub.f32 %v2167, %v2865
      %v2912 = vsub.f32 %v2213, %v2868
      %v2913 = vsub.f32 %v2259, %v2871
      %v2914 = vsub.f32 %v2305, %v2874
      %v2915 = vsub.f32 %v2351, %v2877
      %v2916 = vsub.f32 %v2397, %v2880
      %v2917 = vsub.f32 %v2443, %v2883
      %v2918 = vsub.f32 %v2489, %v2886
      %v2919 = vsub.f32 %v2535, %v2889
      %v2920 = vsub.f32 %v2581, %v2892
      %v2921 = vsub.f32 %v2627, %v2895
      %v2922 = vsub.f32 %v2673, %v2898
      %v2923 = vsub.f32 %v2719, %v2901
      %v2924 = vsub.f32 %v2765, %v2904
      %v2925 = vsub.f32 %v2811, %v2907
      %v2926 = vsub.f32 %v2857, %v2910
      %v2927 = vmul.f32 %v2911, 1.442695
      %v2928 = vpow.pop %v2927
      %v2929 = vmul.f32 %v2912, 1.442695
      %v2930 = vpow.pop %v2929
      %v2931 = vmul.f32 %v2913, 1.442695
      %v2932 = vpow.pop %v2931
      %v2933 = vmul.f32 %v2914, 1.442695
      %v2934 = vpow.pop %v2933
      %v2935 = vmul.f32 %v2915, 1.442695
      %v2936 = vpow.pop %v2935
      %v2937 = vmul.f32 %v2916, 1.442695
      %v2938 = vpow.pop %v2937
      %v2939 = vmul.f32 %v2917, 1.442695
      %v2940 = vpow.pop %v2939
      %v2941 = vmul.f32 %v2918, 1.442695
      %v2942 = vpow.pop %v2941
      %v2943 = vmul.f32 %v2919, 1.442695
      %v2944 = vpow.pop %v2943
      %v2945 = vmul.f32 %v2920, 1.442695
      %v2946 = vpow.pop %v2945
      %v2947 = vmul.f32 %v2921, 1.442695
      %v2948 = vpow.pop %v2947
      %v2949 = vmul.f32 %v2922, 1.442695
      %v2950 = vpow.pop %v2949
      %v2951 = vmul.f32 %v2923, 1.442695
      %v2952 = vpow.pop %v2951
      %v2953 = vmul.f32 %v2924, 1.442695
      %v2954 = vpow.pop %v2953
      %v2955 = vmul.f32 %v2925, 1.442695
      %v2956 = vpow.pop %v2955
      %v2957 = vmul.f32 %v2926, 1.442695
      %v2958 = vpow.pop %v2957
      %v2959 = vsel %vm2862, %v2928, 0.0
      %2960 = vadd.xlane.f32.xlu0 %v2959
      %v2961 = vpop.xlane.xlu0 %2960
      %v2962 = vsel %vm2862, %v2930, 0.0
      %2963 = vadd.xlane.f32.xlu0 %v2962
      %v2964 = vpop.xlane.xlu0 %2963
      %v2965 = vsel %vm2862, %v2932, 0.0
      %2966 = vadd.xlane.f32.xlu0 %v2965
      %v2967 = vpop.xlane.xlu0 %2966
      %v2968 = vsel %vm2862, %v2934, 0.0
      %2969 = vadd.xlane.f32.xlu0 %v2968
      %v2970 = vpop.xlane.xlu0 %2969
      %v2971 = vsel %vm2862, %v2936, 0.0
      %2972 = vadd.xlane.f32.xlu0 %v2971
      %v2973 = vpop.xlane.xlu0 %2972
      %v2974 = vsel %vm2862, %v2938, 0.0
      %2975 = vadd.xlane.f32.xlu0 %v2974
      %v2976 = vpop.xlane.xlu0 %2975
      %v2977 = vsel %vm2862, %v2940, 0.0
      %2978 = vadd.xlane.f32.xlu0 %v2977
      %v2979 = vpop.xlane.xlu0 %2978
      %v2980 = vsel %vm2862, %v2942, 0.0
      %2981 = vadd.xlane.f32.xlu0 %v2980
      %v2982 = vpop.xlane.xlu0 %2981
      %v2983 = vsel %vm2862, %v2944, 0.0
      %2984 = vadd.xlane.f32.xlu0 %v2983
      %v2985 = vpop.xlane.xlu0 %2984
      %v2986 = vsel %vm2862, %v2946, 0.0
      %2987 = vadd.xlane.f32.xlu0 %v2986
      %v2988 = vpop.xlane.xlu0 %2987
      %v2989 = vsel %vm2862, %v2948, 0.0
      %2990 = vadd.xlane.f32.xlu0 %v2989
      %v2991 = vpop.xlane.xlu0 %2990
      %v2992 = vsel %vm2862, %v2950, 0.0
      %2993 = vadd.xlane.f32.xlu0 %v2992
      %v2994 = vpop.xlane.xlu0 %2993
      %v2995 = vsel %vm2862, %v2952, 0.0
      %2996 = vadd.xlane.f32.xlu0 %v2995
      %v2997 = vpop.xlane.xlu0 %2996
      %v2998 = vsel %vm2862, %v2954, 0.0
      %2999 = vadd.xlane.f32.xlu0 %v2998
      %v3000 = vpop.xlane.xlu0 %2999
      %v3001 = vsel %vm2862, %v2956, 0.0
      %3002 = vadd.xlane.f32.xlu0 %v3001
      %v3003 = vpop.xlane.xlu0 %3002
      %v3004 = vsel %vm2862, %v2958, 0.0
      %3005 = vadd.xlane.f32.xlu0 %v3004
      %v3006 = vpop.xlane.xlu0 %3005
      %v3007 = vrcp.pop %v2961
      %v3008 = vrcp.pop %v2964
      %v3009 = vrcp.pop %v2967
      %v3010 = vrcp.pop %v2970
      %v3011 = vrcp.pop %v2973
      %v3012 = vrcp.pop %v2976
      %v3013 = vrcp.pop %v2979
      %v3014 = vrcp.pop %v2982
      %v3015 = vrcp.pop %v2985
      %v3016 = vrcp.pop %v2988
      %v3017 = vrcp.pop %v2991
      %v3018 = vrcp.pop %v2994
      %v3019 = vrcp.pop %v2997
      %v3020 = vrcp.pop %v3000
      %v3021 = vrcp.pop %v3003
      %v3022 = vrcp.pop %v3006
      %v3023 = vmul.f32 %v2928, %v3007
      %v3024 = vmul.f32 %v2930, %v3008
      %v3025 = vmul.f32 %v2932, %v3009
      %v3026 = vmul.f32 %v2934, %v3010
      %v3027 = vmul.f32 %v2936, %v3011
      %v3028 = vmul.f32 %v2938, %v3012
      %v3029 = vmul.f32 %v2940, %v3013
      %v3030 = vmul.f32 %v2942, %v3014
      %v3031 = vmul.f32 %v2944, %v3015
      %v3032 = vmul.f32 %v2946, %v3016
      %v3033 = vmul.f32 %v2948, %v3017
      %v3034 = vmul.f32 %v2950, %v3018
      %v3035 = vmul.f32 %v2952, %v3019
      %v3036 = vmul.f32 %v2954, %v3020
      %v3037 = vmul.f32 %v2956, %v3021
      %v3038 = vmul.f32 %v2958, %v3022
      %v3039 = vpack.c.bf16 %v3023, %v3023
      %v3040 = vpack.c.bf16 %v3024, %v3024
      %v3041 = vpack.c.bf16 %v3025, %v3025
      %v3042 = vpack.c.bf16 %v3026, %v3026
      %v3043 = vpack.c.bf16 %v3027, %v3027
      %v3044 = vpack.c.bf16 %v3028, %v3028
      %v3045 = vpack.c.bf16 %v3029, %v3029
      %v3046 = vpack.c.bf16 %v3030, %v3030
      %v3047 = vpack.c.bf16 %v3031, %v3031
      %v3048 = vpack.c.bf16 %v3032, %v3032
      %v3049 = vpack.c.bf16 %v3033, %v3033
      %v3050 = vpack.c.bf16 %v3034, %v3034
      %v3051 = vpack.c.bf16 %v3035, %v3035
      %v3052 = vpack.c.bf16 %v3036, %v3036
      %v3053 = vpack.c.bf16 %v3037, %v3037
      %v3054 = vpack.c.bf16 %v3038, %v3038
      %vm3055 = vcmask 15360
      %v3057 = vsel %vm3055, %v3039, 0
      %vm3059 = vcmask 1040384
      %v3061 = vsel %vm3059, %v2061, 0
      %3063 = vmatprep.subr.bf16.mxu0 0
      %3064 = vmatpush1.bf16.msra.mxu0 0
      %3065 = vmatprep.subr.bf16.mxu0 0
      %3066 = vmatpush1.bf16.msra.mxu0 0
      %3067 = vmatprep.subr.bf16.mxu0 0
      %3068 = vmatpush1.bf16.msra.mxu0 0
      %3069 = vmatprep.subr.bf16.mxu0 0
      %3070 = vmatpush1.bf16.msra.mxu0 0
      %3071 = vmatprep.subr.bf16.mxu0 0
      %3072 = vmatpush1.bf16.msra.mxu0 0
      %3073 = vmatprep.subr.bf16.mxu0 0
      %3074 = vmatpush1.bf16.msra.mxu0 0
      %3075 = vmatprep.subr.bf16.mxu0 0
      %3076 = vmatpush1.bf16.msra.mxu0 0
      %3077 = vmatprep.subr.bf16.mxu0 0
      %3078 = vmatpush1.bf16.msra.mxu0 %v3061
      %3079 = vmatprep.subr.bf16.mxu0 0
      %3080 = vmatpush2.bf16.msra.mxu0 0
      %3081 = vmatprep.subr.bf16.mxu0 0
      %3082 = vmatpush2.bf16.msra.mxu0 0
      %3083 = vmatprep.subr.bf16.mxu0 0
      %3084 = vmatpush2.bf16.msra.mxu0 0
      %3085 = vmatprep.subr.bf16.mxu0 0
      %3086 = vmatpush2.bf16.msra.mxu0 0
      %3087 = vmatprep.subr.bf16.mxu0 0
      %3088 = vmatpush2.bf16.msra.mxu0 0
      %3089 = vmatprep.subr.bf16.mxu0 0
      %3090 = vmatpush2.bf16.msra.mxu0 0
      %3091 = vmatprep.subr.bf16.mxu0 0
      %3092 = vmatpush2.bf16.msra.mxu0 0
      %3093 = vmatprep.subr.bf16.mxu0 0
      %3094 = vmatpush2.bf16.msra.mxu0 0
      %3095 = vmatprep.mubr.bf16.mxu0 0
      %3096 = vmatmul.mubr.bf16.gmra.mxu0 %v3057
      %v3097 = vpop.f32.mrf.mxu0
      %v3098 = vadd.f32 0.0, %v3097
      %v3099 = vpop.f32.mrf.mxu0
      %v3100 = vpop.f32.mrf.mxu0
      %v3101 = vpop.f32.mrf.mxu0
      %3102 = vdwg.mxu0
      %v3104 = vsel %vm3055, %v3040, 0
      %v3107 = vsel %vm3059, %v2070, 0
      %3109 = vmatprep.subr.bf16.mxu0 0
      %3110 = vmatpush1.bf16.msra.mxu0 0
      %3111 = vmatprep.subr.bf16.mxu0 0
      %3112 = vmatpush1.bf16.msra.mxu0 0
      %3113 = vmatprep.subr.bf16.mxu0 0
      %3114 = vmatpush1.bf16.msra.mxu0 0
      %3115 = vmatprep.subr.bf16.mxu0 0
      %3116 = vmatpush1.bf16.msra.mxu0 0
      %3117 = vmatprep.subr.bf16.mxu0 0
      %3118 = vmatpush1.bf16.msra.mxu0 0
      %3119 = vmatprep.subr.bf16.mxu0 0
      %3120 = vmatpush1.bf16.msra.mxu0 0
      %3121 = vmatprep.subr.bf16.mxu0 0
      %3122 = vmatpush1.bf16.msra.mxu0 0
      %3123 = vmatprep.subr.bf16.mxu0 0
      %3124 = vmatpush1.bf16.msra.mxu0 %v3107
      %3125 = vmatprep.subr.bf16.mxu0 0
      %3126 = vmatpush2.bf16.msra.mxu0 0
      %3127 = vmatprep.subr.bf16.mxu0 0
      %3128 = vmatpush2.bf16.msra.mxu0 0
      %3129 = vmatprep.subr.bf16.mxu0 0
      %3130 = vmatpush2.bf16.msra.mxu0 0
      %3131 = vmatprep.subr.bf16.mxu0 0
      %3132 = vmatpush2.bf16.msra.mxu0 0
      %3133 = vmatprep.subr.bf16.mxu0 0
      %3134 = vmatpush2.bf16.msra.mxu0 0
      %3135 = vmatprep.subr.bf16.mxu0 0
      %3136 = vmatpush2.bf16.msra.mxu0 0
      %3137 = vmatprep.subr.bf16.mxu0 0
      %3138 = vmatpush2.bf16.msra.mxu0 0
      %3139 = vmatprep.subr.bf16.mxu0 0
      %3140 = vmatpush2.bf16.msra.mxu0 0
      %3141 = vmatprep.mubr.bf16.mxu0 0
      %3142 = vmatmul.mubr.bf16.gmra.mxu0 %v3104
      %v3143 = vpop.f32.mrf.mxu0
      %v3144 = vadd.f32 0.0, %v3143
      %v3145 = vpop.f32.mrf.mxu0
      %v3146 = vpop.f32.mrf.mxu0
      %v3147 = vpop.f32.mrf.mxu0
      %3148 = vdwg.mxu0
      %v3150 = vsel %vm3055, %v3041, 0
      %v3153 = vsel %vm3059, %v2062, 0
      %3155 = vmatprep.subr.bf16.mxu0 0
      %3156 = vmatpush1.bf16.msra.mxu0 0
      %3157 = vmatprep.subr.bf16.mxu0 0
      %3158 = vmatpush1.bf16.msra.mxu0 0
      %3159 = vmatprep.subr.bf16.mxu0 0
      %3160 = vmatpush1.bf16.msra.mxu0 0
      %3161 = vmatprep.subr.bf16.mxu0 0
      %3162 = vmatpush1.bf16.msra.mxu0 0
      %3163 = vmatprep.subr.bf16.mxu0 0
      %3164 = vmatpush1.bf16.msra.mxu0 0
      %3165 = vmatprep.subr.bf16.mxu0 0
      %3166 = vmatpush1.bf16.msra.mxu0 0
      %3167 = vmatprep.subr.bf16.mxu0 0
      %3168 = vmatpush1.bf16.msra.mxu0 0
      %3169 = vmatprep.subr.bf16.mxu0 0
      %3170 = vmatpush1.bf16.msra.mxu0 %v3153
      %3171 = vmatprep.subr.bf16.mxu0 0
      %3172 = vmatpush2.bf16.msra.mxu0 0
      %3173 = vmatprep.subr.bf16.mxu0 0
      %3174 = vmatpush2.bf16.msra.mxu0 0
      %3175 = vmatprep.subr.bf16.mxu0 0
      %3176 = vmatpush2.bf16.msra.mxu0 0
      %3177 = vmatprep.subr.bf16.mxu0 0
      %3178 = vmatpush2.bf16.msra.mxu0 0
      %3179 = vmatprep.subr.bf16.mxu0 0
      %3180 = vmatpush2.bf16.msra.mxu0 0
      %3181 = vmatprep.subr.bf16.mxu0 0
      %3182 = vmatpush2.bf16.msra.mxu0 0
      %3183 = vmatprep.subr.bf16.mxu0 0
      %3184 = vmatpush2.bf16.msra.mxu0 0
      %3185 = vmatprep.subr.bf16.mxu0 0
      %3186 = vmatpush2.bf16.msra.mxu0 0
      %3187 = vmatprep.mubr.bf16.mxu0 0
      %3188 = vmatmul.mubr.bf16.gmra.mxu0 %v3150
      %v3189 = vpop.f32.mrf.mxu0
      %v3190 = vadd.f32 0.0, %v3189
      %v3191 = vpop.f32.mrf.mxu0
      %v3192 = vpop.f32.mrf.mxu0
      %v3193 = vpop.f32.mrf.mxu0
      %3194 = vdwg.mxu0
      %v3196 = vsel %vm3055, %v3042, 0
      %v3199 = vsel %vm3059, %v2071, 0
      %3201 = vmatprep.subr.bf16.mxu0 0
      %3202 = vmatpush1.bf16.msra.mxu0 0
      %3203 = vmatprep.subr.bf16.mxu0 0
      %3204 = vmatpush1.bf16.msra.mxu0 0
      %3205 = vmatprep.subr.bf16.mxu0 0
      %3206 = vmatpush1.bf16.msra.mxu0 0
      %3207 = vmatprep.subr.bf16.mxu0 0
      %3208 = vmatpush1.bf16.msra.mxu0 0
      %3209 = vmatprep.subr.bf16.mxu0 0
      %3210 = vmatpush1.bf16.msra.mxu0 0
      %3211 = vmatprep.subr.bf16.mxu0 0
      %3212 = vmatpush1.bf16.msra.mxu0 0
      %3213 = vmatprep.subr.bf16.mxu0 0
      %3214 = vmatpush1.bf16.msra.mxu0 0
      %3215 = vmatprep.subr.bf16.mxu0 0
      %3216 = vmatpush1.bf16.msra.mxu0 %v3199
      %3217 = vmatprep.subr.bf16.mxu0 0
      %3218 = vmatpush2.bf16.msra.mxu0 0
      %3219 = vmatprep.subr.bf16.mxu0 0
      %3220 = vmatpush2.bf16.msra.mxu0 0
      %3221 = vmatprep.subr.bf16.mxu0 0
      %3222 = vmatpush2.bf16.msra.mxu0 0
      %3223 = vmatprep.subr.bf16.mxu0 0
      %3224 = vmatpush2.bf16.msra.mxu0 0
      %3225 = vmatprep.subr.bf16.mxu0 0
      %3226 = vmatpush2.bf16.msra.mxu0 0
      %3227 = vmatprep.subr.bf16.mxu0 0
      %3228 = vmatpush2.bf16.msra.mxu0 0
      %3229 = vmatprep.subr.bf16.mxu0 0
      %3230 = vmatpush2.bf16.msra.mxu0 0
      %3231 = vmatprep.subr.bf16.mxu0 0
      %3232 = vmatpush2.bf16.msra.mxu0 0
      %3233 = vmatprep.mubr.bf16.mxu0 0
      %3234 = vmatmul.mubr.bf16.gmra.mxu0 %v3196
      %v3235 = vpop.f32.mrf.mxu0
      %v3236 = vadd.f32 0.0, %v3235
      %v3237 = vpop.f32.mrf.mxu0
      %v3238 = vpop.f32.mrf.mxu0
      %v3239 = vpop.f32.mrf.mxu0
      %3240 = vdwg.mxu0
      %v3242 = vsel %vm3055, %v3043, 0
      %v3245 = vsel %vm3059, %v2079, 0
      %3247 = vmatprep.subr.bf16.mxu0 0
      %3248 = vmatpush1.bf16.msra.mxu0 0
      %3249 = vmatprep.subr.bf16.mxu0 0
      %3250 = vmatpush1.bf16.msra.mxu0 0
      %3251 = vmatprep.subr.bf16.mxu0 0
      %3252 = vmatpush1.bf16.msra.mxu0 0
      %3253 = vmatprep.subr.bf16.mxu0 0
      %3254 = vmatpush1.bf16.msra.mxu0 0
      %3255 = vmatprep.subr.bf16.mxu0 0
      %3256 = vmatpush1.bf16.msra.mxu0 0
      %3257 = vmatprep.subr.bf16.mxu0 0
      %3258 = vmatpush1.bf16.msra.mxu0 0
      %3259 = vmatprep.subr.bf16.mxu0 0
      %3260 = vmatpush1.bf16.msra.mxu0 0
      %3261 = vmatprep.subr.bf16.mxu0 0
      %3262 = vmatpush1.bf16.msra.mxu0 %v3245
      %3263 = vmatprep.subr.bf16.mxu0 0
      %3264 = vmatpush2.bf16.msra.mxu0 0
      %3265 = vmatprep.subr.bf16.mxu0 0
      %3266 = vmatpush2.bf16.msra.mxu0 0
      %3267 = vmatprep.subr.bf16.mxu0 0
      %3268 = vmatpush2.bf16.msra.mxu0 0
      %3269 = vmatprep.subr.bf16.mxu0 0
      %3270 = vmatpush2.bf16.msra.mxu0 0
      %3271 = vmatprep.subr.bf16.mxu0 0
      %3272 = vmatpush2.bf16.msra.mxu0 0
      %3273 = vmatprep.subr.bf16.mxu0 0
      %3274 = vmatpush2.bf16.msra.mxu0 0
      %3275 = vmatprep.subr.bf16.mxu0 0
      %3276 = vmatpush2.bf16.msra.mxu0 0
      %3277 = vmatprep.subr.bf16.mxu0 0
      %3278 = vmatpush2.bf16.msra.mxu0 0
      %3279 = vmatprep.mubr.bf16.mxu0 0
      %3280 = vmatmul.mubr.bf16.gmra.mxu0 %v3242
      %v3281 = vpop.f32.mrf.mxu0
      %v3282 = vadd.f32 0.0, %v3281
      %v3283 = vpop.f32.mrf.mxu0
      %v3284 = vpop.f32.mrf.mxu0
      %v3285 = vpop.f32.mrf.mxu0
      %3286 = vdwg.mxu0
      %v3288 = vsel %vm3055, %v3044, 0
      %v3291 = vsel %vm3059, %v2088, 0
      %3293 = vmatprep.subr.bf16.mxu0 0
      %3294 = vmatpush1.bf16.msra.mxu0 0
      %3295 = vmatprep.subr.bf16.mxu0 0
      %3296 = vmatpush1.bf16.msra.mxu0 0
      %3297 = vmatprep.subr.bf16.mxu0 0
      %3298 = vmatpush1.bf16.msra.mxu0 0
      %3299 = vmatprep.subr.bf16.mxu0 0
      %3300 = vmatpush1.bf16.msra.mxu0 0
      %3301 = vmatprep.subr.bf16.mxu0 0
      %3302 = vmatpush1.bf16.msra.mxu0 0
      %3303 = vmatprep.subr.bf16.mxu0 0
      %3304 = vmatpush1.bf16.msra.mxu0 0
      %3305 = vmatprep.subr.bf16.mxu0 0
      %3306 = vmatpush1.bf16.msra.mxu0 0
      %3307 = vmatprep.subr.bf16.mxu0 0
      %3308 = vmatpush1.bf16.msra.mxu0 %v3291
      %3309 = vmatprep.subr.bf16.mxu0 0
      %3310 = vmatpush2.bf16.msra.mxu0 0
      %3311 = vmatprep.subr.bf16.mxu0 0
      %3312 = vmatpush2.bf16.msra.mxu0 0
      %3313 = vmatprep.subr.bf16.mxu0 0
      %3314 = vmatpush2.bf16.msra.mxu0 0
      %3315 = vmatprep.subr.bf16.mxu0 0
      %3316 = vmatpush2.bf16.msra.mxu0 0
      %3317 = vmatprep.subr.bf16.mxu0 0
      %3318 = vmatpush2.bf16.msra.mxu0 0
      %3319 = vmatprep.subr.bf16.mxu0 0
      %3320 = vmatpush2.bf16.msra.mxu0 0
      %3321 = vmatprep.subr.bf16.mxu0 0
      %3322 = vmatpush2.bf16.msra.mxu0 0
      %3323 = vmatprep.subr.bf16.mxu0 0
      %3324 = vmatpush2.bf16.msra.mxu0 0
      %3325 = vmatprep.mubr.bf16.mxu0 0
      %3326 = vmatmul.mubr.bf16.gmra.mxu0 %v3288
      %v3327 = vpop.f32.mrf.mxu0
      %v3328 = vadd.f32 0.0, %v3327
      %v3329 = vpop.f32.mrf.mxu0
      %v3330 = vpop.f32.mrf.mxu0
      %v3331 = vpop.f32.mrf.mxu0
      %3332 = vdwg.mxu0
      %v3334 = vsel %vm3055, %v3045, 0
      %v3337 = vsel %vm3059, %v2080, 0
      %3339 = vmatprep.subr.bf16.mxu0 0
      %3340 = vmatpush1.bf16.msra.mxu0 0
      %3341 = vmatprep.subr.bf16.mxu0 0
      %3342 = vmatpush1.bf16.msra.mxu0 0
      %3343 = vmatprep.subr.bf16.mxu0 0
      %3344 = vmatpush1.bf16.msra.mxu0 0
      %3345 = vmatprep.subr.bf16.mxu0 0
      %3346 = vmatpush1.bf16.msra.mxu0 0
      %3347 = vmatprep.subr.bf16.mxu0 0
      %3348 = vmatpush1.bf16.msra.mxu0 0
      %3349 = vmatprep.subr.bf16.mxu0 0
      %3350 = vmatpush1.bf16.msra.mxu0 0
      %3351 = vmatprep.subr.bf16.mxu0 0
      %3352 = vmatpush1.bf16.msra.mxu0 0
      %3353 = vmatprep.subr.bf16.mxu0 0
      %3354 = vmatpush1.bf16.msra.mxu0 %v3337
      %3355 = vmatprep.subr.bf16.mxu0 0
      %3356 = vmatpush2.bf16.msra.mxu0 0
      %3357 = vmatprep.subr.bf16.mxu0 0
      %3358 = vmatpush2.bf16.msra.mxu0 0
      %3359 = vmatprep.subr.bf16.mxu0 0
      %3360 = vmatpush2.bf16.msra.mxu0 0
      %3361 = vmatprep.subr.bf16.mxu0 0
      %3362 = vmatpush2.bf16.msra.mxu0 0
      %3363 = vmatprep.subr.bf16.mxu0 0
      %3364 = vmatpush2.bf16.msra.mxu0 0
      %3365 = vmatprep.subr.bf16.mxu0 0
      %3366 = vmatpush2.bf16.msra.mxu0 0
      %3367 = vmatprep.subr.bf16.mxu0 0
      %3368 = vmatpush2.bf16.msra.mxu0 0
      %3369 = vmatprep.subr.bf16.mxu0 0
      %3370 = vmatpush2.bf16.msra.mxu0 0
      %3371 = vmatprep.mubr.bf16.mxu0 0
      %3372 = vmatmul.mubr.bf16.gmra.mxu0 %v3334
      %v3373 = vpop.f32.mrf.mxu0
      %v3374 = vadd.f32 0.0, %v3373
      %v3375 = vpop.f32.mrf.mxu0
      %v3376 = vpop.f32.mrf.mxu0
      %v3377 = vpop.f32.mrf.mxu0
      %3378 = vdwg.mxu0
      %v3380 = vsel %vm3055, %v3046, 0
      %v3383 = vsel %vm3059, %v2089, 0
      %3385 = vmatprep.subr.bf16.mxu0 0
      %3386 = vmatpush1.bf16.msra.mxu0 0
      %3387 = vmatprep.subr.bf16.mxu0 0
      %3388 = vmatpush1.bf16.msra.mxu0 0
      %3389 = vmatprep.subr.bf16.mxu0 0
      %3390 = vmatpush1.bf16.msra.mxu0 0
      %3391 = vmatprep.subr.bf16.mxu0 0
      %3392 = vmatpush1.bf16.msra.mxu0 0
      %3393 = vmatprep.subr.bf16.mxu0 0
      %3394 = vmatpush1.bf16.msra.mxu0 0
      %3395 = vmatprep.subr.bf16.mxu0 0
      %3396 = vmatpush1.bf16.msra.mxu0 0
      %3397 = vmatprep.subr.bf16.mxu0 0
      %3398 = vmatpush1.bf16.msra.mxu0 0
      %3399 = vmatprep.subr.bf16.mxu0 0
      %3400 = vmatpush1.bf16.msra.mxu0 %v3383
      %3401 = vmatprep.subr.bf16.mxu0 0
      %3402 = vmatpush2.bf16.msra.mxu0 0
      %3403 = vmatprep.subr.bf16.mxu0 0
      %3404 = vmatpush2.bf16.msra.mxu0 0
      %3405 = vmatprep.subr.bf16.mxu0 0
      %3406 = vmatpush2.bf16.msra.mxu0 0
      %3407 = vmatprep.subr.bf16.mxu0 0
      %3408 = vmatpush2.bf16.msra.mxu0 0
      %3409 = vmatprep.subr.bf16.mxu0 0
      %3410 = vmatpush2.bf16.msra.mxu0 0
      %3411 = vmatprep.subr.bf16.mxu0 0
      %3412 = vmatpush2.bf16.msra.mxu0 0
      %3413 = vmatprep.subr.bf16.mxu0 0
      %3414 = vmatpush2.bf16.msra.mxu0 0
      %3415 = vmatprep.subr.bf16.mxu0 0
      %3416 = vmatpush2.bf16.msra.mxu0 0
      %3417 = vmatprep.mubr.bf16.mxu0 0
      %3418 = vmatmul.mubr.bf16.gmra.mxu0 %v3380
      %v3419 = vpop.f32.mrf.mxu0
      %v3420 = vadd.f32 0.0, %v3419
      %v3421 = vpop.f32.mrf.mxu0
      %v3422 = vpop.f32.mrf.mxu0
      %v3423 = vpop.f32.mrf.mxu0
      %3424 = vdwg.mxu0
      %v3426 = vsel %vm3055, %v3047, 0
      %v3429 = vsel %vm3059, %v2097, 0
      %3431 = vmatprep.subr.bf16.mxu0 0
      %3432 = vmatpush1.bf16.msra.mxu0 0
      %3433 = vmatprep.subr.bf16.mxu0 0
      %3434 = vmatpush1.bf16.msra.mxu0 0
      %3435 = vmatprep.subr.bf16.mxu0 0
      %3436 = vmatpush1.bf16.msra.mxu0 0
      %3437 = vmatprep.subr.bf16.mxu0 0
      %3438 = vmatpush1.bf16.msra.mxu0 0
      %3439 = vmatprep.subr.bf16.mxu0 0
      %3440 = vmatpush1.bf16.msra.mxu0 0
      %3441 = vmatprep.subr.bf16.mxu0 0
      %3442 = vmatpush1.bf16.msra.mxu0 0
      %3443 = vmatprep.subr.bf16.mxu0 0
      %3444 = vmatpush1.bf16.msra.mxu0 0
      %3445 = vmatprep.subr.bf16.mxu0 0
      %3446 = vmatpush1.bf16.msra.mxu0 %v3429
      %3447 = vmatprep.subr.bf16.mxu0 0
      %3448 = vmatpush2.bf16.msra.mxu0 0
      %3449 = vmatprep.subr.bf16.mxu0 0
      %3450 = vmatpush2.bf16.msra.mxu0 0
      %3451 = vmatprep.subr.bf16.mxu0 0
      %3452 = vmatpush2.bf16.msra.mxu0 0
      %3453 = vmatprep.subr.bf16.mxu0 0
      %3454 = vmatpush2.bf16.msra.mxu0 0
      %3455 = vmatprep.subr.bf16.mxu0 0
      %3456 = vmatpush2.bf16.msra.mxu0 0
      %3457 = vmatprep.subr.bf16.mxu0 0
      %3458 = vmatpush2.bf16.msra.mxu0 0
      %3459 = vmatprep.subr.bf16.mxu0 0
      %3460 = vmatpush2.bf16.msra.mxu0 0
      %3461 = vmatprep.subr.bf16.mxu0 0
      %3462 = vmatpush2.bf16.msra.mxu0 0
      %3463 = vmatprep.mubr.bf16.mxu0 0
      %3464 = vmatmul.mubr.bf16.gmra.mxu0 %v3426
      %v3465 = vpop.f32.mrf.mxu0
      %v3466 = vadd.f32 0.0, %v3465
      %v3467 = vpop.f32.mrf.mxu0
      %v3468 = vpop.f32.mrf.mxu0
      %v3469 = vpop.f32.mrf.mxu0
      %3470 = vdwg.mxu0
      %v3472 = vsel %vm3055, %v3048, 0
      %v3475 = vsel %vm3059, %v2106, 0
      %3477 = vmatprep.subr.bf16.mxu0 0
      %3478 = vmatpush1.bf16.msra.mxu0 0
      %3479 = vmatprep.subr.bf16.mxu0 0
      %3480 = vmatpush1.bf16.msra.mxu0 0
      %3481 = vmatprep.subr.bf16.mxu0 0
      %3482 = vmatpush1.bf16.msra.mxu0 0
      %3483 = vmatprep.subr.bf16.mxu0 0
      %3484 = vmatpush1.bf16.msra.mxu0 0
      %3485 = vmatprep.subr.bf16.mxu0 0
      %3486 = vmatpush1.bf16.msra.mxu0 0
      %3487 = vmatprep.subr.bf16.mxu0 0
      %3488 = vmatpush1.bf16.msra.mxu0 0
      %3489 = vmatprep.subr.bf16.mxu0 0
      %3490 = vmatpush1.bf16.msra.mxu0 0
      %3491 = vmatprep.subr.bf16.mxu0 0
      %3492 = vmatpush1.bf16.msra.mxu0 %v3475
      %3493 = vmatprep.subr.bf16.mxu0 0
      %3494 = vmatpush2.bf16.msra.mxu0 0
      %3495 = vmatprep.subr.bf16.mxu0 0
      %3496 = vmatpush2.bf16.msra.mxu0 0
      %3497 = vmatprep.subr.bf16.mxu0 0
      %3498 = vmatpush2.bf16.msra.mxu0 0
      %3499 = vmatprep.subr.bf16.mxu0 0
      %3500 = vmatpush2.bf16.msra.mxu0 0
      %3501 = vmatprep.subr.bf16.mxu0 0
      %3502 = vmatpush2.bf16.msra.mxu0 0
      %3503 = vmatprep.subr.bf16.mxu0 0
      %3504 = vmatpush2.bf16.msra.mxu0 0
      %3505 = vmatprep.subr.bf16.mxu0 0
      %3506 = vmatpush2.bf16.msra.mxu0 0
      %3507 = vmatprep.subr.bf16.mxu0 0
      %3508 = vmatpush2.bf16.msra.mxu0 0
      %3509 = vmatprep.mubr.bf16.mxu0 0
      %3510 = vmatmul.mubr.bf16.gmra.mxu0 %v3472
      %v3511 = vpop.f32.mrf.mxu0
      %v3512 = vadd.f32 0.0, %v3511
      %v3513 = vpop.f32.mrf.mxu0
      %v3514 = vpop.f32.mrf.mxu0
      %v3515 = vpop.f32.mrf.mxu0
      %3516 = vdwg.mxu0
      %v3518 = vsel %vm3055, %v3049, 0
      %v3521 = vsel %vm3059, %v2098, 0
      %3523 = vmatprep.subr.bf16.mxu0 0
      %3524 = vmatpush1.bf16.msra.mxu0 0
      %3525 = vmatprep.subr.bf16.mxu0 0
      %3526 = vmatpush1.bf16.msra.mxu0 0
      %3527 = vmatprep.subr.bf16.mxu0 0
      %3528 = vmatpush1.bf16.msra.mxu0 0
      %3529 = vmatprep.subr.bf16.mxu0 0
      %3530 = vmatpush1.bf16.msra.mxu0 0
      %3531 = vmatprep.subr.bf16.mxu0 0
      %3532 = vmatpush1.bf16.msra.mxu0 0
      %3533 = vmatprep.subr.bf16.mxu0 0
      %3534 = vmatpush1.bf16.msra.mxu0 0
      %3535 = vmatprep.subr.bf16.mxu0 0
      %3536 = vmatpush1.bf16.msra.mxu0 0
      %3537 = vmatprep.subr.bf16.mxu0 0
      %3538 = vmatpush1.bf16.msra.mxu0 %v3521
      %3539 = vmatprep.subr.bf16.mxu0 0
      %3540 = vmatpush2.bf16.msra.mxu0 0
      %3541 = vmatprep.subr.bf16.mxu0 0
      %3542 = vmatpush2.bf16.msra.mxu0 0
      %3543 = vmatprep.subr.bf16.mxu0 0
      %3544 = vmatpush2.bf16.msra.mxu0 0
      %3545 = vmatprep.subr.bf16.mxu0 0
      %3546 = vmatpush2.bf16.msra.mxu0 0
      %3547 = vmatprep.subr.bf16.mxu0 0
      %3548 = vmatpush2.bf16.msra.mxu0 0
      %3549 = vmatprep.subr.bf16.mxu0 0
      %3550 = vmatpush2.bf16.msra.mxu0 0
      %3551 = vmatprep.subr.bf16.mxu0 0
      %3552 = vmatpush2.bf16.msra.mxu0 0
      %3553 = vmatprep.subr.bf16.mxu0 0
      %3554 = vmatpush2.bf16.msra.mxu0 0
      %3555 = vmatprep.mubr.bf16.mxu0 0
      %3556 = vmatmul.mubr.bf16.gmra.mxu0 %v3518
      %v3557 = vpop.f32.mrf.mxu0
      %v3558 = vadd.f32 0.0, %v3557
      %v3559 = vpop.f32.mrf.mxu0
      %v3560 = vpop.f32.mrf.mxu0
      %v3561 = vpop.f32.mrf.mxu0
      %3562 = vdwg.mxu0
      %v3564 = vsel %vm3055, %v3050, 0
      %v3567 = vsel %vm3059, %v2107, 0
      %3569 = vmatprep.subr.bf16.mxu0 0
      %3570 = vmatpush1.bf16.msra.mxu0 0
      %3571 = vmatprep.subr.bf16.mxu0 0
      %3572 = vmatpush1.bf16.msra.mxu0 0
      %3573 = vmatprep.subr.bf16.mxu0 0
      %3574 = vmatpush1.bf16.msra.mxu0 0
      %3575 = vmatprep.subr.bf16.mxu0 0
      %3576 = vmatpush1.bf16.msra.mxu0 0
      %3577 = vmatprep.subr.bf16.mxu0 0
      %3578 = vmatpush1.bf16.msra.mxu0 0
      %3579 = vmatprep.subr.bf16.mxu0 0
      %3580 = vmatpush1.bf16.msra.mxu0 0
      %3581 = vmatprep.subr.bf16.mxu0 0
      %3582 = vmatpush1.bf16.msra.mxu0 0
      %3583 = vmatprep.subr.bf16.mxu0 0
      %3584 = vmatpush1.bf16.msra.mxu0 %v3567
      %3585 = vmatprep.subr.bf16.mxu0 0
      %3586 = vmatpush2.bf16.msra.mxu0 0
      %3587 = vmatprep.subr.bf16.mxu0 0
      %3588 = vmatpush2.bf16.msra.mxu0 0
      %3589 = vmatprep.subr.bf16.mxu0 0
      %3590 = vmatpush2.bf16.msra.mxu0 0
      %3591 = vmatprep.subr.bf16.mxu0 0
      %3592 = vmatpush2.bf16.msra.mxu0 0
      %3593 = vmatprep.subr.bf16.mxu0 0
      %3594 = vmatpush2.bf16.msra.mxu0 0
      %3595 = vmatprep.subr.bf16.mxu0 0
      %3596 = vmatpush2.bf16.msra.mxu0 0
      %3597 = vmatprep.subr.bf16.mxu0 0
      %3598 = vmatpush2.bf16.msra.mxu0 0
      %3599 = vmatprep.subr.bf16.mxu0 0
      %3600 = vmatpush2.bf16.msra.mxu0 0
      %3601 = vmatprep.mubr.bf16.mxu0 0
      %3602 = vmatmul.mubr.bf16.gmra.mxu0 %v3564
      %v3603 = vpop.f32.mrf.mxu0
      %v3604 = vadd.f32 0.0, %v3603
      %v3605 = vpop.f32.mrf.mxu0
      %v3606 = vpop.f32.mrf.mxu0
      %v3607 = vpop.f32.mrf.mxu0
      %3608 = vdwg.mxu0
      %v3610 = vsel %vm3055, %v3051, 0
      %v3613 = vsel %vm3059, %v2115, 0
      %3615 = vmatprep.subr.bf16.mxu0 0
      %3616 = vmatpush1.bf16.msra.mxu0 0
      %3617 = vmatprep.subr.bf16.mxu0 0
      %3618 = vmatpush1.bf16.msra.mxu0 0
      %3619 = vmatprep.subr.bf16.mxu0 0
      %3620 = vmatpush1.bf16.msra.mxu0 0
      %3621 = vmatprep.subr.bf16.mxu0 0
      %3622 = vmatpush1.bf16.msra.mxu0 0
      %3623 = vmatprep.subr.bf16.mxu0 0
      %3624 = vmatpush1.bf16.msra.mxu0 0
      %3625 = vmatprep.subr.bf16.mxu0 0
      %3626 = vmatpush1.bf16.msra.mxu0 0
      %3627 = vmatprep.subr.bf16.mxu0 0
      %3628 = vmatpush1.bf16.msra.mxu0 0
      %3629 = vmatprep.subr.bf16.mxu0 0
      %3630 = vmatpush1.bf16.msra.mxu0 %v3613
      %3631 = vmatprep.subr.bf16.mxu0 0
      %3632 = vmatpush2.bf16.msra.mxu0 0
      %3633 = vmatprep.subr.bf16.mxu0 0
      %3634 = vmatpush2.bf16.msra.mxu0 0
      %3635 = vmatprep.subr.bf16.mxu0 0
      %3636 = vmatpush2.bf16.msra.mxu0 0
      %3637 = vmatprep.subr.bf16.mxu0 0
      %3638 = vmatpush2.bf16.msra.mxu0 0
      %3639 = vmatprep.subr.bf16.mxu0 0
      %3640 = vmatpush2.bf16.msra.mxu0 0
      %3641 = vmatprep.subr.bf16.mxu0 0
      %3642 = vmatpush2.bf16.msra.mxu0 0
      %3643 = vmatprep.subr.bf16.mxu0 0
      %3644 = vmatpush2.bf16.msra.mxu0 0
      %3645 = vmatprep.subr.bf16.mxu0 0
      %3646 = vmatpush2.bf16.msra.mxu0 0
      %3647 = vmatprep.mubr.bf16.mxu0 0
      %3648 = vmatmul.mubr.bf16.gmra.mxu0 %v3610
      %v3649 = vpop.f32.mrf.mxu0
      %v3650 = vadd.f32 0.0, %v3649
      %v3651 = vpop.f32.mrf.mxu0
      %v3652 = vpop.f32.mrf.mxu0
      %v3653 = vpop.f32.mrf.mxu0
      %3654 = vdwg.mxu0
      %v3656 = vsel %vm3055, %v3052, 0
      %v3659 = vsel %vm3059, %v2124, 0
      %3661 = vmatprep.subr.bf16.mxu0 0
      %3662 = vmatpush1.bf16.msra.mxu0 0
      %3663 = vmatprep.subr.bf16.mxu0 0
      %3664 = vmatpush1.bf16.msra.mxu0 0
      %3665 = vmatprep.subr.bf16.mxu0 0
      %3666 = vmatpush1.bf16.msra.mxu0 0
      %3667 = vmatprep.subr.bf16.mxu0 0
      %3668 = vmatpush1.bf16.msra.mxu0 0
      %3669 = vmatprep.subr.bf16.mxu0 0
      %3670 = vmatpush1.bf16.msra.mxu0 0
      %3671 = vmatprep.subr.bf16.mxu0 0
      %3672 = vmatpush1.bf16.msra.mxu0 0
      %3673 = vmatprep.subr.bf16.mxu0 0
      %3674 = vmatpush1.bf16.msra.mxu0 0
      %3675 = vmatprep.subr.bf16.mxu0 0
      %3676 = vmatpush1.bf16.msra.mxu0 %v3659
      %3677 = vmatprep.subr.bf16.mxu0 0
      %3678 = vmatpush2.bf16.msra.mxu0 0
      %3679 = vmatprep.subr.bf16.mxu0 0
      %3680 = vmatpush2.bf16.msra.mxu0 0
      %3681 = vmatprep.subr.bf16.mxu0 0
      %3682 = vmatpush2.bf16.msra.mxu0 0
      %3683 = vmatprep.subr.bf16.mxu0 0
      %3684 = vmatpush2.bf16.msra.mxu0 0
      %3685 = vmatprep.subr.bf16.mxu0 0
      %3686 = vmatpush2.bf16.msra.mxu0 0
      %3687 = vmatprep.subr.bf16.mxu0 0
      %3688 = vmatpush2.bf16.msra.mxu0 0
      %3689 = vmatprep.subr.bf16.mxu0 0
      %3690 = vmatpush2.bf16.msra.mxu0 0
      %3691 = vmatprep.subr.bf16.mxu0 0
      %3692 = vmatpush2.bf16.msra.mxu0 0
      %3693 = vmatprep.mubr.bf16.mxu0 0
      %3694 = vmatmul.mubr.bf16.gmra.mxu0 %v3656
      %v3695 = vpop.f32.mrf.mxu0
      %v3696 = vadd.f32 0.0, %v3695
      %v3697 = vpop.f32.mrf.mxu0
      %v3698 = vpop.f32.mrf.mxu0
      %v3699 = vpop.f32.mrf.mxu0
      %3700 = vdwg.mxu0
      %v3702 = vsel %vm3055, %v3053, 0
      %v3705 = vsel %vm3059, %v2116, 0
      %3707 = vmatprep.subr.bf16.mxu0 0
      %3708 = vmatpush1.bf16.msra.mxu0 0
      %3709 = vmatprep.subr.bf16.mxu0 0
      %3710 = vmatpush1.bf16.msra.mxu0 0
      %3711 = vmatprep.subr.bf16.mxu0 0
      %3712 = vmatpush1.bf16.msra.mxu0 0
      %3713 = vmatprep.subr.bf16.mxu0 0
      %3714 = vmatpush1.bf16.msra.mxu0 0
      %3715 = vmatprep.subr.bf16.mxu0 0
      %3716 = vmatpush1.bf16.msra.mxu0 0
      %3717 = vmatprep.subr.bf16.mxu0 0
      %3718 = vmatpush1.bf16.msra.mxu0 0
      %3719 = vmatprep.subr.bf16.mxu0 0
      %3720 = vmatpush1.bf16.msra.mxu0 0
      %3721 = vmatprep.subr.bf16.mxu0 0
      %3722 = vmatpush1.bf16.msra.mxu0 %v3705
      %3723 = vmatprep.subr.bf16.mxu0 0
      %3724 = vmatpush2.bf16.msra.mxu0 0
      %3725 = vmatprep.subr.bf16.mxu0 0
      %3726 = vmatpush2.bf16.msra.mxu0 0
      %3727 = vmatprep.subr.bf16.mxu0 0
      %3728 = vmatpush2.bf16.msra.mxu0 0
      %3729 = vmatprep.subr.bf16.mxu0 0
      %3730 = vmatpush2.bf16.msra.mxu0 0
      %3731 = vmatprep.subr.bf16.mxu0 0
      %3732 = vmatpush2.bf16.msra.mxu0 0
      %3733 = vmatprep.subr.bf16.mxu0 0
      %3734 = vmatpush2.bf16.msra.mxu0 0
      %3735 = vmatprep.subr.bf16.mxu0 0
      %3736 = vmatpush2.bf16.msra.mxu0 0
      %3737 = vmatprep.subr.bf16.mxu0 0
      %3738 = vmatpush2.bf16.msra.mxu0 0
      %3739 = vmatprep.mubr.bf16.mxu0 0
      %3740 = vmatmul.mubr.bf16.gmra.mxu0 %v3702
      %v3741 = vpop.f32.mrf.mxu0
      %v3742 = vadd.f32 0.0, %v3741
      %v3743 = vpop.f32.mrf.mxu0
      %v3744 = vpop.f32.mrf.mxu0
      %v3745 = vpop.f32.mrf.mxu0
      %3746 = vdwg.mxu0
      %v3748 = vsel %vm3055, %v3054, 0
      %v3751 = vsel %vm3059, %v2125, 0
      %3753 = vmatprep.subr.bf16.mxu0 0
      %3754 = vmatpush1.bf16.msra.mxu0 0
      %3755 = vmatprep.subr.bf16.mxu0 0
      %3756 = vmatpush1.bf16.msra.mxu0 0
      %3757 = vmatprep.subr.bf16.mxu0 0
      %3758 = vmatpush1.bf16.msra.mxu0 0
      %3759 = vmatprep.subr.bf16.mxu0 0
      %3760 = vmatpush1.bf16.msra.mxu0 0
      %3761 = vmatprep.subr.bf16.mxu0 0
      %3762 = vmatpush1.bf16.msra.mxu0 0
      %3763 = vmatprep.subr.bf16.mxu0 0
      %3764 = vmatpush1.bf16.msra.mxu0 0
      %3765 = vmatprep.subr.bf16.mxu0 0
      %3766 = vmatpush1.bf16.msra.mxu0 0
      %3767 = vmatprep.subr.bf16.mxu0 0
      %3768 = vmatpush1.bf16.msra.mxu0 %v3751
      %3769 = vmatprep.subr.bf16.mxu0 0
      %3770 = vmatpush2.bf16.msra.mxu0 0
      %3771 = vmatprep.subr.bf16.mxu0 0
      %3772 = vmatpush2.bf16.msra.mxu0 0
      %3773 = vmatprep.subr.bf16.mxu0 0
      %3774 = vmatpush2.bf16.msra.mxu0 0
      %3775 = vmatprep.subr.bf16.mxu0 0
      %3776 = vmatpush2.bf16.msra.mxu0 0
      %3777 = vmatprep.subr.bf16.mxu0 0
      %3778 = vmatpush2.bf16.msra.mxu0 0
      %3779 = vmatprep.subr.bf16.mxu0 0
      %3780 = vmatpush2.bf16.msra.mxu0 0
      %3781 = vmatprep.subr.bf16.mxu0 0
      %3782 = vmatpush2.bf16.msra.mxu0 0
      %3783 = vmatprep.subr.bf16.mxu0 0
      %3784 = vmatpush2.bf16.msra.mxu0 0
      %3785 = vmatprep.mubr.bf16.mxu0 0
      %3786 = vmatmul.mubr.bf16.gmra.mxu0 %v3748
      %v3787 = vpop.f32.mrf.mxu0
      %v3788 = vadd.f32 0.0, %v3787
      %v3789 = vpop.f32.mrf.mxu0
      %v3790 = vpop.f32.mrf.mxu0
      %v3791 = vpop.f32.mrf.mxu0
      %3792 = vdwg.mxu0
      %v3793 = vcombine.low %v3098, %v3190
      %v3795 = vunpack.c.l.s4 1983009808
      %v3796 = vunpack.c.0.s8 %v3795
      %v3797 = vlaneseq
      %v3798 = vshrl.u32 %v3797, 7
      %v3799 = vsub.s32 %v3796, %v3798
      %v3800 = vrot.slane %v3793, %v3799
      %v3801 = vcombine.low %v3144, %v3236
      %v3803 = vunpack.c.l.s4 1983009808
      %v3804 = vunpack.c.0.s8 %v3803
      %v3805 = vlaneseq
      %v3806 = vshrl.u32 %v3805, 7
      %v3807 = vsub.s32 %v3804, %v3806
      %v3808 = vrot.slane %v3801, %v3807
      %v3809 = vcombine.low %v3800, %v3808
      %v3811 = vunpack.c.l.s4 1934713408
      %v3812 = vunpack.c.0.s8 %v3811
      %v3813 = vlaneseq
      %v3814 = vshrl.u32 %v3813, 7
      %v3815 = vsub.s32 %v3812, %v3814
      %v3816 = vrot.slane %v3809, %v3815
      %v3817 = vcombine.high %v3816, 0.0
      %v3818 = vcombine.low %v3282, %v3374
      %v3820 = vunpack.c.l.s4 1983009808
      %v3821 = vunpack.c.0.s8 %v3820
      %v3822 = vlaneseq
      %v3823 = vshrl.u32 %v3822, 7
      %v3824 = vsub.s32 %v3821, %v3823
      %v3825 = vrot.slane %v3818, %v3824
      %v3826 = vcombine.low %v3328, %v3420
      %v3828 = vunpack.c.l.s4 1983009808
      %v3829 = vunpack.c.0.s8 %v3828
      %v3830 = vlaneseq
      %v3831 = vshrl.u32 %v3830, 7
      %v3832 = vsub.s32 %v3829, %v3831
      %v3833 = vrot.slane %v3826, %v3832
      %v3834 = vcombine.low %v3825, %v3833
      %v3836 = vunpack.c.l.s4 1934713408
      %v3837 = vunpack.c.0.s8 %v3836
      %v3838 = vlaneseq
      %v3839 = vshrl.u32 %v3838, 7
      %v3840 = vsub.s32 %v3837, %v3839
      %v3841 = vrot.slane %v3834, %v3840
      %v3842 = vcombine.high %v3841, 0.0
      %v3843 = vcombine.low %v3466, %v3558
      %v3845 = vunpack.c.l.s4 1983009808
      %v3846 = vunpack.c.0.s8 %v3845
      %v3847 = vlaneseq
      %v3848 = vshrl.u32 %v3847, 7
      %v3849 = vsub.s32 %v3846, %v3848
      %v3850 = vrot.slane %v3843, %v3849
      %v3851 = vcombine.low %v3512, %v3604
      %v3853 = vunpack.c.l.s4 1983009808
      %v3854 = vunpack.c.0.s8 %v3853
      %v3855 = vlaneseq
      %v3856 = vshrl.u32 %v3855, 7
      %v3857 = vsub.s32 %v3854, %v3856
      %v3858 = vrot.slane %v3851, %v3857
      %v3859 = vcombine.low %v3850, %v3858
      %v3861 = vunpack.c.l.s4 1934713408
      %v3862 = vunpack.c.0.s8 %v3861
      %v3863 = vlaneseq
      %v3864 = vshrl.u32 %v3863, 7
      %v3865 = vsub.s32 %v3862, %v3864
      %v3866 = vrot.slane %v3859, %v3865
      %v3867 = vcombine.high %v3866, 0.0
      %v3868 = vcombine.low %v3650, %v3742
      %v3870 = vunpack.c.l.s4 1983009808
      %v3871 = vunpack.c.0.s8 %v3870
      %v3872 = vlaneseq
      %v3873 = vshrl.u32 %v3872, 7
      %v3874 = vsub.s32 %v3871, %v3873
      %v3875 = vrot.slane %v3868, %v3874
      %v3876 = vcombine.low %v3696, %v3788
      %v3878 = vunpack.c.l.s4 1983009808
      %v3879 = vunpack.c.0.s8 %v3878
      %v3880 = vlaneseq
      %v3881 = vshrl.u32 %v3880, 7
      %v3882 = vsub.s32 %v3879, %v3881
      %v3883 = vrot.slane %v3876, %v3882
      %v3884 = vcombine.low %v3875, %v3883
      %v3886 = vunpack.c.l.s4 1934713408
      %v3887 = vunpack.c.0.s8 %v3886
      %v3888 = vlaneseq
      %v3889 = vshrl.u32 %v3888, 7
      %v3890 = vsub.s32 %v3887, %v3889
      %v3891 = vrot.slane %v3884, %v3890
      %v3892 = vcombine.high %v3891, 0.0
      %v3893 = vcombine.low %v3816, %v3866
      %v3895 = vunpack.c.l.s4 1983009808
      %v3896 = vunpack.c.0.s8 %v3895
      %v3897 = vlaneseq
      %v3898 = vshrl.u32 %v3897, 7
      %v3899 = vsub.s32 %v3896, %v3898
      %v3900 = vrot.slane %v3893, %v3899
      %v3901 = vcombine.low %v3841, %v3891
      %v3903 = vunpack.c.l.s4 1983009808
      %v3904 = vunpack.c.0.s8 %v3903
      %v3905 = vlaneseq
      %v3906 = vshrl.u32 %v3905, 7
      %v3907 = vsub.s32 %v3904, %v3906
      %v3908 = vrot.slane %v3901, %v3907
      %v3909 = vcombine.low %v3900, %v3908
      %v3910 = vcombine.high %v3900, %v3908
      %v3912 = vunpack.c.l.s4 1934713408
      %v3913 = vunpack.c.0.s8 %v3912
      %v3914 = vlaneseq
      %v3915 = vshrl.u32 %v3914, 7
      %v3916 = vsub.s32 %v3913, %v3915
      %v3917 = vrot.slane %v3909, %v3916
      %v3919 = vunpack.c.l.s4 1934713408
      %v3920 = vunpack.c.0.s8 %v3919
      %v3921 = vlaneseq
      %v3922 = vshrl.u32 %v3921, 7
      %v3923 = vsub.s32 %v3920, %v3922
      %v3924 = vrot.slane %v3910, %v3923
      %v3925 = vcombine.high %v3917, 0.0
      %v3926 = vcombine.high %v3924, 0.0
      %v3927 = vcombine.low %v3817, %v3867
      %v3929 = vunpack.c.l.s4 1983009808
      %v3930 = vunpack.c.0.s8 %v3929
      %v3931 = vlaneseq
      %v3932 = vshrl.u32 %v3931, 7
      %v3933 = vsub.s32 %v3930, %v3932
      %v3934 = vrot.slane %v3927, %v3933
      %v3935 = vcombine.low %v3842, %v3892
      %v3937 = vunpack.c.l.s4 1983009808
      %v3938 = vunpack.c.0.s8 %v3937
      %v3939 = vlaneseq
      %v3940 = vshrl.u32 %v3939, 7
      %v3941 = vsub.s32 %v3938, %v3940
      %v3942 = vrot.slane %v3935, %v3941
      %v3943 = vcombine.low %v3934, %v3942
      %v3944 = vcombine.high %v3934, %v3942
      %v3946 = vunpack.c.l.s4 1934713408
      %v3947 = vunpack.c.0.s8 %v3946
      %v3948 = vlaneseq
      %v3949 = vshrl.u32 %v3948, 7
      %v3950 = vsub.s32 %v3947, %v3949
      %v3951 = vrot.slane %v3943, %v3950
      %v3953 = vunpack.c.l.s4 1934713408
      %v3954 = vunpack.c.0.s8 %v3953
      %v3955 = vlaneseq
      %v3956 = vshrl.u32 %v3955, 7
      %v3957 = vsub.s32 %v3954, %v3956
      %v3958 = vrot.slane %v3944, %v3957
      %v3959 = vcombine.high %v3951, 0.0
      %v3960 = vcombine.high %v3958, 0.0
      %3963 = vrot.lane.b32.xlu0 %v3925, 32
      %v3964 = vpop.permute.xlu0 %3963
      %3965 = vrot.lane.b32.xlu0 %v3959, 32
      %v3966 = vpop.permute.xlu0 %3965
      %3971 = vrot.lane.b32.xlu0 %v3924, 64
      %v3972 = vpop.permute.xlu0 %3971
      %3973 = vrot.lane.b32.xlu0 %v3958, 64
      %v3974 = vpop.permute.xlu0 %3973
      %3979 = vrot.lane.b32.xlu0 %v3926, 96
      %v3980 = vpop.permute.xlu0 %3979
      %3981 = vrot.lane.b32.xlu0 %v3960, 96
      %v3982 = vpop.permute.xlu0 %3981
      %v3985 = vsel %vm598, %v3917, %v3964
      %v3986 = vsel %vm598, %v3951, %v3966
      %v3987 = vsel %vm1596, %v3985, %v3972
      %v3988 = vsel %vm1596, %v3986, %v3974
      %v3989 = vsel %vm1599, %v3987, %v3980
      %v3990 = vsel %vm1599, %v3988, %v3982
      %v3991 = vpack.c.bf16 %v3989, %v3989
      %v3992 = vpack.c.bf16 %v3990, %v3990
      %3993 = vst [vmem:[%s156] sm:$0x3] %v3991
      %3994 = vst [vmem:[%s156 + $0x2] sm:$0x3] %v3992
      %p3995 = scmp.lt.s32.totalorder %s14, 1
      %s3996 = scalar_select %p3995, %s14, 1
      %s3997 = smul.addr %s3996, 2
      %s3998 = smul.addr %s3997, 2
      %s3999 = scalar_lea.vmem %s1, %s3998
      %p4000 = scmp.lt.s32.totalorder %s14, 1
      %s4001 = scalar_select %p4000, %s14, 1
      %s4002 = smul.addr %s4001, 2
      %s4003 = smul.addr %s4002, 2
      %s4004 = scalar_lea.vmem %s2, %s4003
      // Predicated region
      $region25: #{vivit_forward.10} parent=23 // pred_check
        %p4005 = pneg %p58
      $region26: #{vivit_forward.10} parent=23 // pred_check_branch
        %4007 = sbr.rel (%p4005) target = $region28
      $region27: #{vivit_forward.10} parent=23 // pred_region
        _
      $region28: #{vivit_forward.10} parent=23 // pred_fallthru
        _
      // Predicated region
      $region29: #{vivit_forward.10} parent=23 // pred_check
        %p4008 = pneg %p84
      $region30: #{vivit_forward.10} parent=23 // pred_check_branch
        %4010 = sbr.rel (%p4008) target = $region32
      $region31: #{vivit_forward.10} parent=23 // pred_region
        _
      $region32: #{vivit_forward.10} parent=23 // pred_fallthru
        _
    $region24: #{vivit_forward.10} parent=5 // pred_fallthru
      _
    %p4011 = scmp.le.s32.totalorder 2, %s9
    // Predicated region
    $region33: #{vivit_forward.10} parent=5 // pred_check
      %p4012 = pneg %p4011
    $region34: #{vivit_forward.10} parent=5 // pred_check_branch
      %4014 = sbr.rel (%p4012) target = $region36
    $region35: #{vivit_forward.10} parent=5 // pred_region
      %s4015 = ssub.s32 %s9, 2
      // Predicated region
      $region37: #{vivit_forward.10} parent=35 // pred_check
        %p4016 = pneg %p64
      $region38: #{vivit_forward.10} parent=35 // pred_check_branch
        %4018 = sbr.rel (%p4016) target = $region40
      $region39: #{vivit_forward.10} parent=35 // pred_region
        %p4019 = scmp.lt.s32.totalorder %s15, 1
        %s4020 = scalar_select %p4019, %s15, 1
        %s4021 = smul.addr %s4020, 2
        %s4022 = smul.addr %s4021, 2
        %s4023 = scalar_lea.vmem %s1, %s4022
      $region40: #{vivit_forward.10} parent=35 // pred_fallthru
        _
      // Predicated region
      $region41: #{vivit_forward.10} parent=35 // pred_check
        %p4024 = pneg %p90
      $region42: #{vivit_forward.10} parent=35 // pred_check_branch
        %4026 = sbr.rel (%p4024) target = $region44
      $region43: #{vivit_forward.10} parent=35 // pred_region
        %p4027 = scmp.lt.s32.totalorder %s15, 1
        %s4028 = scalar_select %p4027, %s15, 1
        %s4029 = smul.addr %s4028, 2
        %s4030 = smul.addr %s4029, 2
        %s4031 = scalar_lea.vmem %s2, %s4030
      $region44: #{vivit_forward.10} parent=35 // pred_fallthru
        _
    $region36: #{vivit_forward.10} parent=5 // pred_fallthru
      _
  $region6: #{vivit_forward.10} parent=0 // loop_footer
    %s13 = sadd.s32 1, %s9
  $region7: #{vivit_forward.10} parent=0 // loop_footer_branch
    %8 = sbr.rel target = $region3
  $region8: #{vivit_forward.10} parent=0 // loop_exit
    _

</llo_original>
